<compile_context>
chip_gen: v5e
topology: v5e:2x2
jax: 0.10.0
libtpu: 0.0.40
codegen_flags: <defaults>
</compile_context>

<pallas_src>
import functools

import jax
import jax.numpy as jnp
from jax.experimental import pallas as pl
from jax.experimental.pallas import tpu as pltpu

EPS = 1e-5          # nn.LayerNorm default
NEG_INF = -1e30     # finite "minus infinity" for masked softmax (avoids NaNs)


def _round_up(x, m):
    return (x + m - 1) // m * m


# ----------------------------- shared math helpers -----------------------------
def _layernorm(x, g, b):
    mu = jnp.mean(x, axis=-1, keepdims=True)
    var = jnp.mean(jnp.square(x - mu), axis=-1, keepdims=True)
    return (x - mu) * jax.lax.rsqrt(var + EPS) * g + b


def _gelu_exact(x):
    # matches torch.nn.GELU() (erf formulation)
    return 0.5 * x * (1.0 + jax.lax.erf(x * 0.7071067811865476))


# ----------------------------- in-kernel building block -----------------------------
def _seq_layer(x, lp, heads, dim_head, kmask):
    """One PreNorm(MHSA)+PreNorm(MLP) layer on a single padded (L, D) sequence.

    Head work is batched over a leading `heads` axis (weights pre-split in the
    wrapper), padded key positions are masked additively before softmax, and
    the out-projection is a per-head batched matmul summed over heads — no
    per-head slicing, stacking or lane concatenation anywhere.
    """
    L, D = x.shape
    scale = dim_head ** -0.5
    bmm = (((2,), (1,)), ((0,), (0,)))     # batched matmul: contract lhs[-1] with rhs[1]

    # ---- PreNorm + multi-head self-attention + residual ----
    xn = _layernorm(x, lp["ln1_g"][...], lp["ln1_b"][...])
    xb = jnp.broadcast_to(xn[None, :, :], (heads, L, D))
    q = jax.lax.dot_general(xb, lp["w_q"][...], bmm, preferred_element_type=jnp.float32)
    k = jax.lax.dot_general(xb, lp["w_k"][...], bmm, preferred_element_type=jnp.float32)
    v = jax.lax.dot_general(xb, lp["w_v"][...], bmm, preferred_element_type=jnp.float32)

    dots = jax.lax.dot_general(q, k, (((2,), (2,)), ((0,), (0,))),
                               preferred_element_type=jnp.float32) * scale    # (H, L, L)
    dots = dots + kmask                                 # mask padded key positions
    dots = dots - jnp.max(dots, axis=-1, keepdims=True)
    e = jnp.exp(dots)
    denom = jnp.sum(e, axis=-1, keepdims=True)
    probs = e * pl.reciprocal(denom, approx=True)       # EUP reciprocal (free slot)

    o = jax.lax.dot_general(probs, v, bmm, preferred_element_type=jnp.float32)       # (H, L, dh)
    oh = jax.lax.dot_general(o, lp["w_o"][...], bmm, preferred_element_type=jnp.float32)  # (H, L, D)
    x = x + jnp.sum(oh, axis=0) + lp["b_out"][...]

    # ---- PreNorm + GELU MLP + residual ----
    xn2 = _layernorm(x, lp["ln2_g"][...], lp["ln2_b"][...])
    h = jnp.dot(xn2, lp["w_ff1"][...], preferred_element_type=jnp.float32) + lp["b_ff1"][...]
    h = _gelu_exact(h)
    ff = jnp.dot(h, lp["w_ff2"][...], preferred_element_type=jnp.float32) + lp["b_ff2"][...]
    return x + ff


def _fused_vivit_kernel(*refs, treedef, t, heads, dim_head, pool):
    """Whole ViViT forward for ONE batch element, entirely in VMEM."""
    xr_ref = refs[0]
    o_ref = refs[-1]
    p = jax.tree_util.tree_unflatten(treedef, refs[1:-1])

    # 1) patch embedding: the padded patch slab already has the cls slot (row 0)
    #    and tail pad rows zeroed; cls token + positional embedding + patch-embed
    #    bias arrive pre-folded in `base_sp`.
    xs = jnp.dot(xr_ref[0], p["patch_w"][...],
                 preferred_element_type=jnp.float32) + p["base_sp"][...]      # (Lp_s, D)
    # TODO(synk): nn.Dropout(emb_dropout=0.0)/dropout=0.0 are identity at inference; omitted.

    # 2) space transformer (+ final LayerNorm) on the padded sequence.
    mask_sp = p["mask_sp"][...]
    for lp in p["space_tf"]["layers"]:
        xs = _seq_layer(xs, lp, heads, dim_head, mask_sp)
    xs = _layernorm(xs, p["space_tf"]["norm_g"][...], p["space_tf"]["norm_b"][...])

    # 3) temporal sequence: temporal cls token + per-frame space cls outputs,
    #    padded to a sublane multiple (t == 1: the module forward unsqueezes a
    #    singleton frame axis).
    # TODO(synk): num_frames > 1 needs per-frame pos-embedding rows and a frame gather.
    lp_t = p["mask_tm"].shape[-1]
    D = xs.shape[-1]
    pieces = [p["temporal_token"][...], xs[0:1, :]]
    pad_rows = lp_t - 1 - t
    if pad_rows > 0:
        pieces.append(jnp.zeros((pad_rows, D), jnp.float32))
    xt = jnp.concatenate(pieces, axis=0)                                       # (Lp_t, D)

    mask_tm = p["mask_tm"][...]
    for lp in p["temporal_tf"]["layers"]:
        xt = _seq_layer(xt, lp, heads, dim_head, mask_tm)
    xt = _layernorm(xt, p["temporal_tf"]["norm_g"][...], p["temporal_tf"]["norm_b"][...])

    # 4) pool + classifier head (head weights pre-padded to a 128-lane slab).
    if pool == "mean":
        pooled = jnp.mean(xt[: t + 1, :], axis=0, keepdims=True)
    else:
        pooled = xt[0:1, :]
    pn = _layernorm(pooled, p["head_ln_g"][...], p["head_ln_b"][...])
    o_ref[0] = jnp.dot(pn, p["head_w"][...],
                       preferred_element_type=jnp.float32) + p["head_b"][...]


# --------------------------------- Pallas wrapper ---------------------------------
def vivit_forward_pallas(x, params, *, patch_size, heads, dim_head, pool="cls"):
    # x: (b, c, H, W) NCHW, matching the PyTorch module input; unsqueeze(1) -> t=1.
    b, c, H, W = x.shape
    t = 1
    ps = patch_size
    h, w = H // ps, W // ps
    n = h * w
    patch_dim = c * ps * ps
    dim = params["patch_w"].shape[1]
    inner = heads * dim_head
    num_classes = params["head_w"].shape[1]

    # sublane-aligned padded sequence lengths & lane-dense classifier width
    lp_s = _round_up(n + 1, 8)
    lp_t = _round_up(t + 1, 8)
    c_pad = _round_up(num_classes, 128)

    # ---- layout glue: all wrapper-side (free XLA plumbing, nothing in-kernel) ----
    # einops 'b t c (h p1) (w p2) -> b t (h w) (p1 p2 c)', then pad rows so the
    # kernel's patch-embed matmul lands patches directly in rows 1..n of the
    # padded space sequence (row 0 = cls slot, rows n+1.. = pad, all zero).
    xr = (x.reshape(b, t, c, h, ps, w, ps)
            .transpose(0, 1, 3, 5, 4, 6, 2)
            .reshape(b, t * n, patch_dim)).astype(jnp.float32)
    xr_pad = jnp.pad(xr, ((0, 0), (1, lp_s - n - 1), (0, 0)))

    pos = params["pos_embedding"][0, 0, : n + 1].astype(jnp.float32)     # (n+1, dim); t == 1
    base_sp = jnp.concatenate(
        [params["space_token"][0] + pos[0:1],                 # cls row (no patch bias)
         pos[1:] + params["patch_b"],                         # patch rows: pos + linear bias
         jnp.zeros((lp_s - n - 1, dim), jnp.float32)], axis=0)

    mask_sp = jnp.where(jnp.arange(lp_s) < n + 1, 0.0, NEG_INF).astype(jnp.float32)[None, :]
    mask_tm = jnp.where(jnp.arange(lp_t) < t + 1, 0.0, NEG_INF).astype(jnp.float32)[None, :]

    def prep_layer(lp):
        # split qkv columns per head so the kernel runs head-batched matmuls
        wq, wk, wv = (lp["w_qkv"][:, i * inner:(i + 1) * inner] for i in range(3))
        split_heads = lambda wm: wm.reshape(dim, heads, dim_head).transpose(1, 0, 2)
        return dict(
            ln1_g=lp["ln1_g"], ln1_b=lp["ln1_b"],
            w_q=split_heads(wq), w_k=split_heads(wk), w_v=split_heads(wv),
            w_o=lp["w_out"].reshape(heads, dim_head, dim), b_out=lp["b_out"],
            ln2_g=lp["ln2_g"], ln2_b=lp["ln2_b"],
            w_ff1=lp["w_ff1"], b_ff1=lp["b_ff1"],
            w_ff2=lp["w_ff2"], b_ff2=lp["b_ff2"])

    def prep_tf(tf):
        return dict(layers=[prep_layer(lp) for lp in tf["layers"]],
                    norm_g=tf["norm_g"], norm_b=tf["norm_b"])

    kparams = dict(
        patch_w=params["patch_w"], base_sp=base_sp,
        mask_sp=mask_sp, mask_tm=mask_tm,
        temporal_token=params["temporal_token"][0],
        space_tf=prep_tf(params["space_tf"]),
        temporal_tf=prep_tf(params["temporal_tf"]),
        head_ln_g=params["head_ln_g"], head_ln_b=params["head_ln_b"],
        head_w=jnp.pad(params["head_w"], ((0, 0), (0, c_pad - num_classes))),
        head_b=jnp.pad(params["head_b"], ((0, 0), (0, c_pad - num_classes))))
    leaves, treedef = jax.tree_util.tree_flatten(kparams)

    kernel = functools.partial(_fused_vivit_kernel, treedef=treedef, t=t,
                               heads=heads, dim_head=dim_head, pool=pool)

    # grid over the batch: each program handles one sample end-to-end (2nd TC on
    # v7x); weights use constant index_maps so they are fetched once and stay
    # resident in VMEM across grid steps.
    in_specs = [pl.BlockSpec((1, lp_s, patch_dim), lambda i: (i, 0, 0))]
    in_specs += [pl.BlockSpec(leaf.shape, lambda i, nd=leaf.ndim: (0,) * nd)
                 for leaf in leaves]
    out_specs = pl.BlockSpec((1, 1, c_pad), lambda i: (i, 0, 0))

    out_pad = pl.pallas_call(
        kernel,
        grid=(b,),
        in_specs=in_specs,
        out_specs=out_specs,
        out_shape=jax.ShapeDtypeStruct((b, 1, c_pad), jnp.float32),
        compiler_params=pltpu.CompilerParams(dimension_semantics=("parallel",)),
    )(xr_pad, *leaves)
    return out_pad[:, 0, :num_classes]


# ------------------------------ pure-JAX reference ------------------------------
def _ref_layer(x, lp, heads, dim_head):
    B, N, _ = x.shape
    inner = heads * dim_head
    xn = _layernorm(x, lp["ln1_g"], lp["ln1_b"])
    qkv = xn @ lp["w_qkv"]
    q, k, v = jnp.split(qkv, 3, axis=-1)
    split = lambda a: a.reshape(B, N, heads, dim_head).transpose(0, 2, 1, 3)
    q, k, v = split(q), split(k), split(v)
    dots = jnp.einsum("bhid,bhjd->bhij", q, k) * (dim_head ** -0.5)
    attn = jax.nn.softmax(dots, axis=-1)
    out = jnp.einsum("bhij,bhjd->bhid", attn, v).transpose(0, 2, 1, 3).reshape(B, N, inner)
    x = x + out @ lp["w_out"] + lp["b_out"]
    xn2 = _layernorm(x, lp["ln2_g"], lp["ln2_b"])
    hh = _gelu_exact(xn2 @ lp["w_ff1"] + lp["b_ff1"])
    return x + hh @ lp["w_ff2"] + lp["b_ff2"]


def vivit_forward_reference(x, params, *, patch_size, heads, dim_head, pool="cls"):
    b, c, H, W = x.shape
    t = 1
    ps = patch_size
    h, w = H // ps, W // ps
    n = h * w
    dim = params["patch_w"].shape[1]

    xr = (x.reshape(b, t, c, h, ps, w, ps).transpose(0, 1, 3, 5, 4, 6, 2)
            .reshape(b, t, n, ps * ps * c))
    emb = xr @ params["patch_w"] + params["patch_b"]                    # (b, t, n, dim)
    cls_space = jnp.broadcast_to(params["space_token"][:, None], (b, t, 1, dim))
    xc = jnp.concatenate([cls_space, emb], axis=2) + params["pos_embedding"][:, :, : n + 1]
    xs = xc.reshape(b * t, n + 1, dim)
    for lp in params["space_tf"]["layers"]:
        xs = _ref_layer(xs, lp, heads, dim_head)
    xs = _layernorm(xs, params["space_tf"]["norm_g"], params["space_tf"]["norm_b"])
    xsp = xs[:, 0].reshape(b, t, dim)
    cls_temp = jnp.broadcast_to(params["temporal_token"], (b, 1, dim))
    xt = jnp.concatenate([cls_temp, xsp], axis=1)
    for lp in params["temporal_tf"]["layers"]:
        xt = _ref_layer(xt, lp, heads, dim_head)
    xt = _layernorm(xt, params["temporal_tf"]["norm_g"], params["temporal_tf"]["norm_b"])
    pooled = xt.mean(axis=1) if pool == "mean" else xt[:, 0]
    return (_layernorm(pooled, params["head_ln_g"], params["head_ln_b"])
            @ params["head_w"] + params["head_b"])


# --------------------------- deterministic parameter init ---------------------------
def init_params(key, *, image_size, patch_size, num_classes, num_frames,
                dim, depth, heads, dim_head, in_channels, scale_dim):
    num_patches = (image_size // patch_size) ** 2
    patch_dim = in_channels * patch_size ** 2
    inner = heads * dim_head
    mlp_dim = dim * scale_dim
    keys = iter(jax.random.split(key, 256))

    def nrm(shape, std=0.02):
        return (std * jax.random.normal(next(keys), shape)).astype(jnp.float32)

    ones = lambda s: jnp.ones(s, jnp.float32)
    zeros = lambda s: jnp.zeros(s, jnp.float32)

    def layer():
        return dict(
            ln1_g=ones((1, dim)), ln1_b=zeros((1, dim)),
            w_qkv=nrm((dim, 3 * inner)),                    # to_qkv (no bias)
            w_out=nrm((inner, dim)), b_out=zeros((1, dim)),
            ln2_g=ones((1, dim)), ln2_b=zeros((1, dim)),
            w_ff1=nrm((dim, mlp_dim)), b_ff1=zeros((1, mlp_dim)),
            w_ff2=nrm((mlp_dim, dim)), b_ff2=zeros((1, dim)),
        )

    def transformer():
        return dict(layers=[layer() for _ in range(depth)],
                    norm_g=ones((1, dim)), norm_b=zeros((1, dim)))

    return dict(
        patch_w=nrm((patch_dim, dim)), patch_b=zeros((1, dim)),
        pos_embedding=nrm((1, num_frames, num_patches + 1, dim), std=1.0),
        space_token=nrm((1, 1, dim), std=1.0),
        temporal_token=nrm((1, 1, dim), std=1.0),
        space_tf=transformer(),
        temporal_tf=transformer(),
        head_ln_g=ones((1, dim)), head_ln_b=zeros((1, dim)),
        head_w=nrm((dim, num_classes)), head_b=zeros((1, num_classes)),
    )


# ------------------------------------- main -------------------------------------
if __name__ == "__main__":
    cfg = dict(image_size=16, patch_size=4, num_classes=10, num_frames=1,
               dim=32, depth=2, heads=2, dim_head=16, in_channels=4, scale_dim=4)
    key = jax.random.PRNGKey(0)
    pkey, xkey = jax.random.split(key)
    params = init_params(pkey, **cfg)

    # Input (b, c, H, W); forward's unsqueeze(1) makes it (b, t=1, c, H, W).
    x = jax.random.normal(
        xkey, (2, cfg["in_channels"], cfg["image_size"], cfg["image_size"]), jnp.float32
    )

    fwd = jax.jit(functools.partial(
        vivit_forward_pallas, patch_size=cfg["patch_size"],
        heads=cfg["heads"], dim_head=cfg["dim_head"], pool="cls"))
    out = jax.block_until_ready(fwd(x, params))

    ref = vivit_forward_reference(x, params, patch_size=cfg["patch_size"],
                                  heads=cfg["heads"], dim_head=cfg["dim_head"], pool="cls")

    assert out.shape == (2, cfg["num_classes"]), out.shape
    max_err = float(jnp.max(jnp.abs(out - ref)))
    assert jnp.allclose(out, ref, atol=2e-3, rtol=2e-3), max_err
    print("KERNEL_OK")
</pallas_src>

<mosaic_0001>
module attributes {stable_mosaic.version = 11 : i64} {
  func.func @_fused_vivit_kernel(%arg0: i32, %arg1: memref<1x24x64xf32, #tpu.memory_space<vmem>>, %arg2: memref<24x32xf32, #tpu.memory_space<vmem>>, %arg3: memref<1x128xf32, #tpu.memory_space<vmem>>, %arg4: memref<1x32xf32, #tpu.memory_space<vmem>>, %arg5: memref<1x32xf32, #tpu.memory_space<vmem>>, %arg6: memref<32x128xf32, #tpu.memory_space<vmem>>, %arg7: memref<1x24xf32, #tpu.memory_space<vmem>>, %arg8: memref<1x8xf32, #tpu.memory_space<vmem>>, %arg9: memref<64x32xf32, #tpu.memory_space<vmem>>, %arg10: memref<1x128xf32, #tpu.memory_space<vmem>>, %arg11: memref<1x32xf32, #tpu.memory_space<vmem>>, %arg12: memref<1x32xf32, #tpu.memory_space<vmem>>, %arg13: memref<1x32xf32, #tpu.memory_space<vmem>>, %arg14: memref<1x32xf32, #tpu.memory_space<vmem>>, %arg15: memref<1x32xf32, #tpu.memory_space<vmem>>, %arg16: memref<1x32xf32, #tpu.memory_space<vmem>>, %arg17: memref<32x128xf32, #tpu.memory_space<vmem>>, %arg18: memref<128x32xf32, #tpu.memory_space<vmem>>, %arg19: memref<2x32x16xf32, #tpu.memory_space<vmem>>, %arg20: memref<2x16x32xf32, #tpu.memory_space<vmem>>, %arg21: memref<2x32x16xf32, #tpu.memory_space<vmem>>, %arg22: memref<2x32x16xf32, #tpu.memory_space<vmem>>, %arg23: memref<1x128xf32, #tpu.memory_space<vmem>>, %arg24: memref<1x32xf32, #tpu.memory_space<vmem>>, %arg25: memref<1x32xf32, #tpu.memory_space<vmem>>, %arg26: memref<1x32xf32, #tpu.memory_space<vmem>>, %arg27: memref<1x32xf32, #tpu.memory_space<vmem>>, %arg28: memref<1x32xf32, #tpu.memory_space<vmem>>, %arg29: memref<1x32xf32, #tpu.memory_space<vmem>>, %arg30: memref<32x128xf32, #tpu.memory_space<vmem>>, %arg31: memref<128x32xf32, #tpu.memory_space<vmem>>, %arg32: memref<2x32x16xf32, #tpu.memory_space<vmem>>, %arg33: memref<2x16x32xf32, #tpu.memory_space<vmem>>, %arg34: memref<2x32x16xf32, #tpu.memory_space<vmem>>, %arg35: memref<2x32x16xf32, #tpu.memory_space<vmem>>, %arg36: memref<1x32xf32, #tpu.memory_space<vmem>>, %arg37: memref<1x32xf32, #tpu.memory_space<vmem>>, %arg38: memref<1x128xf32, #tpu.memory_space<vmem>>, %arg39: memref<1x32xf32, #tpu.memory_space<vmem>>, %arg40: memref<1x32xf32, #tpu.memory_space<vmem>>, %arg41: memref<1x32xf32, #tpu.memory_space<vmem>>, %arg42: memref<1x32xf32, #tpu.memory_space<vmem>>, %arg43: memref<1x32xf32, #tpu.memory_space<vmem>>, %arg44: memref<1x32xf32, #tpu.memory_space<vmem>>, %arg45: memref<32x128xf32, #tpu.memory_space<vmem>>, %arg46: memref<128x32xf32, #tpu.memory_space<vmem>>, %arg47: memref<2x32x16xf32, #tpu.memory_space<vmem>>, %arg48: memref<2x16x32xf32, #tpu.memory_space<vmem>>, %arg49: memref<2x32x16xf32, #tpu.memory_space<vmem>>, %arg50: memref<2x32x16xf32, #tpu.memory_space<vmem>>, %arg51: memref<1x128xf32, #tpu.memory_space<vmem>>, %arg52: memref<1x32xf32, #tpu.memory_space<vmem>>, %arg53: memref<1x32xf32, #tpu.memory_space<vmem>>, %arg54: memref<1x32xf32, #tpu.memory_space<vmem>>, %arg55: memref<1x32xf32, #tpu.memory_space<vmem>>, %arg56: memref<1x32xf32, #tpu.memory_space<vmem>>, %arg57: memref<1x32xf32, #tpu.memory_space<vmem>>, %arg58: memref<32x128xf32, #tpu.memory_space<vmem>>, %arg59: memref<128x32xf32, #tpu.memory_space<vmem>>, %arg60: memref<2x32x16xf32, #tpu.memory_space<vmem>>, %arg61: memref<2x16x32xf32, #tpu.memory_space<vmem>>, %arg62: memref<2x32x16xf32, #tpu.memory_space<vmem>>, %arg63: memref<2x32x16xf32, #tpu.memory_space<vmem>>, %arg64: memref<1x32xf32, #tpu.memory_space<vmem>>, %arg65: memref<1x32xf32, #tpu.memory_space<vmem>>, %arg66: memref<1x32xf32, #tpu.memory_space<vmem>>, %arg67: memref<1x1x128xf32, #tpu.memory_space<vmem>>) attributes {dimension_semantics = [#tpu.dimension_semantics<parallel>], iteration_bounds = array<i64: 2>, scalar_prefetch = 0 : i64, scratch_operands = 0 : i64, tpu.core_type = #tpu.core_type<tc>, window_params = [{transform_indices = @transform_0, window_bounds = array<i64: 1, 24, 64>}, {pipeline_mode = #tpu.pipeline_mode<synchronous>, transform_indices = @transform_1, window_bounds = array<i64: 24, 32>}, {pipeline_mode = #tpu.pipeline_mode<synchronous>, transform_indices = @transform_2, window_bounds = array<i64: 1, 128>}, {pipeline_mode = #tpu.pipeline_mode<synchronous>, transform_indices = @transform_3, window_bounds = array<i64: 1, 32>}, {pipeline_mode = #tpu.pipeline_mode<synchronous>, transform_indices = @transform_4, window_bounds = array<i64: 1, 32>}, {pipeline_mode = #tpu.pipeline_mode<synchronous>, transform_indices = @transform_5, window_bounds = array<i64: 32, 128>}, {pipeline_mode = #tpu.pipeline_mode<synchronous>, transform_indices = @transform_6, window_bounds = array<i64: 1, 24>}, {pipeline_mode = #tpu.pipeline_mode<synchronous>, transform_indices = @transform_7, window_bounds = array<i64: 1, 8>}, {pipeline_mode = #tpu.pipeline_mode<synchronous>, transform_indices = @transform_8, window_bounds = array<i64: 64, 32>}, {pipeline_mode = #tpu.pipeline_mode<synchronous>, transform_indices = @transform_9, window_bounds = array<i64: 1, 128>}, {pipeline_mode = #tpu.pipeline_mode<synchronous>, transform_indices = @transform_10, window_bounds = array<i64: 1, 32>}, {pipeline_mode = #tpu.pipeline_mode<synchronous>, transform_indices = @transform_11, window_bounds = array<i64: 1, 32>}, {pipeline_mode = #tpu.pipeline_mode<synchronous>, transform_indices = @transform_12, window_bounds = array<i64: 1, 32>}, {pipeline_mode = #tpu.pipeline_mode<synchronous>, transform_indices = @transform_13, window_bounds = array<i64: 1, 32>}, {pipeline_mode = #tpu.pipeline_mode<synchronous>, transform_indices = @transform_14, window_bounds = array<i64: 1, 32>}, {pipeline_mode = #tpu.pipeline_mode<synchronous>, transform_indices = @transform_15, window_bounds = array<i64: 1, 32>}, {pipeline_mode = #tpu.pipeline_mode<synchronous>, transform_indices = @transform_16, window_bounds = array<i64: 32, 128>}, {pipeline_mode = #tpu.pipeline_mode<synchronous>, transform_indices = @transform_17, window_bounds = array<i64: 128, 32>}, {pipeline_mode = #tpu.pipeline_mode<synchronous>, transform_indices = @transform_18, window_bounds = array<i64: 2, 32, 16>}, {pipeline_mode = #tpu.pipeline_mode<synchronous>, transform_indices = @transform_19, window_bounds = array<i64: 2, 16, 32>}, {pipeline_mode = #tpu.pipeline_mode<synchronous>, transform_indices = @transform_20, window_bounds = array<i64: 2, 32, 16>}, {pipeline_mode = #tpu.pipeline_mode<synchronous>, transform_indices = @transform_21, window_bounds = array<i64: 2, 32, 16>}, {pipeline_mode = #tpu.pipeline_mode<synchronous>, transform_indices = @transform_22, window_bounds = array<i64: 1, 128>}, {pipeline_mode = #tpu.pipeline_mode<synchronous>, transform_indices = @transform_23, window_bounds = array<i64: 1, 32>}, {pipeline_mode = #tpu.pipeline_mode<synchronous>, transform_indices = @transform_24, window_bounds = array<i64: 1, 32>}, {pipeline_mode = #tpu.pipeline_mode<synchronous>, transform_indices = @transform_25, window_bounds = array<i64: 1, 32>}, {pipeline_mode = #tpu.pipeline_mode<synchronous>, transform_indices = @transform_26, window_bounds = array<i64: 1, 32>}, {pipeline_mode = #tpu.pipeline_mode<synchronous>, transform_indices = @transform_27, window_bounds = array<i64: 1, 32>}, {pipeline_mode = #tpu.pipeline_mode<synchronous>, transform_indices = @transform_28, window_bounds = array<i64: 1, 32>}, {pipeline_mode = #tpu.pipeline_mode<synchronous>, transform_indices = @transform_29, window_bounds = array<i64: 32, 128>}, {pipeline_mode = #tpu.pipeline_mode<synchronous>, transform_indices = @transform_30, window_bounds = array<i64: 128, 32>}, {pipeline_mode = #tpu.pipeline_mode<synchronous>, transform_indices = @transform_31, window_bounds = array<i64: 2, 32, 16>}, {pipeline_mode = #tpu.pipeline_mode<synchronous>, transform_indices = @transform_32, window_bounds = array<i64: 2, 16, 32>}, {pipeline_mode = #tpu.pipeline_mode<synchronous>, transform_indices = @transform_33, window_bounds = array<i64: 2, 32, 16>}, {pipeline_mode = #tpu.pipeline_mode<synchronous>, transform_indices = @transform_34, window_bounds = array<i64: 2, 32, 16>}, {pipeline_mode = #tpu.pipeline_mode<synchronous>, transform_indices = @transform_35, window_bounds = array<i64: 1, 32>}, {pipeline_mode = #tpu.pipeline_mode<synchronous>, transform_indices = @transform_36, window_bounds = array<i64: 1, 32>}, {pipeline_mode = #tpu.pipeline_mode<synchronous>, transform_indices = @transform_37, window_bounds = array<i64: 1, 128>}, {pipeline_mode = #tpu.pipeline_mode<synchronous>, transform_indices = @transform_38, window_bounds = array<i64: 1, 32>}, {pipeline_mode = #tpu.pipeline_mode<synchronous>, transform_indices = @transform_39, window_bounds = array<i64: 1, 32>}, {pipeline_mode = #tpu.pipeline_mode<synchronous>, transform_indices = @transform_40, window_bounds = array<i64: 1, 32>}, {pipeline_mode = #tpu.pipeline_mode<synchronous>, transform_indices = @transform_41, window_bounds = array<i64: 1, 32>}, {pipeline_mode = #tpu.pipeline_mode<synchronous>, transform_indices = @transform_42, window_bounds = array<i64: 1, 32>}, {pipeline_mode = #tpu.pipeline_mode<synchronous>, transform_indices = @transform_43, window_bounds = array<i64: 1, 32>}, {pipeline_mode = #tpu.pipeline_mode<synchronous>, transform_indices = @transform_44, window_bounds = array<i64: 32, 128>}, {pipeline_mode = #tpu.pipeline_mode<synchronous>, transform_indices = @transform_45, window_bounds = array<i64: 128, 32>}, {pipeline_mode = #tpu.pipeline_mode<synchronous>, transform_indices = @transform_46, window_bounds = array<i64: 2, 32, 16>}, {pipeline_mode = #tpu.pipeline_mode<synchronous>, transform_indices = @transform_47, window_bounds = array<i64: 2, 16, 32>}, {pipeline_mode = #tpu.pipeline_mode<synchronous>, transform_indices = @transform_48, window_bounds = array<i64: 2, 32, 16>}, {pipeline_mode = #tpu.pipeline_mode<synchronous>, transform_indices = @transform_49, window_bounds = array<i64: 2, 32, 16>}, {pipeline_mode = #tpu.pipeline_mode<synchronous>, transform_indices = @transform_50, window_bounds = array<i64: 1, 128>}, {pipeline_mode = #tpu.pipeline_mode<synchronous>, transform_indices = @transform_51, window_bounds = array<i64: 1, 32>}, {pipeline_mode = #tpu.pipeline_mode<synchronous>, transform_indices = @transform_52, window_bounds = array<i64: 1, 32>}, {pipeline_mode = #tpu.pipeline_mode<synchronous>, transform_indices = @transform_53, window_bounds = array<i64: 1, 32>}, {pipeline_mode = #tpu.pipeline_mode<synchronous>, transform_indices = @transform_54, window_bounds = array<i64: 1, 32>}, {pipeline_mode = #tpu.pipeline_mode<synchronous>, transform_indices = @transform_55, window_bounds = array<i64: 1, 32>}, {pipeline_mode = #tpu.pipeline_mode<synchronous>, transform_indices = @transform_56, window_bounds = array<i64: 1, 32>}, {pipeline_mode = #tpu.pipeline_mode<synchronous>, transform_indices = @transform_57, window_bounds = array<i64: 32, 128>}, {pipeline_mode = #tpu.pipeline_mode<synchronous>, transform_indices = @transform_58, window_bounds = array<i64: 128, 32>}, {pipeline_mode = #tpu.pipeline_mode<synchronous>, transform_indices = @transform_59, window_bounds = array<i64: 2, 32, 16>}, {pipeline_mode = #tpu.pipeline_mode<synchronous>, transform_indices = @transform_60, window_bounds = array<i64: 2, 16, 32>}, {pipeline_mode = #tpu.pipeline_mode<synchronous>, transform_indices = @transform_61, window_bounds = array<i64: 2, 32, 16>}, {pipeline_mode = #tpu.pipeline_mode<synchronous>, transform_indices = @transform_62, window_bounds = array<i64: 2, 32, 16>}, {pipeline_mode = #tpu.pipeline_mode<synchronous>, transform_indices = @transform_63, window_bounds = array<i64: 1, 32>}, {pipeline_mode = #tpu.pipeline_mode<synchronous>, transform_indices = @transform_64, window_bounds = array<i64: 1, 32>}, {pipeline_mode = #tpu.pipeline_mode<synchronous>, transform_indices = @transform_65, window_bounds = array<i64: 1, 32>}, {transform_indices = @transform_66, window_bounds = array<i64: 1, 1, 128>}]} {
    %c0 = arith.constant 0 : index
    %c0_0 = arith.constant 0 : index
    %c0_1 = arith.constant 0 : index
    %0 = vector.load %arg1[%c0, %c0_0, %c0_1] : memref<1x24x64xf32, #tpu.memory_space<vmem>>, vector<1x24x64xf32>
    %1 = vector.shape_cast %0 : vector<1x24x64xf32> to vector<24x64xf32>
    %c0_2 = arith.constant 0 : index
    %c0_3 = arith.constant 0 : index
    %2 = vector.load %arg9[%c0_2, %c0_3] : memref<64x32xf32, #tpu.memory_space<vmem>>, vector<64x32xf32>
    %cst = arith.constant dense<0.000000e+00> : vector<24x32xf32>
    %3 = tpu.matmul %1, %2, %cst {dimension_numbers = #tpu.dot_dimension_numbers<[1], [0], [0], [1], [0, 0, 1, 1], [], []>} : vector<24x64xf32>, vector<64x32xf32>, vector<24x32xf32> -> vector<24x32xf32>
    %c0_4 = arith.constant 0 : index
    %c0_5 = arith.constant 0 : index
    %4 = vector.load %arg2[%c0_4, %c0_5] : memref<24x32xf32, #tpu.memory_space<vmem>>, vector<24x32xf32>
    %5 = arith.addf %3, %4 : vector<24x32xf32>
    %c0_6 = arith.constant 0 : index
    %c0_7 = arith.constant 0 : index
    %6 = vector.load %arg7[%c0_6, %c0_7] : memref<1x24xf32, #tpu.memory_space<vmem>>, vector<1x24xf32>
    %c0_8 = arith.constant 0 : index
    %c0_9 = arith.constant 0 : index
    %7 = vector.load %arg14[%c0_8, %c0_9] : memref<1x32xf32, #tpu.memory_space<vmem>>, vector<1x32xf32>
    %c0_10 = arith.constant 0 : index
    %c0_11 = arith.constant 0 : index
    %8 = vector.load %arg13[%c0_10, %c0_11] : memref<1x32xf32, #tpu.memory_space<vmem>>, vector<1x32xf32>
    %cst_12 = arith.constant dense<0.000000e+00> : vector<24xf32>
    %9 = vector.multi_reduction <add>, %5, %cst_12 [1] : vector<24x32xf32> to vector<24xf32>
    %10 = vector.shape_cast %9 : vector<24xf32> to vector<24x1xf32>
    %cst_13 = arith.constant 3.200000e+01 : f32
    %11 = vector.broadcast %cst_13 : f32 to vector<24x1xf32>
    %12 = arith.divf %10, %11 : vector<24x1xf32>
    %13 = vector.broadcast %12 : vector<24x1xf32> to vector<24x32xf32>
    %14 = arith.subf %5, %13 : vector<24x32xf32>
    %15 = arith.mulf %14, %14 : vector<24x32xf32>
    %cst_14 = arith.constant dense<0.000000e+00> : vector<24xf32>
    %16 = vector.multi_reduction <add>, %15, %cst_14 [1] : vector<24x32xf32> to vector<24xf32>
    %17 = vector.shape_cast %16 : vector<24xf32> to vector<24x1xf32>
    %cst_15 = arith.constant 3.200000e+01 : f32
    %18 = vector.broadcast %cst_15 : f32 to vector<24x1xf32>
    %19 = arith.divf %17, %18 : vector<24x1xf32>
    %20 = vector.broadcast %12 : vector<24x1xf32> to vector<24x32xf32>
    %21 = arith.subf %5, %20 : vector<24x32xf32>
    %cst_16 = arith.constant 9.99999974E-6 : f32
    %22 = vector.broadcast %cst_16 : f32 to vector<24x1xf32>
    %23 = arith.addf %19, %22 : vector<24x1xf32>
    %24 = math.rsqrt %23 : vector<24x1xf32>
    %25 = vector.broadcast %24 : vector<24x1xf32> to vector<24x32xf32>
    %26 = arith.mulf %21, %25 : vector<24x32xf32>
    %27 = vector.broadcast %7 : vector<1x32xf32> to vector<24x32xf32>
    %28 = arith.mulf %26, %27 : vector<24x32xf32>
    %29 = vector.broadcast %8 : vector<1x32xf32> to vector<24x32xf32>
    %30 = arith.addf %28, %29 : vector<24x32xf32>
    %31 = vector.shape_cast %30 : vector<24x32xf32> to vector<1x24x32xf32>
    %32 = vector.shape_cast %31 : vector<1x24x32xf32> to vector<1x24x32xf32>
    %33 = vector.broadcast %32 : vector<1x24x32xf32> to vector<2x24x32xf32>
    %c0_17 = arith.constant 0 : index
    %c0_18 = arith.constant 0 : index
    %c0_19 = arith.constant 0 : index
    %34 = vector.load %arg21[%c0_17, %c0_18, %c0_19] : memref<2x32x16xf32, #tpu.memory_space<vmem>>, vector<2x32x16xf32>
    %cst_20 = arith.constant dense<0.000000e+00> : vector<2x24x16xf32>
    %35 = tpu.matmul %33, %34, %cst_20 {dimension_numbers = #tpu.dot_dimension_numbers<[2], [1], [1], [2], [0, 0, 0, 1, 1, 2], [0], [0]>} : vector<2x24x32xf32>, vector<2x32x16xf32>, vector<2x24x16xf32> -> vector<2x24x16xf32>
    %c0_21 = arith.constant 0 : index
    %c0_22 = arith.constant 0 : index
    %c0_23 = arith.constant 0 : index
    %36 = vector.load %arg19[%c0_21, %c0_22, %c0_23] : memref<2x32x16xf32, #tpu.memory_space<vmem>>, vector<2x32x16xf32>
    %cst_24 = arith.constant dense<0.000000e+00> : vector<2x24x16xf32>
    %37 = tpu.matmul %33, %36, %cst_24 {dimension_numbers = #tpu.dot_dimension_numbers<[2], [1], [1], [2], [0, 0, 0, 1, 1, 2], [0], [0]>} : vector<2x24x32xf32>, vector<2x32x16xf32>, vector<2x24x16xf32> -> vector<2x24x16xf32>
    %c0_25 = arith.constant 0 : index
    %c0_26 = arith.constant 0 : index
    %c0_27 = arith.constant 0 : index
    %38 = vector.load %arg22[%c0_25, %c0_26, %c0_27] : memref<2x32x16xf32, #tpu.memory_space<vmem>>, vector<2x32x16xf32>
    %cst_28 = arith.constant dense<0.000000e+00> : vector<2x24x16xf32>
    %39 = tpu.matmul %33, %38, %cst_28 {dimension_numbers = #tpu.dot_dimension_numbers<[2], [1], [1], [2], [0, 0, 0, 1, 1, 2], [0], [0]>} : vector<2x24x32xf32>, vector<2x32x16xf32>, vector<2x24x16xf32> -> vector<2x24x16xf32>
    %cst_29 = arith.constant dense<0.000000e+00> : vector<2x24x24xf32>
    %40 = tpu.matmul %35, %37, %cst_29 {dimension_numbers = #tpu.dot_dimension_numbers<[2], [2], [1], [1], [0, 0, 0, 1, 1, 1], [0], [0]>} : vector<2x24x16xf32>, vector<2x24x16xf32>, vector<2x24x24xf32> -> vector<2x24x24xf32>
    %cst_30 = arith.constant 2.500000e-01 : f32
    %41 = vector.broadcast %cst_30 : f32 to vector<2x24x24xf32>
    %42 = arith.mulf %40, %41 : vector<2x24x24xf32>
    %43 = vector.shape_cast %6 : vector<1x24xf32> to vector<1x1x24xf32>
    %44 = vector.broadcast %43 : vector<1x1x24xf32> to vector<2x24x24xf32>
    %45 = arith.addf %42, %44 : vector<2x24x24xf32>
    %cst_31 = arith.constant dense<0xFF800000> : vector<2x24xf32>
    %46 = vector.multi_reduction <maximumf>, %45, %cst_31 [2] : vector<2x24x24xf32> to vector<2x24xf32>
    %47 = vector.shape_cast %46 : vector<2x24xf32> to vector<2x24x1xf32>
    %48 = vector.broadcast %47 : vector<2x24x1xf32> to vector<2x24x24xf32>
    %49 = arith.subf %45, %48 : vector<2x24x24xf32>
    %50 = math.exp %49 : vector<2x24x24xf32>
    %cst_32 = arith.constant dense<0.000000e+00> : vector<2x24xf32>
    %51 = vector.multi_reduction <add>, %50, %cst_32 [2] : vector<2x24x24xf32> to vector<2x24xf32>
    %52 = vector.shape_cast %51 : vector<2x24xf32> to vector<2x24x1xf32>
    %53 = tpu.reciprocal %52 {approx = true} : vector<2x24x1xf32> -> vector<2x24x1xf32>
    %54 = vector.broadcast %53 : vector<2x24x1xf32> to vector<2x24x24xf32>
    %55 = arith.mulf %50, %54 : vector<2x24x24xf32>
    %cst_33 = arith.constant dense<0.000000e+00> : vector<2x24x16xf32>
    %56 = tpu.matmul %55, %39, %cst_33 {dimension_numbers = #tpu.dot_dimension_numbers<[2], [1], [1], [2], [0, 0, 0, 1, 1, 2], [0], [0]>} : vector<2x24x24xf32>, vector<2x24x16xf32>, vector<2x24x16xf32> -> vector<2x24x16xf32>
    %c0_34 = arith.constant 0 : index
    %c0_35 = arith.constant 0 : index
    %c0_36 = arith.constant 0 : index
    %57 = vector.load %arg20[%c0_34, %c0_35, %c0_36] : memref<2x16x32xf32, #tpu.memory_space<vmem>>, vector<2x16x32xf32>
    %cst_37 = arith.constant dense<0.000000e+00> : vector<2x24x32xf32>
    %58 = tpu.matmul %56, %57, %cst_37 {dimension_numbers = #tpu.dot_dimension_numbers<[2], [1], [1], [2], [0, 0, 0, 1, 1, 2], [0], [0]>} : vector<2x24x16xf32>, vector<2x16x32xf32>, vector<2x24x32xf32> -> vector<2x24x32xf32>
    %cst_38 = arith.constant dense<0.000000e+00> : vector<24x32xf32>
    %59 = vector.multi_reduction <add>, %58, %cst_38 [0] : vector<2x24x32xf32> to vector<24x32xf32>
    %60 = arith.addf %5, %59 : vector<24x32xf32>
    %c0_39 = arith.constant 0 : index
    %c0_40 = arith.constant 0 : index
    %61 = vector.load %arg12[%c0_39, %c0_40] : memref<1x32xf32, #tpu.memory_space<vmem>>, vector<1x32xf32>
    %62 = vector.broadcast %61 : vector<1x32xf32> to vector<24x32xf32>
    %63 = arith.addf %60, %62 : vector<24x32xf32>
    %c0_41 = arith.constant 0 : index
    %c0_42 = arith.constant 0 : index
    %64 = vector.load %arg16[%c0_41, %c0_42] : memref<1x32xf32, #tpu.memory_space<vmem>>, vector<1x32xf32>
    %c0_43 = arith.constant 0 : index
    %c0_44 = arith.constant 0 : index
    %65 = vector.load %arg15[%c0_43, %c0_44] : memref<1x32xf32, #tpu.memory_space<vmem>>, vector<1x32xf32>
    %cst_45 = arith.constant dense<0.000000e+00> : vector<24xf32>
    %66 = vector.multi_reduction <add>, %63, %cst_45 [1] : vector<24x32xf32> to vector<24xf32>
    %67 = vector.shape_cast %66 : vector<24xf32> to vector<24x1xf32>
    %cst_46 = arith.constant 3.200000e+01 : f32
    %68 = vector.broadcast %cst_46 : f32 to vector<24x1xf32>
    %69 = arith.divf %67, %68 : vector<24x1xf32>
    %70 = vector.broadcast %69 : vector<24x1xf32> to vector<24x32xf32>
    %71 = arith.subf %63, %70 : vector<24x32xf32>
    %72 = arith.mulf %71, %71 : vector<24x32xf32>
    %cst_47 = arith.constant dense<0.000000e+00> : vector<24xf32>
    %73 = vector.multi_reduction <add>, %72, %cst_47 [1] : vector<24x32xf32> to vector<24xf32>
    %74 = vector.shape_cast %73 : vector<24xf32> to vector<24x1xf32>
    %cst_48 = arith.constant 3.200000e+01 : f32
    %75 = vector.broadcast %cst_48 : f32 to vector<24x1xf32>
    %76 = arith.divf %74, %75 : vector<24x1xf32>
    %77 = vector.broadcast %69 : vector<24x1xf32> to vector<24x32xf32>
    %78 = arith.subf %63, %77 : vector<24x32xf32>
    %cst_49 = arith.constant 9.99999974E-6 : f32
    %79 = vector.broadcast %cst_49 : f32 to vector<24x1xf32>
    %80 = arith.addf %76, %79 : vector<24x1xf32>
    %81 = math.rsqrt %80 : vector<24x1xf32>
    %82 = vector.broadcast %81 : vector<24x1xf32> to vector<24x32xf32>
    %83 = arith.mulf %78, %82 : vector<24x32xf32>
    %84 = vector.broadcast %64 : vector<1x32xf32> to vector<24x32xf32>
    %85 = arith.mulf %83, %84 : vector<24x32xf32>
    %86 = vector.broadcast %65 : vector<1x32xf32> to vector<24x32xf32>
    %87 = arith.addf %85, %86 : vector<24x32xf32>
    %c0_50 = arith.constant 0 : index
    %c0_51 = arith.constant 0 : index
    %88 = vector.load %arg17[%c0_50, %c0_51] : memref<32x128xf32, #tpu.memory_space<vmem>>, vector<32x128xf32>
    %cst_52 = arith.constant dense<0.000000e+00> : vector<24x128xf32>
    %89 = tpu.matmul %87, %88, %cst_52 {dimension_numbers = #tpu.dot_dimension_numbers<[1], [0], [0], [1], [0, 0, 1, 1], [], []>} : vector<24x32xf32>, vector<32x128xf32>, vector<24x128xf32> -> vector<24x128xf32>
    %c0_53 = arith.constant 0 : index
    %c0_54 = arith.constant 0 : index
    %90 = vector.load %arg10[%c0_53, %c0_54] : memref<1x128xf32, #tpu.memory_space<vmem>>, vector<1x128xf32>
    %91 = vector.broadcast %90 : vector<1x128xf32> to vector<24x128xf32>
    %92 = arith.addf %89, %91 : vector<24x128xf32>
    %cst_55 = arith.constant 5.000000e-01 : f32
    %93 = vector.broadcast %cst_55 : f32 to vector<24x128xf32>
    %94 = arith.mulf %93, %92 : vector<24x128xf32>
    %cst_56 = arith.constant 0.707106769 : f32
    %95 = vector.broadcast %cst_56 : f32 to vector<24x128xf32>
    %96 = arith.mulf %92, %95 : vector<24x128xf32>
    %97 = math.erf %96 : vector<24x128xf32>
    %cst_57 = arith.constant 1.000000e+00 : f32
    %98 = vector.broadcast %cst_57 : f32 to vector<24x128xf32>
    %99 = arith.addf %98, %97 : vector<24x128xf32>
    %100 = arith.mulf %94, %99 : vector<24x128xf32>
    %c0_58 = arith.constant 0 : index
    %c0_59 = arith.constant 0 : index
    %101 = vector.load %arg18[%c0_58, %c0_59] : memref<128x32xf32, #tpu.memory_space<vmem>>, vector<128x32xf32>
    %cst_60 = arith.constant dense<0.000000e+00> : vector<24x32xf32>
    %102 = tpu.matmul %100, %101, %cst_60 {dimension_numbers = #tpu.dot_dimension_numbers<[1], [0], [0], [1], [0, 0, 1, 1], [], []>} : vector<24x128xf32>, vector<128x32xf32>, vector<24x32xf32> -> vector<24x32xf32>
    %c0_61 = arith.constant 0 : index
    %c0_62 = arith.constant 0 : index
    %103 = vector.load %arg11[%c0_61, %c0_62] : memref<1x32xf32, #tpu.memory_space<vmem>>, vector<1x32xf32>
    %104 = vector.broadcast %103 : vector<1x32xf32> to vector<24x32xf32>
    %105 = arith.addf %102, %104 : vector<24x32xf32>
    %106 = arith.addf %63, %105 : vector<24x32xf32>
    %c0_63 = arith.constant 0 : index
    %c0_64 = arith.constant 0 : index
    %107 = vector.load %arg27[%c0_63, %c0_64] : memref<1x32xf32, #tpu.memory_space<vmem>>, vector<1x32xf32>
    %c0_65 = arith.constant 0 : index
    %c0_66 = arith.constant 0 : index
    %108 = vector.load %arg26[%c0_65, %c0_66] : memref<1x32xf32, #tpu.memory_space<vmem>>, vector<1x32xf32>
    %cst_67 = arith.constant dense<0.000000e+00> : vector<24xf32>
    %109 = vector.multi_reduction <add>, %106, %cst_67 [1] : vector<24x32xf32> to vector<24xf32>
    %110 = vector.shape_cast %109 : vector<24xf32> to vector<24x1xf32>
    %cst_68 = arith.constant 3.200000e+01 : f32
    %111 = vector.broadcast %cst_68 : f32 to vector<24x1xf32>
    %112 = arith.divf %110, %111 : vector<24x1xf32>
    %113 = vector.broadcast %112 : vector<24x1xf32> to vector<24x32xf32>
    %114 = arith.subf %106, %113 : vector<24x32xf32>
    %115 = arith.mulf %114, %114 : vector<24x32xf32>
    %cst_69 = arith.constant dense<0.000000e+00> : vector<24xf32>
    %116 = vector.multi_reduction <add>, %115, %cst_69 [1] : vector<24x32xf32> to vector<24xf32>
    %117 = vector.shape_cast %116 : vector<24xf32> to vector<24x1xf32>
    %cst_70 = arith.constant 3.200000e+01 : f32
    %118 = vector.broadcast %cst_70 : f32 to vector<24x1xf32>
    %119 = arith.divf %117, %118 : vector<24x1xf32>
    %120 = vector.broadcast %112 : vector<24x1xf32> to vector<24x32xf32>
    %121 = arith.subf %106, %120 : vector<24x32xf32>
    %cst_71 = arith.constant 9.99999974E-6 : f32
    %122 = vector.broadcast %cst_71 : f32 to vector<24x1xf32>
    %123 = arith.addf %119, %122 : vector<24x1xf32>
    %124 = math.rsqrt %123 : vector<24x1xf32>
    %125 = vector.broadcast %124 : vector<24x1xf32> to vector<24x32xf32>
    %126 = arith.mulf %121, %125 : vector<24x32xf32>
    %127 = vector.broadcast %107 : vector<1x32xf32> to vector<24x32xf32>
    %128 = arith.mulf %126, %127 : vector<24x32xf32>
    %129 = vector.broadcast %108 : vector<1x32xf32> to vector<24x32xf32>
    %130 = arith.addf %128, %129 : vector<24x32xf32>
    %131 = vector.shape_cast %130 : vector<24x32xf32> to vector<1x24x32xf32>
    %132 = vector.shape_cast %131 : vector<1x24x32xf32> to vector<1x24x32xf32>
    %133 = vector.broadcast %132 : vector<1x24x32xf32> to vector<2x24x32xf32>
    %c0_72 = arith.constant 0 : index
    %c0_73 = arith.constant 0 : index
    %c0_74 = arith.constant 0 : index
    %134 = vector.load %arg34[%c0_72, %c0_73, %c0_74] : memref<2x32x16xf32, #tpu.memory_space<vmem>>, vector<2x32x16xf32>
    %cst_75 = arith.constant dense<0.000000e+00> : vector<2x24x16xf32>
    %135 = tpu.matmul %133, %134, %cst_75 {dimension_numbers = #tpu.dot_dimension_numbers<[2], [1], [1], [2], [0, 0, 0, 1, 1, 2], [0], [0]>} : vector<2x24x32xf32>, vector<2x32x16xf32>, vector<2x24x16xf32> -> vector<2x24x16xf32>
    %c0_76 = arith.constant 0 : index
    %c0_77 = arith.constant 0 : index
    %c0_78 = arith.constant 0 : index
    %136 = vector.load %arg32[%c0_76, %c0_77, %c0_78] : memref<2x32x16xf32, #tpu.memory_space<vmem>>, vector<2x32x16xf32>
    %cst_79 = arith.constant dense<0.000000e+00> : vector<2x24x16xf32>
    %137 = tpu.matmul %133, %136, %cst_79 {dimension_numbers = #tpu.dot_dimension_numbers<[2], [1], [1], [2], [0, 0, 0, 1, 1, 2], [0], [0]>} : vector<2x24x32xf32>, vector<2x32x16xf32>, vector<2x24x16xf32> -> vector<2x24x16xf32>
    %c0_80 = arith.constant 0 : index
    %c0_81 = arith.constant 0 : index
    %c0_82 = arith.constant 0 : index
    %138 = vector.load %arg35[%c0_80, %c0_81, %c0_82] : memref<2x32x16xf32, #tpu.memory_space<vmem>>, vector<2x32x16xf32>
    %cst_83 = arith.constant dense<0.000000e+00> : vector<2x24x16xf32>
    %139 = tpu.matmul %133, %138, %cst_83 {dimension_numbers = #tpu.dot_dimension_numbers<[2], [1], [1], [2], [0, 0, 0, 1, 1, 2], [0], [0]>} : vector<2x24x32xf32>, vector<2x32x16xf32>, vector<2x24x16xf32> -> vector<2x24x16xf32>
    %cst_84 = arith.constant dense<0.000000e+00> : vector<2x24x24xf32>
    %140 = tpu.matmul %135, %137, %cst_84 {dimension_numbers = #tpu.dot_dimension_numbers<[2], [2], [1], [1], [0, 0, 0, 1, 1, 1], [0], [0]>} : vector<2x24x16xf32>, vector<2x24x16xf32>, vector<2x24x24xf32> -> vector<2x24x24xf32>
    %cst_85 = arith.constant 2.500000e-01 : f32
    %141 = vector.broadcast %cst_85 : f32 to vector<2x24x24xf32>
    %142 = arith.mulf %140, %141 : vector<2x24x24xf32>
    %143 = vector.shape_cast %6 : vector<1x24xf32> to vector<1x1x24xf32>
    %144 = vector.broadcast %143 : vector<1x1x24xf32> to vector<2x24x24xf32>
    %145 = arith.addf %142, %144 : vector<2x24x24xf32>
    %cst_86 = arith.constant dense<0xFF800000> : vector<2x24xf32>
    %146 = vector.multi_reduction <maximumf>, %145, %cst_86 [2] : vector<2x24x24xf32> to vector<2x24xf32>
    %147 = vector.shape_cast %146 : vector<2x24xf32> to vector<2x24x1xf32>
    %148 = vector.broadcast %147 : vector<2x24x1xf32> to vector<2x24x24xf32>
    %149 = arith.subf %145, %148 : vector<2x24x24xf32>
    %150 = math.exp %149 : vector<2x24x24xf32>
    %cst_87 = arith.constant dense<0.000000e+00> : vector<2x24xf32>
    %151 = vector.multi_reduction <add>, %150, %cst_87 [2] : vector<2x24x24xf32> to vector<2x24xf32>
    %152 = vector.shape_cast %151 : vector<2x24xf32> to vector<2x24x1xf32>
    %153 = tpu.reciprocal %152 {approx = true} : vector<2x24x1xf32> -> vector<2x24x1xf32>
    %154 = vector.broadcast %153 : vector<2x24x1xf32> to vector<2x24x24xf32>
    %155 = arith.mulf %150, %154 : vector<2x24x24xf32>
    %cst_88 = arith.constant dense<0.000000e+00> : vector<2x24x16xf32>
    %156 = tpu.matmul %155, %139, %cst_88 {dimension_numbers = #tpu.dot_dimension_numbers<[2], [1], [1], [2], [0, 0, 0, 1, 1, 2], [0], [0]>} : vector<2x24x24xf32>, vector<2x24x16xf32>, vector<2x24x16xf32> -> vector<2x24x16xf32>
    %c0_89 = arith.constant 0 : index
    %c0_90 = arith.constant 0 : index
    %c0_91 = arith.constant 0 : index
    %157 = vector.load %arg33[%c0_89, %c0_90, %c0_91] : memref<2x16x32xf32, #tpu.memory_space<vmem>>, vector<2x16x32xf32>
    %cst_92 = arith.constant dense<0.000000e+00> : vector<2x24x32xf32>
    %158 = tpu.matmul %156, %157, %cst_92 {dimension_numbers = #tpu.dot_dimension_numbers<[2], [1], [1], [2], [0, 0, 0, 1, 1, 2], [0], [0]>} : vector<2x24x16xf32>, vector<2x16x32xf32>, vector<2x24x32xf32> -> vector<2x24x32xf32>
    %cst_93 = arith.constant dense<0.000000e+00> : vector<24x32xf32>
    %159 = vector.multi_reduction <add>, %158, %cst_93 [0] : vector<2x24x32xf32> to vector<24x32xf32>
    %160 = arith.addf %106, %159 : vector<24x32xf32>
    %c0_94 = arith.constant 0 : index
    %c0_95 = arith.constant 0 : index
    %161 = vector.load %arg25[%c0_94, %c0_95] : memref<1x32xf32, #tpu.memory_space<vmem>>, vector<1x32xf32>
    %162 = vector.broadcast %161 : vector<1x32xf32> to vector<24x32xf32>
    %163 = arith.addf %160, %162 : vector<24x32xf32>
    %c0_96 = arith.constant 0 : index
    %c0_97 = arith.constant 0 : index
    %164 = vector.load %arg29[%c0_96, %c0_97] : memref<1x32xf32, #tpu.memory_space<vmem>>, vector<1x32xf32>
    %c0_98 = arith.constant 0 : index
    %c0_99 = arith.constant 0 : index
    %165 = vector.load %arg28[%c0_98, %c0_99] : memref<1x32xf32, #tpu.memory_space<vmem>>, vector<1x32xf32>
    %cst_100 = arith.constant dense<0.000000e+00> : vector<24xf32>
    %166 = vector.multi_reduction <add>, %163, %cst_100 [1] : vector<24x32xf32> to vector<24xf32>
    %167 = vector.shape_cast %166 : vector<24xf32> to vector<24x1xf32>
    %cst_101 = arith.constant 3.200000e+01 : f32
    %168 = vector.broadcast %cst_101 : f32 to vector<24x1xf32>
    %169 = arith.divf %167, %168 : vector<24x1xf32>
    %170 = vector.broadcast %169 : vector<24x1xf32> to vector<24x32xf32>
    %171 = arith.subf %163, %170 : vector<24x32xf32>
    %172 = arith.mulf %171, %171 : vector<24x32xf32>
    %cst_102 = arith.constant dense<0.000000e+00> : vector<24xf32>
    %173 = vector.multi_reduction <add>, %172, %cst_102 [1] : vector<24x32xf32> to vector<24xf32>
    %174 = vector.shape_cast %173 : vector<24xf32> to vector<24x1xf32>
    %cst_103 = arith.constant 3.200000e+01 : f32
    %175 = vector.broadcast %cst_103 : f32 to vector<24x1xf32>
    %176 = arith.divf %174, %175 : vector<24x1xf32>
    %177 = vector.broadcast %169 : vector<24x1xf32> to vector<24x32xf32>
    %178 = arith.subf %163, %177 : vector<24x32xf32>
    %cst_104 = arith.constant 9.99999974E-6 : f32
    %179 = vector.broadcast %cst_104 : f32 to vector<24x1xf32>
    %180 = arith.addf %176, %179 : vector<24x1xf32>
    %181 = math.rsqrt %180 : vector<24x1xf32>
    %182 = vector.broadcast %181 : vector<24x1xf32> to vector<24x32xf32>
    %183 = arith.mulf %178, %182 : vector<24x32xf32>
    %184 = vector.broadcast %164 : vector<1x32xf32> to vector<24x32xf32>
    %185 = arith.mulf %183, %184 : vector<24x32xf32>
    %186 = vector.broadcast %165 : vector<1x32xf32> to vector<24x32xf32>
    %187 = arith.addf %185, %186 : vector<24x32xf32>
    %c0_105 = arith.constant 0 : index
    %c0_106 = arith.constant 0 : index
    %188 = vector.load %arg30[%c0_105, %c0_106] : memref<32x128xf32, #tpu.memory_space<vmem>>, vector<32x128xf32>
    %cst_107 = arith.constant dense<0.000000e+00> : vector<24x128xf32>
    %189 = tpu.matmul %187, %188, %cst_107 {dimension_numbers = #tpu.dot_dimension_numbers<[1], [0], [0], [1], [0, 0, 1, 1], [], []>} : vector<24x32xf32>, vector<32x128xf32>, vector<24x128xf32> -> vector<24x128xf32>
    %c0_108 = arith.constant 0 : index
    %c0_109 = arith.constant 0 : index
    %190 = vector.load %arg23[%c0_108, %c0_109] : memref<1x128xf32, #tpu.memory_space<vmem>>, vector<1x128xf32>
    %191 = vector.broadcast %190 : vector<1x128xf32> to vector<24x128xf32>
    %192 = arith.addf %189, %191 : vector<24x128xf32>
    %cst_110 = arith.constant 5.000000e-01 : f32
    %193 = vector.broadcast %cst_110 : f32 to vector<24x128xf32>
    %194 = arith.mulf %193, %192 : vector<24x128xf32>
    %cst_111 = arith.constant 0.707106769 : f32
    %195 = vector.broadcast %cst_111 : f32 to vector<24x128xf32>
    %196 = arith.mulf %192, %195 : vector<24x128xf32>
    %197 = math.erf %196 : vector<24x128xf32>
    %cst_112 = arith.constant 1.000000e+00 : f32
    %198 = vector.broadcast %cst_112 : f32 to vector<24x128xf32>
    %199 = arith.addf %198, %197 : vector<24x128xf32>
    %200 = arith.mulf %194, %199 : vector<24x128xf32>
    %c0_113 = arith.constant 0 : index
    %c0_114 = arith.constant 0 : index
    %201 = vector.load %arg31[%c0_113, %c0_114] : memref<128x32xf32, #tpu.memory_space<vmem>>, vector<128x32xf32>
    %cst_115 = arith.constant dense<0.000000e+00> : vector<24x32xf32>
    %202 = tpu.matmul %200, %201, %cst_115 {dimension_numbers = #tpu.dot_dimension_numbers<[1], [0], [0], [1], [0, 0, 1, 1], [], []>} : vector<24x128xf32>, vector<128x32xf32>, vector<24x32xf32> -> vector<24x32xf32>
    %c0_116 = arith.constant 0 : index
    %c0_117 = arith.constant 0 : index
    %203 = vector.load %arg24[%c0_116, %c0_117] : memref<1x32xf32, #tpu.memory_space<vmem>>, vector<1x32xf32>
    %204 = vector.broadcast %203 : vector<1x32xf32> to vector<24x32xf32>
    %205 = arith.addf %202, %204 : vector<24x32xf32>
    %206 = arith.addf %163, %205 : vector<24x32xf32>
    %c0_118 = arith.constant 0 : index
    %c0_119 = arith.constant 0 : index
    %207 = vector.load %arg37[%c0_118, %c0_119] : memref<1x32xf32, #tpu.memory_space<vmem>>, vector<1x32xf32>
    %c0_120 = arith.constant 0 : index
    %c0_121 = arith.constant 0 : index
    %208 = vector.load %arg36[%c0_120, %c0_121] : memref<1x32xf32, #tpu.memory_space<vmem>>, vector<1x32xf32>
    %cst_122 = arith.constant dense<0.000000e+00> : vector<24xf32>
    %209 = vector.multi_reduction <add>, %206, %cst_122 [1] : vector<24x32xf32> to vector<24xf32>
    %210 = vector.shape_cast %209 : vector<24xf32> to vector<24x1xf32>
    %cst_123 = arith.constant 3.200000e+01 : f32
    %211 = vector.broadcast %cst_123 : f32 to vector<24x1xf32>
    %212 = arith.divf %210, %211 : vector<24x1xf32>
    %213 = vector.broadcast %212 : vector<24x1xf32> to vector<24x32xf32>
    %214 = arith.subf %206, %213 : vector<24x32xf32>
    %215 = arith.mulf %214, %214 : vector<24x32xf32>
    %cst_124 = arith.constant dense<0.000000e+00> : vector<24xf32>
    %216 = vector.multi_reduction <add>, %215, %cst_124 [1] : vector<24x32xf32> to vector<24xf32>
    %217 = vector.shape_cast %216 : vector<24xf32> to vector<24x1xf32>
    %cst_125 = arith.constant 3.200000e+01 : f32
    %218 = vector.broadcast %cst_125 : f32 to vector<24x1xf32>
    %219 = arith.divf %217, %218 : vector<24x1xf32>
    %220 = vector.broadcast %212 : vector<24x1xf32> to vector<24x32xf32>
    %221 = arith.subf %206, %220 : vector<24x32xf32>
    %cst_126 = arith.constant 9.99999974E-6 : f32
    %222 = vector.broadcast %cst_126 : f32 to vector<24x1xf32>
    %223 = arith.addf %219, %222 : vector<24x1xf32>
    %224 = math.rsqrt %223 : vector<24x1xf32>
    %225 = vector.broadcast %224 : vector<24x1xf32> to vector<24x32xf32>
    %226 = arith.mulf %221, %225 : vector<24x32xf32>
    %227 = vector.broadcast %207 : vector<1x32xf32> to vector<24x32xf32>
    %228 = arith.mulf %226, %227 : vector<24x32xf32>
    %229 = vector.broadcast %208 : vector<1x32xf32> to vector<24x32xf32>
    %230 = arith.addf %228, %229 : vector<24x32xf32>
    %c0_127 = arith.constant 0 : index
    %c0_128 = arith.constant 0 : index
    %231 = vector.load %arg66[%c0_127, %c0_128] : memref<1x32xf32, #tpu.memory_space<vmem>>, vector<1x32xf32>
    %232 = vector.extract_strided_slice %230 {offsets = [0, 0], sizes = [1, 32], strides = [1, 1]} : vector<24x32xf32> to vector<1x32xf32>
    %cst_129 = arith.constant 0.000000e+00 : f32
    %233 = vector.broadcast %cst_129 : f32 to vector<6x32xf32>
    %234 = tpu.concatenate %231, %232, %233 in 0 : vector<1x32xf32>, vector<1x32xf32>, vector<6x32xf32> -> vector<8x32xf32>
    %c0_130 = arith.constant 0 : index
    %c0_131 = arith.constant 0 : index
    %235 = vector.load %arg8[%c0_130, %c0_131] : memref<1x8xf32, #tpu.memory_space<vmem>>, vector<1x8xf32>
    %c0_132 = arith.constant 0 : index
    %c0_133 = arith.constant 0 : index
    %236 = vector.load %arg42[%c0_132, %c0_133] : memref<1x32xf32, #tpu.memory_space<vmem>>, vector<1x32xf32>
    %c0_134 = arith.constant 0 : index
    %c0_135 = arith.constant 0 : index
    %237 = vector.load %arg41[%c0_134, %c0_135] : memref<1x32xf32, #tpu.memory_space<vmem>>, vector<1x32xf32>
    %cst_136 = arith.constant dense<0.000000e+00> : vector<8xf32>
    %238 = vector.multi_reduction <add>, %234, %cst_136 [1] : vector<8x32xf32> to vector<8xf32>
    %239 = vector.shape_cast %238 : vector<8xf32> to vector<8x1xf32>
    %cst_137 = arith.constant 3.200000e+01 : f32
    %240 = vector.broadcast %cst_137 : f32 to vector<8x1xf32>
    %241 = arith.divf %239, %240 : vector<8x1xf32>
    %242 = vector.broadcast %241 : vector<8x1xf32> to vector<8x32xf32>
    %243 = arith.subf %234, %242 : vector<8x32xf32>
    %244 = arith.mulf %243, %243 : vector<8x32xf32>
    %cst_138 = arith.constant dense<0.000000e+00> : vector<8xf32>
    %245 = vector.multi_reduction <add>, %244, %cst_138 [1] : vector<8x32xf32> to vector<8xf32>
    %246 = vector.shape_cast %245 : vector<8xf32> to vector<8x1xf32>
    %cst_139 = arith.constant 3.200000e+01 : f32
    %247 = vector.broadcast %cst_139 : f32 to vector<8x1xf32>
    %248 = arith.divf %246, %247 : vector<8x1xf32>
    %249 = vector.broadcast %241 : vector<8x1xf32> to vector<8x32xf32>
    %250 = arith.subf %234, %249 : vector<8x32xf32>
    %cst_140 = arith.constant 9.99999974E-6 : f32
    %251 = vector.broadcast %cst_140 : f32 to vector<8x1xf32>
    %252 = arith.addf %248, %251 : vector<8x1xf32>
    %253 = math.rsqrt %252 : vector<8x1xf32>
    %254 = vector.broadcast %253 : vector<8x1xf32> to vector<8x32xf32>
    %255 = arith.mulf %250, %254 : vector<8x32xf32>
    %256 = vector.broadcast %236 : vector<1x32xf32> to vector<8x32xf32>
    %257 = arith.mulf %255, %256 : vector<8x32xf32>
    %258 = vector.broadcast %237 : vector<1x32xf32> to vector<8x32xf32>
    %259 = arith.addf %257, %258 : vector<8x32xf32>
    %260 = vector.shape_cast %259 : vector<8x32xf32> to vector<1x8x32xf32>
    %261 = vector.shape_cast %260 : vector<1x8x32xf32> to vector<1x8x32xf32>
    %262 = vector.broadcast %261 : vector<1x8x32xf32> to vector<2x8x32xf32>
    %c0_141 = arith.constant 0 : index
    %c0_142 = arith.constant 0 : index
    %c0_143 = arith.constant 0 : index
    %263 = vector.load %arg49[%c0_141, %c0_142, %c0_143] : memref<2x32x16xf32, #tpu.memory_space<vmem>>, vector<2x32x16xf32>
    %cst_144 = arith.constant dense<0.000000e+00> : vector<2x8x16xf32>
    %264 = tpu.matmul %262, %263, %cst_144 {dimension_numbers = #tpu.dot_dimension_numbers<[2], [1], [1], [2], [0, 0, 0, 1, 1, 2], [0], [0]>} : vector<2x8x32xf32>, vector<2x32x16xf32>, vector<2x8x16xf32> -> vector<2x8x16xf32>
    %c0_145 = arith.constant 0 : index
    %c0_146 = arith.constant 0 : index
    %c0_147 = arith.constant 0 : index
    %265 = vector.load %arg47[%c0_145, %c0_146, %c0_147] : memref<2x32x16xf32, #tpu.memory_space<vmem>>, vector<2x32x16xf32>
    %cst_148 = arith.constant dense<0.000000e+00> : vector<2x8x16xf32>
    %266 = tpu.matmul %262, %265, %cst_148 {dimension_numbers = #tpu.dot_dimension_numbers<[2], [1], [1], [2], [0, 0, 0, 1, 1, 2], [0], [0]>} : vector<2x8x32xf32>, vector<2x32x16xf32>, vector<2x8x16xf32> -> vector<2x8x16xf32>
    %c0_149 = arith.constant 0 : index
    %c0_150 = arith.constant 0 : index
    %c0_151 = arith.constant 0 : index
    %267 = vector.load %arg50[%c0_149, %c0_150, %c0_151] : memref<2x32x16xf32, #tpu.memory_space<vmem>>, vector<2x32x16xf32>
    %cst_152 = arith.constant dense<0.000000e+00> : vector<2x8x16xf32>
    %268 = tpu.matmul %262, %267, %cst_152 {dimension_numbers = #tpu.dot_dimension_numbers<[2], [1], [1], [2], [0, 0, 0, 1, 1, 2], [0], [0]>} : vector<2x8x32xf32>, vector<2x32x16xf32>, vector<2x8x16xf32> -> vector<2x8x16xf32>
    %cst_153 = arith.constant dense<0.000000e+00> : vector<2x8x8xf32>
    %269 = tpu.matmul %264, %266, %cst_153 {dimension_numbers = #tpu.dot_dimension_numbers<[2], [2], [1], [1], [0, 0, 0, 1, 1, 1], [0], [0]>} : vector<2x8x16xf32>, vector<2x8x16xf32>, vector<2x8x8xf32> -> vector<2x8x8xf32>
    %cst_154 = arith.constant 2.500000e-01 : f32
    %270 = vector.broadcast %cst_154 : f32 to vector<2x8x8xf32>
    %271 = arith.mulf %269, %270 : vector<2x8x8xf32>
    %272 = vector.shape_cast %235 : vector<1x8xf32> to vector<1x1x8xf32>
    %273 = vector.broadcast %272 : vector<1x1x8xf32> to vector<2x8x8xf32>
    %274 = arith.addf %271, %273 : vector<2x8x8xf32>
    %cst_155 = arith.constant dense<0xFF800000> : vector<2x8xf32>
    %275 = vector.multi_reduction <maximumf>, %274, %cst_155 [2] : vector<2x8x8xf32> to vector<2x8xf32>
    %276 = vector.shape_cast %275 : vector<2x8xf32> to vector<2x8x1xf32>
    %277 = vector.broadcast %276 : vector<2x8x1xf32> to vector<2x8x8xf32>
    %278 = arith.subf %274, %277 : vector<2x8x8xf32>
    %279 = math.exp %278 : vector<2x8x8xf32>
    %cst_156 = arith.constant dense<0.000000e+00> : vector<2x8xf32>
    %280 = vector.multi_reduction <add>, %279, %cst_156 [2] : vector<2x8x8xf32> to vector<2x8xf32>
    %281 = vector.shape_cast %280 : vector<2x8xf32> to vector<2x8x1xf32>
    %282 = tpu.reciprocal %281 {approx = true} : vector<2x8x1xf32> -> vector<2x8x1xf32>
    %283 = vector.broadcast %282 : vector<2x8x1xf32> to vector<2x8x8xf32>
    %284 = arith.mulf %279, %283 : vector<2x8x8xf32>
    %cst_157 = arith.constant dense<0.000000e+00> : vector<2x8x16xf32>
    %285 = tpu.matmul %284, %268, %cst_157 {dimension_numbers = #tpu.dot_dimension_numbers<[2], [1], [1], [2], [0, 0, 0, 1, 1, 2], [0], [0]>} : vector<2x8x8xf32>, vector<2x8x16xf32>, vector<2x8x16xf32> -> vector<2x8x16xf32>
    %c0_158 = arith.constant 0 : index
    %c0_159 = arith.constant 0 : index
    %c0_160 = arith.constant 0 : index
    %286 = vector.load %arg48[%c0_158, %c0_159, %c0_160] : memref<2x16x32xf32, #tpu.memory_space<vmem>>, vector<2x16x32xf32>
    %cst_161 = arith.constant dense<0.000000e+00> : vector<2x8x32xf32>
    %287 = tpu.matmul %285, %286, %cst_161 {dimension_numbers = #tpu.dot_dimension_numbers<[2], [1], [1], [2], [0, 0, 0, 1, 1, 2], [0], [0]>} : vector<2x8x16xf32>, vector<2x16x32xf32>, vector<2x8x32xf32> -> vector<2x8x32xf32>
    %cst_162 = arith.constant dense<0.000000e+00> : vector<8x32xf32>
    %288 = vector.multi_reduction <add>, %287, %cst_162 [0] : vector<2x8x32xf32> to vector<8x32xf32>
    %289 = arith.addf %234, %288 : vector<8x32xf32>
    %c0_163 = arith.constant 0 : index
    %c0_164 = arith.constant 0 : index
    %290 = vector.load %arg40[%c0_163, %c0_164] : memref<1x32xf32, #tpu.memory_space<vmem>>, vector<1x32xf32>
    %291 = vector.broadcast %290 : vector<1x32xf32> to vector<8x32xf32>
    %292 = arith.addf %289, %291 : vector<8x32xf32>
    %c0_165 = arith.constant 0 : index
    %c0_166 = arith.constant 0 : index
    %293 = vector.load %arg44[%c0_165, %c0_166] : memref<1x32xf32, #tpu.memory_space<vmem>>, vector<1x32xf32>
    %c0_167 = arith.constant 0 : index
    %c0_168 = arith.constant 0 : index
    %294 = vector.load %arg43[%c0_167, %c0_168] : memref<1x32xf32, #tpu.memory_space<vmem>>, vector<1x32xf32>
    %cst_169 = arith.constant dense<0.000000e+00> : vector<8xf32>
    %295 = vector.multi_reduction <add>, %292, %cst_169 [1] : vector<8x32xf32> to vector<8xf32>
    %296 = vector.shape_cast %295 : vector<8xf32> to vector<8x1xf32>
    %cst_170 = arith.constant 3.200000e+01 : f32
    %297 = vector.broadcast %cst_170 : f32 to vector<8x1xf32>
    %298 = arith.divf %296, %297 : vector<8x1xf32>
    %299 = vector.broadcast %298 : vector<8x1xf32> to vector<8x32xf32>
    %300 = arith.subf %292, %299 : vector<8x32xf32>
    %301 = arith.mulf %300, %300 : vector<8x32xf32>
    %cst_171 = arith.constant dense<0.000000e+00> : vector<8xf32>
    %302 = vector.multi_reduction <add>, %301, %cst_171 [1] : vector<8x32xf32> to vector<8xf32>
    %303 = vector.shape_cast %302 : vector<8xf32> to vector<8x1xf32>
    %cst_172 = arith.constant 3.200000e+01 : f32
    %304 = vector.broadcast %cst_172 : f32 to vector<8x1xf32>
    %305 = arith.divf %303, %304 : vector<8x1xf32>
    %306 = vector.broadcast %298 : vector<8x1xf32> to vector<8x32xf32>
    %307 = arith.subf %292, %306 : vector<8x32xf32>
    %cst_173 = arith.constant 9.99999974E-6 : f32
    %308 = vector.broadcast %cst_173 : f32 to vector<8x1xf32>
    %309 = arith.addf %305, %308 : vector<8x1xf32>
    %310 = math.rsqrt %309 : vector<8x1xf32>
    %311 = vector.broadcast %310 : vector<8x1xf32> to vector<8x32xf32>
    %312 = arith.mulf %307, %311 : vector<8x32xf32>
    %313 = vector.broadcast %293 : vector<1x32xf32> to vector<8x32xf32>
    %314 = arith.mulf %312, %313 : vector<8x32xf32>
    %315 = vector.broadcast %294 : vector<1x32xf32> to vector<8x32xf32>
    %316 = arith.addf %314, %315 : vector<8x32xf32>
    %c0_174 = arith.constant 0 : index
    %c0_175 = arith.constant 0 : index
    %317 = vector.load %arg45[%c0_174, %c0_175] : memref<32x128xf32, #tpu.memory_space<vmem>>, vector<32x128xf32>
    %cst_176 = arith.constant dense<0.000000e+00> : vector<8x128xf32>
    %318 = tpu.matmul %316, %317, %cst_176 {dimension_numbers = #tpu.dot_dimension_numbers<[1], [0], [0], [1], [0, 0, 1, 1], [], []>} : vector<8x32xf32>, vector<32x128xf32>, vector<8x128xf32> -> vector<8x128xf32>
    %c0_177 = arith.constant 0 : index
    %c0_178 = arith.constant 0 : index
    %319 = vector.load %arg38[%c0_177, %c0_178] : memref<1x128xf32, #tpu.memory_space<vmem>>, vector<1x128xf32>
    %320 = vector.broadcast %319 : vector<1x128xf32> to vector<8x128xf32>
    %321 = arith.addf %318, %320 : vector<8x128xf32>
    %cst_179 = arith.constant 5.000000e-01 : f32
    %322 = vector.broadcast %cst_179 : f32 to vector<8x128xf32>
    %323 = arith.mulf %322, %321 : vector<8x128xf32>
    %cst_180 = arith.constant 0.707106769 : f32
    %324 = vector.broadcast %cst_180 : f32 to vector<8x128xf32>
    %325 = arith.mulf %321, %324 : vector<8x128xf32>
    %326 = math.erf %325 : vector<8x128xf32>
    %cst_181 = arith.constant 1.000000e+00 : f32
    %327 = vector.broadcast %cst_181 : f32 to vector<8x128xf32>
    %328 = arith.addf %327, %326 : vector<8x128xf32>
    %329 = arith.mulf %323, %328 : vector<8x128xf32>
    %c0_182 = arith.constant 0 : index
    %c0_183 = arith.constant 0 : index
    %330 = vector.load %arg46[%c0_182, %c0_183] : memref<128x32xf32, #tpu.memory_space<vmem>>, vector<128x32xf32>
    %cst_184 = arith.constant dense<0.000000e+00> : vector<8x32xf32>
    %331 = tpu.matmul %329, %330, %cst_184 {dimension_numbers = #tpu.dot_dimension_numbers<[1], [0], [0], [1], [0, 0, 1, 1], [], []>} : vector<8x128xf32>, vector<128x32xf32>, vector<8x32xf32> -> vector<8x32xf32>
    %c0_185 = arith.constant 0 : index
    %c0_186 = arith.constant 0 : index
    %332 = vector.load %arg39[%c0_185, %c0_186] : memref<1x32xf32, #tpu.memory_space<vmem>>, vector<1x32xf32>
    %333 = vector.broadcast %332 : vector<1x32xf32> to vector<8x32xf32>
    %334 = arith.addf %331, %333 : vector<8x32xf32>
    %335 = arith.addf %292, %334 : vector<8x32xf32>
    %c0_187 = arith.constant 0 : index
    %c0_188 = arith.constant 0 : index
    %336 = vector.load %arg55[%c0_187, %c0_188] : memref<1x32xf32, #tpu.memory_space<vmem>>, vector<1x32xf32>
    %c0_189 = arith.constant 0 : index
    %c0_190 = arith.constant 0 : index
    %337 = vector.load %arg54[%c0_189, %c0_190] : memref<1x32xf32, #tpu.memory_space<vmem>>, vector<1x32xf32>
    %cst_191 = arith.constant dense<0.000000e+00> : vector<8xf32>
    %338 = vector.multi_reduction <add>, %335, %cst_191 [1] : vector<8x32xf32> to vector<8xf32>
    %339 = vector.shape_cast %338 : vector<8xf32> to vector<8x1xf32>
    %cst_192 = arith.constant 3.200000e+01 : f32
    %340 = vector.broadcast %cst_192 : f32 to vector<8x1xf32>
    %341 = arith.divf %339, %340 : vector<8x1xf32>
    %342 = vector.broadcast %341 : vector<8x1xf32> to vector<8x32xf32>
    %343 = arith.subf %335, %342 : vector<8x32xf32>
    %344 = arith.mulf %343, %343 : vector<8x32xf32>
    %cst_193 = arith.constant dense<0.000000e+00> : vector<8xf32>
    %345 = vector.multi_reduction <add>, %344, %cst_193 [1] : vector<8x32xf32> to vector<8xf32>
    %346 = vector.shape_cast %345 : vector<8xf32> to vector<8x1xf32>
    %cst_194 = arith.constant 3.200000e+01 : f32
    %347 = vector.broadcast %cst_194 : f32 to vector<8x1xf32>
    %348 = arith.divf %346, %347 : vector<8x1xf32>
    %349 = vector.broadcast %341 : vector<8x1xf32> to vector<8x32xf32>
    %350 = arith.subf %335, %349 : vector<8x32xf32>
    %cst_195 = arith.constant 9.99999974E-6 : f32
    %351 = vector.broadcast %cst_195 : f32 to vector<8x1xf32>
    %352 = arith.addf %348, %351 : vector<8x1xf32>
    %353 = math.rsqrt %352 : vector<8x1xf32>
    %354 = vector.broadcast %353 : vector<8x1xf32> to vector<8x32xf32>
    %355 = arith.mulf %350, %354 : vector<8x32xf32>
    %356 = vector.broadcast %336 : vector<1x32xf32> to vector<8x32xf32>
    %357 = arith.mulf %355, %356 : vector<8x32xf32>
    %358 = vector.broadcast %337 : vector<1x32xf32> to vector<8x32xf32>
    %359 = arith.addf %357, %358 : vector<8x32xf32>
    %360 = vector.shape_cast %359 : vector<8x32xf32> to vector<1x8x32xf32>
    %361 = vector.shape_cast %360 : vector<1x8x32xf32> to vector<1x8x32xf32>
    %362 = vector.broadcast %361 : vector<1x8x32xf32> to vector<2x8x32xf32>
    %c0_196 = arith.constant 0 : index
    %c0_197 = arith.constant 0 : index
    %c0_198 = arith.constant 0 : index
    %363 = vector.load %arg62[%c0_196, %c0_197, %c0_198] : memref<2x32x16xf32, #tpu.memory_space<vmem>>, vector<2x32x16xf32>
    %cst_199 = arith.constant dense<0.000000e+00> : vector<2x8x16xf32>
    %364 = tpu.matmul %362, %363, %cst_199 {dimension_numbers = #tpu.dot_dimension_numbers<[2], [1], [1], [2], [0, 0, 0, 1, 1, 2], [0], [0]>} : vector<2x8x32xf32>, vector<2x32x16xf32>, vector<2x8x16xf32> -> vector<2x8x16xf32>
    %c0_200 = arith.constant 0 : index
    %c0_201 = arith.constant 0 : index
    %c0_202 = arith.constant 0 : index
    %365 = vector.load %arg60[%c0_200, %c0_201, %c0_202] : memref<2x32x16xf32, #tpu.memory_space<vmem>>, vector<2x32x16xf32>
    %cst_203 = arith.constant dense<0.000000e+00> : vector<2x8x16xf32>
    %366 = tpu.matmul %362, %365, %cst_203 {dimension_numbers = #tpu.dot_dimension_numbers<[2], [1], [1], [2], [0, 0, 0, 1, 1, 2], [0], [0]>} : vector<2x8x32xf32>, vector<2x32x16xf32>, vector<2x8x16xf32> -> vector<2x8x16xf32>
    %c0_204 = arith.constant 0 : index
    %c0_205 = arith.constant 0 : index
    %c0_206 = arith.constant 0 : index
    %367 = vector.load %arg63[%c0_204, %c0_205, %c0_206] : memref<2x32x16xf32, #tpu.memory_space<vmem>>, vector<2x32x16xf32>
    %cst_207 = arith.constant dense<0.000000e+00> : vector<2x8x16xf32>
    %368 = tpu.matmul %362, %367, %cst_207 {dimension_numbers = #tpu.dot_dimension_numbers<[2], [1], [1], [2], [0, 0, 0, 1, 1, 2], [0], [0]>} : vector<2x8x32xf32>, vector<2x32x16xf32>, vector<2x8x16xf32> -> vector<2x8x16xf32>
    %cst_208 = arith.constant dense<0.000000e+00> : vector<2x8x8xf32>
    %369 = tpu.matmul %364, %366, %cst_208 {dimension_numbers = #tpu.dot_dimension_numbers<[2], [2], [1], [1], [0, 0, 0, 1, 1, 1], [0], [0]>} : vector<2x8x16xf32>, vector<2x8x16xf32>, vector<2x8x8xf32> -> vector<2x8x8xf32>
    %cst_209 = arith.constant 2.500000e-01 : f32
    %370 = vector.broadcast %cst_209 : f32 to vector<2x8x8xf32>
    %371 = arith.mulf %369, %370 : vector<2x8x8xf32>
    %372 = vector.shape_cast %235 : vector<1x8xf32> to vector<1x1x8xf32>
    %373 = vector.broadcast %372 : vector<1x1x8xf32> to vector<2x8x8xf32>
    %374 = arith.addf %371, %373 : vector<2x8x8xf32>
    %cst_210 = arith.constant dense<0xFF800000> : vector<2x8xf32>
    %375 = vector.multi_reduction <maximumf>, %374, %cst_210 [2] : vector<2x8x8xf32> to vector<2x8xf32>
    %376 = vector.shape_cast %375 : vector<2x8xf32> to vector<2x8x1xf32>
    %377 = vector.broadcast %376 : vector<2x8x1xf32> to vector<2x8x8xf32>
    %378 = arith.subf %374, %377 : vector<2x8x8xf32>
    %379 = math.exp %378 : vector<2x8x8xf32>
    %cst_211 = arith.constant dense<0.000000e+00> : vector<2x8xf32>
    %380 = vector.multi_reduction <add>, %379, %cst_211 [2] : vector<2x8x8xf32> to vector<2x8xf32>
    %381 = vector.shape_cast %380 : vector<2x8xf32> to vector<2x8x1xf32>
    %382 = tpu.reciprocal %381 {approx = true} : vector<2x8x1xf32> -> vector<2x8x1xf32>
    %383 = vector.broadcast %382 : vector<2x8x1xf32> to vector<2x8x8xf32>
    %384 = arith.mulf %379, %383 : vector<2x8x8xf32>
    %cst_212 = arith.constant dense<0.000000e+00> : vector<2x8x16xf32>
    %385 = tpu.matmul %384, %368, %cst_212 {dimension_numbers = #tpu.dot_dimension_numbers<[2], [1], [1], [2], [0, 0, 0, 1, 1, 2], [0], [0]>} : vector<2x8x8xf32>, vector<2x8x16xf32>, vector<2x8x16xf32> -> vector<2x8x16xf32>
    %c0_213 = arith.constant 0 : index
    %c0_214 = arith.constant 0 : index
    %c0_215 = arith.constant 0 : index
    %386 = vector.load %arg61[%c0_213, %c0_214, %c0_215] : memref<2x16x32xf32, #tpu.memory_space<vmem>>, vector<2x16x32xf32>
    %cst_216 = arith.constant dense<0.000000e+00> : vector<2x8x32xf32>
    %387 = tpu.matmul %385, %386, %cst_216 {dimension_numbers = #tpu.dot_dimension_numbers<[2], [1], [1], [2], [0, 0, 0, 1, 1, 2], [0], [0]>} : vector<2x8x16xf32>, vector<2x16x32xf32>, vector<2x8x32xf32> -> vector<2x8x32xf32>
    %cst_217 = arith.constant dense<0.000000e+00> : vector<8x32xf32>
    %388 = vector.multi_reduction <add>, %387, %cst_217 [0] : vector<2x8x32xf32> to vector<8x32xf32>
    %389 = arith.addf %335, %388 : vector<8x32xf32>
    %c0_218 = arith.constant 0 : index
    %c0_219 = arith.constant 0 : index
    %390 = vector.load %arg53[%c0_218, %c0_219] : memref<1x32xf32, #tpu.memory_space<vmem>>, vector<1x32xf32>
    %391 = vector.broadcast %390 : vector<1x32xf32> to vector<8x32xf32>
    %392 = arith.addf %389, %391 : vector<8x32xf32>
    %c0_220 = arith.constant 0 : index
    %c0_221 = arith.constant 0 : index
    %393 = vector.load %arg57[%c0_220, %c0_221] : memref<1x32xf32, #tpu.memory_space<vmem>>, vector<1x32xf32>
    %c0_222 = arith.constant 0 : index
    %c0_223 = arith.constant 0 : index
    %394 = vector.load %arg56[%c0_222, %c0_223] : memref<1x32xf32, #tpu.memory_space<vmem>>, vector<1x32xf32>
    %cst_224 = arith.constant dense<0.000000e+00> : vector<8xf32>
    %395 = vector.multi_reduction <add>, %392, %cst_224 [1] : vector<8x32xf32> to vector<8xf32>
    %396 = vector.shape_cast %395 : vector<8xf32> to vector<8x1xf32>
    %cst_225 = arith.constant 3.200000e+01 : f32
    %397 = vector.broadcast %cst_225 : f32 to vector<8x1xf32>
    %398 = arith.divf %396, %397 : vector<8x1xf32>
    %399 = vector.broadcast %398 : vector<8x1xf32> to vector<8x32xf32>
    %400 = arith.subf %392, %399 : vector<8x32xf32>
    %401 = arith.mulf %400, %400 : vector<8x32xf32>
    %cst_226 = arith.constant dense<0.000000e+00> : vector<8xf32>
    %402 = vector.multi_reduction <add>, %401, %cst_226 [1] : vector<8x32xf32> to vector<8xf32>
    %403 = vector.shape_cast %402 : vector<8xf32> to vector<8x1xf32>
    %cst_227 = arith.constant 3.200000e+01 : f32
    %404 = vector.broadcast %cst_227 : f32 to vector<8x1xf32>
    %405 = arith.divf %403, %404 : vector<8x1xf32>
    %406 = vector.broadcast %398 : vector<8x1xf32> to vector<8x32xf32>
    %407 = arith.subf %392, %406 : vector<8x32xf32>
    %cst_228 = arith.constant 9.99999974E-6 : f32
    %408 = vector.broadcast %cst_228 : f32 to vector<8x1xf32>
    %409 = arith.addf %405, %408 : vector<8x1xf32>
    %410 = math.rsqrt %409 : vector<8x1xf32>
    %411 = vector.broadcast %410 : vector<8x1xf32> to vector<8x32xf32>
    %412 = arith.mulf %407, %411 : vector<8x32xf32>
    %413 = vector.broadcast %393 : vector<1x32xf32> to vector<8x32xf32>
    %414 = arith.mulf %412, %413 : vector<8x32xf32>
    %415 = vector.broadcast %394 : vector<1x32xf32> to vector<8x32xf32>
    %416 = arith.addf %414, %415 : vector<8x32xf32>
    %c0_229 = arith.constant 0 : index
    %c0_230 = arith.constant 0 : index
    %417 = vector.load %arg58[%c0_229, %c0_230] : memref<32x128xf32, #tpu.memory_space<vmem>>, vector<32x128xf32>
    %cst_231 = arith.constant dense<0.000000e+00> : vector<8x128xf32>
    %418 = tpu.matmul %416, %417, %cst_231 {dimension_numbers = #tpu.dot_dimension_numbers<[1], [0], [0], [1], [0, 0, 1, 1], [], []>} : vector<8x32xf32>, vector<32x128xf32>, vector<8x128xf32> -> vector<8x128xf32>
    %c0_232 = arith.constant 0 : index
    %c0_233 = arith.constant 0 : index
    %419 = vector.load %arg51[%c0_232, %c0_233] : memref<1x128xf32, #tpu.memory_space<vmem>>, vector<1x128xf32>
    %420 = vector.broadcast %419 : vector<1x128xf32> to vector<8x128xf32>
    %421 = arith.addf %418, %420 : vector<8x128xf32>
    %cst_234 = arith.constant 5.000000e-01 : f32
    %422 = vector.broadcast %cst_234 : f32 to vector<8x128xf32>
    %423 = arith.mulf %422, %421 : vector<8x128xf32>
    %cst_235 = arith.constant 0.707106769 : f32
    %424 = vector.broadcast %cst_235 : f32 to vector<8x128xf32>
    %425 = arith.mulf %421, %424 : vector<8x128xf32>
    %426 = math.erf %425 : vector<8x128xf32>
    %cst_236 = arith.constant 1.000000e+00 : f32
    %427 = vector.broadcast %cst_236 : f32 to vector<8x128xf32>
    %428 = arith.addf %427, %426 : vector<8x128xf32>
    %429 = arith.mulf %423, %428 : vector<8x128xf32>
    %c0_237 = arith.constant 0 : index
    %c0_238 = arith.constant 0 : index
    %430 = vector.load %arg59[%c0_237, %c0_238] : memref<128x32xf32, #tpu.memory_space<vmem>>, vector<128x32xf32>
    %cst_239 = arith.constant dense<0.000000e+00> : vector<8x32xf32>
    %431 = tpu.matmul %429, %430, %cst_239 {dimension_numbers = #tpu.dot_dimension_numbers<[1], [0], [0], [1], [0, 0, 1, 1], [], []>} : vector<8x128xf32>, vector<128x32xf32>, vector<8x32xf32> -> vector<8x32xf32>
    %c0_240 = arith.constant 0 : index
    %c0_241 = arith.constant 0 : index
    %432 = vector.load %arg52[%c0_240, %c0_241] : memref<1x32xf32, #tpu.memory_space<vmem>>, vector<1x32xf32>
    %433 = vector.broadcast %432 : vector<1x32xf32> to vector<8x32xf32>
    %434 = arith.addf %431, %433 : vector<8x32xf32>
    %435 = arith.addf %392, %434 : vector<8x32xf32>
    %c0_242 = arith.constant 0 : index
    %c0_243 = arith.constant 0 : index
    %436 = vector.load %arg65[%c0_242, %c0_243] : memref<1x32xf32, #tpu.memory_space<vmem>>, vector<1x32xf32>
    %c0_244 = arith.constant 0 : index
    %c0_245 = arith.constant 0 : index
    %437 = vector.load %arg64[%c0_244, %c0_245] : memref<1x32xf32, #tpu.memory_space<vmem>>, vector<1x32xf32>
    %cst_246 = arith.constant dense<0.000000e+00> : vector<8xf32>
    %438 = vector.multi_reduction <add>, %435, %cst_246 [1] : vector<8x32xf32> to vector<8xf32>
    %439 = vector.shape_cast %438 : vector<8xf32> to vector<8x1xf32>
    %cst_247 = arith.constant 3.200000e+01 : f32
    %440 = vector.broadcast %cst_247 : f32 to vector<8x1xf32>
    %441 = arith.divf %439, %440 : vector<8x1xf32>
    %442 = vector.broadcast %441 : vector<8x1xf32> to vector<8x32xf32>
    %443 = arith.subf %435, %442 : vector<8x32xf32>
    %444 = arith.mulf %443, %443 : vector<8x32xf32>
    %cst_248 = arith.constant dense<0.000000e+00> : vector<8xf32>
    %445 = vector.multi_reduction <add>, %444, %cst_248 [1] : vector<8x32xf32> to vector<8xf32>
    %446 = vector.shape_cast %445 : vector<8xf32> to vector<8x1xf32>
    %cst_249 = arith.constant 3.200000e+01 : f32
    %447 = vector.broadcast %cst_249 : f32 to vector<8x1xf32>
    %448 = arith.divf %446, %447 : vector<8x1xf32>
    %449 = vector.broadcast %441 : vector<8x1xf32> to vector<8x32xf32>
    %450 = arith.subf %435, %449 : vector<8x32xf32>
    %cst_250 = arith.constant 9.99999974E-6 : f32
    %451 = vector.broadcast %cst_250 : f32 to vector<8x1xf32>
    %452 = arith.addf %448, %451 : vector<8x1xf32>
    %453 = math.rsqrt %452 : vector<8x1xf32>
    %454 = vector.broadcast %453 : vector<8x1xf32> to vector<8x32xf32>
    %455 = arith.mulf %450, %454 : vector<8x32xf32>
    %456 = vector.broadcast %436 : vector<1x32xf32> to vector<8x32xf32>
    %457 = arith.mulf %455, %456 : vector<8x32xf32>
    %458 = vector.broadcast %437 : vector<1x32xf32> to vector<8x32xf32>
    %459 = arith.addf %457, %458 : vector<8x32xf32>
    %460 = vector.extract_strided_slice %459 {offsets = [0, 0], sizes = [1, 32], strides = [1, 1]} : vector<8x32xf32> to vector<1x32xf32>
    %c0_251 = arith.constant 0 : index
    %c0_252 = arith.constant 0 : index
    %461 = vector.load %arg5[%c0_251, %c0_252] : memref<1x32xf32, #tpu.memory_space<vmem>>, vector<1x32xf32>
    %c0_253 = arith.constant 0 : index
    %c0_254 = arith.constant 0 : index
    %462 = vector.load %arg4[%c0_253, %c0_254] : memref<1x32xf32, #tpu.memory_space<vmem>>, vector<1x32xf32>
    %cst_255 = arith.constant dense<0.000000e+00> : vector<1xf32>
    %463 = vector.multi_reduction <add>, %460, %cst_255 [1] : vector<1x32xf32> to vector<1xf32>
    %464 = vector.shape_cast %463 : vector<1xf32> to vector<1x1xf32>
    %cst_256 = arith.constant 3.200000e+01 : f32
    %465 = vector.broadcast %cst_256 : f32 to vector<1x1xf32>
    %466 = arith.divf %464, %465 : vector<1x1xf32>
    %467 = vector.broadcast %466 : vector<1x1xf32> to vector<1x32xf32>
    %468 = arith.subf %460, %467 : vector<1x32xf32>
    %469 = arith.mulf %468, %468 : vector<1x32xf32>
    %cst_257 = arith.constant dense<0.000000e+00> : vector<1xf32>
    %470 = vector.multi_reduction <add>, %469, %cst_257 [1] : vector<1x32xf32> to vector<1xf32>
    %471 = vector.shape_cast %470 : vector<1xf32> to vector<1x1xf32>
    %cst_258 = arith.constant 3.200000e+01 : f32
    %472 = vector.broadcast %cst_258 : f32 to vector<1x1xf32>
    %473 = arith.divf %471, %472 : vector<1x1xf32>
    %474 = vector.broadcast %466 : vector<1x1xf32> to vector<1x32xf32>
    %475 = arith.subf %460, %474 : vector<1x32xf32>
    %cst_259 = arith.constant 9.99999974E-6 : f32
    %476 = vector.broadcast %cst_259 : f32 to vector<1x1xf32>
    %477 = arith.addf %473, %476 : vector<1x1xf32>
    %478 = math.rsqrt %477 : vector<1x1xf32>
    %479 = vector.broadcast %478 : vector<1x1xf32> to vector<1x32xf32>
    %480 = arith.mulf %475, %479 : vector<1x32xf32>
    %481 = arith.mulf %480, %461 : vector<1x32xf32>
    %482 = arith.addf %481, %462 : vector<1x32xf32>
    %c0_260 = arith.constant 0 : index
    %c0_261 = arith.constant 0 : index
    %483 = vector.load %arg6[%c0_260, %c0_261] : memref<32x128xf32, #tpu.memory_space<vmem>>, vector<32x128xf32>
    %cst_262 = arith.constant dense<0.000000e+00> : vector<1x128xf32>
    %484 = tpu.matmul %482, %483, %cst_262 {dimension_numbers = #tpu.dot_dimension_numbers<[1], [0], [0], [1], [0, 0, 1, 1], [], []>} : vector<1x32xf32>, vector<32x128xf32>, vector<1x128xf32> -> vector<1x128xf32>
    %c0_263 = arith.constant 0 : index
    %c0_264 = arith.constant 0 : index
    %485 = vector.load %arg3[%c0_263, %c0_264] : memref<1x128xf32, #tpu.memory_space<vmem>>, vector<1x128xf32>
    %486 = arith.addf %484, %485 : vector<1x128xf32>
    %c0_265 = arith.constant 0 : index
    %c0_266 = arith.constant 0 : index
    %c0_267 = arith.constant 0 : index
    %487 = vector.load %arg67[%c0_265, %c0_266, %c0_267] : memref<1x1x128xf32, #tpu.memory_space<vmem>>, vector<1x1x128xf32>
    %488 = vector.shape_cast %487 : vector<1x1x128xf32> to vector<1x128xf32>
    %489 = vector.shape_cast %486 : vector<1x128xf32> to vector<1x1x128xf32>
    tpu.vector_store %arg67[%c0_265, %c0_266, %c0_267], %489 {strides = array<i32>} : memref<1x1x128xf32, #tpu.memory_space<vmem>>, vector<1x1x128xf32>,
    return
  }
  func.func @transform_0(%arg0: i32) -> (i32, i32, i32) {
    %c0_i32 = arith.constant 0 : i32
    %c0_i32_0 = arith.constant 0 : i32
    %c0_i32_1 = arith.constant 0 : i32
    return %arg0, %c0_i32, %c0_i32_0 : i32, i32, i32
  }
  func.func @transform_1(%arg0: i32) -> (i32, i32) {
    %c0_i32 = arith.constant 0 : i32
    %c0_i32_0 = arith.constant 0 : i32
    %c0_i32_1 = arith.constant 0 : i32
    return %c0_i32, %c0_i32_0 : i32, i32
  }
  func.func @transform_2(%arg0: i32) -> (i32, i32) {
    %c0_i32 = arith.constant 0 : i32
    %c0_i32_0 = arith.constant 0 : i32
    %c0_i32_1 = arith.constant 0 : i32
    return %c0_i32, %c0_i32_0 : i32, i32
  }
  func.func @transform_3(%arg0: i32) -> (i32, i32) {
    %c0_i32 = arith.constant 0 : i32
    %c0_i32_0 = arith.constant 0 : i32
    %c0_i32_1 = arith.constant 0 : i32
    return %c0_i32, %c0_i32_0 : i32, i32
  }
  func.func @transform_4(%arg0: i32) -> (i32, i32) {
    %c0_i32 = arith.constant 0 : i32
    %c0_i32_0 = arith.constant 0 : i32
    %c0_i32_1 = arith.constant 0 : i32
    return %c0_i32, %c0_i32_0 : i32, i32
  }
  func.func @transform_5(%arg0: i32) -> (i32, i32) {
    %c0_i32 = arith.constant 0 : i32
    %c0_i32_0 = arith.constant 0 : i32
    %c0_i32_1 = arith.constant 0 : i32
    return %c0_i32, %c0_i32_0 : i32, i32
  }
  func.func @transform_6(%arg0: i32) -> (i32, i32) {
    %c0_i32 = arith.constant 0 : i32
    %c0_i32_0 = arith.constant 0 : i32
    %c0_i32_1 = arith.constant 0 : i32
    return %c0_i32, %c0_i32_0 : i32, i32
  }
  func.func @transform_7(%arg0: i32) -> (i32, i32) {
    %c0_i32 = arith.constant 0 : i32
    %c0_i32_0 = arith.constant 0 : i32
    %c0_i32_1 = arith.constant 0 : i32
    return %c0_i32, %c0_i32_0 : i32, i32
  }
  func.func @transform_8(%arg0: i32) -> (i32, i32) {
    %c0_i32 = arith.constant 0 : i32
    %c0_i32_0 = arith.constant 0 : i32
    %c0_i32_1 = arith.constant 0 : i32
    return %c0_i32, %c0_i32_0 : i32, i32
  }
  func.func @transform_9(%arg0: i32) -> (i32, i32) {
    %c0_i32 = arith.constant 0 : i32
    %c0_i32_0 = arith.constant 0 : i32
    %c0_i32_1 = arith.constant 0 : i32
    return %c0_i32, %c0_i32_0 : i32, i32
  }
  func.func @transform_10(%arg0: i32) -> (i32, i32) {
    %c0_i32 = arith.constant 0 : i32
    %c0_i32_0 = arith.constant 0 : i32
    %c0_i32_1 = arith.constant 0 : i32
    return %c0_i32, %c0_i32_0 : i32, i32
  }
  func.func @transform_11(%arg0: i32) -> (i32, i32) {
    %c0_i32 = arith.constant 0 : i32
    %c0_i32_0 = arith.constant 0 : i32
    %c0_i32_1 = arith.constant 0 : i32
    return %c0_i32, %c0_i32_0 : i32, i32
  }
  func.func @transform_12(%arg0: i32) -> (i32, i32) {
    %c0_i32 = arith.constant 0 : i32
    %c0_i32_0 = arith.constant 0 : i32
    %c0_i32_1 = arith.constant 0 : i32
    return %c0_i32, %c0_i32_0 : i32, i32
  }
  func.func @transform_13(%arg0: i32) -> (i32, i32) {
    %c0_i32 = arith.constant 0 : i32
    %c0_i32_0 = arith.constant 0 : i32
    %c0_i32_1 = arith.constant 0 : i32
    return %c0_i32, %c0_i32_0 : i32, i32
  }
  func.func @transform_14(%arg0: i32) -> (i32, i32) {
    %c0_i32 = arith.constant 0 : i32
    %c0_i32_0 = arith.constant 0 : i32
    %c0_i32_1 = arith.constant 0 : i32
    return %c0_i32, %c0_i32_0 : i32, i32
  }
  func.func @transform_15(%arg0: i32) -> (i32, i32) {
    %c0_i32 = arith.constant 0 : i32
    %c0_i32_0 = arith.constant 0 : i32
    %c0_i32_1 = arith.constant 0 : i32
    return %c0_i32, %c0_i32_0 : i32, i32
  }
  func.func @transform_16(%arg0: i32) -> (i32, i32) {
    %c0_i32 = arith.constant 0 : i32
    %c0_i32_0 = arith.constant 0 : i32
    %c0_i32_1 = arith.constant 0 : i32
    return %c0_i32, %c0_i32_0 : i32, i32
  }
  func.func @transform_17(%arg0: i32) -> (i32, i32) {
    %c0_i32 = arith.constant 0 : i32
    %c0_i32_0 = arith.constant 0 : i32
    %c0_i32_1 = arith.constant 0 : i32
    return %c0_i32, %c0_i32_0 : i32, i32
  }
  func.func @transform_18(%arg0: i32) -> (i32, i32, i32) {
    %c0_i32 = arith.constant 0 : i32
    %c0_i32_0 = arith.constant 0 : i32
    %c0_i32_1 = arith.constant 0 : i32
    %c0_i32_2 = arith.constant 0 : i32
    return %c0_i32, %c0_i32_0, %c0_i32_1 : i32, i32, i32
  }
  func.func @transform_19(%arg0: i32) -> (i32, i32, i32) {
    %c0_i32 = arith.constant 0 : i32
    %c0_i32_0 = arith.constant 0 : i32
    %c0_i32_1 = arith.constant 0 : i32
    %c0_i32_2 = arith.constant 0 : i32
    return %c0_i32, %c0_i32_0, %c0_i32_1 : i32, i32, i32
  }
  func.func @transform_20(%arg0: i32) -> (i32, i32, i32) {
    %c0_i32 = arith.constant 0 : i32
    %c0_i32_0 = arith.constant 0 : i32
    %c0_i32_1 = arith.constant 0 : i32
    %c0_i32_2 = arith.constant 0 : i32
    return %c0_i32, %c0_i32_0, %c0_i32_1 : i32, i32, i32
  }
  func.func @transform_21(%arg0: i32) -> (i32, i32, i32) {
    %c0_i32 = arith.constant 0 : i32
    %c0_i32_0 = arith.constant 0 : i32
    %c0_i32_1 = arith.constant 0 : i32
    %c0_i32_2 = arith.constant 0 : i32
    return %c0_i32, %c0_i32_0, %c0_i32_1 : i32, i32, i32
  }
  func.func @transform_22(%arg0: i32) -> (i32, i32) {
    %c0_i32 = arith.constant 0 : i32
    %c0_i32_0 = arith.constant 0 : i32
    %c0_i32_1 = arith.constant 0 : i32
    return %c0_i32, %c0_i32_0 : i32, i32
  }
  func.func @transform_23(%arg0: i32) -> (i32, i32) {
    %c0_i32 = arith.constant 0 : i32
    %c0_i32_0 = arith.constant 0 : i32
    %c0_i32_1 = arith.constant 0 : i32
    return %c0_i32, %c0_i32_0 : i32, i32
  }
  func.func @transform_24(%arg0: i32) -> (i32, i32) {
    %c0_i32 = arith.constant 0 : i32
    %c0_i32_0 = arith.constant 0 : i32
    %c0_i32_1 = arith.constant 0 : i32
    return %c0_i32, %c0_i32_0 : i32, i32
  }
  func.func @transform_25(%arg0: i32) -> (i32, i32) {
    %c0_i32 = arith.constant 0 : i32
    %c0_i32_0 = arith.constant 0 : i32
    %c0_i32_1 = arith.constant 0 : i32
    return %c0_i32, %c0_i32_0 : i32, i32
  }
  func.func @transform_26(%arg0: i32) -> (i32, i32) {
    %c0_i32 = arith.constant 0 : i32
    %c0_i32_0 = arith.constant 0 : i32
    %c0_i32_1 = arith.constant 0 : i32
    return %c0_i32, %c0_i32_0 : i32, i32
  }
  func.func @transform_27(%arg0: i32) -> (i32, i32) {
    %c0_i32 = arith.constant 0 : i32
    %c0_i32_0 = arith.constant 0 : i32
    %c0_i32_1 = arith.constant 0 : i32
    return %c0_i32, %c0_i32_0 : i32, i32
  }
  func.func @transform_28(%arg0: i32) -> (i32, i32) {
    %c0_i32 = arith.constant 0 : i32
    %c0_i32_0 = arith.constant 0 : i32
    %c0_i32_1 = arith.constant 0 : i32
    return %c0_i32, %c0_i32_0 : i32, i32
  }
  func.func @transform_29(%arg0: i32) -> (i32, i32) {
    %c0_i32 = arith.constant 0 : i32
    %c0_i32_0 = arith.constant 0 : i32
    %c0_i32_1 = arith.constant 0 : i32
    return %c0_i32, %c0_i32_0 : i32, i32
  }
  func.func @transform_30(%arg0: i32) -> (i32, i32) {
    %c0_i32 = arith.constant 0 : i32
    %c0_i32_0 = arith.constant 0 : i32
    %c0_i32_1 = arith.constant 0 : i32
    return %c0_i32, %c0_i32_0 : i32, i32
  }
  func.func @transform_31(%arg0: i32) -> (i32, i32, i32) {
    %c0_i32 = arith.constant 0 : i32
    %c0_i32_0 = arith.constant 0 : i32
    %c0_i32_1 = arith.constant 0 : i32
    %c0_i32_2 = arith.constant 0 : i32
    return %c0_i32, %c0_i32_0, %c0_i32_1 : i32, i32, i32
  }
  func.func @transform_32(%arg0: i32) -> (i32, i32, i32) {
    %c0_i32 = arith.constant 0 : i32
    %c0_i32_0 = arith.constant 0 : i32
    %c0_i32_1 = arith.constant 0 : i32
    %c0_i32_2 = arith.constant 0 : i32
    return %c0_i32, %c0_i32_0, %c0_i32_1 : i32, i32, i32
  }
  func.func @transform_33(%arg0: i32) -> (i32, i32, i32) {
    %c0_i32 = arith.constant 0 : i32
    %c0_i32_0 = arith.constant 0 : i32
    %c0_i32_1 = arith.constant 0 : i32
    %c0_i32_2 = arith.constant 0 : i32
    return %c0_i32, %c0_i32_0, %c0_i32_1 : i32, i32, i32
  }
  func.func @transform_34(%arg0: i32) -> (i32, i32, i32) {
    %c0_i32 = arith.constant 0 : i32
    %c0_i32_0 = arith.constant 0 : i32
    %c0_i32_1 = arith.constant 0 : i32
    %c0_i32_2 = arith.constant 0 : i32
    return %c0_i32, %c0_i32_0, %c0_i32_1 : i32, i32, i32
  }
  func.func @transform_35(%arg0: i32) -> (i32, i32) {
    %c0_i32 = arith.constant 0 : i32
    %c0_i32_0 = arith.constant 0 : i32
    %c0_i32_1 = arith.constant 0 : i32
    return %c0_i32, %c0_i32_0 : i32, i32
  }
  func.func @transform_36(%arg0: i32) -> (i32, i32) {
    %c0_i32 = arith.constant 0 : i32
    %c0_i32_0 = arith.constant 0 : i32
    %c0_i32_1 = arith.constant 0 : i32
    return %c0_i32, %c0_i32_0 : i32, i32
  }
  func.func @transform_37(%arg0: i32) -> (i32, i32) {
    %c0_i32 = arith.constant 0 : i32
    %c0_i32_0 = arith.constant 0 : i32
    %c0_i32_1 = arith.constant 0 : i32
    return %c0_i32, %c0_i32_0 : i32, i32
  }
  func.func @transform_38(%arg0: i32) -> (i32, i32) {
    %c0_i32 = arith.constant 0 : i32
    %c0_i32_0 = arith.constant 0 : i32
    %c0_i32_1 = arith.constant 0 : i32
    return %c0_i32, %c0_i32_0 : i32, i32
  }
  func.func @transform_39(%arg0: i32) -> (i32, i32) {
    %c0_i32 = arith.constant 0 : i32
    %c0_i32_0 = arith.constant 0 : i32
    %c0_i32_1 = arith.constant 0 : i32
    return %c0_i32, %c0_i32_0 : i32, i32
  }
  func.func @transform_40(%arg0: i32) -> (i32, i32) {
    %c0_i32 = arith.constant 0 : i32
    %c0_i32_0 = arith.constant 0 : i32
    %c0_i32_1 = arith.constant 0 : i32
    return %c0_i32, %c0_i32_0 : i32, i32
  }
  func.func @transform_41(%arg0: i32) -> (i32, i32) {
    %c0_i32 = arith.constant 0 : i32
    %c0_i32_0 = arith.constant 0 : i32
    %c0_i32_1 = arith.constant 0 : i32
    return %c0_i32, %c0_i32_0 : i32, i32
  }
  func.func @transform_42(%arg0: i32) -> (i32, i32) {
    %c0_i32 = arith.constant 0 : i32
    %c0_i32_0 = arith.constant 0 : i32
    %c0_i32_1 = arith.constant 0 : i32
    return %c0_i32, %c0_i32_0 : i32, i32
  }
  func.func @transform_43(%arg0: i32) -> (i32, i32) {
    %c0_i32 = arith.constant 0 : i32
    %c0_i32_0 = arith.constant 0 : i32
    %c0_i32_1 = arith.constant 0 : i32
    return %c0_i32, %c0_i32_0 : i32, i32
  }
  func.func @transform_44(%arg0: i32) -> (i32, i32) {
    %c0_i32 = arith.constant 0 : i32
    %c0_i32_0 = arith.constant 0 : i32
    %c0_i32_1 = arith.constant 0 : i32
    return %c0_i32, %c0_i32_0 : i32, i32
  }
  func.func @transform_45(%arg0: i32) -> (i32, i32) {
    %c0_i32 = arith.constant 0 : i32
    %c0_i32_0 = arith.constant 0 : i32
    %c0_i32_1 = arith.constant 0 : i32
    return %c0_i32, %c0_i32_0 : i32, i32
  }
  func.func @transform_46(%arg0: i32) -> (i32, i32, i32) {
    %c0_i32 = arith.constant 0 : i32
    %c0_i32_0 = arith.constant 0 : i32
    %c0_i32_1 = arith.constant 0 : i32
    %c0_i32_2 = arith.constant 0 : i32
    return %c0_i32, %c0_i32_0, %c0_i32_1 : i32, i32, i32
  }
  func.func @transform_47(%arg0: i32) -> (i32, i32, i32) {
    %c0_i32 = arith.constant 0 : i32
    %c0_i32_0 = arith.constant 0 : i32
    %c0_i32_1 = arith.constant 0 : i32
    %c0_i32_2 = arith.constant 0 : i32
    return %c0_i32, %c0_i32_0, %c0_i32_1 : i32, i32, i32
  }
  func.func @transform_48(%arg0: i32) -> (i32, i32, i32) {
    %c0_i32 = arith.constant 0 : i32
    %c0_i32_0 = arith.constant 0 : i32
    %c0_i32_1 = arith.constant 0 : i32
    %c0_i32_2 = arith.constant 0 : i32
    return %c0_i32, %c0_i32_0, %c0_i32_1 : i32, i32, i32
  }
  func.func @transform_49(%arg0: i32) -> (i32, i32, i32) {
    %c0_i32 = arith.constant 0 : i32
    %c0_i32_0 = arith.constant 0 : i32
    %c0_i32_1 = arith.constant 0 : i32
    %c0_i32_2 = arith.constant 0 : i32
    return %c0_i32, %c0_i32_0, %c0_i32_1 : i32, i32, i32
  }
  func.func @transform_50(%arg0: i32) -> (i32, i32) {
    %c0_i32 = arith.constant 0 : i32
    %c0_i32_0 = arith.constant 0 : i32
    %c0_i32_1 = arith.constant 0 : i32
    return %c0_i32, %c0_i32_0 : i32, i32
  }
  func.func @transform_51(%arg0: i32) -> (i32, i32) {
    %c0_i32 = arith.constant 0 : i32
    %c0_i32_0 = arith.constant 0 : i32
    %c0_i32_1 = arith.constant 0 : i32
    return %c0_i32, %c0_i32_0 : i32, i32
  }
  func.func @transform_52(%arg0: i32) -> (i32, i32) {
    %c0_i32 = arith.constant 0 : i32
    %c0_i32_0 = arith.constant 0 : i32
    %c0_i32_1 = arith.constant 0 : i32
    return %c0_i32, %c0_i32_0 : i32, i32
  }
  func.func @transform_53(%arg0: i32) -> (i32, i32) {
    %c0_i32 = arith.constant 0 : i32
    %c0_i32_0 = arith.constant 0 : i32
    %c0_i32_1 = arith.constant 0 : i32
    return %c0_i32, %c0_i32_0 : i32, i32
  }
  func.func @transform_54(%arg0: i32) -> (i32, i32) {
    %c0_i32 = arith.constant 0 : i32
    %c0_i32_0 = arith.constant 0 : i32
    %c0_i32_1 = arith.constant 0 : i32
    return %c0_i32, %c0_i32_0 : i32, i32
  }
  func.func @transform_55(%arg0: i32) -> (i32, i32) {
    %c0_i32 = arith.constant 0 : i32
    %c0_i32_0 = arith.constant 0 : i32
    %c0_i32_1 = arith.constant 0 : i32
    return %c0_i32, %c0_i32_0 : i32, i32
  }
  func.func @transform_56(%arg0: i32) -> (i32, i32) {
    %c0_i32 = arith.constant 0 : i32
    %c0_i32_0 = arith.constant 0 : i32
    %c0_i32_1 = arith.constant 0 : i32
    return %c0_i32, %c0_i32_0 : i32, i32
  }
  func.func @transform_57(%arg0: i32) -> (i32, i32) {
    %c0_i32 = arith.constant 0 : i32
    %c0_i32_0 = arith.constant 0 : i32
    %c0_i32_1 = arith.constant 0 : i32
    return %c0_i32, %c0_i32_0 : i32, i32
  }
  func.func @transform_58(%arg0: i32) -> (i32, i32) {
    %c0_i32 = arith.constant 0 : i32
    %c0_i32_0 = arith.constant 0 : i32
    %c0_i32_1 = arith.constant 0 : i32
    return %c0_i32, %c0_i32_0 : i32, i32
  }
  func.func @transform_59(%arg0: i32) -> (i32, i32, i32) {
    %c0_i32 = arith.constant 0 : i32
    %c0_i32_0 = arith.constant 0 : i32
    %c0_i32_1 = arith.constant 0 : i32
    %c0_i32_2 = arith.constant 0 : i32
    return %c0_i32, %c0_i32_0, %c0_i32_1 : i32, i32, i32
  }
  func.func @transform_60(%arg0: i32) -> (i32, i32, i32) {
    %c0_i32 = arith.constant 0 : i32
    %c0_i32_0 = arith.constant 0 : i32
    %c0_i32_1 = arith.constant 0 : i32
    %c0_i32_2 = arith.constant 0 : i32
    return %c0_i32, %c0_i32_0, %c0_i32_1 : i32, i32, i32
  }
  func.func @transform_61(%arg0: i32) -> (i32, i32, i32) {
    %c0_i32 = arith.constant 0 : i32
    %c0_i32_0 = arith.constant 0 : i32
    %c0_i32_1 = arith.constant 0 : i32
    %c0_i32_2 = arith.constant 0 : i32
    return %c0_i32, %c0_i32_0, %c0_i32_1 : i32, i32, i32
  }
  func.func @transform_62(%arg0: i32) -> (i32, i32, i32) {
    %c0_i32 = arith.constant 0 : i32
    %c0_i32_0 = arith.constant 0 : i32
    %c0_i32_1 = arith.constant 0 : i32
    %c0_i32_2 = arith.constant 0 : i32
    return %c0_i32, %c0_i32_0, %c0_i32_1 : i32, i32, i32
  }
  func.func @transform_63(%arg0: i32) -> (i32, i32) {
    %c0_i32 = arith.constant 0 : i32
    %c0_i32_0 = arith.constant 0 : i32
    %c0_i32_1 = arith.constant 0 : i32
    return %c0_i32, %c0_i32_0 : i32, i32
  }
  func.func @transform_64(%arg0: i32) -> (i32, i32) {
    %c0_i32 = arith.constant 0 : i32
    %c0_i32_0 = arith.constant 0 : i32
    %c0_i32_1 = arith.constant 0 : i32
    return %c0_i32, %c0_i32_0 : i32, i32
  }
  func.func @transform_65(%arg0: i32) -> (i32, i32) {
    %c0_i32 = arith.constant 0 : i32
    %c0_i32_0 = arith.constant 0 : i32
    %c0_i32_1 = arith.constant 0 : i32
    return %c0_i32, %c0_i32_0 : i32, i32
  }
  func.func @transform_66(%arg0: i32) -> (i32, i32, i32) {
    %c0_i32 = arith.constant 0 : i32
    %c0_i32_0 = arith.constant 0 : i32
    %c0_i32_1 = arith.constant 0 : i32
    return %arg0, %c0_i32, %c0_i32_0 : i32, i32, i32
  }
}

</mosaic_0001>

<llo_original>
// kernel: vivit_forward_pallas.1
$region0: #{vivit_forward_pallas.1}
  #allocation0 [shape = 'u32[]', space=smem, size = 0x4, offset = 0x4, fixed_abs, tag = 'smem constant byte address 0x4 - core index']
  #allocation1 [shape = 'u32[72,128]{1,0:T(1,128)}', space=vmem, size = 0x9000, scoped, tag = 'internal scratch']
  %s0 = inlined_call_operand.smem [shape: u32[67], index: -1, kind: input, shape index: {}]
  %s1 = sld [smem:[%s0]]
  %s2 = scalar_lea.smem %s0, 1
  %s3 = sld [smem:[%s2]]
  %s4 = scalar_lea.smem %s0, 2
  %s5 = sld [smem:[%s4]]
  %s6 = scalar_lea.smem %s0, 3
  %s7 = sld [smem:[%s6]]
  %s8 = scalar_lea.smem %s0, 4
  %s9 = sld [smem:[%s8]]
  %s10 = scalar_lea.smem %s0, 5
  %s11 = sld [smem:[%s10]]
  %s12 = scalar_lea.smem %s0, 6
  %s13 = sld [smem:[%s12]]
  %s14 = scalar_lea.smem %s0, 7
  %s15 = sld [smem:[%s14]]
  %s16 = scalar_lea.smem %s0, 8
  %s17 = sld [smem:[%s16]]
  %s18 = scalar_lea.smem %s0, 9
  %s19 = sld [smem:[%s18]]
  %s20 = scalar_lea.smem %s0, 10
  %s21 = sld [smem:[%s20]]
  %s22 = scalar_lea.smem %s0, 11
  %s23 = sld [smem:[%s22]]
  %s24 = scalar_lea.smem %s0, 12
  %s25 = sld [smem:[%s24]]
  %s26 = scalar_lea.smem %s0, 13
  %s27 = sld [smem:[%s26]]
  %s28 = scalar_lea.smem %s0, 14
  %s29 = sld [smem:[%s28]]
  %s30 = scalar_lea.smem %s0, 15
  %s31 = sld [smem:[%s30]]
  %s32 = scalar_lea.smem %s0, 16
  %s33 = sld [smem:[%s32]]
  %s34 = scalar_lea.smem %s0, 17
  %s35 = sld [smem:[%s34]]
  %s36 = scalar_lea.smem %s0, 18
  %s37 = sld [smem:[%s36]]
  %s38 = scalar_lea.smem %s0, 19
  %s39 = sld [smem:[%s38]]
  %s40 = scalar_lea.smem %s0, 20
  %s41 = sld [smem:[%s40]]
  %s42 = scalar_lea.smem %s0, 21
  %s43 = sld [smem:[%s42]]
  %s44 = scalar_lea.smem %s0, 22
  %s45 = sld [smem:[%s44]]
  %s46 = scalar_lea.smem %s0, 23
  %s47 = sld [smem:[%s46]]
  %s48 = scalar_lea.smem %s0, 24
  %s49 = sld [smem:[%s48]]
  %s50 = scalar_lea.smem %s0, 25
  %s51 = sld [smem:[%s50]]
  %s52 = scalar_lea.smem %s0, 26
  %s53 = sld [smem:[%s52]]
  %s54 = scalar_lea.smem %s0, 27
  %s55 = sld [smem:[%s54]]
  %s56 = scalar_lea.smem %s0, 28
  %s57 = sld [smem:[%s56]]
  %s58 = scalar_lea.smem %s0, 29
  %s59 = sld [smem:[%s58]]
  %s60 = scalar_lea.smem %s0, 30
  %s61 = sld [smem:[%s60]]
  %s62 = scalar_lea.smem %s0, 31
  %s63 = sld [smem:[%s62]]
  %s64 = scalar_lea.smem %s0, 32
  %s65 = sld [smem:[%s64]]
  %s66 = scalar_lea.smem %s0, 33
  %s67 = sld [smem:[%s66]]
  %s68 = scalar_lea.smem %s0, 34
  %s69 = sld [smem:[%s68]]
  %s70 = scalar_lea.smem %s0, 35
  %s71 = sld [smem:[%s70]]
  %s72 = scalar_lea.smem %s0, 36
  %s73 = sld [smem:[%s72]]
  %s74 = scalar_lea.smem %s0, 37
  %s75 = sld [smem:[%s74]]
  %s76 = scalar_lea.smem %s0, 38
  %s77 = sld [smem:[%s76]]
  %s78 = scalar_lea.smem %s0, 39
  %s79 = sld [smem:[%s78]]
  %s80 = scalar_lea.smem %s0, 40
  %s81 = sld [smem:[%s80]]
  %s82 = scalar_lea.smem %s0, 41
  %s83 = sld [smem:[%s82]]
  %s84 = scalar_lea.smem %s0, 42
  %s85 = sld [smem:[%s84]]
  %s86 = scalar_lea.smem %s0, 43
  %s87 = sld [smem:[%s86]]
  %s88 = scalar_lea.smem %s0, 44
  %s89 = sld [smem:[%s88]]
  %s90 = scalar_lea.smem %s0, 45
  %s91 = sld [smem:[%s90]]
  %s92 = scalar_lea.smem %s0, 46
  %s93 = sld [smem:[%s92]]
  %s94 = scalar_lea.smem %s0, 47
  %s95 = sld [smem:[%s94]]
  %s96 = scalar_lea.smem %s0, 48
  %s97 = sld [smem:[%s96]]
  %s98 = scalar_lea.smem %s0, 49
  %s99 = sld [smem:[%s98]]
  %s100 = scalar_lea.smem %s0, 50
  %s101 = sld [smem:[%s100]]
  %s102 = scalar_lea.smem %s0, 51
  %s103 = sld [smem:[%s102]]
  %s104 = scalar_lea.smem %s0, 52
  %s105 = sld [smem:[%s104]]
  %s106 = scalar_lea.smem %s0, 53
  %s107 = sld [smem:[%s106]]
  %s108 = scalar_lea.smem %s0, 54
  %s109 = sld [smem:[%s108]]
  %s110 = scalar_lea.smem %s0, 55
  %s111 = sld [smem:[%s110]]
  %s112 = scalar_lea.smem %s0, 56
  %s113 = sld [smem:[%s112]]
  %s114 = scalar_lea.smem %s0, 57
  %s115 = sld [smem:[%s114]]
  %s116 = scalar_lea.smem %s0, 58
  %s117 = sld [smem:[%s116]]
  %s118 = scalar_lea.smem %s0, 59
  %s119 = sld [smem:[%s118]]
  %s120 = scalar_lea.smem %s0, 60
  %s121 = sld [smem:[%s120]]
  %s122 = scalar_lea.smem %s0, 61
  %s123 = sld [smem:[%s122]]
  %s124 = scalar_lea.smem %s0, 62
  %s125 = sld [smem:[%s124]]
  %s126 = scalar_lea.smem %s0, 63
  %s127 = sld [smem:[%s126]]
  %s128 = scalar_lea.smem %s0, 64
  %s129 = sld [smem:[%s128]]
  %s130 = scalar_lea.smem %s0, 65
  %s131 = sld [smem:[%s130]]
  %s132 = scalar_lea.smem %s0, 66
  %s133 = sld [smem:[%s132]]
  %s134 = sld [smem:[#allocation0]]
  $region309: #{vivit_forward_pallas.1} parent=0
    _
  %s136 = ssub.s32 1, %s134
  %s137 = scalar_select 0, %s136, %s134
  $region1: #{vivit_forward_pallas.1} parent=0
    #allocation2 [shape = 'u8[512]{0}', space=vmem, size = 0x400, scoped, tag = 'input window, operand 63, single buffered']
    #allocation3 [shape = 's32[2]{0}', space=sflag, size = 0x8, scoped, tag = 'scoped memory for vivit_forward_pallas.1']
    #allocation4 [shape = 's32[2]{0}', space=sflag, size = 0x8, scoped, tag = 'scoped memory for vivit_forward_pallas.1']
    #allocation5 [shape = 'u8[512]{0}', space=vmem, size = 0x400, scoped, tag = 'input window, operand 64, single buffered']
    #allocation6 [shape = 's32[1]{0}', space=sflag, size = 0x4, scoped, tag = 'scoped memory for vivit_forward_pallas.1']
    #allocation7 [shape = 'u8[512]{0}', space=vmem, size = 0x400, scoped, tag = 'input window, operand 65, single buffered']
    #allocation8 [shape = 'u8[1024]{0}', space=vmem, size = 0x400, scoped, tag = 'output window, operand 0']
    %138 = vsyncpa [#allocation3], 0
    %139 = vsyncpa [#allocation6], 0
    %140 = vsyncpa [#allocation4], 0
    %s141 = scalar_lea.sflag [#allocation4], 1
    %142 = vsyncpa %s141, 0
    loop: start=0, step=1, limit=4
    $region2: #{vivit_forward_pallas.1} parent=1 // loop_pre_header
      _
    $region3: #{vivit_forward_pallas.1} parent=1 // loop_header
      %s144 = sphi 0, %s148
      %p145 = scmp.ge.s32.totalorder %s144, 4
      %s154 = sphi 0, %s156
      %s157 = sphi 0, %s154
      %s158 = sphi 0, %s157
      %s174 = sphi 0, %s158
      %s178 = sphi 0, %s178
      %s180 = sphi 0, %s178
      %s181 = sphi 0, %s180
      %s195 = sphi 0, %s181
      %s199 = sphi 0, %s199
      %s201 = sphi 0, %s199
      %s202 = sphi 0, %s201
      %s216 = sphi 0, %s202
      %s220 = sphi 0, %s220
      %s222 = sphi 0, %s220
      %s223 = sphi 0, %s222
      %s237 = sphi 0, %s223
      %s241 = sphi 0, %s241
      %s243 = sphi 0, %s241
      %s244 = sphi 0, %s243
      %s258 = sphi 0, %s244
      %s262 = sphi 0, %s262
      %s264 = sphi 0, %s262
      %s265 = sphi 0, %s264
      %s279 = sphi 0, %s265
      %s283 = sphi 0, %s283
      %s285 = sphi 0, %s283
      %s286 = sphi 0, %s285
      %s300 = sphi 0, %s286
      %s304 = sphi 0, %s304
      %s306 = sphi 0, %s304
      %s307 = sphi 0, %s306
      %s321 = sphi 0, %s307
      %s325 = sphi 0, %s325
      %s327 = sphi 0, %s325
      %s328 = sphi 0, %s327
      %s342 = sphi 0, %s328
      %s346 = sphi 0, %s346
      %s348 = sphi 0, %s346
      %s349 = sphi 0, %s348
      %s363 = sphi 0, %s349
      %s367 = sphi 0, %s367
      %s369 = sphi 0, %s367
      %s370 = sphi 0, %s369
      %s384 = sphi 0, %s370
      %s388 = sphi 0, %s388
      %s390 = sphi 0, %s388
      %s391 = sphi 0, %s390
      %s405 = sphi 0, %s391
      %s409 = sphi 0, %s409
      %s411 = sphi 0, %s409
      %s412 = sphi 0, %s411
      %s426 = sphi 0, %s412
      %s430 = sphi 0, %s430
      %s432 = sphi 0, %s430
      %s433 = sphi 0, %s432
      %s447 = sphi 0, %s433
      %s451 = sphi 0, %s451
      %s453 = sphi 0, %s451
      %s454 = sphi 0, %s453
      %s468 = sphi 0, %s454
      %s472 = sphi 0, %s472
      %s474 = sphi 0, %s472
      %s475 = sphi 0, %s474
      %s489 = sphi 0, %s475
      %s493 = sphi 0, %s493
      %s495 = sphi 0, %s493
      %s496 = sphi 0, %s495
      %s510 = sphi 0, %s496
      %s514 = sphi 0, %s514
      %s516 = sphi 0, %s514
      %s517 = sphi 0, %s516
      %s531 = sphi 0, %s517
      %s535 = sphi 0, %s535
      %s537 = sphi 0, %s535
      %s538 = sphi 0, %s537
      %s552 = sphi 0, %s538
      %s556 = sphi 0, %s556
      %s558 = sphi 0, %s556
      %s559 = sphi 0, %s558
      %s573 = sphi 0, %s559
      %s577 = sphi 0, %s577
      %s579 = sphi 0, %s577
      %s580 = sphi 0, %s579
      %s594 = sphi 0, %s580
      %s598 = sphi 0, %s598
      %s600 = sphi 0, %s598
      %s601 = sphi 0, %s600
      %s615 = sphi 0, %s601
      %s619 = sphi 0, %s619
      %s621 = sphi 0, %s619
      %s622 = sphi 0, %s621
      %s636 = sphi 0, %s622
      %s640 = sphi 0, %s640
      %s642 = sphi 0, %s640
      %s643 = sphi 0, %s642
      %s657 = sphi 0, %s643
      %s661 = sphi 0, %s661
      %s663 = sphi 0, %s661
      %s664 = sphi 0, %s663
      %s678 = sphi 0, %s664
      %s682 = sphi 0, %s682
      %s684 = sphi 0, %s682
      %s685 = sphi 0, %s684
      %s699 = sphi 0, %s685
      %s703 = sphi 0, %s703
      %s705 = sphi 0, %s703
      %s706 = sphi 0, %s705
      %s720 = sphi 0, %s706
      %s724 = sphi 0, %s724
      %s726 = sphi 0, %s724
      %s727 = sphi 0, %s726
      %s741 = sphi 0, %s727
      %s745 = sphi 0, %s745
      %s747 = sphi 0, %s745
      %s748 = sphi 0, %s747
      %s762 = sphi 0, %s748
      %s766 = sphi 0, %s766
      %s768 = sphi 0, %s766
      %s769 = sphi 0, %s768
      %s783 = sphi 0, %s769
      %s787 = sphi 0, %s787
      %s789 = sphi 0, %s787
      %s790 = sphi 0, %s789
      %s804 = sphi 0, %s790
      %s808 = sphi 0, %s808
      %s810 = sphi 0, %s808
      %s811 = sphi 0, %s810
      %s825 = sphi 0, %s811
      %s829 = sphi 0, %s829
      %s831 = sphi 0, %s829
      %s832 = sphi 0, %s831
      %s846 = sphi 0, %s832
      %s850 = sphi 0, %s850
      %s852 = sphi 0, %s850
      %s853 = sphi 0, %s852
      %s867 = sphi 0, %s853
      %s871 = sphi 0, %s871
      %s873 = sphi 0, %s871
      %s874 = sphi 0, %s873
      %s888 = sphi 0, %s874
      %s892 = sphi 0, %s892
      %s894 = sphi 0, %s892
      %s895 = sphi 0, %s894
      %s909 = sphi 0, %s895
      %s913 = sphi 0, %s913
      %s915 = sphi 0, %s913
      %s916 = sphi 0, %s915
      %s930 = sphi 0, %s916
      %s934 = sphi 0, %s934
      %s936 = sphi 0, %s934
      %s937 = sphi 0, %s936
      %s951 = sphi 0, %s937
      %s955 = sphi 0, %s955
      %s957 = sphi 0, %s955
      %s958 = sphi 0, %s957
      %s972 = sphi 0, %s958
      %s976 = sphi 0, %s976
      %s978 = sphi 0, %s976
      %s979 = sphi 0, %s978
      %s993 = sphi 0, %s979
      %s997 = sphi 0, %s997
      %s999 = sphi 0, %s997
      %s1000 = sphi 0, %s999
      %s1014 = sphi 0, %s1000
      %s1018 = sphi 0, %s1018
      %s1020 = sphi 0, %s1018
      %s1021 = sphi 0, %s1020
      %s1035 = sphi 0, %s1021
      %s1039 = sphi 0, %s1039
      %s1041 = sphi 0, %s1039
      %s1042 = sphi 0, %s1041
      %s1056 = sphi 0, %s1042
      %s1060 = sphi 0, %s1060
      %s1062 = sphi 0, %s1060
      %s1063 = sphi 0, %s1062
      %s1077 = sphi 0, %s1063
      %s1081 = sphi 0, %s1081
      %s1083 = sphi 0, %s1081
      %s1084 = sphi 0, %s1083
      %s1098 = sphi 0, %s1084
      %s1102 = sphi 0, %s1102
      %s1104 = sphi 0, %s1102
      %s1105 = sphi 0, %s1104
      %s1119 = sphi 0, %s1105
      %s1123 = sphi 0, %s1123
      %s1125 = sphi 0, %s1123
      %s1126 = sphi 0, %s1125
      %s1140 = sphi 0, %s1126
      %s1144 = sphi 0, %s1144
      %s1146 = sphi 0, %s1144
      %s1147 = sphi 0, %s1146
      %s1161 = sphi 0, %s1147
      %s1165 = sphi 0, %s1165
      %s1167 = sphi 0, %s1165
      %s1168 = sphi 0, %s1167
      %s1182 = sphi 0, %s1168
      %s1186 = sphi 0, %s1186
      %s1188 = sphi 0, %s1186
      %s1189 = sphi 0, %s1188
      %s1203 = sphi 0, %s1189
      %s1207 = sphi 0, %s1207
      %s1209 = sphi 0, %s1207
      %s1210 = sphi 0, %s1209
      %s1224 = sphi 0, %s1210
      %s1228 = sphi 0, %s1228
      %s1230 = sphi 0, %s1228
      %s1231 = sphi 0, %s1230
      %s1245 = sphi 0, %s1231
      %s1249 = sphi 0, %s1249
      %s1251 = sphi 0, %s1249
      %s1252 = sphi 0, %s1251
      %s1266 = sphi 0, %s1252
      %s1270 = sphi 0, %s1270
      %s1272 = sphi 0, %s1270
      %s1273 = sphi 0, %s1272
      %s1287 = sphi 0, %s1273
      %s1291 = sphi 0, %s1291
      %s1293 = sphi 0, %s1291
      %s1294 = sphi 0, %s1293
      %s1308 = sphi 0, %s1294
      %s1312 = sphi 0, %s1312
      %s1314 = sphi 0, %s1312
      %s1315 = sphi 0, %s1314
      %s1329 = sphi 0, %s1315
      %s1333 = sphi 0, %s1333
      %s1335 = sphi 0, %s1333
      %s1336 = sphi 0, %s1335
      %s1350 = sphi 0, %s1336
      %s1354 = sphi 0, %s1354
      %s1356 = sphi 0, %s1354
      %s1357 = sphi 0, %s1356
      %s1371 = sphi 0, %s1357
      %s1375 = sphi 0, %s1375
      %s1377 = sphi 0, %s1375
      %s1378 = sphi 0, %s1377
      %s1392 = sphi 0, %s1378
      %s1396 = sphi 0, %s1396
      %s1398 = sphi 0, %s1396
      %s1399 = sphi 0, %s1398
      %s1413 = sphi 0, %s1399
      %s1417 = sphi 0, %s1417
      %s1419 = sphi 0, %s1417
      %s1420 = sphi 0, %s1419
      %s1434 = sphi 0, %s1420
      %s1438 = sphi 0, %s1438
      %s1440 = sphi 0, %s1438
      %s1441 = sphi 0, %s1440
      %s1455 = sphi 0, %s1441
      %s1459 = sphi 0, %s1459
      %s1461 = sphi 0, %s1459
      %s1462 = sphi 0, %s1461
      %s1476 = sphi 0, %s1462
      %s1480 = sphi 0, %s1480
      %s1482 = sphi 0, %s1480
      %s1483 = sphi 0, %s1482
      %s1497 = sphi 0, %s1483
      %s1501 = sphi 0, %s1501
      %s1503 = sphi 0, %s1501
      %s1504 = sphi 0, %s1503
      %s1518 = sphi 0, %s1504
      %s1522 = sphi 0, %s1522
      %s1524 = sphi 0, %s1522
      %s1525 = sphi 0, %s1524
      %s1539 = sphi 0, %s1525
      %s1545 = sphi 0, %s1547
      %s1548 = sphi 0, %s1545
      %s1549 = sphi 0, %s1548
      %s1565 = sphi 0, %s1549
    $region4: #{vivit_forward_pallas.1} parent=1 // loop_header_branch
      %147 = sbr.rel (%p145) target = $region8
    $region5: #{vivit_forward_pallas.1} parent=1 // loop_body
      %s149 = ssub.s32 %s144, 1
      %s150 = ssub.s32 %s144, 2
      %s151 = sadd.s32 %s144, 1
      %s152 = ssub.s32 %s144, %s151
      %p153 = scmp.eq.s32.totalorder %s152, 0
      %s155 = sadd.s32 %s154, 1
      %s156 = scalar_select %p153, %s154, %s155
      %p159 = pneg %p153
      %p160 = scmp.eq.s32.totalorder %s144, 1
      %p161 = por %p159, %p160
      %p162 = scmp.ne.s32.totalorder %s154, %s157
      %p163 = scmp.eq.s32.totalorder %s144, 0
      %p164 = por %p162, %p163
      %p165 = scmp.ne.s32.totalorder %s154, %s157
      %p166 = scmp.eq.s32.totalorder %s149, 1
      %p167 = por %p165, %p166
      %p168 = scmp.ne.s32.totalorder %s157, %s158
      %p169 = scmp.eq.s32.totalorder %s149, 0
      %p170 = por %p168, %p169
      %p171 = scmp.ne.s32.totalorder %s157, %s158
      %p172 = scmp.eq.s32.totalorder %s150, 1
      %p173 = por %p171, %p172
      %p175 = scmp.ne.s32.totalorder %s158, %s174
      %p176 = scmp.eq.s32.totalorder %s150, 0
      %p177 = por %p175, %p176
      %s179 = sadd.s32 %s178, 1
      %p182 = scmp.eq.s32.totalorder %s144, 1
      %p183 = scmp.ne.s32.totalorder %s178, %s180
      %p184 = scmp.eq.s32.totalorder %s144, 0
      %p185 = por %p183, %p184
      %p186 = scmp.ne.s32.totalorder %s178, %s180
      %p187 = scmp.eq.s32.totalorder %s149, 1
      %p188 = por %p186, %p187
      %p189 = scmp.ne.s32.totalorder %s180, %s181
      %p190 = scmp.eq.s32.totalorder %s149, 0
      %p191 = por %p189, %p190
      %p192 = scmp.ne.s32.totalorder %s180, %s181
      %p193 = scmp.eq.s32.totalorder %s150, 1
      %p194 = por %p192, %p193
      %p196 = scmp.ne.s32.totalorder %s181, %s195
      %p197 = scmp.eq.s32.totalorder %s150, 0
      %p198 = por %p196, %p197
      %s200 = sadd.s32 %s199, 1
      %p203 = scmp.eq.s32.totalorder %s144, 1
      %p204 = scmp.ne.s32.totalorder %s199, %s201
      %p205 = scmp.eq.s32.totalorder %s144, 0
      %p206 = por %p204, %p205
      %p207 = scmp.ne.s32.totalorder %s199, %s201
      %p208 = scmp.eq.s32.totalorder %s149, 1
      %p209 = por %p207, %p208
      %p210 = scmp.ne.s32.totalorder %s201, %s202
      %p211 = scmp.eq.s32.totalorder %s149, 0
      %p212 = por %p210, %p211
      %p213 = scmp.ne.s32.totalorder %s201, %s202
      %p214 = scmp.eq.s32.totalorder %s150, 1
      %p215 = por %p213, %p214
      %p217 = scmp.ne.s32.totalorder %s202, %s216
      %p218 = scmp.eq.s32.totalorder %s150, 0
      %p219 = por %p217, %p218
      %s221 = sadd.s32 %s220, 1
      %p224 = scmp.eq.s32.totalorder %s144, 1
      %p225 = scmp.ne.s32.totalorder %s220, %s222
      %p226 = scmp.eq.s32.totalorder %s144, 0
      %p227 = por %p225, %p226
      %p228 = scmp.ne.s32.totalorder %s220, %s222
      %p229 = scmp.eq.s32.totalorder %s149, 1
      %p230 = por %p228, %p229
      %p231 = scmp.ne.s32.totalorder %s222, %s223
      %p232 = scmp.eq.s32.totalorder %s149, 0
      %p233 = por %p231, %p232
      %p234 = scmp.ne.s32.totalorder %s222, %s223
      %p235 = scmp.eq.s32.totalorder %s150, 1
      %p236 = por %p234, %p235
      %p238 = scmp.ne.s32.totalorder %s223, %s237
      %p239 = scmp.eq.s32.totalorder %s150, 0
      %p240 = por %p238, %p239
      %s242 = sadd.s32 %s241, 1
      %p245 = scmp.eq.s32.totalorder %s144, 1
      %p246 = scmp.ne.s32.totalorder %s241, %s243
      %p247 = scmp.eq.s32.totalorder %s144, 0
      %p248 = por %p246, %p247
      %p249 = scmp.ne.s32.totalorder %s241, %s243
      %p250 = scmp.eq.s32.totalorder %s149, 1
      %p251 = por %p249, %p250
      %p252 = scmp.ne.s32.totalorder %s243, %s244
      %p253 = scmp.eq.s32.totalorder %s149, 0
      %p254 = por %p252, %p253
      %p255 = scmp.ne.s32.totalorder %s243, %s244
      %p256 = scmp.eq.s32.totalorder %s150, 1
      %p257 = por %p255, %p256
      %p259 = scmp.ne.s32.totalorder %s244, %s258
      %p260 = scmp.eq.s32.totalorder %s150, 0
      %p261 = por %p259, %p260
      %s263 = sadd.s32 %s262, 1
      %p266 = scmp.eq.s32.totalorder %s144, 1
      %p267 = scmp.ne.s32.totalorder %s262, %s264
      %p268 = scmp.eq.s32.totalorder %s144, 0
      %p269 = por %p267, %p268
      %p270 = scmp.ne.s32.totalorder %s262, %s264
      %p271 = scmp.eq.s32.totalorder %s149, 1
      %p272 = por %p270, %p271
      %p273 = scmp.ne.s32.totalorder %s264, %s265
      %p274 = scmp.eq.s32.totalorder %s149, 0
      %p275 = por %p273, %p274
      %p276 = scmp.ne.s32.totalorder %s264, %s265
      %p277 = scmp.eq.s32.totalorder %s150, 1
      %p278 = por %p276, %p277
      %p280 = scmp.ne.s32.totalorder %s265, %s279
      %p281 = scmp.eq.s32.totalorder %s150, 0
      %p282 = por %p280, %p281
      %s284 = sadd.s32 %s283, 1
      %p287 = scmp.eq.s32.totalorder %s144, 1
      %p288 = scmp.ne.s32.totalorder %s283, %s285
      %p289 = scmp.eq.s32.totalorder %s144, 0
      %p290 = por %p288, %p289
      %p291 = scmp.ne.s32.totalorder %s283, %s285
      %p292 = scmp.eq.s32.totalorder %s149, 1
      %p293 = por %p291, %p292
      %p294 = scmp.ne.s32.totalorder %s285, %s286
      %p295 = scmp.eq.s32.totalorder %s149, 0
      %p296 = por %p294, %p295
      %p297 = scmp.ne.s32.totalorder %s285, %s286
      %p298 = scmp.eq.s32.totalorder %s150, 1
      %p299 = por %p297, %p298
      %p301 = scmp.ne.s32.totalorder %s286, %s300
      %p302 = scmp.eq.s32.totalorder %s150, 0
      %p303 = por %p301, %p302
      %s305 = sadd.s32 %s304, 1
      %p308 = scmp.eq.s32.totalorder %s144, 1
      %p309 = scmp.ne.s32.totalorder %s304, %s306
      %p310 = scmp.eq.s32.totalorder %s144, 0
      %p311 = por %p309, %p310
      %p312 = scmp.ne.s32.totalorder %s304, %s306
      %p313 = scmp.eq.s32.totalorder %s149, 1
      %p314 = por %p312, %p313
      %p315 = scmp.ne.s32.totalorder %s306, %s307
      %p316 = scmp.eq.s32.totalorder %s149, 0
      %p317 = por %p315, %p316
      %p318 = scmp.ne.s32.totalorder %s306, %s307
      %p319 = scmp.eq.s32.totalorder %s150, 1
      %p320 = por %p318, %p319
      %p322 = scmp.ne.s32.totalorder %s307, %s321
      %p323 = scmp.eq.s32.totalorder %s150, 0
      %p324 = por %p322, %p323
      %s326 = sadd.s32 %s325, 1
      %p329 = scmp.eq.s32.totalorder %s144, 1
      %p330 = scmp.ne.s32.totalorder %s325, %s327
      %p331 = scmp.eq.s32.totalorder %s144, 0
      %p332 = por %p330, %p331
      %p333 = scmp.ne.s32.totalorder %s325, %s327
      %p334 = scmp.eq.s32.totalorder %s149, 1
      %p335 = por %p333, %p334
      %p336 = scmp.ne.s32.totalorder %s327, %s328
      %p337 = scmp.eq.s32.totalorder %s149, 0
      %p338 = por %p336, %p337
      %p339 = scmp.ne.s32.totalorder %s327, %s328
      %p340 = scmp.eq.s32.totalorder %s150, 1
      %p341 = por %p339, %p340
      %p343 = scmp.ne.s32.totalorder %s328, %s342
      %p344 = scmp.eq.s32.totalorder %s150, 0
      %p345 = por %p343, %p344
      %s347 = sadd.s32 %s346, 1
      %p350 = scmp.eq.s32.totalorder %s144, 1
      %p351 = scmp.ne.s32.totalorder %s346, %s348
      %p352 = scmp.eq.s32.totalorder %s144, 0
      %p353 = por %p351, %p352
      %p354 = scmp.ne.s32.totalorder %s346, %s348
      %p355 = scmp.eq.s32.totalorder %s149, 1
      %p356 = por %p354, %p355
      %p357 = scmp.ne.s32.totalorder %s348, %s349
      %p358 = scmp.eq.s32.totalorder %s149, 0
      %p359 = por %p357, %p358
      %p360 = scmp.ne.s32.totalorder %s348, %s349
      %p361 = scmp.eq.s32.totalorder %s150, 1
      %p362 = por %p360, %p361
      %p364 = scmp.ne.s32.totalorder %s349, %s363
      %p365 = scmp.eq.s32.totalorder %s150, 0
      %p366 = por %p364, %p365
      %s368 = sadd.s32 %s367, 1
      %p371 = scmp.eq.s32.totalorder %s144, 1
      %p372 = scmp.ne.s32.totalorder %s367, %s369
      %p373 = scmp.eq.s32.totalorder %s144, 0
      %p374 = por %p372, %p373
      %p375 = scmp.ne.s32.totalorder %s367, %s369
      %p376 = scmp.eq.s32.totalorder %s149, 1
      %p377 = por %p375, %p376
      %p378 = scmp.ne.s32.totalorder %s369, %s370
      %p379 = scmp.eq.s32.totalorder %s149, 0
      %p380 = por %p378, %p379
      %p381 = scmp.ne.s32.totalorder %s369, %s370
      %p382 = scmp.eq.s32.totalorder %s150, 1
      %p383 = por %p381, %p382
      %p385 = scmp.ne.s32.totalorder %s370, %s384
      %p386 = scmp.eq.s32.totalorder %s150, 0
      %p387 = por %p385, %p386
      %s389 = sadd.s32 %s388, 1
      %p392 = scmp.eq.s32.totalorder %s144, 1
      %p393 = scmp.ne.s32.totalorder %s388, %s390
      %p394 = scmp.eq.s32.totalorder %s144, 0
      %p395 = por %p393, %p394
      %p396 = scmp.ne.s32.totalorder %s388, %s390
      %p397 = scmp.eq.s32.totalorder %s149, 1
      %p398 = por %p396, %p397
      %p399 = scmp.ne.s32.totalorder %s390, %s391
      %p400 = scmp.eq.s32.totalorder %s149, 0
      %p401 = por %p399, %p400
      %p402 = scmp.ne.s32.totalorder %s390, %s391
      %p403 = scmp.eq.s32.totalorder %s150, 1
      %p404 = por %p402, %p403
      %p406 = scmp.ne.s32.totalorder %s391, %s405
      %p407 = scmp.eq.s32.totalorder %s150, 0
      %p408 = por %p406, %p407
      %s410 = sadd.s32 %s409, 1
      %p413 = scmp.eq.s32.totalorder %s144, 1
      %p414 = scmp.ne.s32.totalorder %s409, %s411
      %p415 = scmp.eq.s32.totalorder %s144, 0
      %p416 = por %p414, %p415
      %p417 = scmp.ne.s32.totalorder %s409, %s411
      %p418 = scmp.eq.s32.totalorder %s149, 1
      %p419 = por %p417, %p418
      %p420 = scmp.ne.s32.totalorder %s411, %s412
      %p421 = scmp.eq.s32.totalorder %s149, 0
      %p422 = por %p420, %p421
      %p423 = scmp.ne.s32.totalorder %s411, %s412
      %p424 = scmp.eq.s32.totalorder %s150, 1
      %p425 = por %p423, %p424
      %p427 = scmp.ne.s32.totalorder %s412, %s426
      %p428 = scmp.eq.s32.totalorder %s150, 0
      %p429 = por %p427, %p428
      %s431 = sadd.s32 %s430, 1
      %p434 = scmp.eq.s32.totalorder %s144, 1
      %p435 = scmp.ne.s32.totalorder %s430, %s432
      %p436 = scmp.eq.s32.totalorder %s144, 0
      %p437 = por %p435, %p436
      %p438 = scmp.ne.s32.totalorder %s430, %s432
      %p439 = scmp.eq.s32.totalorder %s149, 1
      %p440 = por %p438, %p439
      %p441 = scmp.ne.s32.totalorder %s432, %s433
      %p442 = scmp.eq.s32.totalorder %s149, 0
      %p443 = por %p441, %p442
      %p444 = scmp.ne.s32.totalorder %s432, %s433
      %p445 = scmp.eq.s32.totalorder %s150, 1
      %p446 = por %p444, %p445
      %p448 = scmp.ne.s32.totalorder %s433, %s447
      %p449 = scmp.eq.s32.totalorder %s150, 0
      %p450 = por %p448, %p449
      %s452 = sadd.s32 %s451, 1
      %p455 = scmp.eq.s32.totalorder %s144, 1
      %p456 = scmp.ne.s32.totalorder %s451, %s453
      %p457 = scmp.eq.s32.totalorder %s144, 0
      %p458 = por %p456, %p457
      %p459 = scmp.ne.s32.totalorder %s451, %s453
      %p460 = scmp.eq.s32.totalorder %s149, 1
      %p461 = por %p459, %p460
      %p462 = scmp.ne.s32.totalorder %s453, %s454
      %p463 = scmp.eq.s32.totalorder %s149, 0
      %p464 = por %p462, %p463
      %p465 = scmp.ne.s32.totalorder %s453, %s454
      %p466 = scmp.eq.s32.totalorder %s150, 1
      %p467 = por %p465, %p466
      %p469 = scmp.ne.s32.totalorder %s454, %s468
      %p470 = scmp.eq.s32.totalorder %s150, 0
      %p471 = por %p469, %p470
      %s473 = sadd.s32 %s472, 1
      %p476 = scmp.eq.s32.totalorder %s144, 1
      %p477 = scmp.ne.s32.totalorder %s472, %s474
      %p478 = scmp.eq.s32.totalorder %s144, 0
      %p479 = por %p477, %p478
      %p480 = scmp.ne.s32.totalorder %s472, %s474
      %p481 = scmp.eq.s32.totalorder %s149, 1
      %p482 = por %p480, %p481
      %p483 = scmp.ne.s32.totalorder %s474, %s475
      %p484 = scmp.eq.s32.totalorder %s149, 0
      %p485 = por %p483, %p484
      %p486 = scmp.ne.s32.totalorder %s474, %s475
      %p487 = scmp.eq.s32.totalorder %s150, 1
      %p488 = por %p486, %p487
      %p490 = scmp.ne.s32.totalorder %s475, %s489
      %p491 = scmp.eq.s32.totalorder %s150, 0
      %p492 = por %p490, %p491
      %s494 = sadd.s32 %s493, 1
      %p497 = scmp.eq.s32.totalorder %s144, 1
      %p498 = scmp.ne.s32.totalorder %s493, %s495
      %p499 = scmp.eq.s32.totalorder %s144, 0
      %p500 = por %p498, %p499
      %p501 = scmp.ne.s32.totalorder %s493, %s495
      %p502 = scmp.eq.s32.totalorder %s149, 1
      %p503 = por %p501, %p502
      %p504 = scmp.ne.s32.totalorder %s495, %s496
      %p505 = scmp.eq.s32.totalorder %s149, 0
      %p506 = por %p504, %p505
      %p507 = scmp.ne.s32.totalorder %s495, %s496
      %p508 = scmp.eq.s32.totalorder %s150, 1
      %p509 = por %p507, %p508
      %p511 = scmp.ne.s32.totalorder %s496, %s510
      %p512 = scmp.eq.s32.totalorder %s150, 0
      %p513 = por %p511, %p512
      %s515 = sadd.s32 %s514, 1
      %p518 = scmp.eq.s32.totalorder %s144, 1
      %p519 = scmp.ne.s32.totalorder %s514, %s516
      %p520 = scmp.eq.s32.totalorder %s144, 0
      %p521 = por %p519, %p520
      %p522 = scmp.ne.s32.totalorder %s514, %s516
      %p523 = scmp.eq.s32.totalorder %s149, 1
      %p524 = por %p522, %p523
      %p525 = scmp.ne.s32.totalorder %s516, %s517
      %p526 = scmp.eq.s32.totalorder %s149, 0
      %p527 = por %p525, %p526
      %p528 = scmp.ne.s32.totalorder %s516, %s517
      %p529 = scmp.eq.s32.totalorder %s150, 1
      %p530 = por %p528, %p529
      %p532 = scmp.ne.s32.totalorder %s517, %s531
      %p533 = scmp.eq.s32.totalorder %s150, 0
      %p534 = por %p532, %p533
      %s536 = sadd.s32 %s535, 1
      %p539 = scmp.eq.s32.totalorder %s144, 1
      %p540 = scmp.ne.s32.totalorder %s535, %s537
      %p541 = scmp.eq.s32.totalorder %s144, 0
      %p542 = por %p540, %p541
      %p543 = scmp.ne.s32.totalorder %s535, %s537
      %p544 = scmp.eq.s32.totalorder %s149, 1
      %p545 = por %p543, %p544
      %p546 = scmp.ne.s32.totalorder %s537, %s538
      %p547 = scmp.eq.s32.totalorder %s149, 0
      %p548 = por %p546, %p547
      %p549 = scmp.ne.s32.totalorder %s537, %s538
      %p550 = scmp.eq.s32.totalorder %s150, 1
      %p551 = por %p549, %p550
      %p553 = scmp.ne.s32.totalorder %s538, %s552
      %p554 = scmp.eq.s32.totalorder %s150, 0
      %p555 = por %p553, %p554
      %s557 = sadd.s32 %s556, 1
      %p560 = scmp.eq.s32.totalorder %s144, 1
      %p561 = scmp.ne.s32.totalorder %s556, %s558
      %p562 = scmp.eq.s32.totalorder %s144, 0
      %p563 = por %p561, %p562
      %p564 = scmp.ne.s32.totalorder %s556, %s558
      %p565 = scmp.eq.s32.totalorder %s149, 1
      %p566 = por %p564, %p565
      %p567 = scmp.ne.s32.totalorder %s558, %s559
      %p568 = scmp.eq.s32.totalorder %s149, 0
      %p569 = por %p567, %p568
      %p570 = scmp.ne.s32.totalorder %s558, %s559
      %p571 = scmp.eq.s32.totalorder %s150, 1
      %p572 = por %p570, %p571
      %p574 = scmp.ne.s32.totalorder %s559, %s573
      %p575 = scmp.eq.s32.totalorder %s150, 0
      %p576 = por %p574, %p575
      %s578 = sadd.s32 %s577, 1
      %p581 = scmp.eq.s32.totalorder %s144, 1
      %p582 = scmp.ne.s32.totalorder %s577, %s579
      %p583 = scmp.eq.s32.totalorder %s144, 0
      %p584 = por %p582, %p583
      %p585 = scmp.ne.s32.totalorder %s577, %s579
      %p586 = scmp.eq.s32.totalorder %s149, 1
      %p587 = por %p585, %p586
      %p588 = scmp.ne.s32.totalorder %s579, %s580
      %p589 = scmp.eq.s32.totalorder %s149, 0
      %p590 = por %p588, %p589
      %p591 = scmp.ne.s32.totalorder %s579, %s580
      %p592 = scmp.eq.s32.totalorder %s150, 1
      %p593 = por %p591, %p592
      %p595 = scmp.ne.s32.totalorder %s580, %s594
      %p596 = scmp.eq.s32.totalorder %s150, 0
      %p597 = por %p595, %p596
      %s599 = sadd.s32 %s598, 1
      %p602 = scmp.eq.s32.totalorder %s144, 1
      %p603 = scmp.ne.s32.totalorder %s598, %s600
      %p604 = scmp.eq.s32.totalorder %s144, 0
      %p605 = por %p603, %p604
      %p606 = scmp.ne.s32.totalorder %s598, %s600
      %p607 = scmp.eq.s32.totalorder %s149, 1
      %p608 = por %p606, %p607
      %p609 = scmp.ne.s32.totalorder %s600, %s601
      %p610 = scmp.eq.s32.totalorder %s149, 0
      %p611 = por %p609, %p610
      %p612 = scmp.ne.s32.totalorder %s600, %s601
      %p613 = scmp.eq.s32.totalorder %s150, 1
      %p614 = por %p612, %p613
      %p616 = scmp.ne.s32.totalorder %s601, %s615
      %p617 = scmp.eq.s32.totalorder %s150, 0
      %p618 = por %p616, %p617
      %s620 = sadd.s32 %s619, 1
      %p623 = scmp.eq.s32.totalorder %s144, 1
      %p624 = scmp.ne.s32.totalorder %s619, %s621
      %p625 = scmp.eq.s32.totalorder %s144, 0
      %p626 = por %p624, %p625
      %p627 = scmp.ne.s32.totalorder %s619, %s621
      %p628 = scmp.eq.s32.totalorder %s149, 1
      %p629 = por %p627, %p628
      %p630 = scmp.ne.s32.totalorder %s621, %s622
      %p631 = scmp.eq.s32.totalorder %s149, 0
      %p632 = por %p630, %p631
      %p633 = scmp.ne.s32.totalorder %s621, %s622
      %p634 = scmp.eq.s32.totalorder %s150, 1
      %p635 = por %p633, %p634
      %p637 = scmp.ne.s32.totalorder %s622, %s636
      %p638 = scmp.eq.s32.totalorder %s150, 0
      %p639 = por %p637, %p638
      %s641 = sadd.s32 %s640, 1
      %p644 = scmp.eq.s32.totalorder %s144, 1
      %p645 = scmp.ne.s32.totalorder %s640, %s642
      %p646 = scmp.eq.s32.totalorder %s144, 0
      %p647 = por %p645, %p646
      %p648 = scmp.ne.s32.totalorder %s640, %s642
      %p649 = scmp.eq.s32.totalorder %s149, 1
      %p650 = por %p648, %p649
      %p651 = scmp.ne.s32.totalorder %s642, %s643
      %p652 = scmp.eq.s32.totalorder %s149, 0
      %p653 = por %p651, %p652
      %p654 = scmp.ne.s32.totalorder %s642, %s643
      %p655 = scmp.eq.s32.totalorder %s150, 1
      %p656 = por %p654, %p655
      %p658 = scmp.ne.s32.totalorder %s643, %s657
      %p659 = scmp.eq.s32.totalorder %s150, 0
      %p660 = por %p658, %p659
      %s662 = sadd.s32 %s661, 1
      %p665 = scmp.eq.s32.totalorder %s144, 1
      %p666 = scmp.ne.s32.totalorder %s661, %s663
      %p667 = scmp.eq.s32.totalorder %s144, 0
      %p668 = por %p666, %p667
      %p669 = scmp.ne.s32.totalorder %s661, %s663
      %p670 = scmp.eq.s32.totalorder %s149, 1
      %p671 = por %p669, %p670
      %p672 = scmp.ne.s32.totalorder %s663, %s664
      %p673 = scmp.eq.s32.totalorder %s149, 0
      %p674 = por %p672, %p673
      %p675 = scmp.ne.s32.totalorder %s663, %s664
      %p676 = scmp.eq.s32.totalorder %s150, 1
      %p677 = por %p675, %p676
      %p679 = scmp.ne.s32.totalorder %s664, %s678
      %p680 = scmp.eq.s32.totalorder %s150, 0
      %p681 = por %p679, %p680
      %s683 = sadd.s32 %s682, 1
      %p686 = scmp.eq.s32.totalorder %s144, 1
      %p687 = scmp.ne.s32.totalorder %s682, %s684
      %p688 = scmp.eq.s32.totalorder %s144, 0
      %p689 = por %p687, %p688
      %p690 = scmp.ne.s32.totalorder %s682, %s684
      %p691 = scmp.eq.s32.totalorder %s149, 1
      %p692 = por %p690, %p691
      %p693 = scmp.ne.s32.totalorder %s684, %s685
      %p694 = scmp.eq.s32.totalorder %s149, 0
      %p695 = por %p693, %p694
      %p696 = scmp.ne.s32.totalorder %s684, %s685
      %p697 = scmp.eq.s32.totalorder %s150, 1
      %p698 = por %p696, %p697
      %p700 = scmp.ne.s32.totalorder %s685, %s699
      %p701 = scmp.eq.s32.totalorder %s150, 0
      %p702 = por %p700, %p701
      %s704 = sadd.s32 %s703, 1
      %p707 = scmp.eq.s32.totalorder %s144, 1
      %p708 = scmp.ne.s32.totalorder %s703, %s705
      %p709 = scmp.eq.s32.totalorder %s144, 0
      %p710 = por %p708, %p709
      %p711 = scmp.ne.s32.totalorder %s703, %s705
      %p712 = scmp.eq.s32.totalorder %s149, 1
      %p713 = por %p711, %p712
      %p714 = scmp.ne.s32.totalorder %s705, %s706
      %p715 = scmp.eq.s32.totalorder %s149, 0
      %p716 = por %p714, %p715
      %p717 = scmp.ne.s32.totalorder %s705, %s706
      %p718 = scmp.eq.s32.totalorder %s150, 1
      %p719 = por %p717, %p718
      %p721 = scmp.ne.s32.totalorder %s706, %s720
      %p722 = scmp.eq.s32.totalorder %s150, 0
      %p723 = por %p721, %p722
      %s725 = sadd.s32 %s724, 1
      %p728 = scmp.eq.s32.totalorder %s144, 1
      %p729 = scmp.ne.s32.totalorder %s724, %s726
      %p730 = scmp.eq.s32.totalorder %s144, 0
      %p731 = por %p729, %p730
      %p732 = scmp.ne.s32.totalorder %s724, %s726
      %p733 = scmp.eq.s32.totalorder %s149, 1
      %p734 = por %p732, %p733
      %p735 = scmp.ne.s32.totalorder %s726, %s727
      %p736 = scmp.eq.s32.totalorder %s149, 0
      %p737 = por %p735, %p736
      %p738 = scmp.ne.s32.totalorder %s726, %s727
      %p739 = scmp.eq.s32.totalorder %s150, 1
      %p740 = por %p738, %p739
      %p742 = scmp.ne.s32.totalorder %s727, %s741
      %p743 = scmp.eq.s32.totalorder %s150, 0
      %p744 = por %p742, %p743
      %s746 = sadd.s32 %s745, 1
      %p749 = scmp.eq.s32.totalorder %s144, 1
      %p750 = scmp.ne.s32.totalorder %s745, %s747
      %p751 = scmp.eq.s32.totalorder %s144, 0
      %p752 = por %p750, %p751
      %p753 = scmp.ne.s32.totalorder %s745, %s747
      %p754 = scmp.eq.s32.totalorder %s149, 1
      %p755 = por %p753, %p754
      %p756 = scmp.ne.s32.totalorder %s747, %s748
      %p757 = scmp.eq.s32.totalorder %s149, 0
      %p758 = por %p756, %p757
      %p759 = scmp.ne.s32.totalorder %s747, %s748
      %p760 = scmp.eq.s32.totalorder %s150, 1
      %p761 = por %p759, %p760
      %p763 = scmp.ne.s32.totalorder %s748, %s762
      %p764 = scmp.eq.s32.totalorder %s150, 0
      %p765 = por %p763, %p764
      %s767 = sadd.s32 %s766, 1
      %p770 = scmp.eq.s32.totalorder %s144, 1
      %p771 = scmp.ne.s32.totalorder %s766, %s768
      %p772 = scmp.eq.s32.totalorder %s144, 0
      %p773 = por %p771, %p772
      %p774 = scmp.ne.s32.totalorder %s766, %s768
      %p775 = scmp.eq.s32.totalorder %s149, 1
      %p776 = por %p774, %p775
      %p777 = scmp.ne.s32.totalorder %s768, %s769
      %p778 = scmp.eq.s32.totalorder %s149, 0
      %p779 = por %p777, %p778
      %p780 = scmp.ne.s32.totalorder %s768, %s769
      %p781 = scmp.eq.s32.totalorder %s150, 1
      %p782 = por %p780, %p781
      %p784 = scmp.ne.s32.totalorder %s769, %s783
      %p785 = scmp.eq.s32.totalorder %s150, 0
      %p786 = por %p784, %p785
      %s788 = sadd.s32 %s787, 1
      %p791 = scmp.eq.s32.totalorder %s144, 1
      %p792 = scmp.ne.s32.totalorder %s787, %s789
      %p793 = scmp.eq.s32.totalorder %s144, 0
      %p794 = por %p792, %p793
      %p795 = scmp.ne.s32.totalorder %s787, %s789
      %p796 = scmp.eq.s32.totalorder %s149, 1
      %p797 = por %p795, %p796
      %p798 = scmp.ne.s32.totalorder %s789, %s790
      %p799 = scmp.eq.s32.totalorder %s149, 0
      %p800 = por %p798, %p799
      %p801 = scmp.ne.s32.totalorder %s789, %s790
      %p802 = scmp.eq.s32.totalorder %s150, 1
      %p803 = por %p801, %p802
      %p805 = scmp.ne.s32.totalorder %s790, %s804
      %p806 = scmp.eq.s32.totalorder %s150, 0
      %p807 = por %p805, %p806
      %s809 = sadd.s32 %s808, 1
      %p812 = scmp.eq.s32.totalorder %s144, 1
      %p813 = scmp.ne.s32.totalorder %s808, %s810
      %p814 = scmp.eq.s32.totalorder %s144, 0
      %p815 = por %p813, %p814
      %p816 = scmp.ne.s32.totalorder %s808, %s810
      %p817 = scmp.eq.s32.totalorder %s149, 1
      %p818 = por %p816, %p817
      %p819 = scmp.ne.s32.totalorder %s810, %s811
      %p820 = scmp.eq.s32.totalorder %s149, 0
      %p821 = por %p819, %p820
      %p822 = scmp.ne.s32.totalorder %s810, %s811
      %p823 = scmp.eq.s32.totalorder %s150, 1
      %p824 = por %p822, %p823
      %p826 = scmp.ne.s32.totalorder %s811, %s825
      %p827 = scmp.eq.s32.totalorder %s150, 0
      %p828 = por %p826, %p827
      %s830 = sadd.s32 %s829, 1
      %p833 = scmp.eq.s32.totalorder %s144, 1
      %p834 = scmp.ne.s32.totalorder %s829, %s831
      %p835 = scmp.eq.s32.totalorder %s144, 0
      %p836 = por %p834, %p835
      %p837 = scmp.ne.s32.totalorder %s829, %s831
      %p838 = scmp.eq.s32.totalorder %s149, 1
      %p839 = por %p837, %p838
      %p840 = scmp.ne.s32.totalorder %s831, %s832
      %p841 = scmp.eq.s32.totalorder %s149, 0
      %p842 = por %p840, %p841
      %p843 = scmp.ne.s32.totalorder %s831, %s832
      %p844 = scmp.eq.s32.totalorder %s150, 1
      %p845 = por %p843, %p844
      %p847 = scmp.ne.s32.totalorder %s832, %s846
      %p848 = scmp.eq.s32.totalorder %s150, 0
      %p849 = por %p847, %p848
      %s851 = sadd.s32 %s850, 1
      %p854 = scmp.eq.s32.totalorder %s144, 1
      %p855 = scmp.ne.s32.totalorder %s850, %s852
      %p856 = scmp.eq.s32.totalorder %s144, 0
      %p857 = por %p855, %p856
      %p858 = scmp.ne.s32.totalorder %s850, %s852
      %p859 = scmp.eq.s32.totalorder %s149, 1
      %p860 = por %p858, %p859
      %p861 = scmp.ne.s32.totalorder %s852, %s853
      %p862 = scmp.eq.s32.totalorder %s149, 0
      %p863 = por %p861, %p862
      %p864 = scmp.ne.s32.totalorder %s852, %s853
      %p865 = scmp.eq.s32.totalorder %s150, 1
      %p866 = por %p864, %p865
      %p868 = scmp.ne.s32.totalorder %s853, %s867
      %p869 = scmp.eq.s32.totalorder %s150, 0
      %p870 = por %p868, %p869
      %s872 = sadd.s32 %s871, 1
      %p875 = scmp.eq.s32.totalorder %s144, 1
      %p876 = scmp.ne.s32.totalorder %s871, %s873
      %p877 = scmp.eq.s32.totalorder %s144, 0
      %p878 = por %p876, %p877
      %p879 = scmp.ne.s32.totalorder %s871, %s873
      %p880 = scmp.eq.s32.totalorder %s149, 1
      %p881 = por %p879, %p880
      %p882 = scmp.ne.s32.totalorder %s873, %s874
      %p883 = scmp.eq.s32.totalorder %s149, 0
      %p884 = por %p882, %p883
      %p885 = scmp.ne.s32.totalorder %s873, %s874
      %p886 = scmp.eq.s32.totalorder %s150, 1
      %p887 = por %p885, %p886
      %p889 = scmp.ne.s32.totalorder %s874, %s888
      %p890 = scmp.eq.s32.totalorder %s150, 0
      %p891 = por %p889, %p890
      %s893 = sadd.s32 %s892, 1
      %p896 = scmp.eq.s32.totalorder %s144, 1
      %p897 = scmp.ne.s32.totalorder %s892, %s894
      %p898 = scmp.eq.s32.totalorder %s144, 0
      %p899 = por %p897, %p898
      %p900 = scmp.ne.s32.totalorder %s892, %s894
      %p901 = scmp.eq.s32.totalorder %s149, 1
      %p902 = por %p900, %p901
      %p903 = scmp.ne.s32.totalorder %s894, %s895
      %p904 = scmp.eq.s32.totalorder %s149, 0
      %p905 = por %p903, %p904
      %p906 = scmp.ne.s32.totalorder %s894, %s895
      %p907 = scmp.eq.s32.totalorder %s150, 1
      %p908 = por %p906, %p907
      %p910 = scmp.ne.s32.totalorder %s895, %s909
      %p911 = scmp.eq.s32.totalorder %s150, 0
      %p912 = por %p910, %p911
      %s914 = sadd.s32 %s913, 1
      %p917 = scmp.eq.s32.totalorder %s144, 1
      %p918 = scmp.ne.s32.totalorder %s913, %s915
      %p919 = scmp.eq.s32.totalorder %s144, 0
      %p920 = por %p918, %p919
      %p921 = scmp.ne.s32.totalorder %s913, %s915
      %p922 = scmp.eq.s32.totalorder %s149, 1
      %p923 = por %p921, %p922
      %p924 = scmp.ne.s32.totalorder %s915, %s916
      %p925 = scmp.eq.s32.totalorder %s149, 0
      %p926 = por %p924, %p925
      %p927 = scmp.ne.s32.totalorder %s915, %s916
      %p928 = scmp.eq.s32.totalorder %s150, 1
      %p929 = por %p927, %p928
      %p931 = scmp.ne.s32.totalorder %s916, %s930
      %p932 = scmp.eq.s32.totalorder %s150, 0
      %p933 = por %p931, %p932
      %s935 = sadd.s32 %s934, 1
      %p938 = scmp.eq.s32.totalorder %s144, 1
      %p939 = scmp.ne.s32.totalorder %s934, %s936
      %p940 = scmp.eq.s32.totalorder %s144, 0
      %p941 = por %p939, %p940
      %p942 = scmp.ne.s32.totalorder %s934, %s936
      %p943 = scmp.eq.s32.totalorder %s149, 1
      %p944 = por %p942, %p943
      %p945 = scmp.ne.s32.totalorder %s936, %s937
      %p946 = scmp.eq.s32.totalorder %s149, 0
      %p947 = por %p945, %p946
      %p948 = scmp.ne.s32.totalorder %s936, %s937
      %p949 = scmp.eq.s32.totalorder %s150, 1
      %p950 = por %p948, %p949
      %p952 = scmp.ne.s32.totalorder %s937, %s951
      %p953 = scmp.eq.s32.totalorder %s150, 0
      %p954 = por %p952, %p953
      %s956 = sadd.s32 %s955, 1
      %p959 = scmp.eq.s32.totalorder %s144, 1
      %p960 = scmp.ne.s32.totalorder %s955, %s957
      %p961 = scmp.eq.s32.totalorder %s144, 0
      %p962 = por %p960, %p961
      %p963 = scmp.ne.s32.totalorder %s955, %s957
      %p964 = scmp.eq.s32.totalorder %s149, 1
      %p965 = por %p963, %p964
      %p966 = scmp.ne.s32.totalorder %s957, %s958
      %p967 = scmp.eq.s32.totalorder %s149, 0
      %p968 = por %p966, %p967
      %p969 = scmp.ne.s32.totalorder %s957, %s958
      %p970 = scmp.eq.s32.totalorder %s150, 1
      %p971 = por %p969, %p970
      %p973 = scmp.ne.s32.totalorder %s958, %s972
      %p974 = scmp.eq.s32.totalorder %s150, 0
      %p975 = por %p973, %p974
      %s977 = sadd.s32 %s976, 1
      %p980 = scmp.eq.s32.totalorder %s144, 1
      %p981 = scmp.ne.s32.totalorder %s976, %s978
      %p982 = scmp.eq.s32.totalorder %s144, 0
      %p983 = por %p981, %p982
      %p984 = scmp.ne.s32.totalorder %s976, %s978
      %p985 = scmp.eq.s32.totalorder %s149, 1
      %p986 = por %p984, %p985
      %p987 = scmp.ne.s32.totalorder %s978, %s979
      %p988 = scmp.eq.s32.totalorder %s149, 0
      %p989 = por %p987, %p988
      %p990 = scmp.ne.s32.totalorder %s978, %s979
      %p991 = scmp.eq.s32.totalorder %s150, 1
      %p992 = por %p990, %p991
      %p994 = scmp.ne.s32.totalorder %s979, %s993
      %p995 = scmp.eq.s32.totalorder %s150, 0
      %p996 = por %p994, %p995
      %s998 = sadd.s32 %s997, 1
      %p1001 = scmp.eq.s32.totalorder %s144, 1
      %p1002 = scmp.ne.s32.totalorder %s997, %s999
      %p1003 = scmp.eq.s32.totalorder %s144, 0
      %p1004 = por %p1002, %p1003
      %p1005 = scmp.ne.s32.totalorder %s997, %s999
      %p1006 = scmp.eq.s32.totalorder %s149, 1
      %p1007 = por %p1005, %p1006
      %p1008 = scmp.ne.s32.totalorder %s999, %s1000
      %p1009 = scmp.eq.s32.totalorder %s149, 0
      %p1010 = por %p1008, %p1009
      %p1011 = scmp.ne.s32.totalorder %s999, %s1000
      %p1012 = scmp.eq.s32.totalorder %s150, 1
      %p1013 = por %p1011, %p1012
      %p1015 = scmp.ne.s32.totalorder %s1000, %s1014
      %p1016 = scmp.eq.s32.totalorder %s150, 0
      %p1017 = por %p1015, %p1016
      %s1019 = sadd.s32 %s1018, 1
      %p1022 = scmp.eq.s32.totalorder %s144, 1
      %p1023 = scmp.ne.s32.totalorder %s1018, %s1020
      %p1024 = scmp.eq.s32.totalorder %s144, 0
      %p1025 = por %p1023, %p1024
      %p1026 = scmp.ne.s32.totalorder %s1018, %s1020
      %p1027 = scmp.eq.s32.totalorder %s149, 1
      %p1028 = por %p1026, %p1027
      %p1029 = scmp.ne.s32.totalorder %s1020, %s1021
      %p1030 = scmp.eq.s32.totalorder %s149, 0
      %p1031 = por %p1029, %p1030
      %p1032 = scmp.ne.s32.totalorder %s1020, %s1021
      %p1033 = scmp.eq.s32.totalorder %s150, 1
      %p1034 = por %p1032, %p1033
      %p1036 = scmp.ne.s32.totalorder %s1021, %s1035
      %p1037 = scmp.eq.s32.totalorder %s150, 0
      %p1038 = por %p1036, %p1037
      %s1040 = sadd.s32 %s1039, 1
      %p1043 = scmp.eq.s32.totalorder %s144, 1
      %p1044 = scmp.ne.s32.totalorder %s1039, %s1041
      %p1045 = scmp.eq.s32.totalorder %s144, 0
      %p1046 = por %p1044, %p1045
      %p1047 = scmp.ne.s32.totalorder %s1039, %s1041
      %p1048 = scmp.eq.s32.totalorder %s149, 1
      %p1049 = por %p1047, %p1048
      %p1050 = scmp.ne.s32.totalorder %s1041, %s1042
      %p1051 = scmp.eq.s32.totalorder %s149, 0
      %p1052 = por %p1050, %p1051
      %p1053 = scmp.ne.s32.totalorder %s1041, %s1042
      %p1054 = scmp.eq.s32.totalorder %s150, 1
      %p1055 = por %p1053, %p1054
      %p1057 = scmp.ne.s32.totalorder %s1042, %s1056
      %p1058 = scmp.eq.s32.totalorder %s150, 0
      %p1059 = por %p1057, %p1058
      %s1061 = sadd.s32 %s1060, 1
      %p1064 = scmp.eq.s32.totalorder %s144, 1
      %p1065 = scmp.ne.s32.totalorder %s1060, %s1062
      %p1066 = scmp.eq.s32.totalorder %s144, 0
      %p1067 = por %p1065, %p1066
      %p1068 = scmp.ne.s32.totalorder %s1060, %s1062
      %p1069 = scmp.eq.s32.totalorder %s149, 1
      %p1070 = por %p1068, %p1069
      %p1071 = scmp.ne.s32.totalorder %s1062, %s1063
      %p1072 = scmp.eq.s32.totalorder %s149, 0
      %p1073 = por %p1071, %p1072
      %p1074 = scmp.ne.s32.totalorder %s1062, %s1063
      %p1075 = scmp.eq.s32.totalorder %s150, 1
      %p1076 = por %p1074, %p1075
      %p1078 = scmp.ne.s32.totalorder %s1063, %s1077
      %p1079 = scmp.eq.s32.totalorder %s150, 0
      %p1080 = por %p1078, %p1079
      %s1082 = sadd.s32 %s1081, 1
      %p1085 = scmp.eq.s32.totalorder %s144, 1
      %p1086 = scmp.ne.s32.totalorder %s1081, %s1083
      %p1087 = scmp.eq.s32.totalorder %s144, 0
      %p1088 = por %p1086, %p1087
      %p1089 = scmp.ne.s32.totalorder %s1081, %s1083
      %p1090 = scmp.eq.s32.totalorder %s149, 1
      %p1091 = por %p1089, %p1090
      %p1092 = scmp.ne.s32.totalorder %s1083, %s1084
      %p1093 = scmp.eq.s32.totalorder %s149, 0
      %p1094 = por %p1092, %p1093
      %p1095 = scmp.ne.s32.totalorder %s1083, %s1084
      %p1096 = scmp.eq.s32.totalorder %s150, 1
      %p1097 = por %p1095, %p1096
      %p1099 = scmp.ne.s32.totalorder %s1084, %s1098
      %p1100 = scmp.eq.s32.totalorder %s150, 0
      %p1101 = por %p1099, %p1100
      %s1103 = sadd.s32 %s1102, 1
      %p1106 = scmp.eq.s32.totalorder %s144, 1
      %p1107 = scmp.ne.s32.totalorder %s1102, %s1104
      %p1108 = scmp.eq.s32.totalorder %s144, 0
      %p1109 = por %p1107, %p1108
      %p1110 = scmp.ne.s32.totalorder %s1102, %s1104
      %p1111 = scmp.eq.s32.totalorder %s149, 1
      %p1112 = por %p1110, %p1111
      %p1113 = scmp.ne.s32.totalorder %s1104, %s1105
      %p1114 = scmp.eq.s32.totalorder %s149, 0
      %p1115 = por %p1113, %p1114
      %p1116 = scmp.ne.s32.totalorder %s1104, %s1105
      %p1117 = scmp.eq.s32.totalorder %s150, 1
      %p1118 = por %p1116, %p1117
      %p1120 = scmp.ne.s32.totalorder %s1105, %s1119
      %p1121 = scmp.eq.s32.totalorder %s150, 0
      %p1122 = por %p1120, %p1121
      %s1124 = sadd.s32 %s1123, 1
      %p1127 = scmp.eq.s32.totalorder %s144, 1
      %p1128 = scmp.ne.s32.totalorder %s1123, %s1125
      %p1129 = scmp.eq.s32.totalorder %s144, 0
      %p1130 = por %p1128, %p1129
      %p1131 = scmp.ne.s32.totalorder %s1123, %s1125
      %p1132 = scmp.eq.s32.totalorder %s149, 1
      %p1133 = por %p1131, %p1132
      %p1134 = scmp.ne.s32.totalorder %s1125, %s1126
      %p1135 = scmp.eq.s32.totalorder %s149, 0
      %p1136 = por %p1134, %p1135
      %p1137 = scmp.ne.s32.totalorder %s1125, %s1126
      %p1138 = scmp.eq.s32.totalorder %s150, 1
      %p1139 = por %p1137, %p1138
      %p1141 = scmp.ne.s32.totalorder %s1126, %s1140
      %p1142 = scmp.eq.s32.totalorder %s150, 0
      %p1143 = por %p1141, %p1142
      %s1145 = sadd.s32 %s1144, 1
      %p1148 = scmp.eq.s32.totalorder %s144, 1
      %p1149 = scmp.ne.s32.totalorder %s1144, %s1146
      %p1150 = scmp.eq.s32.totalorder %s144, 0
      %p1151 = por %p1149, %p1150
      %p1152 = scmp.ne.s32.totalorder %s1144, %s1146
      %p1153 = scmp.eq.s32.totalorder %s149, 1
      %p1154 = por %p1152, %p1153
      %p1155 = scmp.ne.s32.totalorder %s1146, %s1147
      %p1156 = scmp.eq.s32.totalorder %s149, 0
      %p1157 = por %p1155, %p1156
      %p1158 = scmp.ne.s32.totalorder %s1146, %s1147
      %p1159 = scmp.eq.s32.totalorder %s150, 1
      %p1160 = por %p1158, %p1159
      %p1162 = scmp.ne.s32.totalorder %s1147, %s1161
      %p1163 = scmp.eq.s32.totalorder %s150, 0
      %p1164 = por %p1162, %p1163
      %s1166 = sadd.s32 %s1165, 1
      %p1169 = scmp.eq.s32.totalorder %s144, 1
      %p1170 = scmp.ne.s32.totalorder %s1165, %s1167
      %p1171 = scmp.eq.s32.totalorder %s144, 0
      %p1172 = por %p1170, %p1171
      %p1173 = scmp.ne.s32.totalorder %s1165, %s1167
      %p1174 = scmp.eq.s32.totalorder %s149, 1
      %p1175 = por %p1173, %p1174
      %p1176 = scmp.ne.s32.totalorder %s1167, %s1168
      %p1177 = scmp.eq.s32.totalorder %s149, 0
      %p1178 = por %p1176, %p1177
      %p1179 = scmp.ne.s32.totalorder %s1167, %s1168
      %p1180 = scmp.eq.s32.totalorder %s150, 1
      %p1181 = por %p1179, %p1180
      %p1183 = scmp.ne.s32.totalorder %s1168, %s1182
      %p1184 = scmp.eq.s32.totalorder %s150, 0
      %p1185 = por %p1183, %p1184
      %s1187 = sadd.s32 %s1186, 1
      %p1190 = scmp.eq.s32.totalorder %s144, 1
      %p1191 = scmp.ne.s32.totalorder %s1186, %s1188
      %p1192 = scmp.eq.s32.totalorder %s144, 0
      %p1193 = por %p1191, %p1192
      %p1194 = scmp.ne.s32.totalorder %s1186, %s1188
      %p1195 = scmp.eq.s32.totalorder %s149, 1
      %p1196 = por %p1194, %p1195
      %p1197 = scmp.ne.s32.totalorder %s1188, %s1189
      %p1198 = scmp.eq.s32.totalorder %s149, 0
      %p1199 = por %p1197, %p1198
      %p1200 = scmp.ne.s32.totalorder %s1188, %s1189
      %p1201 = scmp.eq.s32.totalorder %s150, 1
      %p1202 = por %p1200, %p1201
      %p1204 = scmp.ne.s32.totalorder %s1189, %s1203
      %p1205 = scmp.eq.s32.totalorder %s150, 0
      %p1206 = por %p1204, %p1205
      %s1208 = sadd.s32 %s1207, 1
      %p1211 = scmp.eq.s32.totalorder %s144, 1
      %p1212 = scmp.ne.s32.totalorder %s1207, %s1209
      %p1213 = scmp.eq.s32.totalorder %s144, 0
      %p1214 = por %p1212, %p1213
      %p1215 = scmp.ne.s32.totalorder %s1207, %s1209
      %p1216 = scmp.eq.s32.totalorder %s149, 1
      %p1217 = por %p1215, %p1216
      %p1218 = scmp.ne.s32.totalorder %s1209, %s1210
      %p1219 = scmp.eq.s32.totalorder %s149, 0
      %p1220 = por %p1218, %p1219
      %p1221 = scmp.ne.s32.totalorder %s1209, %s1210
      %p1222 = scmp.eq.s32.totalorder %s150, 1
      %p1223 = por %p1221, %p1222
      %p1225 = scmp.ne.s32.totalorder %s1210, %s1224
      %p1226 = scmp.eq.s32.totalorder %s150, 0
      %p1227 = por %p1225, %p1226
      %s1229 = sadd.s32 %s1228, 1
      %p1232 = scmp.eq.s32.totalorder %s144, 1
      %p1233 = scmp.ne.s32.totalorder %s1228, %s1230
      %p1234 = scmp.eq.s32.totalorder %s144, 0
      %p1235 = por %p1233, %p1234
      %p1236 = scmp.ne.s32.totalorder %s1228, %s1230
      %p1237 = scmp.eq.s32.totalorder %s149, 1
      %p1238 = por %p1236, %p1237
      %p1239 = scmp.ne.s32.totalorder %s1230, %s1231
      %p1240 = scmp.eq.s32.totalorder %s149, 0
      %p1241 = por %p1239, %p1240
      %p1242 = scmp.ne.s32.totalorder %s1230, %s1231
      %p1243 = scmp.eq.s32.totalorder %s150, 1
      %p1244 = por %p1242, %p1243
      %p1246 = scmp.ne.s32.totalorder %s1231, %s1245
      %p1247 = scmp.eq.s32.totalorder %s150, 0
      %p1248 = por %p1246, %p1247
      %s1250 = sadd.s32 %s1249, 1
      %p1253 = scmp.eq.s32.totalorder %s144, 1
      %p1254 = scmp.ne.s32.totalorder %s1249, %s1251
      %p1255 = scmp.eq.s32.totalorder %s144, 0
      %p1256 = por %p1254, %p1255
      %p1257 = scmp.ne.s32.totalorder %s1249, %s1251
      %p1258 = scmp.eq.s32.totalorder %s149, 1
      %p1259 = por %p1257, %p1258
      %p1260 = scmp.ne.s32.totalorder %s1251, %s1252
      %p1261 = scmp.eq.s32.totalorder %s149, 0
      %p1262 = por %p1260, %p1261
      %p1263 = scmp.ne.s32.totalorder %s1251, %s1252
      %p1264 = scmp.eq.s32.totalorder %s150, 1
      %p1265 = por %p1263, %p1264
      %p1267 = scmp.ne.s32.totalorder %s1252, %s1266
      %p1268 = scmp.eq.s32.totalorder %s150, 0
      %p1269 = por %p1267, %p1268
      %s1271 = sadd.s32 %s1270, 1
      %p1274 = scmp.eq.s32.totalorder %s144, 1
      %p1275 = scmp.ne.s32.totalorder %s1270, %s1272
      %p1276 = scmp.eq.s32.totalorder %s144, 0
      %p1277 = por %p1275, %p1276
      %p1278 = scmp.ne.s32.totalorder %s1270, %s1272
      %p1279 = scmp.eq.s32.totalorder %s149, 1
      %p1280 = por %p1278, %p1279
      %p1281 = scmp.ne.s32.totalorder %s1272, %s1273
      %p1282 = scmp.eq.s32.totalorder %s149, 0
      %p1283 = por %p1281, %p1282
      %p1284 = scmp.ne.s32.totalorder %s1272, %s1273
      %p1285 = scmp.eq.s32.totalorder %s150, 1
      %p1286 = por %p1284, %p1285
      %p1288 = scmp.ne.s32.totalorder %s1273, %s1287
      %p1289 = scmp.eq.s32.totalorder %s150, 0
      %p1290 = por %p1288, %p1289
      %s1292 = sadd.s32 %s1291, 1
      %p1295 = scmp.eq.s32.totalorder %s144, 1
      %p1296 = scmp.ne.s32.totalorder %s1291, %s1293
      %p1297 = scmp.eq.s32.totalorder %s144, 0
      %p1298 = por %p1296, %p1297
      %p1299 = scmp.ne.s32.totalorder %s1291, %s1293
      %p1300 = scmp.eq.s32.totalorder %s149, 1
      %p1301 = por %p1299, %p1300
      %p1302 = scmp.ne.s32.totalorder %s1293, %s1294
      %p1303 = scmp.eq.s32.totalorder %s149, 0
      %p1304 = por %p1302, %p1303
      %p1305 = scmp.ne.s32.totalorder %s1293, %s1294
      %p1306 = scmp.eq.s32.totalorder %s150, 1
      %p1307 = por %p1305, %p1306
      %p1309 = scmp.ne.s32.totalorder %s1294, %s1308
      %p1310 = scmp.eq.s32.totalorder %s150, 0
      %p1311 = por %p1309, %p1310
      %s1313 = sadd.s32 %s1312, 1
      %p1316 = scmp.eq.s32.totalorder %s144, 1
      %p1317 = scmp.ne.s32.totalorder %s1312, %s1314
      %p1318 = scmp.eq.s32.totalorder %s144, 0
      %p1319 = por %p1317, %p1318
      %p1320 = scmp.ne.s32.totalorder %s1312, %s1314
      %p1321 = scmp.eq.s32.totalorder %s149, 1
      %p1322 = por %p1320, %p1321
      %p1323 = scmp.ne.s32.totalorder %s1314, %s1315
      %p1324 = scmp.eq.s32.totalorder %s149, 0
      %p1325 = por %p1323, %p1324
      %p1326 = scmp.ne.s32.totalorder %s1314, %s1315
      %p1327 = scmp.eq.s32.totalorder %s150, 1
      %p1328 = por %p1326, %p1327
      %p1330 = scmp.ne.s32.totalorder %s1315, %s1329
      %p1331 = scmp.eq.s32.totalorder %s150, 0
      %p1332 = por %p1330, %p1331
      %s1334 = sadd.s32 %s1333, 1
      %p1337 = scmp.eq.s32.totalorder %s144, 1
      %p1338 = scmp.ne.s32.totalorder %s1333, %s1335
      %p1339 = scmp.eq.s32.totalorder %s144, 0
      %p1340 = por %p1338, %p1339
      %p1341 = scmp.ne.s32.totalorder %s1333, %s1335
      %p1342 = scmp.eq.s32.totalorder %s149, 1
      %p1343 = por %p1341, %p1342
      %p1344 = scmp.ne.s32.totalorder %s1335, %s1336
      %p1345 = scmp.eq.s32.totalorder %s149, 0
      %p1346 = por %p1344, %p1345
      %p1347 = scmp.ne.s32.totalorder %s1335, %s1336
      %p1348 = scmp.eq.s32.totalorder %s150, 1
      %p1349 = por %p1347, %p1348
      %p1351 = scmp.ne.s32.totalorder %s1336, %s1350
      %p1352 = scmp.eq.s32.totalorder %s150, 0
      %p1353 = por %p1351, %p1352
      %s1355 = sadd.s32 %s1354, 1
      %p1358 = scmp.eq.s32.totalorder %s144, 1
      %p1359 = scmp.ne.s32.totalorder %s1354, %s1356
      %p1360 = scmp.eq.s32.totalorder %s144, 0
      %p1361 = por %p1359, %p1360
      %p1362 = scmp.ne.s32.totalorder %s1354, %s1356
      %p1363 = scmp.eq.s32.totalorder %s149, 1
      %p1364 = por %p1362, %p1363
      %p1365 = scmp.ne.s32.totalorder %s1356, %s1357
      %p1366 = scmp.eq.s32.totalorder %s149, 0
      %p1367 = por %p1365, %p1366
      %p1368 = scmp.ne.s32.totalorder %s1356, %s1357
      %p1369 = scmp.eq.s32.totalorder %s150, 1
      %p1370 = por %p1368, %p1369
      %p1372 = scmp.ne.s32.totalorder %s1357, %s1371
      %p1373 = scmp.eq.s32.totalorder %s150, 0
      %p1374 = por %p1372, %p1373
      %s1376 = sadd.s32 %s1375, 1
      %p1379 = scmp.eq.s32.totalorder %s144, 1
      %p1380 = scmp.ne.s32.totalorder %s1375, %s1377
      %p1381 = scmp.eq.s32.totalorder %s144, 0
      %p1382 = por %p1380, %p1381
      %p1383 = scmp.ne.s32.totalorder %s1375, %s1377
      %p1384 = scmp.eq.s32.totalorder %s149, 1
      %p1385 = por %p1383, %p1384
      %p1386 = scmp.ne.s32.totalorder %s1377, %s1378
      %p1387 = scmp.eq.s32.totalorder %s149, 0
      %p1388 = por %p1386, %p1387
      %p1389 = scmp.ne.s32.totalorder %s1377, %s1378
      %p1390 = scmp.eq.s32.totalorder %s150, 1
      %p1391 = por %p1389, %p1390
      %p1393 = scmp.ne.s32.totalorder %s1378, %s1392
      %p1394 = scmp.eq.s32.totalorder %s150, 0
      %p1395 = por %p1393, %p1394
      %s1397 = sadd.s32 %s1396, 1
      %p1400 = scmp.eq.s32.totalorder %s144, 1
      %p1401 = scmp.ne.s32.totalorder %s1396, %s1398
      %p1402 = scmp.eq.s32.totalorder %s144, 0
      %p1403 = por %p1401, %p1402
      %p1404 = scmp.ne.s32.totalorder %s1396, %s1398
      %p1405 = scmp.eq.s32.totalorder %s149, 1
      %p1406 = por %p1404, %p1405
      %p1407 = scmp.ne.s32.totalorder %s1398, %s1399
      %p1408 = scmp.eq.s32.totalorder %s149, 0
      %p1409 = por %p1407, %p1408
      %p1410 = scmp.ne.s32.totalorder %s1398, %s1399
      %p1411 = scmp.eq.s32.totalorder %s150, 1
      %p1412 = por %p1410, %p1411
      %p1414 = scmp.ne.s32.totalorder %s1399, %s1413
      %p1415 = scmp.eq.s32.totalorder %s150, 0
      %p1416 = por %p1414, %p1415
      %s1418 = sadd.s32 %s1417, 1
      %p1421 = scmp.eq.s32.totalorder %s144, 1
      %p1422 = scmp.ne.s32.totalorder %s1417, %s1419
      %p1423 = scmp.eq.s32.totalorder %s144, 0
      %p1424 = por %p1422, %p1423
      %p1425 = scmp.ne.s32.totalorder %s1417, %s1419
      %p1426 = scmp.eq.s32.totalorder %s149, 1
      %p1427 = por %p1425, %p1426
      %p1428 = scmp.ne.s32.totalorder %s1419, %s1420
      %p1429 = scmp.eq.s32.totalorder %s149, 0
      %p1430 = por %p1428, %p1429
      %p1431 = scmp.ne.s32.totalorder %s1419, %s1420
      %p1432 = scmp.eq.s32.totalorder %s150, 1
      %p1433 = por %p1431, %p1432
      %p1435 = scmp.ne.s32.totalorder %s1420, %s1434
      %p1436 = scmp.eq.s32.totalorder %s150, 0
      %p1437 = por %p1435, %p1436
      %s1439 = sadd.s32 %s1438, 1
      %p1442 = scmp.eq.s32.totalorder %s144, 1
      %p1443 = scmp.ne.s32.totalorder %s1438, %s1440
      %p1444 = scmp.eq.s32.totalorder %s144, 0
      %p1445 = por %p1443, %p1444
      %p1446 = scmp.ne.s32.totalorder %s1438, %s1440
      %p1447 = scmp.eq.s32.totalorder %s149, 1
      %p1448 = por %p1446, %p1447
      %p1449 = scmp.ne.s32.totalorder %s1440, %s1441
      %p1450 = scmp.eq.s32.totalorder %s149, 0
      %p1451 = por %p1449, %p1450
      %p1452 = scmp.ne.s32.totalorder %s1440, %s1441
      %p1453 = scmp.eq.s32.totalorder %s150, 1
      %p1454 = por %p1452, %p1453
      %p1456 = scmp.ne.s32.totalorder %s1441, %s1455
      %p1457 = scmp.eq.s32.totalorder %s150, 0
      %p1458 = por %p1456, %p1457
      %s1460 = sadd.s32 %s1459, 1
      %p1463 = scmp.eq.s32.totalorder %s144, 1
      %p1464 = scmp.ne.s32.totalorder %s1459, %s1461
      %p1465 = scmp.eq.s32.totalorder %s144, 0
      %p1466 = por %p1464, %p1465
      %p1467 = scmp.ne.s32.totalorder %s1459, %s1461
      %p1468 = scmp.eq.s32.totalorder %s149, 1
      %p1469 = por %p1467, %p1468
      %p1470 = scmp.ne.s32.totalorder %s1461, %s1462
      %p1471 = scmp.eq.s32.totalorder %s149, 0
      %p1472 = por %p1470, %p1471
      %p1473 = scmp.ne.s32.totalorder %s1461, %s1462
      %p1474 = scmp.eq.s32.totalorder %s150, 1
      %p1475 = por %p1473, %p1474
      %p1477 = scmp.ne.s32.totalorder %s1462, %s1476
      %p1478 = scmp.eq.s32.totalorder %s150, 0
      %p1479 = por %p1477, %p1478
      %s1481 = sadd.s32 %s1480, 1
      %p1484 = scmp.eq.s32.totalorder %s144, 1
      %p1485 = scmp.ne.s32.totalorder %s1480, %s1482
      %p1486 = scmp.eq.s32.totalorder %s144, 0
      %p1487 = por %p1485, %p1486
      %p1488 = scmp.ne.s32.totalorder %s1480, %s1482
      %p1489 = scmp.eq.s32.totalorder %s149, 1
      %p1490 = por %p1488, %p1489
      %p1491 = scmp.ne.s32.totalorder %s1482, %s1483
      %p1492 = scmp.eq.s32.totalorder %s149, 0
      %p1493 = por %p1491, %p1492
      %p1494 = scmp.ne.s32.totalorder %s1482, %s1483
      %p1495 = scmp.eq.s32.totalorder %s150, 1
      %p1496 = por %p1494, %p1495
      %p1498 = scmp.ne.s32.totalorder %s1483, %s1497
      %p1499 = scmp.eq.s32.totalorder %s150, 0
      %p1500 = por %p1498, %p1499
      %s1502 = sadd.s32 %s1501, 1
      %p1505 = scmp.eq.s32.totalorder %s144, 1
      %p1506 = scmp.ne.s32.totalorder %s1501, %s1503
      %p1507 = scmp.eq.s32.totalorder %s144, 0
      %p1508 = por %p1506, %p1507
      %p1509 = scmp.ne.s32.totalorder %s1501, %s1503
      %p1510 = scmp.eq.s32.totalorder %s149, 1
      %p1511 = por %p1509, %p1510
      %p1512 = scmp.ne.s32.totalorder %s1503, %s1504
      %p1513 = scmp.eq.s32.totalorder %s149, 0
      %p1514 = por %p1512, %p1513
      %p1515 = scmp.ne.s32.totalorder %s1503, %s1504
      %p1516 = scmp.eq.s32.totalorder %s150, 1
      %p1517 = por %p1515, %p1516
      %p1519 = scmp.ne.s32.totalorder %s1504, %s1518
      %p1520 = scmp.eq.s32.totalorder %s150, 0
      %p1521 = por %p1519, %p1520
      %s1523 = sadd.s32 %s1522, 1
      %p1526 = scmp.eq.s32.totalorder %s144, 1
      %p1527 = scmp.ne.s32.totalorder %s1522, %s1524
      %p1528 = scmp.eq.s32.totalorder %s144, 0
      %p1529 = por %p1527, %p1528
      %p1530 = scmp.ne.s32.totalorder %s1522, %s1524
      %p1531 = scmp.eq.s32.totalorder %s149, 1
      %p1532 = por %p1530, %p1531
      %p1533 = scmp.ne.s32.totalorder %s1524, %s1525
      %p1534 = scmp.eq.s32.totalorder %s149, 0
      %p1535 = por %p1533, %p1534
      %p1536 = scmp.ne.s32.totalorder %s1524, %s1525
      %p1537 = scmp.eq.s32.totalorder %s150, 1
      %p1538 = por %p1536, %p1537
      %p1540 = scmp.ne.s32.totalorder %s1525, %s1539
      %p1541 = scmp.eq.s32.totalorder %s150, 0
      %p1542 = por %p1540, %p1541
      %s1543 = ssub.s32 %s144, %s151
      %p1544 = scmp.eq.s32.totalorder %s1543, 0
      %s1546 = sadd.s32 %s1545, 1
      %s1547 = scalar_select %p1544, %s1545, %s1546
      %p1550 = pneg %p1544
      %p1551 = scmp.eq.s32.totalorder %s144, 1
      %p1552 = por %p1550, %p1551
      %p1553 = scmp.ne.s32.totalorder %s1545, %s1548
      %p1554 = scmp.eq.s32.totalorder %s144, 0
      %p1555 = por %p1553, %p1554
      %p1556 = scmp.ne.s32.totalorder %s1545, %s1548
      %p1557 = scmp.eq.s32.totalorder %s149, 1
      %p1558 = por %p1556, %p1557
      %p1559 = scmp.ne.s32.totalorder %s1548, %s1549
      %p1560 = scmp.eq.s32.totalorder %s149, 0
      %p1561 = por %p1559, %p1560
      %p1562 = scmp.ne.s32.totalorder %s1548, %s1549
      %p1563 = scmp.eq.s32.totalorder %s150, 1
      %p1564 = por %p1562, %p1563
      %p1566 = scmp.ne.s32.totalorder %s1549, %s1565
      %p1567 = scmp.eq.s32.totalorder %s150, 0
      %p1568 = por %p1566, %p1567
      %p1569 = scmp.le.s32.totalorder 1, %s144
      %p1570 = scmp.lt.s32.totalorder %s144, 3
      %p1571 = pnand %p1569, %p1570
      %p1572 = pneg %p1571
      // Predicated region
      $region9: #{vivit_forward_pallas.1} parent=5 // pred_check
        _
      $region10: #{vivit_forward_pallas.1} parent=5 // pred_check_branch
        %1574 = sbr.rel (%p1571) target = $region12
      $region11: #{vivit_forward_pallas.1} parent=5 // pred_region
        %s1575 = ssub.s32 %s144, 1
        // Predicated region
        $region13: #{vivit_forward_pallas.1} parent=11 // pred_check
          %p1576 = pneg %p191
        $region14: #{vivit_forward_pallas.1} parent=11 // pred_check_branch
          %1578 = sbr.rel (%p1576) target = $region16
        $region15: #{vivit_forward_pallas.1} parent=11 // pred_region
          _
        $region16: #{vivit_forward_pallas.1} parent=11 // pred_fallthru
          _
        // Predicated region
        $region17: #{vivit_forward_pallas.1} parent=11 // pred_check
          %p1579 = pneg %p212
        $region18: #{vivit_forward_pallas.1} parent=11 // pred_check_branch
          %1581 = sbr.rel (%p1579) target = $region20
        $region19: #{vivit_forward_pallas.1} parent=11 // pred_region
          _
        $region20: #{vivit_forward_pallas.1} parent=11 // pred_fallthru
          _
        // Predicated region
        $region21: #{vivit_forward_pallas.1} parent=11 // pred_check
          %p1582 = pneg %p233
        $region22: #{vivit_forward_pallas.1} parent=11 // pred_check_branch
          %1584 = sbr.rel (%p1582) target = $region24
        $region23: #{vivit_forward_pallas.1} parent=11 // pred_region
          _
        $region24: #{vivit_forward_pallas.1} parent=11 // pred_fallthru
          _
        // Predicated region
        $region25: #{vivit_forward_pallas.1} parent=11 // pred_check
          %p1585 = pneg %p254
        $region26: #{vivit_forward_pallas.1} parent=11 // pred_check_branch
          %1587 = sbr.rel (%p1585) target = $region28
        $region27: #{vivit_forward_pallas.1} parent=11 // pred_region
          _
        $region28: #{vivit_forward_pallas.1} parent=11 // pred_fallthru
          _
        // Predicated region
        $region29: #{vivit_forward_pallas.1} parent=11 // pred_check
          %p1588 = pneg %p275
        $region30: #{vivit_forward_pallas.1} parent=11 // pred_check_branch
          %1590 = sbr.rel (%p1588) target = $region32
        $region31: #{vivit_forward_pallas.1} parent=11 // pred_region
          _
        $region32: #{vivit_forward_pallas.1} parent=11 // pred_fallthru
          _
        // Predicated region
        $region33: #{vivit_forward_pallas.1} parent=11 // pred_check
          %p1591 = pneg %p296
        $region34: #{vivit_forward_pallas.1} parent=11 // pred_check_branch
          %1593 = sbr.rel (%p1591) target = $region36
        $region35: #{vivit_forward_pallas.1} parent=11 // pred_region
          _
        $region36: #{vivit_forward_pallas.1} parent=11 // pred_fallthru
          _
        // Predicated region
        $region37: #{vivit_forward_pallas.1} parent=11 // pred_check
          %p1594 = pneg %p317
        $region38: #{vivit_forward_pallas.1} parent=11 // pred_check_branch
          %1596 = sbr.rel (%p1594) target = $region40
        $region39: #{vivit_forward_pallas.1} parent=11 // pred_region
          _
        $region40: #{vivit_forward_pallas.1} parent=11 // pred_fallthru
          _
        // Predicated region
        $region41: #{vivit_forward_pallas.1} parent=11 // pred_check
          %p1597 = pneg %p338
        $region42: #{vivit_forward_pallas.1} parent=11 // pred_check_branch
          %1599 = sbr.rel (%p1597) target = $region44
        $region43: #{vivit_forward_pallas.1} parent=11 // pred_region
          _
        $region44: #{vivit_forward_pallas.1} parent=11 // pred_fallthru
          _
        // Predicated region
        $region45: #{vivit_forward_pallas.1} parent=11 // pred_check
          %p1600 = pneg %p359
        $region46: #{vivit_forward_pallas.1} parent=11 // pred_check_branch
          %1602 = sbr.rel (%p1600) target = $region48
        $region47: #{vivit_forward_pallas.1} parent=11 // pred_region
          _
        $region48: #{vivit_forward_pallas.1} parent=11 // pred_fallthru
          _
        // Predicated region
        $region49: #{vivit_forward_pallas.1} parent=11 // pred_check
          %p1603 = pneg %p380
        $region50: #{vivit_forward_pallas.1} parent=11 // pred_check_branch
          %1605 = sbr.rel (%p1603) target = $region52
        $region51: #{vivit_forward_pallas.1} parent=11 // pred_region
          _
        $region52: #{vivit_forward_pallas.1} parent=11 // pred_fallthru
          _
        // Predicated region
        $region53: #{vivit_forward_pallas.1} parent=11 // pred_check
          %p1606 = pneg %p401
        $region54: #{vivit_forward_pallas.1} parent=11 // pred_check_branch
          %1608 = sbr.rel (%p1606) target = $region56
        $region55: #{vivit_forward_pallas.1} parent=11 // pred_region
          _
        $region56: #{vivit_forward_pallas.1} parent=11 // pred_fallthru
          _
        // Predicated region
        $region57: #{vivit_forward_pallas.1} parent=11 // pred_check
          %p1609 = pneg %p422
        $region58: #{vivit_forward_pallas.1} parent=11 // pred_check_branch
          %1611 = sbr.rel (%p1609) target = $region60
        $region59: #{vivit_forward_pallas.1} parent=11 // pred_region
          _
        $region60: #{vivit_forward_pallas.1} parent=11 // pred_fallthru
          _
        // Predicated region
        $region61: #{vivit_forward_pallas.1} parent=11 // pred_check
          %p1612 = pneg %p443
        $region62: #{vivit_forward_pallas.1} parent=11 // pred_check_branch
          %1614 = sbr.rel (%p1612) target = $region64
        $region63: #{vivit_forward_pallas.1} parent=11 // pred_region
          _
        $region64: #{vivit_forward_pallas.1} parent=11 // pred_fallthru
          _
        // Predicated region
        $region65: #{vivit_forward_pallas.1} parent=11 // pred_check
          %p1615 = pneg %p464
        $region66: #{vivit_forward_pallas.1} parent=11 // pred_check_branch
          %1617 = sbr.rel (%p1615) target = $region68
        $region67: #{vivit_forward_pallas.1} parent=11 // pred_region
          _
        $region68: #{vivit_forward_pallas.1} parent=11 // pred_fallthru
          _
        // Predicated region
        $region69: #{vivit_forward_pallas.1} parent=11 // pred_check
          %p1618 = pneg %p485
        $region70: #{vivit_forward_pallas.1} parent=11 // pred_check_branch
          %1620 = sbr.rel (%p1618) target = $region72
        $region71: #{vivit_forward_pallas.1} parent=11 // pred_region
          _
        $region72: #{vivit_forward_pallas.1} parent=11 // pred_fallthru
          _
        // Predicated region
        $region73: #{vivit_forward_pallas.1} parent=11 // pred_check
          %p1621 = pneg %p506
        $region74: #{vivit_forward_pallas.1} parent=11 // pred_check_branch
          %1623 = sbr.rel (%p1621) target = $region76
        $region75: #{vivit_forward_pallas.1} parent=11 // pred_region
          _
        $region76: #{vivit_forward_pallas.1} parent=11 // pred_fallthru
          _
        // Predicated region
        $region77: #{vivit_forward_pallas.1} parent=11 // pred_check
          %p1624 = pneg %p527
        $region78: #{vivit_forward_pallas.1} parent=11 // pred_check_branch
          %1626 = sbr.rel (%p1624) target = $region80
        $region79: #{vivit_forward_pallas.1} parent=11 // pred_region
          _
        $region80: #{vivit_forward_pallas.1} parent=11 // pred_fallthru
          _
        // Predicated region
        $region81: #{vivit_forward_pallas.1} parent=11 // pred_check
          %p1627 = pneg %p548
        $region82: #{vivit_forward_pallas.1} parent=11 // pred_check_branch
          %1629 = sbr.rel (%p1627) target = $region84
        $region83: #{vivit_forward_pallas.1} parent=11 // pred_region
          _
        $region84: #{vivit_forward_pallas.1} parent=11 // pred_fallthru
          _
        // Predicated region
        $region85: #{vivit_forward_pallas.1} parent=11 // pred_check
          %p1630 = pneg %p569
        $region86: #{vivit_forward_pallas.1} parent=11 // pred_check_branch
          %1632 = sbr.rel (%p1630) target = $region88
        $region87: #{vivit_forward_pallas.1} parent=11 // pred_region
          _
        $region88: #{vivit_forward_pallas.1} parent=11 // pred_fallthru
          _
        // Predicated region
        $region89: #{vivit_forward_pallas.1} parent=11 // pred_check
          %p1633 = pneg %p590
        $region90: #{vivit_forward_pallas.1} parent=11 // pred_check_branch
          %1635 = sbr.rel (%p1633) target = $region92
        $region91: #{vivit_forward_pallas.1} parent=11 // pred_region
          _
        $region92: #{vivit_forward_pallas.1} parent=11 // pred_fallthru
          _
        // Predicated region
        $region93: #{vivit_forward_pallas.1} parent=11 // pred_check
          %p1636 = pneg %p611
        $region94: #{vivit_forward_pallas.1} parent=11 // pred_check_branch
          %1638 = sbr.rel (%p1636) target = $region96
        $region95: #{vivit_forward_pallas.1} parent=11 // pred_region
          _
        $region96: #{vivit_forward_pallas.1} parent=11 // pred_fallthru
          _
        // Predicated region
        $region97: #{vivit_forward_pallas.1} parent=11 // pred_check
          %p1639 = pneg %p632
        $region98: #{vivit_forward_pallas.1} parent=11 // pred_check_branch
          %1641 = sbr.rel (%p1639) target = $region100
        $region99: #{vivit_forward_pallas.1} parent=11 // pred_region
          _
        $region100: #{vivit_forward_pallas.1} parent=11 // pred_fallthru
          _
        // Predicated region
        $region101: #{vivit_forward_pallas.1} parent=11 // pred_check
          %p1642 = pneg %p653
        $region102: #{vivit_forward_pallas.1} parent=11 // pred_check_branch
          %1644 = sbr.rel (%p1642) target = $region104
        $region103: #{vivit_forward_pallas.1} parent=11 // pred_region
          _
        $region104: #{vivit_forward_pallas.1} parent=11 // pred_fallthru
          _
        // Predicated region
        $region105: #{vivit_forward_pallas.1} parent=11 // pred_check
          %p1645 = pneg %p674
        $region106: #{vivit_forward_pallas.1} parent=11 // pred_check_branch
          %1647 = sbr.rel (%p1645) target = $region108
        $region107: #{vivit_forward_pallas.1} parent=11 // pred_region
          _
        $region108: #{vivit_forward_pallas.1} parent=11 // pred_fallthru
          _
        // Predicated region
        $region109: #{vivit_forward_pallas.1} parent=11 // pred_check
          %p1648 = pneg %p695
        $region110: #{vivit_forward_pallas.1} parent=11 // pred_check_branch
          %1650 = sbr.rel (%p1648) target = $region112
        $region111: #{vivit_forward_pallas.1} parent=11 // pred_region
          _
        $region112: #{vivit_forward_pallas.1} parent=11 // pred_fallthru
          _
        // Predicated region
        $region113: #{vivit_forward_pallas.1} parent=11 // pred_check
          %p1651 = pneg %p716
        $region114: #{vivit_forward_pallas.1} parent=11 // pred_check_branch
          %1653 = sbr.rel (%p1651) target = $region116
        $region115: #{vivit_forward_pallas.1} parent=11 // pred_region
          _
        $region116: #{vivit_forward_pallas.1} parent=11 // pred_fallthru
          _
        // Predicated region
        $region117: #{vivit_forward_pallas.1} parent=11 // pred_check
          %p1654 = pneg %p737
        $region118: #{vivit_forward_pallas.1} parent=11 // pred_check_branch
          %1656 = sbr.rel (%p1654) target = $region120
        $region119: #{vivit_forward_pallas.1} parent=11 // pred_region
          _
        $region120: #{vivit_forward_pallas.1} parent=11 // pred_fallthru
          _
        // Predicated region
        $region121: #{vivit_forward_pallas.1} parent=11 // pred_check
          %p1657 = pneg %p758
        $region122: #{vivit_forward_pallas.1} parent=11 // pred_check_branch
          %1659 = sbr.rel (%p1657) target = $region124
        $region123: #{vivit_forward_pallas.1} parent=11 // pred_region
          _
        $region124: #{vivit_forward_pallas.1} parent=11 // pred_fallthru
          _
        // Predicated region
        $region125: #{vivit_forward_pallas.1} parent=11 // pred_check
          %p1660 = pneg %p779
        $region126: #{vivit_forward_pallas.1} parent=11 // pred_check_branch
          %1662 = sbr.rel (%p1660) target = $region128
        $region127: #{vivit_forward_pallas.1} parent=11 // pred_region
          _
        $region128: #{vivit_forward_pallas.1} parent=11 // pred_fallthru
          _
        // Predicated region
        $region129: #{vivit_forward_pallas.1} parent=11 // pred_check
          %p1663 = pneg %p800
        $region130: #{vivit_forward_pallas.1} parent=11 // pred_check_branch
          %1665 = sbr.rel (%p1663) target = $region132
        $region131: #{vivit_forward_pallas.1} parent=11 // pred_region
          _
        $region132: #{vivit_forward_pallas.1} parent=11 // pred_fallthru
          _
        // Predicated region
        $region133: #{vivit_forward_pallas.1} parent=11 // pred_check
          %p1666 = pneg %p821
        $region134: #{vivit_forward_pallas.1} parent=11 // pred_check_branch
          %1668 = sbr.rel (%p1666) target = $region136
        $region135: #{vivit_forward_pallas.1} parent=11 // pred_region
          _
        $region136: #{vivit_forward_pallas.1} parent=11 // pred_fallthru
          _
        // Predicated region
        $region137: #{vivit_forward_pallas.1} parent=11 // pred_check
          %p1669 = pneg %p842
        $region138: #{vivit_forward_pallas.1} parent=11 // pred_check_branch
          %1671 = sbr.rel (%p1669) target = $region140
        $region139: #{vivit_forward_pallas.1} parent=11 // pred_region
          _
        $region140: #{vivit_forward_pallas.1} parent=11 // pred_fallthru
          _
        // Predicated region
        $region141: #{vivit_forward_pallas.1} parent=11 // pred_check
          %p1672 = pneg %p863
        $region142: #{vivit_forward_pallas.1} parent=11 // pred_check_branch
          %1674 = sbr.rel (%p1672) target = $region144
        $region143: #{vivit_forward_pallas.1} parent=11 // pred_region
          _
        $region144: #{vivit_forward_pallas.1} parent=11 // pred_fallthru
          _
        // Predicated region
        $region145: #{vivit_forward_pallas.1} parent=11 // pred_check
          %p1675 = pneg %p884
        $region146: #{vivit_forward_pallas.1} parent=11 // pred_check_branch
          %1677 = sbr.rel (%p1675) target = $region148
        $region147: #{vivit_forward_pallas.1} parent=11 // pred_region
          _
        $region148: #{vivit_forward_pallas.1} parent=11 // pred_fallthru
          _
        // Predicated region
        $region149: #{vivit_forward_pallas.1} parent=11 // pred_check
          %p1678 = pneg %p905
        $region150: #{vivit_forward_pallas.1} parent=11 // pred_check_branch
          %1680 = sbr.rel (%p1678) target = $region152
        $region151: #{vivit_forward_pallas.1} parent=11 // pred_region
          _
        $region152: #{vivit_forward_pallas.1} parent=11 // pred_fallthru
          _
        // Predicated region
        $region153: #{vivit_forward_pallas.1} parent=11 // pred_check
          %p1681 = pneg %p926
        $region154: #{vivit_forward_pallas.1} parent=11 // pred_check_branch
          %1683 = sbr.rel (%p1681) target = $region156
        $region155: #{vivit_forward_pallas.1} parent=11 // pred_region
          _
        $region156: #{vivit_forward_pallas.1} parent=11 // pred_fallthru
          _
        // Predicated region
        $region157: #{vivit_forward_pallas.1} parent=11 // pred_check
          %p1684 = pneg %p947
        $region158: #{vivit_forward_pallas.1} parent=11 // pred_check_branch
          %1686 = sbr.rel (%p1684) target = $region160
        $region159: #{vivit_forward_pallas.1} parent=11 // pred_region
          _
        $region160: #{vivit_forward_pallas.1} parent=11 // pred_fallthru
          _
        // Predicated region
        $region161: #{vivit_forward_pallas.1} parent=11 // pred_check
          %p1687 = pneg %p968
        $region162: #{vivit_forward_pallas.1} parent=11 // pred_check_branch
          %1689 = sbr.rel (%p1687) target = $region164
        $region163: #{vivit_forward_pallas.1} parent=11 // pred_region
          _
        $region164: #{vivit_forward_pallas.1} parent=11 // pred_fallthru
          _
        // Predicated region
        $region165: #{vivit_forward_pallas.1} parent=11 // pred_check
          %p1690 = pneg %p989
        $region166: #{vivit_forward_pallas.1} parent=11 // pred_check_branch
          %1692 = sbr.rel (%p1690) target = $region168
        $region167: #{vivit_forward_pallas.1} parent=11 // pred_region
          _
        $region168: #{vivit_forward_pallas.1} parent=11 // pred_fallthru
          _
        // Predicated region
        $region169: #{vivit_forward_pallas.1} parent=11 // pred_check
          %p1693 = pneg %p1010
        $region170: #{vivit_forward_pallas.1} parent=11 // pred_check_branch
          %1695 = sbr.rel (%p1693) target = $region172
        $region171: #{vivit_forward_pallas.1} parent=11 // pred_region
          _
        $region172: #{vivit_forward_pallas.1} parent=11 // pred_fallthru
          _
        // Predicated region
        $region173: #{vivit_forward_pallas.1} parent=11 // pred_check
          %p1696 = pneg %p1031
        $region174: #{vivit_forward_pallas.1} parent=11 // pred_check_branch
          %1698 = sbr.rel (%p1696) target = $region176
        $region175: #{vivit_forward_pallas.1} parent=11 // pred_region
          _
        $region176: #{vivit_forward_pallas.1} parent=11 // pred_fallthru
          _
        // Predicated region
        $region177: #{vivit_forward_pallas.1} parent=11 // pred_check
          %p1699 = pneg %p1052
        $region178: #{vivit_forward_pallas.1} parent=11 // pred_check_branch
          %1701 = sbr.rel (%p1699) target = $region180
        $region179: #{vivit_forward_pallas.1} parent=11 // pred_region
          _
        $region180: #{vivit_forward_pallas.1} parent=11 // pred_fallthru
          _
        // Predicated region
        $region181: #{vivit_forward_pallas.1} parent=11 // pred_check
          %p1702 = pneg %p1073
        $region182: #{vivit_forward_pallas.1} parent=11 // pred_check_branch
          %1704 = sbr.rel (%p1702) target = $region184
        $region183: #{vivit_forward_pallas.1} parent=11 // pred_region
          _
        $region184: #{vivit_forward_pallas.1} parent=11 // pred_fallthru
          _
        // Predicated region
        $region185: #{vivit_forward_pallas.1} parent=11 // pred_check
          %p1705 = pneg %p1094
        $region186: #{vivit_forward_pallas.1} parent=11 // pred_check_branch
          %1707 = sbr.rel (%p1705) target = $region188
        $region187: #{vivit_forward_pallas.1} parent=11 // pred_region
          _
        $region188: #{vivit_forward_pallas.1} parent=11 // pred_fallthru
          _
        // Predicated region
        $region189: #{vivit_forward_pallas.1} parent=11 // pred_check
          %p1708 = pneg %p1115
        $region190: #{vivit_forward_pallas.1} parent=11 // pred_check_branch
          %1710 = sbr.rel (%p1708) target = $region192
        $region191: #{vivit_forward_pallas.1} parent=11 // pred_region
          _
        $region192: #{vivit_forward_pallas.1} parent=11 // pred_fallthru
          _
        // Predicated region
        $region193: #{vivit_forward_pallas.1} parent=11 // pred_check
          %p1711 = pneg %p1136
        $region194: #{vivit_forward_pallas.1} parent=11 // pred_check_branch
          %1713 = sbr.rel (%p1711) target = $region196
        $region195: #{vivit_forward_pallas.1} parent=11 // pred_region
          _
        $region196: #{vivit_forward_pallas.1} parent=11 // pred_fallthru
          _
        // Predicated region
        $region197: #{vivit_forward_pallas.1} parent=11 // pred_check
          %p1714 = pneg %p1157
        $region198: #{vivit_forward_pallas.1} parent=11 // pred_check_branch
          %1716 = sbr.rel (%p1714) target = $region200
        $region199: #{vivit_forward_pallas.1} parent=11 // pred_region
          _
        $region200: #{vivit_forward_pallas.1} parent=11 // pred_fallthru
          _
        // Predicated region
        $region201: #{vivit_forward_pallas.1} parent=11 // pred_check
          %p1717 = pneg %p1178
        $region202: #{vivit_forward_pallas.1} parent=11 // pred_check_branch
          %1719 = sbr.rel (%p1717) target = $region204
        $region203: #{vivit_forward_pallas.1} parent=11 // pred_region
          _
        $region204: #{vivit_forward_pallas.1} parent=11 // pred_fallthru
          _
        // Predicated region
        $region205: #{vivit_forward_pallas.1} parent=11 // pred_check
          %p1720 = pneg %p1199
        $region206: #{vivit_forward_pallas.1} parent=11 // pred_check_branch
          %1722 = sbr.rel (%p1720) target = $region208
        $region207: #{vivit_forward_pallas.1} parent=11 // pred_region
          _
        $region208: #{vivit_forward_pallas.1} parent=11 // pred_fallthru
          _
        // Predicated region
        $region209: #{vivit_forward_pallas.1} parent=11 // pred_check
          %p1723 = pneg %p1220
        $region210: #{vivit_forward_pallas.1} parent=11 // pred_check_branch
          %1725 = sbr.rel (%p1723) target = $region212
        $region211: #{vivit_forward_pallas.1} parent=11 // pred_region
          _
        $region212: #{vivit_forward_pallas.1} parent=11 // pred_fallthru
          _
        // Predicated region
        $region213: #{vivit_forward_pallas.1} parent=11 // pred_check
          %p1726 = pneg %p1241
        $region214: #{vivit_forward_pallas.1} parent=11 // pred_check_branch
          %1728 = sbr.rel (%p1726) target = $region216
        $region215: #{vivit_forward_pallas.1} parent=11 // pred_region
          _
        $region216: #{vivit_forward_pallas.1} parent=11 // pred_fallthru
          _
        // Predicated region
        $region217: #{vivit_forward_pallas.1} parent=11 // pred_check
          %p1729 = pneg %p1262
        $region218: #{vivit_forward_pallas.1} parent=11 // pred_check_branch
          %1731 = sbr.rel (%p1729) target = $region220
        $region219: #{vivit_forward_pallas.1} parent=11 // pred_region
          _
        $region220: #{vivit_forward_pallas.1} parent=11 // pred_fallthru
          _
        // Predicated region
        $region221: #{vivit_forward_pallas.1} parent=11 // pred_check
          %p1732 = pneg %p1283
        $region222: #{vivit_forward_pallas.1} parent=11 // pred_check_branch
          %1734 = sbr.rel (%p1732) target = $region224
        $region223: #{vivit_forward_pallas.1} parent=11 // pred_region
          _
        $region224: #{vivit_forward_pallas.1} parent=11 // pred_fallthru
          _
        // Predicated region
        $region225: #{vivit_forward_pallas.1} parent=11 // pred_check
          %p1735 = pneg %p1304
        $region226: #{vivit_forward_pallas.1} parent=11 // pred_check_branch
          %1737 = sbr.rel (%p1735) target = $region228
        $region227: #{vivit_forward_pallas.1} parent=11 // pred_region
          _
        $region228: #{vivit_forward_pallas.1} parent=11 // pred_fallthru
          _
        // Predicated region
        $region229: #{vivit_forward_pallas.1} parent=11 // pred_check
          %p1738 = pneg %p1325
        $region230: #{vivit_forward_pallas.1} parent=11 // pred_check_branch
          %1740 = sbr.rel (%p1738) target = $region232
        $region231: #{vivit_forward_pallas.1} parent=11 // pred_region
          _
        $region232: #{vivit_forward_pallas.1} parent=11 // pred_fallthru
          _
        // Predicated region
        $region233: #{vivit_forward_pallas.1} parent=11 // pred_check
          %p1741 = pneg %p1346
        $region234: #{vivit_forward_pallas.1} parent=11 // pred_check_branch
          %1743 = sbr.rel (%p1741) target = $region236
        $region235: #{vivit_forward_pallas.1} parent=11 // pred_region
          _
        $region236: #{vivit_forward_pallas.1} parent=11 // pred_fallthru
          _
        // Predicated region
        $region237: #{vivit_forward_pallas.1} parent=11 // pred_check
          %p1744 = pneg %p1367
        $region238: #{vivit_forward_pallas.1} parent=11 // pred_check_branch
          %1746 = sbr.rel (%p1744) target = $region240
        $region239: #{vivit_forward_pallas.1} parent=11 // pred_region
          _
        $region240: #{vivit_forward_pallas.1} parent=11 // pred_fallthru
          _
        // Predicated region
        $region241: #{vivit_forward_pallas.1} parent=11 // pred_check
          %p1747 = pneg %p1388
        $region242: #{vivit_forward_pallas.1} parent=11 // pred_check_branch
          %1749 = sbr.rel (%p1747) target = $region244
        $region243: #{vivit_forward_pallas.1} parent=11 // pred_region
          _
        $region244: #{vivit_forward_pallas.1} parent=11 // pred_fallthru
          _
        // Predicated region
        $region245: #{vivit_forward_pallas.1} parent=11 // pred_check
          %p1750 = pneg %p1409
        $region246: #{vivit_forward_pallas.1} parent=11 // pred_check_branch
          %1752 = sbr.rel (%p1750) target = $region248
        $region247: #{vivit_forward_pallas.1} parent=11 // pred_region
          _
        $region248: #{vivit_forward_pallas.1} parent=11 // pred_fallthru
          _
        // Predicated region
        $region249: #{vivit_forward_pallas.1} parent=11 // pred_check
          %p1753 = pneg %p1430
        $region250: #{vivit_forward_pallas.1} parent=11 // pred_check_branch
          %1755 = sbr.rel (%p1753) target = $region252
        $region251: #{vivit_forward_pallas.1} parent=11 // pred_region
          _
        $region252: #{vivit_forward_pallas.1} parent=11 // pred_fallthru
          _
        // Predicated region
        $region253: #{vivit_forward_pallas.1} parent=11 // pred_check
          %p1756 = pneg %p1451
        $region254: #{vivit_forward_pallas.1} parent=11 // pred_check_branch
          %1758 = sbr.rel (%p1756) target = $region256
        $region255: #{vivit_forward_pallas.1} parent=11 // pred_region
          _
        $region256: #{vivit_forward_pallas.1} parent=11 // pred_fallthru
          _
        // Predicated region
        $region257: #{vivit_forward_pallas.1} parent=11 // pred_check
          %p1759 = pneg %p1472
        $region258: #{vivit_forward_pallas.1} parent=11 // pred_check_branch
          %1761 = sbr.rel (%p1759) target = $region260
        $region259: #{vivit_forward_pallas.1} parent=11 // pred_region
          _
        $region260: #{vivit_forward_pallas.1} parent=11 // pred_fallthru
          _
        // Predicated region
        $region261: #{vivit_forward_pallas.1} parent=11 // pred_check
          %p1762 = pneg %p1493
        $region262: #{vivit_forward_pallas.1} parent=11 // pred_check_branch
          %1764 = sbr.rel (%p1762) target = $region264
        $region263: #{vivit_forward_pallas.1} parent=11 // pred_region
          %1766 = vsyncadd [#allocation3], 0
          %s1768 = sshll.u32 %s127, 4
          %s1769 = int_to_ptr.hbm [resolvable:$true] %s1768
          %s1770 = sshll.u32 [#allocation2], 4
          %s1771 = int_to_ptr.vmem [resolvable:$true] %s1770
          %1773 = dma.hbm_to_vmem [thread:$0]  %s1769, 16, %s1771, [#allocation3]
        $region264: #{vivit_forward_pallas.1} parent=11 // pred_fallthru
          _
        // Predicated region
        $region265: #{vivit_forward_pallas.1} parent=11 // pred_check
          %p1774 = pneg %p1514
        $region266: #{vivit_forward_pallas.1} parent=11 // pred_check_branch
          %1776 = sbr.rel (%p1774) target = $region268
        $region267: #{vivit_forward_pallas.1} parent=11 // pred_region
          %1778 = vsyncadd [#allocation6], 0
          %s1780 = sshll.u32 %s129, 4
          %s1781 = int_to_ptr.hbm [resolvable:$true] %s1780
          %s1782 = sshll.u32 [#allocation5], 4
          %s1783 = int_to_ptr.vmem [resolvable:$true] %s1782
          %1785 = dma.hbm_to_vmem [thread:$0]  %s1781, 16, %s1783, [#allocation6]
        $region268: #{vivit_forward_pallas.1} parent=11 // pred_fallthru
          _
        // Predicated region
        $region269: #{vivit_forward_pallas.1} parent=11 // pred_check
          %p1786 = pneg %p1535
        $region270: #{vivit_forward_pallas.1} parent=11 // pred_check_branch
          %1788 = sbr.rel (%p1786) target = $region272
        $region271: #{vivit_forward_pallas.1} parent=11 // pred_region
          %1790 = vsyncadd [#allocation6], 0
          %s1792 = sshll.u32 %s131, 4
          %s1793 = int_to_ptr.hbm [resolvable:$true] %s1792
          %s1794 = sshll.u32 [#allocation7], 4
          %s1795 = int_to_ptr.vmem [resolvable:$true] %s1794
          %1797 = dma.hbm_to_vmem [thread:$0]  %s1793, 16, %s1795, [#allocation6]
        $region272: #{vivit_forward_pallas.1} parent=11 // pred_fallthru
          _
      $region12: #{vivit_forward_pallas.1} parent=5 // pred_fallthru
        _
      %p1798 = scmp.lt.s32.totalorder %s144, 2
      // Predicated region
      $region273: #{vivit_forward_pallas.1} parent=5 // pred_check
        %p1799 = pneg %p1798
      $region274: #{vivit_forward_pallas.1} parent=5 // pred_check_branch
        %1801 = sbr.rel (%p1799) target = $region276
      $region275: #{vivit_forward_pallas.1} parent=5 // pred_region
        // Predicated region
        $region277: #{vivit_forward_pallas.1} parent=275 // pred_check
          %p1802 = pneg %p164
        $region278: #{vivit_forward_pallas.1} parent=275 // pred_check_branch
          %1804 = sbr.rel (%p1802) target = $region280
        $region279: #{vivit_forward_pallas.1} parent=275 // pred_region
          %p1805 = scmp.lt.s32.totalorder %s144, 1
          %s1806 = scalar_select %p1805, %s144, 1
          %s1807 = smul.addr %s1806, 3
          %s1808 = smul.addr %s1807, 8
          %s1809 = scalar_lea.vmem %s1, %s1808
        $region280: #{vivit_forward_pallas.1} parent=275 // pred_fallthru
          _
      $region276: #{vivit_forward_pallas.1} parent=5 // pred_fallthru
        _
      %p1810 = scmp.le.s32.totalorder 1, %s144
      %p1811 = scmp.lt.s32.totalorder %s144, 3
      %p1812 = pnand %p1810, %p1811
      %p1813 = pneg %p1812
      // Predicated region
      $region281: #{vivit_forward_pallas.1} parent=5 // pred_check
        _
      $region282: #{vivit_forward_pallas.1} parent=5 // pred_check_branch
        %1815 = sbr.rel (%p1812) target = $region284
      $region283: #{vivit_forward_pallas.1} parent=5 // pred_region
        %s1816 = ssub.s32 %s144, 1
        // Predicated region
        $region285: #{vivit_forward_pallas.1} parent=283 // pred_check
          %p1817 = pneg %p1493
        $region286: #{vivit_forward_pallas.1} parent=283 // pred_check_branch
          %1819 = sbr.rel (%p1817) target = $region288
        $region287: #{vivit_forward_pallas.1} parent=283 // pred_region
          %1821 = dma.done [#allocation3], 16
        $region288: #{vivit_forward_pallas.1} parent=283 // pred_fallthru
          _
        // Predicated region
        $region289: #{vivit_forward_pallas.1} parent=283 // pred_check
          %p1822 = pneg %p1514
        $region290: #{vivit_forward_pallas.1} parent=283 // pred_check_branch
          %1824 = sbr.rel (%p1822) target = $region292
        $region291: #{vivit_forward_pallas.1} parent=283 // pred_region
          %1826 = dma.done [#allocation6], 16
        $region292: #{vivit_forward_pallas.1} parent=283 // pred_fallthru
          _
        // Predicated region
        $region293: #{vivit_forward_pallas.1} parent=283 // pred_check
          %p1827 = pneg %p1535
        $region294: #{vivit_forward_pallas.1} parent=283 // pred_check_branch
          %1829 = sbr.rel (%p1827) target = $region296
        $region295: #{vivit_forward_pallas.1} parent=283 // pred_region
          %1831 = dma.done [#allocation6], 16
        $region296: #{vivit_forward_pallas.1} parent=283 // pred_fallthru
          _
        %p1832 = scmp.lt.s32.totalorder %s149, 1
        %s1833 = scalar_select %p1832, %s149, 1
        %s1834 = smul.addr %s1833, 3
        %s1835 = smul.addr %s1834, 8
        %s1836 = scalar_lea.vmem %s1, %s1835
        %p1837 = pneg %p170
        %p1838 = pneg %p167
        %p1839 = pneg %p191
        %p1840 = pneg %p188
        %p1841 = pneg %p212
        %p1842 = pneg %p209
        %p1843 = pneg %p233
        %p1844 = pneg %p230
        %p1845 = pneg %p254
        %p1846 = pneg %p251
        %p1847 = pneg %p275
        %p1848 = pneg %p272
        %p1849 = pneg %p296
        %p1850 = pneg %p293
        %p1851 = pneg %p317
        %p1852 = pneg %p314
        %p1853 = pneg %p338
        %p1854 = pneg %p335
        %p1855 = pneg %p359
        %p1856 = pneg %p356
        %p1857 = pneg %p380
        %p1858 = pneg %p377
        %p1859 = pneg %p401
        %p1860 = pneg %p398
        %p1861 = pneg %p422
        %p1862 = pneg %p419
        %p1863 = pneg %p443
        %p1864 = pneg %p440
        %p1865 = pneg %p464
        %p1866 = pneg %p461
        %p1867 = pneg %p485
        %p1868 = pneg %p482
        %p1869 = pneg %p506
        %p1870 = pneg %p503
        %p1871 = pneg %p527
        %p1872 = pneg %p524
        %p1873 = pneg %p548
        %p1874 = pneg %p545
        %p1875 = pneg %p569
        %p1876 = pneg %p566
        %p1877 = pneg %p590
        %p1878 = pneg %p587
        %p1879 = pneg %p611
        %p1880 = pneg %p608
        %p1881 = pneg %p632
        %p1882 = pneg %p629
        %p1883 = pneg %p653
        %p1884 = pneg %p650
        %p1885 = pneg %p674
        %p1886 = pneg %p671
        %p1887 = pneg %p695
        %p1888 = pneg %p692
        %p1889 = pneg %p716
        %p1890 = pneg %p713
        %p1891 = pneg %p737
        %p1892 = pneg %p734
        %p1893 = pneg %p758
        %p1894 = pneg %p755
        %p1895 = pneg %p779
        %p1896 = pneg %p776
        %p1897 = pneg %p800
        %p1898 = pneg %p797
        %p1899 = pneg %p821
        %p1900 = pneg %p818
        %p1901 = pneg %p842
        %p1902 = pneg %p839
        %p1903 = pneg %p863
        %p1904 = pneg %p860
        %p1905 = pneg %p884
        %p1906 = pneg %p881
        %p1907 = pneg %p905
        %p1908 = pneg %p902
        %p1909 = pneg %p926
        %p1910 = pneg %p923
        %p1911 = pneg %p947
        %p1912 = pneg %p944
        %p1913 = pneg %p968
        %p1914 = pneg %p965
        %p1915 = pneg %p989
        %p1916 = pneg %p986
        %p1917 = pneg %p1010
        %p1918 = pneg %p1007
        %p1919 = pneg %p1031
        %p1920 = pneg %p1028
        %p1921 = pneg %p1052
        %p1922 = pneg %p1049
        %p1923 = pneg %p1073
        %p1924 = pneg %p1070
        %p1925 = pneg %p1094
        %p1926 = pneg %p1091
        %p1927 = pneg %p1115
        %p1928 = pneg %p1112
        %p1929 = pneg %p1136
        %p1930 = pneg %p1133
        %p1931 = pneg %p1157
        %p1932 = pneg %p1154
        %p1933 = pneg %p1178
        %p1934 = pneg %p1175
        %p1935 = pneg %p1199
        %p1936 = pneg %p1196
        %p1937 = pneg %p1220
        %p1938 = pneg %p1217
        %p1939 = pneg %p1241
        %p1940 = pneg %p1238
        %p1941 = pneg %p1262
        %p1942 = pneg %p1259
        %p1943 = pneg %p1283
        %p1944 = pneg %p1280
        %p1945 = pneg %p1304
        %p1946 = pneg %p1301
        %p1947 = pneg %p1325
        %p1948 = pneg %p1322
        %p1949 = pneg %p1346
        %p1950 = pneg %p1343
        %p1951 = pneg %p1367
        %p1952 = pneg %p1364
        %p1953 = pneg %p1388
        %p1954 = pneg %p1385
        %p1955 = pneg %p1409
        %p1956 = pneg %p1406
        %p1957 = pneg %p1430
        %p1958 = pneg %p1427
        %p1959 = pneg %p1451
        %p1960 = pneg %p1448
        %p1961 = pneg %p1472
        %p1962 = pneg %p1469
        %p1963 = pneg %p1493
        %p1964 = pneg %p1490
        %p1965 = pneg %p1514
        %p1966 = pneg %p1511
        %p1967 = pneg %p1535
        %p1968 = pneg %p1532
        %p1969 = pneg %p1561
        %p1970 = pneg %p1558
        %s1971 = sand.u32 %s1548, 1
        %s1972 = scalar_lea.sflag [#allocation4], %s1971
        %s1973 = sand.u32 %s1548, 1
        %s1974 = scalar_lea.vmem [#allocation8], %s1973
        %p1975 = scmp.lt.s32.totalorder %s149, 1
        %s1976 = scalar_select %p1975, %s149, 1
        %s1977 = smul.addr %s1976, 3
        %s1978 = smul.addr %s1977, 8
        %s1979 = scalar_lea.vmem %s1, %s1978
        %v1980 = vld [vmem:[%s1979] sm:$0xff]
        %v1981 = vld [vmem:[%s1979 + $0x8] sm:$0xff]
        %v1982 = vld [vmem:[%s1979 + $0x10] sm:$0xff]
        %v1983 = vld [vmem:[%s17] sm:$0xff]
        %v1984 = vld [vmem:[%s17 + $0x8] sm:$0xff]
        %v1985 = vld [vmem:[%s17 + $0x10] sm:$0xff]
        %v1986 = vld [vmem:[%s17 + $0x18] sm:$0xff]
        %v1987 = vld [vmem:[%s17 + $0x20] sm:$0xff]
        %v1988 = vld [vmem:[%s17 + $0x28] sm:$0xff]
        %v1989 = vld [vmem:[%s17 + $0x30] sm:$0xff]
        %v1990 = vld [vmem:[%s17 + $0x38] sm:$0xff]
        %v1991 = vld [vmem:[%s3] sm:$0xff]
        %v1992 = vld [vmem:[%s3 + $0x8] sm:$0xff]
        %v1993 = vld [vmem:[%s3 + $0x10] sm:$0xff]
        %vm1994 = vcmask 523264
        %v1996 = vsel %vm1994, %v1980, 0
        %v1999 = vsel %vm1994, %v1981, 0
        %v2002 = vsel %vm1994, %v1982, 0
        %2004 = vmatpush.msra.mxu0 0.0
        %2005 = vmatpush.msra.mxu0 0.0
        %2006 = vmatpush.msra.mxu0 0.0
        %2007 = vmatpush.msra.mxu0 0.0
        %2008 = vmatpush.msra.mxu0 0.0
        %2009 = vmatpush.msra.mxu0 0.0
        %2010 = vmatpush.msra.mxu0 0.0
        %2011 = vmatpush.msra.mxu0 0.0
        %2012 = vmatpush.msra.mxu0 %v1990
        %2013 = vmatpush.msra.mxu0 %v1989
        %2014 = vmatpush.msra.mxu0 %v1988
        %2015 = vmatpush.msra.mxu0 %v1987
        %2016 = vmatpush.msra.mxu0 %v1986
        %2017 = vmatpush.msra.mxu0 %v1985
        %2018 = vmatpush.msra.mxu0 %v1984
        %2019 = vmatpush.msra.mxu0 %v1983
        %2020 = vmatmul.f32.gmra.mxu0 %v1996
        %v2021 = vpop.f32.mrf.mxu0
        %v2022 = vadd.f32 %v1991, %v2021
        %2023 = vmatmul.f32.gmra.mxu0 %v1999
        %v2024 = vpop.f32.mrf.mxu0
        %v2025 = vadd.f32 %v1992, %v2024
        %2026 = vmatmul.f32.gmra.mxu0 %v2002
        %v2027 = vpop.f32.mrf.mxu0
        %v2028 = vadd.f32 %v1993, %v2027
        %2029 = vdwg.mxu0
        %v2030 = vld [vmem:[%s13] sm:$0x1]
        %v2031 = vld [vmem:[%s27] sm:$0x1]
        %v2032 = vld [vmem:[%s25] sm:$0x1]
        %vm2033 = vcmask 261120
        %v2034 = vsel %vm2033, %v2022, 0.0
        %2035 = vadd.xlane.f32.xlu0 %v2034
        %v2036 = vpop.xlane.xlu0 %2035
        %v2037 = vsel %vm2033, %v2025, 0.0
        %2038 = vadd.xlane.f32.xlu0 %v2037
        %v2039 = vpop.xlane.xlu0 %2038
        %v2040 = vsel %vm2033, %v2028, 0.0
        %2041 = vadd.xlane.f32.xlu0 %v2040
        %v2042 = vpop.xlane.xlu0 %2041
        %v2043 = vrcp.pop 32.0
        %v2044 = vmul.f32 32.0, %v2043
        %v2045 = vsub.f32 1.0, %v2044
        %v2046 = vmul.f32 %v2043, %v2045
        %v2047 = vadd.f32 %v2043, %v2046
        %vm2048 = vweird.f32 %v2043
        %v2049 = vsel %vm2048, %v2043, %v2047
        %v2050 = vmul.f32 %v2036, %v2049
        %v2051 = vmul.f32 %v2039, %v2049
        %v2052 = vmul.f32 %v2042, %v2049
        %v2053 = vsub.f32 %v2022, %v2050
        %v2054 = vsub.f32 %v2025, %v2051
        %v2055 = vsub.f32 %v2028, %v2052
        %v2056 = vmul.f32 %v2053, %v2053
        %v2057 = vmul.f32 %v2054, %v2054
        %v2058 = vmul.f32 %v2055, %v2055
        %v2059 = vsel %vm2033, %v2056, 0.0
        %2060 = vadd.xlane.f32.xlu0 %v2059
        %v2061 = vpop.xlane.xlu0 %2060
        %v2062 = vsel %vm2033, %v2057, 0.0
        %2063 = vadd.xlane.f32.xlu0 %v2062
        %v2064 = vpop.xlane.xlu0 %2063
        %v2065 = vsel %vm2033, %v2058, 0.0
        %2066 = vadd.xlane.f32.xlu0 %v2065
        %v2067 = vpop.xlane.xlu0 %2066
        %v2068 = vmul.f32 %v2061, %v2049
        %v2069 = vmul.f32 %v2064, %v2049
        %v2070 = vmul.f32 %v2067, %v2049
        %v2071 = vadd.f32 %v2068, 1e-05
        %v2072 = vadd.f32 %v2069, 1e-05
        %v2073 = vadd.f32 %v2070, 1e-05
        %v2074 = vrsqrt.pop %v2071
        %v2075 = vmul.f32 %v2074, %v2071
        %v2076 = vmul.f32 %v2075, %v2074
        %v2077 = vmul.f32 0.5, %v2076
        %v2078 = vsub.f32 1.5, %v2077
        %v2079 = vmul.f32 %v2074, %v2078
        %vm2080 = vweird.f32 %v2071
        %vm2081 = vweird.f32 %v2074
        %vm2082 = vmor %vm2080, %vm2081
        %v2083 = vsel %vm2082, %v2074, %v2079
        %v2084 = vrsqrt.pop %v2072
        %v2085 = vmul.f32 %v2084, %v2072
        %v2086 = vmul.f32 %v2085, %v2084
        %v2087 = vmul.f32 0.5, %v2086
        %v2088 = vsub.f32 1.5, %v2087
        %v2089 = vmul.f32 %v2084, %v2088
        %vm2090 = vweird.f32 %v2072
        %vm2091 = vweird.f32 %v2084
        %vm2092 = vmor %vm2090, %vm2091
        %v2093 = vsel %vm2092, %v2084, %v2089
        %v2094 = vrsqrt.pop %v2073
        %v2095 = vmul.f32 %v2094, %v2073
        %v2096 = vmul.f32 %v2095, %v2094
        %v2097 = vmul.f32 0.5, %v2096
        %v2098 = vsub.f32 1.5, %v2097
        %v2099 = vmul.f32 %v2094, %v2098
        %vm2100 = vweird.f32 %v2073
        %vm2101 = vweird.f32 %v2094
        %vm2102 = vmor %vm2100, %vm2101
        %v2103 = vsel %vm2102, %v2094, %v2099
        %v2104 = vmul.f32 %v2053, %v2083
        %v2105 = vmul.f32 %v2054, %v2093
        %v2106 = vmul.f32 %v2055, %v2103
        %v2108 = vperm.slane %v2031, 0
        %v2110 = vmul.f32 %v2104, %v2108
        %v2111 = vmul.f32 %v2105, %v2108
        %v2112 = vmul.f32 %v2106, %v2108
        %v2114 = vperm.slane %v2032, 0
        %v2116 = vadd.f32 %v2110, %v2114
        %v2117 = vadd.f32 %v2111, %v2114
        %v2118 = vadd.f32 %v2112, %v2114
        %v2119 = vld [vmem:[%s41] sm:$0xff]
        %v2120 = vld [vmem:[%s41 + $0x8] sm:$0xff]
        %v2121 = vld [vmem:[%s41 + $0x10] sm:$0xff]
        %v2122 = vld [vmem:[%s41 + $0x18] sm:$0xff]
        %v2123 = vld [vmem:[%s41 + $0x20] sm:$0xff]
        %v2124 = vld [vmem:[%s41 + $0x28] sm:$0xff]
        %v2125 = vld [vmem:[%s41 + $0x30] sm:$0xff]
        %v2126 = vld [vmem:[%s41 + $0x38] sm:$0xff]
        %v2128 = vsel %vm2033, %v2116, 0
        %v2131 = vsel %vm2033, %v2117, 0
        %v2134 = vsel %vm2033, %v2118, 0
        %2136 = vmatpush.msra.mxu0 0.0
        %2137 = vmatpush.msra.mxu0 0.0
        %2138 = vmatpush.msra.mxu0 0.0
        %2139 = vmatpush.msra.mxu0 0.0
        %2140 = vmatpush.msra.mxu0 0.0
        %2141 = vmatpush.msra.mxu0 0.0
        %2142 = vmatpush.msra.mxu0 0.0
        %2143 = vmatpush.msra.mxu0 0.0
        %2144 = vmatpush.msra.mxu0 0.0
        %2145 = vmatpush.msra.mxu0 0.0
        %2146 = vmatpush.msra.mxu0 0.0
        %2147 = vmatpush.msra.mxu0 0.0
        %2148 = vmatpush.msra.mxu0 %v2122
        %2149 = vmatpush.msra.mxu0 %v2121
        %2150 = vmatpush.msra.mxu0 %v2120
        %2151 = vmatpush.msra.mxu0 %v2119
        %2152 = vmatmul.f32.gmra.mxu0 %v2128
        %v2153 = vpop.f32.mrf.mxu0
        %v2154 = vadd.f32 0.0, %v2153
        %2155 = vmatmul.f32.gmra.mxu0 %v2131
        %v2156 = vpop.f32.mrf.mxu0
        %v2157 = vadd.f32 0.0, %v2156
        %2158 = vmatmul.f32.gmra.mxu0 %v2134
        %v2159 = vpop.f32.mrf.mxu0
        %v2160 = vadd.f32 0.0, %v2159
        %2161 = vdwg.mxu0
        %2162 = vmatpush.msra.mxu0 0.0
        %2163 = vmatpush.msra.mxu0 0.0
        %2164 = vmatpush.msra.mxu0 0.0
        %2165 = vmatpush.msra.mxu0 0.0
        %2166 = vmatpush.msra.mxu0 0.0
        %2167 = vmatpush.msra.mxu0 0.0
        %2168 = vmatpush.msra.mxu0 0.0
        %2169 = vmatpush.msra.mxu0 0.0
        %2170 = vmatpush.msra.mxu0 0.0
        %2171 = vmatpush.msra.mxu0 0.0
        %2172 = vmatpush.msra.mxu0 0.0
        %2173 = vmatpush.msra.mxu0 0.0
        %2174 = vmatpush.msra.mxu0 %v2126
        %2175 = vmatpush.msra.mxu0 %v2125
        %2176 = vmatpush.msra.mxu0 %v2124
        %2177 = vmatpush.msra.mxu0 %v2123
        %2178 = vmatmul.f32.gmra.mxu0 %v2128
        %v2179 = vpop.f32.mrf.mxu0
        %v2180 = vadd.f32 0.0, %v2179
        %2181 = vmatmul.f32.gmra.mxu0 %v2131
        %v2182 = vpop.f32.mrf.mxu0
        %v2183 = vadd.f32 0.0, %v2182
        %2184 = vmatmul.f32.gmra.mxu0 %v2134
        %v2185 = vpop.f32.mrf.mxu0
        %v2186 = vadd.f32 0.0, %v2185
        %2187 = vdwg.mxu0
        %v2188 = vld [vmem:[%s37] sm:$0xff]
        %v2189 = vld [vmem:[%s37 + $0x8] sm:$0xff]
        %v2190 = vld [vmem:[%s37 + $0x10] sm:$0xff]
        %v2191 = vld [vmem:[%s37 + $0x18] sm:$0xff]
        %v2192 = vld [vmem:[%s37 + $0x20] sm:$0xff]
        %v2193 = vld [vmem:[%s37 + $0x28] sm:$0xff]
        %v2194 = vld [vmem:[%s37 + $0x30] sm:$0xff]
        %v2195 = vld [vmem:[%s37 + $0x38] sm:$0xff]
        %2196 = vmatpush.msra.mxu0 0.0
        %2197 = vmatpush.msra.mxu0 0.0
        %2198 = vmatpush.msra.mxu0 0.0
        %2199 = vmatpush.msra.mxu0 0.0
        %2200 = vmatpush.msra.mxu0 0.0
        %2201 = vmatpush.msra.mxu0 0.0
        %2202 = vmatpush.msra.mxu0 0.0
        %2203 = vmatpush.msra.mxu0 0.0
        %2204 = vmatpush.msra.mxu0 0.0
        %2205 = vmatpush.msra.mxu0 0.0
        %2206 = vmatpush.msra.mxu0 0.0
        %2207 = vmatpush.msra.mxu0 0.0
        %2208 = vmatpush.msra.mxu0 %v2191
        %2209 = vmatpush.msra.mxu0 %v2190
        %2210 = vmatpush.msra.mxu0 %v2189
        %2211 = vmatpush.msra.mxu0 %v2188
        %2212 = vmatmul.f32.gmra.mxu0 %v2128
        %v2213 = vpop.f32.mrf.mxu0
        %v2214 = vadd.f32 0.0, %v2213
        %2215 = vmatmul.f32.gmra.mxu0 %v2131
        %v2216 = vpop.f32.mrf.mxu0
        %v2217 = vadd.f32 0.0, %v2216
        %2218 = vmatmul.f32.gmra.mxu0 %v2134
        %v2219 = vpop.f32.mrf.mxu0
        %v2220 = vadd.f32 0.0, %v2219
        %2221 = vdwg.mxu0
        %2222 = vmatpush.msra.mxu0 0.0
        %2223 = vmatpush.msra.mxu0 0.0
        %2224 = vmatpush.msra.mxu0 0.0
        %2225 = vmatpush.msra.mxu0 0.0
        %2226 = vmatpush.msra.mxu0 0.0
        %2227 = vmatpush.msra.mxu0 0.0
        %2228 = vmatpush.msra.mxu0 0.0
        %2229 = vmatpush.msra.mxu0 0.0
        %2230 = vmatpush.msra.mxu0 0.0
        %2231 = vmatpush.msra.mxu0 0.0
        %2232 = vmatpush.msra.mxu0 0.0
        %2233 = vmatpush.msra.mxu0 0.0
        %2234 = vmatpush.msra.mxu0 %v2195
        %2235 = vmatpush.msra.mxu0 %v2194
        %2236 = vmatpush.msra.mxu0 %v2193
        %2237 = vmatpush.msra.mxu0 %v2192
        %2238 = vmatmul.f32.gmra.mxu0 %v2128
        %v2239 = vpop.f32.mrf.mxu0
        %v2240 = vadd.f32 0.0, %v2239
        %2241 = vmatmul.f32.gmra.mxu0 %v2131
        %v2242 = vpop.f32.mrf.mxu0
        %v2243 = vadd.f32 0.0, %v2242
        %2244 = vmatmul.f32.gmra.mxu0 %v2134
        %v2245 = vpop.f32.mrf.mxu0
        %v2246 = vadd.f32 0.0, %v2245
        %2247 = vdwg.mxu0
        %v2248 = vld [vmem:[%s43] sm:$0xff]
        %v2249 = vld [vmem:[%s43 + $0x8] sm:$0xff]
        %v2250 = vld [vmem:[%s43 + $0x10] sm:$0xff]
        %v2251 = vld [vmem:[%s43 + $0x18] sm:$0xff]
        %v2252 = vld [vmem:[%s43 + $0x20] sm:$0xff]
        %v2253 = vld [vmem:[%s43 + $0x28] sm:$0xff]
        %v2254 = vld [vmem:[%s43 + $0x30] sm:$0xff]
        %v2255 = vld [vmem:[%s43 + $0x38] sm:$0xff]
        %2256 = vmatpush.msra.mxu0 0.0
        %2257 = vmatpush.msra.mxu0 0.0
        %2258 = vmatpush.msra.mxu0 0.0
        %2259 = vmatpush.msra.mxu0 0.0
        %2260 = vmatpush.msra.mxu0 0.0
        %2261 = vmatpush.msra.mxu0 0.0
        %2262 = vmatpush.msra.mxu0 0.0
        %2263 = vmatpush.msra.mxu0 0.0
        %2264 = vmatpush.msra.mxu0 0.0
        %2265 = vmatpush.msra.mxu0 0.0
        %2266 = vmatpush.msra.mxu0 0.0
        %2267 = vmatpush.msra.mxu0 0.0
        %2268 = vmatpush.msra.mxu0 %v2251
        %2269 = vmatpush.msra.mxu0 %v2250
        %2270 = vmatpush.msra.mxu0 %v2249
        %2271 = vmatpush.msra.mxu0 %v2248
        %2272 = vmatmul.f32.gmra.mxu0 %v2128
        %v2273 = vpop.f32.mrf.mxu0
        %v2274 = vadd.f32 0.0, %v2273
        %2275 = vmatmul.f32.gmra.mxu0 %v2131
        %v2276 = vpop.f32.mrf.mxu0
        %v2277 = vadd.f32 0.0, %v2276
        %2278 = vmatmul.f32.gmra.mxu0 %v2134
        %v2279 = vpop.f32.mrf.mxu0
        %v2280 = vadd.f32 0.0, %v2279
        %2281 = vdwg.mxu0
        %2282 = vmatpush.msra.mxu0 0.0
        %2283 = vmatpush.msra.mxu0 0.0
        %2284 = vmatpush.msra.mxu0 0.0
        %2285 = vmatpush.msra.mxu0 0.0
        %2286 = vmatpush.msra.mxu0 0.0
        %2287 = vmatpush.msra.mxu0 0.0
        %2288 = vmatpush.msra.mxu0 0.0
        %2289 = vmatpush.msra.mxu0 0.0
        %2290 = vmatpush.msra.mxu0 0.0
        %2291 = vmatpush.msra.mxu0 0.0
        %2292 = vmatpush.msra.mxu0 0.0
        %2293 = vmatpush.msra.mxu0 0.0
        %2294 = vmatpush.msra.mxu0 %v2255
        %2295 = vmatpush.msra.mxu0 %v2254
        %2296 = vmatpush.msra.mxu0 %v2253
        %2297 = vmatpush.msra.mxu0 %v2252
        %2298 = vmatmul.f32.gmra.mxu0 %v2128
        %v2299 = vpop.f32.mrf.mxu0
        %v2300 = vadd.f32 0.0, %v2299
        %2301 = vmatmul.f32.gmra.mxu0 %v2131
        %v2302 = vpop.f32.mrf.mxu0
        %v2303 = vadd.f32 0.0, %v2302
        %2304 = vmatmul.f32.gmra.mxu0 %v2134
        %v2305 = vpop.f32.mrf.mxu0
        %v2306 = vadd.f32 0.0, %v2305
        %2307 = vdwg.mxu0
        %vm2308 = vcmask 130048
        %v2310 = vsel %vm2308, %v2154, 0
        %v2313 = vsel %vm2308, %v2157, 0
        %v2316 = vsel %vm2308, %v2160, 0
        %v2319 = vsel %vm2308, %v2214, 0
        %v2322 = vsel %vm2308, %v2217, 0
        %v2325 = vsel %vm2308, %v2220, 0
        %2327 = vmatpush.xpose.msra.mxu0 0.0
        %2328 = vmatpush.xpose.msra.mxu0 0.0
        %2329 = vmatpush.xpose.msra.mxu0 0.0
        %2330 = vmatpush.xpose.msra.mxu0 0.0
        %2331 = vmatpush.xpose.msra.mxu0 0.0
        %2332 = vmatpush.xpose.msra.mxu0 0.0
        %2333 = vmatpush.xpose.msra.mxu0 0.0
        %2334 = vmatpush.xpose.msra.mxu0 0.0
        %2335 = vmatpush.xpose.msra.mxu0 0.0
        %2336 = vmatpush.xpose.msra.mxu0 0.0
        %2337 = vmatpush.xpose.msra.mxu0 0.0
        %2338 = vmatpush.xpose.msra.mxu0 0.0
        %2339 = vmatpush.xpose.msra.mxu0 0.0
        %2340 = vmatpush.xpose.msra.mxu0 %v2325
        %2341 = vmatpush.xpose.msra.mxu0 %v2322
        %2342 = vmatpush.xpose.msra.mxu0 %v2319
        %2343 = vmatmul.f32.gmra.mxu0 %v2310
        %v2344 = vpop.f32.mrf.mxu0
        %v2345 = vadd.f32 0.0, %v2344
        %2346 = vmatmul.f32.gmra.mxu0 %v2313
        %v2347 = vpop.f32.mrf.mxu0
        %v2348 = vadd.f32 0.0, %v2347
        %2349 = vmatmul.f32.gmra.mxu0 %v2316
        %v2350 = vpop.f32.mrf.mxu0
        %v2351 = vadd.f32 0.0, %v2350
        %2352 = vdwg.mxu0
        %v2354 = vsel %vm2308, %v2180, 0
        %v2357 = vsel %vm2308, %v2183, 0
        %v2360 = vsel %vm2308, %v2186, 0
        %v2363 = vsel %vm2308, %v2240, 0
        %v2366 = vsel %vm2308, %v2243, 0
        %v2369 = vsel %vm2308, %v2246, 0
        %2371 = vmatpush.xpose.msra.mxu0 0.0
        %2372 = vmatpush.xpose.msra.mxu0 0.0
        %2373 = vmatpush.xpose.msra.mxu0 0.0
        %2374 = vmatpush.xpose.msra.mxu0 0.0
        %2375 = vmatpush.xpose.msra.mxu0 0.0
        %2376 = vmatpush.xpose.msra.mxu0 0.0
        %2377 = vmatpush.xpose.msra.mxu0 0.0
        %2378 = vmatpush.xpose.msra.mxu0 0.0
        %2379 = vmatpush.xpose.msra.mxu0 0.0
        %2380 = vmatpush.xpose.msra.mxu0 0.0
        %2381 = vmatpush.xpose.msra.mxu0 0.0
        %2382 = vmatpush.xpose.msra.mxu0 0.0
        %2383 = vmatpush.xpose.msra.mxu0 0.0
        %2384 = vmatpush.xpose.msra.mxu0 %v2369
        %2385 = vmatpush.xpose.msra.mxu0 %v2366
        %2386 = vmatpush.xpose.msra.mxu0 %v2363
        %2387 = vmatmul.f32.gmra.mxu0 %v2354
        %v2388 = vpop.f32.mrf.mxu0
        %v2389 = vadd.f32 0.0, %v2388
        %2390 = vmatmul.f32.gmra.mxu0 %v2357
        %v2391 = vpop.f32.mrf.mxu0
        %v2392 = vadd.f32 0.0, %v2391
        %2393 = vmatmul.f32.gmra.mxu0 %v2360
        %v2394 = vpop.f32.mrf.mxu0
        %v2395 = vadd.f32 0.0, %v2394
        %2396 = vdwg.mxu0
        %v2397 = vmul.f32 %v2345, 0.25
        %v2398 = vmul.f32 %v2348, 0.25
        %v2399 = vmul.f32 %v2351, 0.25
        %v2400 = vmul.f32 %v2389, 0.25
        %v2401 = vmul.f32 %v2392, 0.25
        %v2402 = vmul.f32 %v2395, 0.25
        %v2404 = vperm.slane %v2030, 0
        %v2406 = vadd.f32 %v2397, %v2404
        %v2407 = vadd.f32 %v2398, %v2404
        %v2408 = vadd.f32 %v2399, %v2404
        %v2409 = vadd.f32 %v2400, %v2404
        %v2410 = vadd.f32 %v2401, %v2404
        %v2411 = vadd.f32 %v2402, %v2404
        %vm2412 = vcmask 195584
        %v2413 = vsel %vm2412, %v2406, -inf
        %2414 = vmax.xlane.f32.xlu0 %v2413
        %v2415 = vpop.xlane.xlu0 %2414
        %v2416 = vsel %vm2412, %v2407, -inf
        %2417 = vmax.xlane.f32.xlu0 %v2416
        %v2418 = vpop.xlane.xlu0 %2417
        %v2419 = vsel %vm2412, %v2408, -inf
        %2420 = vmax.xlane.f32.xlu0 %v2419
        %v2421 = vpop.xlane.xlu0 %2420
        %v2422 = vsel %vm2412, %v2409, -inf
        %2423 = vmax.xlane.f32.xlu0 %v2422
        %v2424 = vpop.xlane.xlu0 %2423
        %v2425 = vsel %vm2412, %v2410, -inf
        %2426 = vmax.xlane.f32.xlu0 %v2425
        %v2427 = vpop.xlane.xlu0 %2426
        %v2428 = vsel %vm2412, %v2411, -inf
        %2429 = vmax.xlane.f32.xlu0 %v2428
        %v2430 = vpop.xlane.xlu0 %2429
        %v2431 = vsub.f32 %v2406, %v2415
        %v2432 = vsub.f32 %v2407, %v2418
        %v2433 = vsub.f32 %v2408, %v2421
        %v2434 = vsub.f32 %v2409, %v2424
        %v2435 = vsub.f32 %v2410, %v2427
        %v2436 = vsub.f32 %v2411, %v2430
        %v2437 = vmul.f32 %v2431, 1.442695
        %v2438 = vpow.pop %v2437
        %v2439 = vmul.f32 %v2432, 1.442695
        %v2440 = vpow.pop %v2439
        %v2441 = vmul.f32 %v2433, 1.442695
        %v2442 = vpow.pop %v2441
        %v2443 = vmul.f32 %v2434, 1.442695
        %v2444 = vpow.pop %v2443
        %v2445 = vmul.f32 %v2435, 1.442695
        %v2446 = vpow.pop %v2445
        %v2447 = vmul.f32 %v2436, 1.442695
        %v2448 = vpow.pop %v2447
        %v2449 = vsel %vm2412, %v2438, 0.0
        %2450 = vadd.xlane.f32.xlu0 %v2449
        %v2451 = vpop.xlane.xlu0 %2450
        %v2452 = vsel %vm2412, %v2440, 0.0
        %2453 = vadd.xlane.f32.xlu0 %v2452
        %v2454 = vpop.xlane.xlu0 %2453
        %v2455 = vsel %vm2412, %v2442, 0.0
        %2456 = vadd.xlane.f32.xlu0 %v2455
        %v2457 = vpop.xlane.xlu0 %2456
        %v2458 = vsel %vm2412, %v2444, 0.0
        %2459 = vadd.xlane.f32.xlu0 %v2458
        %v2460 = vpop.xlane.xlu0 %2459
        %v2461 = vsel %vm2412, %v2446, 0.0
        %2462 = vadd.xlane.f32.xlu0 %v2461
        %v2463 = vpop.xlane.xlu0 %2462
        %v2464 = vsel %vm2412, %v2448, 0.0
        %2465 = vadd.xlane.f32.xlu0 %v2464
        %v2466 = vpop.xlane.xlu0 %2465
        %v2467 = vrcp.pop %v2451
        %v2468 = vrcp.pop %v2454
        %v2469 = vrcp.pop %v2457
        %v2470 = vrcp.pop %v2460
        %v2471 = vrcp.pop %v2463
        %v2472 = vrcp.pop %v2466
        %v2473 = vmul.f32 %v2438, %v2467
        %v2474 = vmul.f32 %v2440, %v2468
        %v2475 = vmul.f32 %v2442, %v2469
        %v2476 = vmul.f32 %v2444, %v2470
        %v2477 = vmul.f32 %v2446, %v2471
        %v2478 = vmul.f32 %v2448, %v2472
        %v2480 = vsel %vm2412, %v2473, 0
        %v2483 = vsel %vm2412, %v2474, 0
        %v2486 = vsel %vm2412, %v2475, 0
        %2488 = vmatpush.msra.mxu0 0.0
        %2489 = vmatpush.msra.mxu0 0.0
        %2490 = vmatpush.msra.mxu0 0.0
        %2491 = vmatpush.msra.mxu0 0.0
        %2492 = vmatpush.msra.mxu0 0.0
        %2493 = vmatpush.msra.mxu0 0.0
        %2494 = vmatpush.msra.mxu0 0.0
        %2495 = vmatpush.msra.mxu0 0.0
        %2496 = vmatpush.msra.mxu0 0.0
        %2497 = vmatpush.msra.mxu0 0.0
        %2498 = vmatpush.msra.mxu0 0.0
        %2499 = vmatpush.msra.mxu0 0.0
        %2500 = vmatpush.msra.mxu0 0.0
        %2501 = vmatpush.msra.mxu0 %v2280
        %2502 = vmatpush.msra.mxu0 %v2277
        %2503 = vmatpush.msra.mxu0 %v2274
        %2504 = vmatmul.f32.gmra.mxu0 %v2480
        %v2505 = vpop.f32.mrf.mxu0
        %v2506 = vadd.f32 0.0, %v2505
        %2507 = vmatmul.f32.gmra.mxu0 %v2483
        %v2508 = vpop.f32.mrf.mxu0
        %v2509 = vadd.f32 0.0, %v2508
        %2510 = vmatmul.f32.gmra.mxu0 %v2486
        %v2511 = vpop.f32.mrf.mxu0
        %v2512 = vadd.f32 0.0, %v2511
        %2513 = vdwg.mxu0
        %v2515 = vsel %vm2412, %v2476, 0
        %v2518 = vsel %vm2412, %v2477, 0
        %v2521 = vsel %vm2412, %v2478, 0
        %2523 = vmatpush.msra.mxu0 0.0
        %2524 = vmatpush.msra.mxu0 0.0
        %2525 = vmatpush.msra.mxu0 0.0
        %2526 = vmatpush.msra.mxu0 0.0
        %2527 = vmatpush.msra.mxu0 0.0
        %2528 = vmatpush.msra.mxu0 0.0
        %2529 = vmatpush.msra.mxu0 0.0
        %2530 = vmatpush.msra.mxu0 0.0
        %2531 = vmatpush.msra.mxu0 0.0
        %2532 = vmatpush.msra.mxu0 0.0
        %2533 = vmatpush.msra.mxu0 0.0
        %2534 = vmatpush.msra.mxu0 0.0
        %2535 = vmatpush.msra.mxu0 0.0
        %2536 = vmatpush.msra.mxu0 %v2306
        %2537 = vmatpush.msra.mxu0 %v2303
        %2538 = vmatpush.msra.mxu0 %v2300
        %2539 = vmatmul.f32.gmra.mxu0 %v2515
        %v2540 = vpop.f32.mrf.mxu0
        %v2541 = vadd.f32 0.0, %v2540
        %2542 = vmatmul.f32.gmra.mxu0 %v2518
        %v2543 = vpop.f32.mrf.mxu0
        %v2544 = vadd.f32 0.0, %v2543
        %2545 = vmatmul.f32.gmra.mxu0 %v2521
        %v2546 = vpop.f32.mrf.mxu0
        %v2547 = vadd.f32 0.0, %v2546
        %2548 = vdwg.mxu0
        %v2549 = vld [vmem:[%s39] sm:$0xff]
        %v2550 = vld [vmem:[%s39 + $0x8] sm:$0xff]
        %v2551 = vld [vmem:[%s39 + $0x10] sm:$0xff]
        %v2552 = vld [vmem:[%s39 + $0x18] sm:$0xff]
        %v2554 = vsel %vm2308, %v2506, 0
        %v2557 = vsel %vm2308, %v2509, 0
        %v2560 = vsel %vm2308, %v2512, 0
        %2562 = vmatpush.msra.mxu0 0.0
        %2563 = vmatpush.msra.mxu0 0.0
        %2564 = vmatpush.msra.mxu0 0.0
        %2565 = vmatpush.msra.mxu0 0.0
        %2566 = vmatpush.msra.mxu0 0.0
        %2567 = vmatpush.msra.mxu0 0.0
        %2568 = vmatpush.msra.mxu0 0.0
        %2569 = vmatpush.msra.mxu0 0.0
        %2570 = vmatpush.msra.mxu0 0.0
        %2571 = vmatpush.msra.mxu0 0.0
        %2572 = vmatpush.msra.mxu0 0.0
        %2573 = vmatpush.msra.mxu0 0.0
        %2574 = vmatpush.msra.mxu0 0.0
        %2575 = vmatpush.msra.mxu0 0.0
        %2576 = vmatpush.msra.mxu0 %v2550
        %2577 = vmatpush.msra.mxu0 %v2549
        %2578 = vmatmul.f32.gmra.mxu0 %v2554
        %v2579 = vpop.f32.mrf.mxu0
        %v2580 = vadd.f32 0.0, %v2579
        %2581 = vmatmul.f32.gmra.mxu0 %v2557
        %v2582 = vpop.f32.mrf.mxu0
        %v2583 = vadd.f32 0.0, %v2582
        %2584 = vmatmul.f32.gmra.mxu0 %v2560
        %v2585 = vpop.f32.mrf.mxu0
        %v2586 = vadd.f32 0.0, %v2585
        %2587 = vdwg.mxu0
        %v2589 = vsel %vm2308, %v2541, 0
        %v2592 = vsel %vm2308, %v2544, 0
        %v2595 = vsel %vm2308, %v2547, 0
        %2597 = vmatpush.msra.mxu0 0.0
        %2598 = vmatpush.msra.mxu0 0.0
        %2599 = vmatpush.msra.mxu0 0.0
        %2600 = vmatpush.msra.mxu0 0.0
        %2601 = vmatpush.msra.mxu0 0.0
        %2602 = vmatpush.msra.mxu0 0.0
        %2603 = vmatpush.msra.mxu0 0.0
        %2604 = vmatpush.msra.mxu0 0.0
        %2605 = vmatpush.msra.mxu0 0.0
        %2606 = vmatpush.msra.mxu0 0.0
        %2607 = vmatpush.msra.mxu0 0.0
        %2608 = vmatpush.msra.mxu0 0.0
        %2609 = vmatpush.msra.mxu0 0.0
        %2610 = vmatpush.msra.mxu0 0.0
        %2611 = vmatpush.msra.mxu0 %v2552
        %2612 = vmatpush.msra.mxu0 %v2551
        %2613 = vmatmul.f32.gmra.mxu0 %v2589
        %v2614 = vpop.f32.mrf.mxu0
        %v2615 = vadd.f32 0.0, %v2614
        %2616 = vmatmul.f32.gmra.mxu0 %v2592
        %v2617 = vpop.f32.mrf.mxu0
        %v2618 = vadd.f32 0.0, %v2617
        %2619 = vmatmul.f32.gmra.mxu0 %v2595
        %v2620 = vpop.f32.mrf.mxu0
        %v2621 = vadd.f32 0.0, %v2620
        %2622 = vdwg.mxu0
        %v2623 = vsel %vm2033, %v2580, 0.0
        %v2624 = vsel %vm2033, %v2615, 0.0
        %v2625 = vadd.f32 %v2623, %v2624
        %v2626 = vsel %vm2033, %v2583, 0.0
        %v2627 = vsel %vm2033, %v2618, 0.0
        %v2628 = vadd.f32 %v2626, %v2627
        %v2629 = vsel %vm2033, %v2586, 0.0
        %v2630 = vsel %vm2033, %v2621, 0.0
        %v2631 = vadd.f32 %v2629, %v2630
        %v2632 = vadd.f32 %v2022, %v2625
        %v2633 = vadd.f32 %v2025, %v2628
        %v2634 = vadd.f32 %v2028, %v2631
        %v2635 = vld [vmem:[%s23] sm:$0x1]
        %v2637 = vperm.slane %v2635, 0
        %v2639 = vadd.f32 %v2632, %v2637
        %v2640 = vadd.f32 %v2633, %v2637
        %v2641 = vadd.f32 %v2634, %v2637
        %v2642 = vld [vmem:[%s31] sm:$0x1]
        %v2643 = vld [vmem:[%s29] sm:$0x1]
        %v2644 = vsel %vm2033, %v2639, 0.0
        %2645 = vadd.xlane.f32.xlu0 %v2644
        %v2646 = vpop.xlane.xlu0 %2645
        %v2647 = vsel %vm2033, %v2640, 0.0
        %2648 = vadd.xlane.f32.xlu0 %v2647
        %v2649 = vpop.xlane.xlu0 %2648
        %v2650 = vsel %vm2033, %v2641, 0.0
        %2651 = vadd.xlane.f32.xlu0 %v2650
        %v2652 = vpop.xlane.xlu0 %2651
        %v2653 = vmul.f32 %v2646, %v2049
        %v2654 = vmul.f32 %v2649, %v2049
        %v2655 = vmul.f32 %v2652, %v2049
        %v2656 = vsub.f32 %v2639, %v2653
        %v2657 = vsub.f32 %v2640, %v2654
        %v2658 = vsub.f32 %v2641, %v2655
        %v2659 = vmul.f32 %v2656, %v2656
        %v2660 = vmul.f32 %v2657, %v2657
        %v2661 = vmul.f32 %v2658, %v2658
        %v2662 = vsel %vm2033, %v2659, 0.0
        %2663 = vadd.xlane.f32.xlu0 %v2662
        %v2664 = vpop.xlane.xlu0 %2663
        %v2665 = vsel %vm2033, %v2660, 0.0
        %2666 = vadd.xlane.f32.xlu0 %v2665
        %v2667 = vpop.xlane.xlu0 %2666
        %v2668 = vsel %vm2033, %v2661, 0.0
        %2669 = vadd.xlane.f32.xlu0 %v2668
        %v2670 = vpop.xlane.xlu0 %2669
        %v2671 = vmul.f32 %v2664, %v2049
        %v2672 = vmul.f32 %v2667, %v2049
        %v2673 = vmul.f32 %v2670, %v2049
        %v2674 = vadd.f32 %v2671, 1e-05
        %v2675 = vadd.f32 %v2672, 1e-05
        %v2676 = vadd.f32 %v2673, 1e-05
        %v2677 = vrsqrt.pop %v2674
        %v2678 = vmul.f32 %v2677, %v2674
        %v2679 = vmul.f32 %v2678, %v2677
        %v2680 = vmul.f32 0.5, %v2679
        %v2681 = vsub.f32 1.5, %v2680
        %v2682 = vmul.f32 %v2677, %v2681
        %vm2683 = vweird.f32 %v2674
        %vm2684 = vweird.f32 %v2677
        %vm2685 = vmor %vm2683, %vm2684
        %v2686 = vsel %vm2685, %v2677, %v2682
        %v2687 = vrsqrt.pop %v2675
        %v2688 = vmul.f32 %v2687, %v2675
        %v2689 = vmul.f32 %v2688, %v2687
        %v2690 = vmul.f32 0.5, %v2689
        %v2691 = vsub.f32 1.5, %v2690
        %v2692 = vmul.f32 %v2687, %v2691
        %vm2693 = vweird.f32 %v2675
        %vm2694 = vweird.f32 %v2687
        %vm2695 = vmor %vm2693, %vm2694
        %v2696 = vsel %vm2695, %v2687, %v2692
        %v2697 = vrsqrt.pop %v2676
        %v2698 = vmul.f32 %v2697, %v2676
        %v2699 = vmul.f32 %v2698, %v2697
        %v2700 = vmul.f32 0.5, %v2699
        %v2701 = vsub.f32 1.5, %v2700
        %v2702 = vmul.f32 %v2697, %v2701
        %vm2703 = vweird.f32 %v2676
        %vm2704 = vweird.f32 %v2697
        %vm2705 = vmor %vm2703, %vm2704
        %v2706 = vsel %vm2705, %v2697, %v2702
        %v2707 = vmul.f32 %v2656, %v2686
        %v2708 = vmul.f32 %v2657, %v2696
        %v2709 = vmul.f32 %v2658, %v2706
        %v2711 = vperm.slane %v2642, 0
        %v2713 = vmul.f32 %v2707, %v2711
        %v2714 = vmul.f32 %v2708, %v2711
        %v2715 = vmul.f32 %v2709, %v2711
        %v2717 = vperm.slane %v2643, 0
        %v2719 = vadd.f32 %v2713, %v2717
        %v2720 = vadd.f32 %v2714, %v2717
        %v2721 = vadd.f32 %v2715, %v2717
        %v2722 = vld [vmem:[%s33] sm:$0xff]
        %v2723 = vld [vmem:[%s33 + $0x8] sm:$0xff]
        %v2724 = vld [vmem:[%s33 + $0x10] sm:$0xff]
        %v2725 = vld [vmem:[%s33 + $0x18] sm:$0xff]
        %v2726 = vld [vmem:[%s19] sm:$0x1]
        %v2728 = vperm.slane %v2726, 0
        %v2731 = vsel %vm2033, %v2719, 0
        %v2734 = vsel %vm2033, %v2720, 0
        %v2737 = vsel %vm2033, %v2721, 0
        %2739 = vmatpush.msra.mxu0 0.0
        %2740 = vmatpush.msra.mxu0 0.0
        %2741 = vmatpush.msra.mxu0 0.0
        %2742 = vmatpush.msra.mxu0 0.0
        %2743 = vmatpush.msra.mxu0 0.0
        %2744 = vmatpush.msra.mxu0 0.0
        %2745 = vmatpush.msra.mxu0 0.0
        %2746 = vmatpush.msra.mxu0 0.0
        %2747 = vmatpush.msra.mxu0 0.0
        %2748 = vmatpush.msra.mxu0 0.0
        %2749 = vmatpush.msra.mxu0 0.0
        %2750 = vmatpush.msra.mxu0 0.0
        %2751 = vmatpush.msra.mxu0 %v2725
        %2752 = vmatpush.msra.mxu0 %v2724
        %2753 = vmatpush.msra.mxu0 %v2723
        %2754 = vmatpush.msra.mxu0 %v2722
        %2755 = vmatmul.f32.gmra.mxu0 %v2731
        %v2756 = vpop.f32.mrf.mxu0
        %v2757 = vadd.f32 %v2728, %v2756
        %2758 = vmatmul.f32.gmra.mxu0 %v2734
        %v2759 = vpop.f32.mrf.mxu0
        %v2760 = vadd.f32 %v2728, %v2759
        %2761 = vmatmul.f32.gmra.mxu0 %v2737
        %v2762 = vpop.f32.mrf.mxu0
        %v2763 = vadd.f32 %v2728, %v2762
        %2764 = vdwg.mxu0
        %v2765 = vmul.f32 %v2757, 0.5
        %v2766 = vmul.f32 %v2760, 0.5
        %v2767 = vmul.f32 %v2763, 0.5
        %v2768 = vmul.f32 %v2757, 0.70710677
        %v2769 = vmul.f32 %v2760, 0.70710677
        %v2770 = vmul.f32 %v2763, 0.70710677
        %v2771 = vmul.f32 %v2768, %v2768
        %v2772 = vmin.f32 16.0, %v2771
        %v2773 = vmul.f32 %v2772, 2.1237322e-06
        %v2774 = vadd.f32 %v2773, 0.00028619796
        %v2775 = vmul.f32 %v2772, %v2774
        %v2776 = vadd.f32 %v2775, 0.0036580483
        %v2777 = vmul.f32 %v2772, %v2776
        %v2778 = vadd.f32 %v2777, 0.05243302
        %v2779 = vmul.f32 %v2772, %v2778
        %v2780 = vadd.f32 %v2779, 0.18741608
        %v2781 = vmul.f32 %v2772, %v2780
        %v2782 = vadd.f32 %v2781, 1.1283791
        %v2783 = vmul.f32 %v2768, %v2782
        %v2784 = vmul.f32 %v2772, 3.8918573e-05
        %v2785 = vadd.f32 %v2784, 0.001143296
        %v2786 = vmul.f32 %v2772, %v2785
        %v2787 = vadd.f32 %v2786, 0.014752088
        %v2788 = vmul.f32 %v2772, %v2787
        %v2789 = vadd.f32 %v2788, 0.112945676
        %v2790 = vmul.f32 %v2772, %v2789
        %v2791 = vadd.f32 %v2790, 0.4994258
        %v2792 = vmul.f32 %v2772, %v2791
        %v2793 = vadd.f32 %v2792, 1.0
        %v2794 = vrcp.pop %v2793
        %v2795 = vmul.f32 %v2793, %v2794
        %v2796 = vsub.f32 1.0, %v2795
        %v2797 = vmul.f32 %v2794, %v2796
        %v2798 = vadd.f32 %v2794, %v2797
        %vm2799 = vweird.f32 %v2793
        %vm2800 = vweird.f32 %v2794
        %vm2801 = vmor %vm2799, %vm2800
        %v2802 = vsel %vm2801, %v2794, %v2798
        %v2803 = vand.u32 2147483647, %v2793
        %vm2804 = vcmp.eq.f32.partialorder %v2803, 8.507059e+37
        %v2805 = vand.u32 %v2793, 2147483648
        %v2806 = vor.u32 1.1754944e-38, %v2805
        %v2807 = vsel %vm2804, %v2806, %v2802
        %v2808 = vmul.f32 %v2783, %v2807
        %v2809 = vmin.f32 %v2808, 1.0
        %v2810 = vmax.f32 %v2809, -1.0
        %v2811 = vmul.f32 %v2769, %v2769
        %v2812 = vmin.f32 16.0, %v2811
        %v2813 = vmul.f32 %v2812, 2.1237322e-06
        %v2814 = vadd.f32 %v2813, 0.00028619796
        %v2815 = vmul.f32 %v2812, %v2814
        %v2816 = vadd.f32 %v2815, 0.0036580483
        %v2817 = vmul.f32 %v2812, %v2816
        %v2818 = vadd.f32 %v2817, 0.05243302
        %v2819 = vmul.f32 %v2812, %v2818
        %v2820 = vadd.f32 %v2819, 0.18741608
        %v2821 = vmul.f32 %v2812, %v2820
        %v2822 = vadd.f32 %v2821, 1.1283791
        %v2823 = vmul.f32 %v2769, %v2822
        %v2824 = vmul.f32 %v2812, 3.8918573e-05
        %v2825 = vadd.f32 %v2824, 0.001143296
        %v2826 = vmul.f32 %v2812, %v2825
        %v2827 = vadd.f32 %v2826, 0.014752088
        %v2828 = vmul.f32 %v2812, %v2827
        %v2829 = vadd.f32 %v2828, 0.112945676
        %v2830 = vmul.f32 %v2812, %v2829
        %v2831 = vadd.f32 %v2830, 0.4994258
        %v2832 = vmul.f32 %v2812, %v2831
        %v2833 = vadd.f32 %v2832, 1.0
        %v2834 = vrcp.pop %v2833
        %v2835 = vmul.f32 %v2833, %v2834
        %v2836 = vsub.f32 1.0, %v2835
        %v2837 = vmul.f32 %v2834, %v2836
        %v2838 = vadd.f32 %v2834, %v2837
        %vm2839 = vweird.f32 %v2833
        %vm2840 = vweird.f32 %v2834
        %vm2841 = vmor %vm2839, %vm2840
        %v2842 = vsel %vm2841, %v2834, %v2838
        %v2843 = vand.u32 2147483647, %v2833
        %vm2844 = vcmp.eq.f32.partialorder %v2843, 8.507059e+37
        %v2845 = vand.u32 %v2833, 2147483648
        %v2846 = vor.u32 1.1754944e-38, %v2845
        %v2847 = vsel %vm2844, %v2846, %v2842
        %v2848 = vmul.f32 %v2823, %v2847
        %v2849 = vmin.f32 %v2848, 1.0
        %v2850 = vmax.f32 %v2849, -1.0
        %v2851 = vmul.f32 %v2770, %v2770
        %v2852 = vmin.f32 16.0, %v2851
        %v2853 = vmul.f32 %v2852, 2.1237322e-06
        %v2854 = vadd.f32 %v2853, 0.00028619796
        %v2855 = vmul.f32 %v2852, %v2854
        %v2856 = vadd.f32 %v2855, 0.0036580483
        %v2857 = vmul.f32 %v2852, %v2856
        %v2858 = vadd.f32 %v2857, 0.05243302
        %v2859 = vmul.f32 %v2852, %v2858
        %v2860 = vadd.f32 %v2859, 0.18741608
        %v2861 = vmul.f32 %v2852, %v2860
        %v2862 = vadd.f32 %v2861, 1.1283791
        %v2863 = vmul.f32 %v2770, %v2862
        %v2864 = vmul.f32 %v2852, 3.8918573e-05
        %v2865 = vadd.f32 %v2864, 0.001143296
        %v2866 = vmul.f32 %v2852, %v2865
        %v2867 = vadd.f32 %v2866, 0.014752088
        %v2868 = vmul.f32 %v2852, %v2867
        %v2869 = vadd.f32 %v2868, 0.112945676
        %v2870 = vmul.f32 %v2852, %v2869
        %v2871 = vadd.f32 %v2870, 0.4994258
        %v2872 = vmul.f32 %v2852, %v2871
        %v2873 = vadd.f32 %v2872, 1.0
        %v2874 = vrcp.pop %v2873
        %v2875 = vmul.f32 %v2873, %v2874
        %v2876 = vsub.f32 1.0, %v2875
        %v2877 = vmul.f32 %v2874, %v2876
        %v2878 = vadd.f32 %v2874, %v2877
        %vm2879 = vweird.f32 %v2873
        %vm2880 = vweird.f32 %v2874
        %vm2881 = vmor %vm2879, %vm2880
        %v2882 = vsel %vm2881, %v2874, %v2878
        %v2883 = vand.u32 2147483647, %v2873
        %vm2884 = vcmp.eq.f32.partialorder %v2883, 8.507059e+37
        %v2885 = vand.u32 %v2873, 2147483648
        %v2886 = vor.u32 1.1754944e-38, %v2885
        %v2887 = vsel %vm2884, %v2886, %v2882
        %v2888 = vmul.f32 %v2863, %v2887
        %v2889 = vmin.f32 %v2888, 1.0
        %v2890 = vmax.f32 %v2889, -1.0
        %v2891 = vadd.f32 %v2810, 1.0
        %v2892 = vadd.f32 %v2850, 1.0
        %v2893 = vadd.f32 %v2890, 1.0
        %v2894 = vmul.f32 %v2765, %v2891
        %v2895 = vmul.f32 %v2766, %v2892
        %v2896 = vmul.f32 %v2767, %v2893
        %v2897 = vld [vmem:[%s35] sm:$0xff]
        %v2898 = vld [vmem:[%s35 + $0x8] sm:$0xff]
        %v2899 = vld [vmem:[%s35 + $0x10] sm:$0xff]
        %v2900 = vld [vmem:[%s35 + $0x18] sm:$0xff]
        %v2901 = vld [vmem:[%s35 + $0x20] sm:$0xff]
        %v2902 = vld [vmem:[%s35 + $0x28] sm:$0xff]
        %v2903 = vld [vmem:[%s35 + $0x30] sm:$0xff]
        %v2904 = vld [vmem:[%s35 + $0x38] sm:$0xff]
        %v2905 = vld [vmem:[%s35 + $0x40] sm:$0xff]
        %v2906 = vld [vmem:[%s35 + $0x48] sm:$0xff]
        %v2907 = vld [vmem:[%s35 + $0x50] sm:$0xff]
        %v2908 = vld [vmem:[%s35 + $0x58] sm:$0xff]
        %v2909 = vld [vmem:[%s35 + $0x60] sm:$0xff]
        %v2910 = vld [vmem:[%s35 + $0x68] sm:$0xff]
        %v2911 = vld [vmem:[%s35 + $0x70] sm:$0xff]
        %v2912 = vld [vmem:[%s35 + $0x78] sm:$0xff]
        %v2913 = vld [vmem:[%s21] sm:$0x1]
        %v2915 = vperm.slane %v2913, 0
        %2917 = vmatpush.msra.mxu0 %v2912
        %2918 = vmatpush.msra.mxu0 %v2911
        %2919 = vmatpush.msra.mxu0 %v2910
        %2920 = vmatpush.msra.mxu0 %v2909
        %2921 = vmatpush.msra.mxu0 %v2908
        %2922 = vmatpush.msra.mxu0 %v2907
        %2923 = vmatpush.msra.mxu0 %v2906
        %2924 = vmatpush.msra.mxu0 %v2905
        %2925 = vmatpush.msra.mxu0 %v2904
        %2926 = vmatpush.msra.mxu0 %v2903
        %2927 = vmatpush.msra.mxu0 %v2902
        %2928 = vmatpush.msra.mxu0 %v2901
        %2929 = vmatpush.msra.mxu0 %v2900
        %2930 = vmatpush.msra.mxu0 %v2899
        %2931 = vmatpush.msra.mxu0 %v2898
        %2932 = vmatpush.msra.mxu0 %v2897
        %2933 = vmatmul.f32.gmra.mxu0 %v2894
        %v2934 = vpop.f32.mrf.mxu0
        %v2935 = vadd.f32 %v2915, %v2934
        %2936 = vmatmul.f32.gmra.mxu0 %v2895
        %v2937 = vpop.f32.mrf.mxu0
        %v2938 = vadd.f32 %v2915, %v2937
        %2939 = vmatmul.f32.gmra.mxu0 %v2896
        %v2940 = vpop.f32.mrf.mxu0
        %v2941 = vadd.f32 %v2915, %v2940
        %2942 = vdwg.mxu0
        %v2943 = vadd.f32 %v2639, %v2935
        %v2944 = vadd.f32 %v2640, %v2938
        %v2945 = vadd.f32 %v2641, %v2941
        %v2946 = vld [vmem:[%s53] sm:$0x1]
        %v2947 = vld [vmem:[%s51] sm:$0x1]
        %v2948 = vsel %vm2033, %v2943, 0.0
        %2949 = vadd.xlane.f32.xlu0 %v2948
        %v2950 = vpop.xlane.xlu0 %2949
        %v2951 = vsel %vm2033, %v2944, 0.0
        %2952 = vadd.xlane.f32.xlu0 %v2951
        %v2953 = vpop.xlane.xlu0 %2952
        %v2954 = vsel %vm2033, %v2945, 0.0
        %2955 = vadd.xlane.f32.xlu0 %v2954
        %v2956 = vpop.xlane.xlu0 %2955
        %v2957 = vmul.f32 %v2950, %v2049
        %v2958 = vmul.f32 %v2953, %v2049
        %v2959 = vmul.f32 %v2956, %v2049
        %v2960 = vsub.f32 %v2943, %v2957
        %v2961 = vsub.f32 %v2944, %v2958
        %v2962 = vsub.f32 %v2945, %v2959
        %v2963 = vmul.f32 %v2960, %v2960
        %v2964 = vmul.f32 %v2961, %v2961
        %v2965 = vmul.f32 %v2962, %v2962
        %v2966 = vsel %vm2033, %v2963, 0.0
        %2967 = vadd.xlane.f32.xlu0 %v2966
        %v2968 = vpop.xlane.xlu0 %2967
        %v2969 = vsel %vm2033, %v2964, 0.0
        %2970 = vadd.xlane.f32.xlu0 %v2969
        %v2971 = vpop.xlane.xlu0 %2970
        %v2972 = vsel %vm2033, %v2965, 0.0
        %2973 = vadd.xlane.f32.xlu0 %v2972
        %v2974 = vpop.xlane.xlu0 %2973
        %v2975 = vmul.f32 %v2968, %v2049
        %v2976 = vmul.f32 %v2971, %v2049
        %v2977 = vmul.f32 %v2974, %v2049
        %v2978 = vadd.f32 %v2975, 1e-05
        %v2979 = vadd.f32 %v2976, 1e-05
        %v2980 = vadd.f32 %v2977, 1e-05
        %v2981 = vrsqrt.pop %v2978
        %v2982 = vmul.f32 %v2981, %v2978
        %v2983 = vmul.f32 %v2982, %v2981
        %v2984 = vmul.f32 0.5, %v2983
        %v2985 = vsub.f32 1.5, %v2984
        %v2986 = vmul.f32 %v2981, %v2985
        %vm2987 = vweird.f32 %v2978
        %vm2988 = vweird.f32 %v2981
        %vm2989 = vmor %vm2987, %vm2988
        %v2990 = vsel %vm2989, %v2981, %v2986
        %v2991 = vrsqrt.pop %v2979
        %v2992 = vmul.f32 %v2991, %v2979
        %v2993 = vmul.f32 %v2992, %v2991
        %v2994 = vmul.f32 0.5, %v2993
        %v2995 = vsub.f32 1.5, %v2994
        %v2996 = vmul.f32 %v2991, %v2995
        %vm2997 = vweird.f32 %v2979
        %vm2998 = vweird.f32 %v2991
        %vm2999 = vmor %vm2997, %vm2998
        %v3000 = vsel %vm2999, %v2991, %v2996
        %v3001 = vrsqrt.pop %v2980
        %v3002 = vmul.f32 %v3001, %v2980
        %v3003 = vmul.f32 %v3002, %v3001
        %v3004 = vmul.f32 0.5, %v3003
        %v3005 = vsub.f32 1.5, %v3004
        %v3006 = vmul.f32 %v3001, %v3005
        %vm3007 = vweird.f32 %v2980
        %vm3008 = vweird.f32 %v3001
        %vm3009 = vmor %vm3007, %vm3008
        %v3010 = vsel %vm3009, %v3001, %v3006
        %v3011 = vmul.f32 %v2960, %v2990
        %v3012 = vmul.f32 %v2961, %v3000
        %v3013 = vmul.f32 %v2962, %v3010
        %v3015 = vperm.slane %v2946, 0
        %v3017 = vmul.f32 %v3011, %v3015
        %v3018 = vmul.f32 %v3012, %v3015
        %v3019 = vmul.f32 %v3013, %v3015
        %v3021 = vperm.slane %v2947, 0
        %v3023 = vadd.f32 %v3017, %v3021
        %v3024 = vadd.f32 %v3018, %v3021
        %v3025 = vadd.f32 %v3019, %v3021
        %v3026 = vld [vmem:[%s67] sm:$0xff]
        %v3027 = vld [vmem:[%s67 + $0x8] sm:$0xff]
        %v3028 = vld [vmem:[%s67 + $0x10] sm:$0xff]
        %v3029 = vld [vmem:[%s67 + $0x18] sm:$0xff]
        %v3030 = vld [vmem:[%s67 + $0x20] sm:$0xff]
        %v3031 = vld [vmem:[%s67 + $0x28] sm:$0xff]
        %v3032 = vld [vmem:[%s67 + $0x30] sm:$0xff]
        %v3033 = vld [vmem:[%s67 + $0x38] sm:$0xff]
        %v3035 = vsel %vm2033, %v3023, 0
        %v3038 = vsel %vm2033, %v3024, 0
        %v3041 = vsel %vm2033, %v3025, 0
        %3043 = vmatpush.msra.mxu0 0.0
        %3044 = vmatpush.msra.mxu0 0.0
        %3045 = vmatpush.msra.mxu0 0.0
        %3046 = vmatpush.msra.mxu0 0.0
        %3047 = vmatpush.msra.mxu0 0.0
        %3048 = vmatpush.msra.mxu0 0.0
        %3049 = vmatpush.msra.mxu0 0.0
        %3050 = vmatpush.msra.mxu0 0.0
        %3051 = vmatpush.msra.mxu0 0.0
        %3052 = vmatpush.msra.mxu0 0.0
        %3053 = vmatpush.msra.mxu0 0.0
        %3054 = vmatpush.msra.mxu0 0.0
        %3055 = vmatpush.msra.mxu0 %v3029
        %3056 = vmatpush.msra.mxu0 %v3028
        %3057 = vmatpush.msra.mxu0 %v3027
        %3058 = vmatpush.msra.mxu0 %v3026
        %3059 = vmatmul.f32.gmra.mxu0 %v3035
        %v3060 = vpop.f32.mrf.mxu0
        %v3061 = vadd.f32 0.0, %v3060
        %3062 = vmatmul.f32.gmra.mxu0 %v3038
        %v3063 = vpop.f32.mrf.mxu0
        %v3064 = vadd.f32 0.0, %v3063
        %3065 = vmatmul.f32.gmra.mxu0 %v3041
        %v3066 = vpop.f32.mrf.mxu0
        %v3067 = vadd.f32 0.0, %v3066
        %3068 = vdwg.mxu0
        %3069 = vmatpush.msra.mxu0 0.0
        %3070 = vmatpush.msra.mxu0 0.0
        %3071 = vmatpush.msra.mxu0 0.0
        %3072 = vmatpush.msra.mxu0 0.0
        %3073 = vmatpush.msra.mxu0 0.0
        %3074 = vmatpush.msra.mxu0 0.0
        %3075 = vmatpush.msra.mxu0 0.0
        %3076 = vmatpush.msra.mxu0 0.0
        %3077 = vmatpush.msra.mxu0 0.0
        %3078 = vmatpush.msra.mxu0 0.0
        %3079 = vmatpush.msra.mxu0 0.0
        %3080 = vmatpush.msra.mxu0 0.0
        %3081 = vmatpush.msra.mxu0 %v3033
        %3082 = vmatpush.msra.mxu0 %v3032
        %3083 = vmatpush.msra.mxu0 %v3031
        %3084 = vmatpush.msra.mxu0 %v3030
        %3085 = vmatmul.f32.gmra.mxu0 %v3035
        %v3086 = vpop.f32.mrf.mxu0
        %v3087 = vadd.f32 0.0, %v3086
        %3088 = vmatmul.f32.gmra.mxu0 %v3038
        %v3089 = vpop.f32.mrf.mxu0
        %v3090 = vadd.f32 0.0, %v3089
        %3091 = vmatmul.f32.gmra.mxu0 %v3041
        %v3092 = vpop.f32.mrf.mxu0
        %v3093 = vadd.f32 0.0, %v3092
        %3094 = vdwg.mxu0
        %v3095 = vld [vmem:[%s63] sm:$0xff]
        %v3096 = vld [vmem:[%s63 + $0x8] sm:$0xff]
        %v3097 = vld [vmem:[%s63 + $0x10] sm:$0xff]
        %v3098 = vld [vmem:[%s63 + $0x18] sm:$0xff]
        %v3099 = vld [vmem:[%s63 + $0x20] sm:$0xff]
        %v3100 = vld [vmem:[%s63 + $0x28] sm:$0xff]
        %v3101 = vld [vmem:[%s63 + $0x30] sm:$0xff]
        %v3102 = vld [vmem:[%s63 + $0x38] sm:$0xff]
        %3103 = vmatpush.msra.mxu0 0.0
        %3104 = vmatpush.msra.mxu0 0.0
        %3105 = vmatpush.msra.mxu0 0.0
        %3106 = vmatpush.msra.mxu0 0.0
        %3107 = vmatpush.msra.mxu0 0.0
        %3108 = vmatpush.msra.mxu0 0.0
        %3109 = vmatpush.msra.mxu0 0.0
        %3110 = vmatpush.msra.mxu0 0.0
        %3111 = vmatpush.msra.mxu0 0.0
        %3112 = vmatpush.msra.mxu0 0.0
        %3113 = vmatpush.msra.mxu0 0.0
        %3114 = vmatpush.msra.mxu0 0.0
        %3115 = vmatpush.msra.mxu0 %v3098
        %3116 = vmatpush.msra.mxu0 %v3097
        %3117 = vmatpush.msra.mxu0 %v3096
        %3118 = vmatpush.msra.mxu0 %v3095
        %3119 = vmatmul.f32.gmra.mxu0 %v3035
        %v3120 = vpop.f32.mrf.mxu0
        %v3121 = vadd.f32 0.0, %v3120
        %3122 = vmatmul.f32.gmra.mxu0 %v3038
        %v3123 = vpop.f32.mrf.mxu0
        %v3124 = vadd.f32 0.0, %v3123
        %3125 = vmatmul.f32.gmra.mxu0 %v3041
        %v3126 = vpop.f32.mrf.mxu0
        %v3127 = vadd.f32 0.0, %v3126
        %3128 = vdwg.mxu0
        %3129 = vmatpush.msra.mxu0 0.0
        %3130 = vmatpush.msra.mxu0 0.0
        %3131 = vmatpush.msra.mxu0 0.0
        %3132 = vmatpush.msra.mxu0 0.0
        %3133 = vmatpush.msra.mxu0 0.0
        %3134 = vmatpush.msra.mxu0 0.0
        %3135 = vmatpush.msra.mxu0 0.0
        %3136 = vmatpush.msra.mxu0 0.0
        %3137 = vmatpush.msra.mxu0 0.0
        %3138 = vmatpush.msra.mxu0 0.0
        %3139 = vmatpush.msra.mxu0 0.0
        %3140 = vmatpush.msra.mxu0 0.0
        %3141 = vmatpush.msra.mxu0 %v3102
        %3142 = vmatpush.msra.mxu0 %v3101
        %3143 = vmatpush.msra.mxu0 %v3100
        %3144 = vmatpush.msra.mxu0 %v3099
        %3145 = vmatmul.f32.gmra.mxu0 %v3035
        %v3146 = vpop.f32.mrf.mxu0
        %v3147 = vadd.f32 0.0, %v3146
        %3148 = vmatmul.f32.gmra.mxu0 %v3038
        %v3149 = vpop.f32.mrf.mxu0
        %v3150 = vadd.f32 0.0, %v3149
        %3151 = vmatmul.f32.gmra.mxu0 %v3041
        %v3152 = vpop.f32.mrf.mxu0
        %v3153 = vadd.f32 0.0, %v3152
        %3154 = vdwg.mxu0
        %v3155 = vld [vmem:[%s69] sm:$0xff]
        %v3156 = vld [vmem:[%s69 + $0x8] sm:$0xff]
        %v3157 = vld [vmem:[%s69 + $0x10] sm:$0xff]
        %v3158 = vld [vmem:[%s69 + $0x18] sm:$0xff]
        %v3159 = vld [vmem:[%s69 + $0x20] sm:$0xff]
        %v3160 = vld [vmem:[%s69 + $0x28] sm:$0xff]
        %v3161 = vld [vmem:[%s69 + $0x30] sm:$0xff]
        %v3162 = vld [vmem:[%s69 + $0x38] sm:$0xff]
        %3163 = vmatpush.msra.mxu0 0.0
        %3164 = vmatpush.msra.mxu0 0.0
        %3165 = vmatpush.msra.mxu0 0.0
        %3166 = vmatpush.msra.mxu0 0.0
        %3167 = vmatpush.msra.mxu0 0.0
        %3168 = vmatpush.msra.mxu0 0.0
        %3169 = vmatpush.msra.mxu0 0.0
        %3170 = vmatpush.msra.mxu0 0.0
        %3171 = vmatpush.msra.mxu0 0.0
        %3172 = vmatpush.msra.mxu0 0.0
        %3173 = vmatpush.msra.mxu0 0.0
        %3174 = vmatpush.msra.mxu0 0.0
        %3175 = vmatpush.msra.mxu0 %v3158
        %3176 = vmatpush.msra.mxu0 %v3157
        %3177 = vmatpush.msra.mxu0 %v3156
        %3178 = vmatpush.msra.mxu0 %v3155
        %3179 = vmatmul.f32.gmra.mxu0 %v3035
        %v3180 = vpop.f32.mrf.mxu0
        %v3181 = vadd.f32 0.0, %v3180
        %3182 = vmatmul.f32.gmra.mxu0 %v3038
        %v3183 = vpop.f32.mrf.mxu0
        %v3184 = vadd.f32 0.0, %v3183
        %3185 = vmatmul.f32.gmra.mxu0 %v3041
        %v3186 = vpop.f32.mrf.mxu0
        %v3187 = vadd.f32 0.0, %v3186
        %3188 = vdwg.mxu0
        %3189 = vmatpush.msra.mxu0 0.0
        %3190 = vmatpush.msra.mxu0 0.0
        %3191 = vmatpush.msra.mxu0 0.0
        %3192 = vmatpush.msra.mxu0 0.0
        %3193 = vmatpush.msra.mxu0 0.0
        %3194 = vmatpush.msra.mxu0 0.0
        %3195 = vmatpush.msra.mxu0 0.0
        %3196 = vmatpush.msra.mxu0 0.0
        %3197 = vmatpush.msra.mxu0 0.0
        %3198 = vmatpush.msra.mxu0 0.0
        %3199 = vmatpush.msra.mxu0 0.0
        %3200 = vmatpush.msra.mxu0 0.0
        %3201 = vmatpush.msra.mxu0 %v3162
        %3202 = vmatpush.msra.mxu0 %v3161
        %3203 = vmatpush.msra.mxu0 %v3160
        %3204 = vmatpush.msra.mxu0 %v3159
        %3205 = vmatmul.f32.gmra.mxu0 %v3035
        %v3206 = vpop.f32.mrf.mxu0
        %v3207 = vadd.f32 0.0, %v3206
        %3208 = vmatmul.f32.gmra.mxu0 %v3038
        %v3209 = vpop.f32.mrf.mxu0
        %v3210 = vadd.f32 0.0, %v3209
        %3211 = vmatmul.f32.gmra.mxu0 %v3041
        %v3212 = vpop.f32.mrf.mxu0
        %v3213 = vadd.f32 0.0, %v3212
        %3214 = vdwg.mxu0
        %v3216 = vsel %vm2308, %v3061, 0
        %v3219 = vsel %vm2308, %v3064, 0
        %v3222 = vsel %vm2308, %v3067, 0
        %v3225 = vsel %vm2308, %v3121, 0
        %v3228 = vsel %vm2308, %v3124, 0
        %v3231 = vsel %vm2308, %v3127, 0
        %3233 = vmatpush.xpose.msra.mxu0 0.0
        %3234 = vmatpush.xpose.msra.mxu0 0.0
        %3235 = vmatpush.xpose.msra.mxu0 0.0
        %3236 = vmatpush.xpose.msra.mxu0 0.0
        %3237 = vmatpush.xpose.msra.mxu0 0.0
        %3238 = vmatpush.xpose.msra.mxu0 0.0
        %3239 = vmatpush.xpose.msra.mxu0 0.0
        %3240 = vmatpush.xpose.msra.mxu0 0.0
        %3241 = vmatpush.xpose.msra.mxu0 0.0
        %3242 = vmatpush.xpose.msra.mxu0 0.0
        %3243 = vmatpush.xpose.msra.mxu0 0.0
        %3244 = vmatpush.xpose.msra.mxu0 0.0
        %3245 = vmatpush.xpose.msra.mxu0 0.0
        %3246 = vmatpush.xpose.msra.mxu0 %v3231
        %3247 = vmatpush.xpose.msra.mxu0 %v3228
        %3248 = vmatpush.xpose.msra.mxu0 %v3225
        %3249 = vmatmul.f32.gmra.mxu0 %v3216
        %v3250 = vpop.f32.mrf.mxu0
        %v3251 = vadd.f32 0.0, %v3250
        %3252 = vmatmul.f32.gmra.mxu0 %v3219
        %v3253 = vpop.f32.mrf.mxu0
        %v3254 = vadd.f32 0.0, %v3253
        %3255 = vmatmul.f32.gmra.mxu0 %v3222
        %v3256 = vpop.f32.mrf.mxu0
        %v3257 = vadd.f32 0.0, %v3256
        %3258 = vdwg.mxu0
        %v3260 = vsel %vm2308, %v3087, 0
        %v3263 = vsel %vm2308, %v3090, 0
        %v3266 = vsel %vm2308, %v3093, 0
        %v3269 = vsel %vm2308, %v3147, 0
        %v3272 = vsel %vm2308, %v3150, 0
        %v3275 = vsel %vm2308, %v3153, 0
        %3277 = vmatpush.xpose.msra.mxu0 0.0
        %3278 = vmatpush.xpose.msra.mxu0 0.0
        %3279 = vmatpush.xpose.msra.mxu0 0.0
        %3280 = vmatpush.xpose.msra.mxu0 0.0
        %3281 = vmatpush.xpose.msra.mxu0 0.0
        %3282 = vmatpush.xpose.msra.mxu0 0.0
        %3283 = vmatpush.xpose.msra.mxu0 0.0
        %3284 = vmatpush.xpose.msra.mxu0 0.0
        %3285 = vmatpush.xpose.msra.mxu0 0.0
        %3286 = vmatpush.xpose.msra.mxu0 0.0
        %3287 = vmatpush.xpose.msra.mxu0 0.0
        %3288 = vmatpush.xpose.msra.mxu0 0.0
        %3289 = vmatpush.xpose.msra.mxu0 0.0
        %3290 = vmatpush.xpose.msra.mxu0 %v3275
        %3291 = vmatpush.xpose.msra.mxu0 %v3272
        %3292 = vmatpush.xpose.msra.mxu0 %v3269
        %3293 = vmatmul.f32.gmra.mxu0 %v3260
        %v3294 = vpop.f32.mrf.mxu0
        %v3295 = vadd.f32 0.0, %v3294
        %3296 = vmatmul.f32.gmra.mxu0 %v3263
        %v3297 = vpop.f32.mrf.mxu0
        %v3298 = vadd.f32 0.0, %v3297
        %3299 = vmatmul.f32.gmra.mxu0 %v3266
        %v3300 = vpop.f32.mrf.mxu0
        %v3301 = vadd.f32 0.0, %v3300
        %3302 = vdwg.mxu0
        %v3303 = vmul.f32 %v3251, 0.25
        %v3304 = vmul.f32 %v3254, 0.25
        %v3305 = vmul.f32 %v3257, 0.25
        %v3306 = vmul.f32 %v3295, 0.25
        %v3307 = vmul.f32 %v3298, 0.25
        %v3308 = vmul.f32 %v3301, 0.25
        %v3309 = vadd.f32 %v3303, %v2404
        %v3310 = vadd.f32 %v3304, %v2404
        %v3311 = vadd.f32 %v3305, %v2404
        %v3312 = vadd.f32 %v3306, %v2404
        %v3313 = vadd.f32 %v3307, %v2404
        %v3314 = vadd.f32 %v3308, %v2404
        %v3315 = vsel %vm2412, %v3309, -inf
        %3316 = vmax.xlane.f32.xlu0 %v3315
        %v3317 = vpop.xlane.xlu0 %3316
        %v3318 = vsel %vm2412, %v3310, -inf
        %3319 = vmax.xlane.f32.xlu0 %v3318
        %v3320 = vpop.xlane.xlu0 %3319
        %v3321 = vsel %vm2412, %v3311, -inf
        %3322 = vmax.xlane.f32.xlu0 %v3321
        %v3323 = vpop.xlane.xlu0 %3322
        %v3324 = vsel %vm2412, %v3312, -inf
        %3325 = vmax.xlane.f32.xlu0 %v3324
        %v3326 = vpop.xlane.xlu0 %3325
        %v3327 = vsel %vm2412, %v3313, -inf
        %3328 = vmax.xlane.f32.xlu0 %v3327
        %v3329 = vpop.xlane.xlu0 %3328
        %v3330 = vsel %vm2412, %v3314, -inf
        %3331 = vmax.xlane.f32.xlu0 %v3330
        %v3332 = vpop.xlane.xlu0 %3331
        %v3333 = vsub.f32 %v3309, %v3317
        %v3334 = vsub.f32 %v3310, %v3320
        %v3335 = vsub.f32 %v3311, %v3323
        %v3336 = vsub.f32 %v3312, %v3326
        %v3337 = vsub.f32 %v3313, %v3329
        %v3338 = vsub.f32 %v3314, %v3332
        %v3339 = vmul.f32 %v3333, 1.442695
        %v3340 = vpow.pop %v3339
        %v3341 = vmul.f32 %v3334, 1.442695
        %v3342 = vpow.pop %v3341
        %v3343 = vmul.f32 %v3335, 1.442695
        %v3344 = vpow.pop %v3343
        %v3345 = vmul.f32 %v3336, 1.442695
        %v3346 = vpow.pop %v3345
        %v3347 = vmul.f32 %v3337, 1.442695
        %v3348 = vpow.pop %v3347
        %v3349 = vmul.f32 %v3338, 1.442695
        %v3350 = vpow.pop %v3349
        %v3351 = vsel %vm2412, %v3340, 0.0
        %3352 = vadd.xlane.f32.xlu0 %v3351
        %v3353 = vpop.xlane.xlu0 %3352
        %v3354 = vsel %vm2412, %v3342, 0.0
        %3355 = vadd.xlane.f32.xlu0 %v3354
        %v3356 = vpop.xlane.xlu0 %3355
        %v3357 = vsel %vm2412, %v3344, 0.0
        %3358 = vadd.xlane.f32.xlu0 %v3357
        %v3359 = vpop.xlane.xlu0 %3358
        %v3360 = vsel %vm2412, %v3346, 0.0
        %3361 = vadd.xlane.f32.xlu0 %v3360
        %v3362 = vpop.xlane.xlu0 %3361
        %v3363 = vsel %vm2412, %v3348, 0.0
        %3364 = vadd.xlane.f32.xlu0 %v3363
        %v3365 = vpop.xlane.xlu0 %3364
        %v3366 = vsel %vm2412, %v3350, 0.0
        %3367 = vadd.xlane.f32.xlu0 %v3366
        %v3368 = vpop.xlane.xlu0 %3367
        %v3369 = vrcp.pop %v3353
        %v3370 = vrcp.pop %v3356
        %v3371 = vrcp.pop %v3359
        %v3372 = vrcp.pop %v3362
        %v3373 = vrcp.pop %v3365
        %v3374 = vrcp.pop %v3368
        %v3375 = vmul.f32 %v3340, %v3369
        %v3376 = vmul.f32 %v3342, %v3370
        %v3377 = vmul.f32 %v3344, %v3371
        %v3378 = vmul.f32 %v3346, %v3372
        %v3379 = vmul.f32 %v3348, %v3373
        %v3380 = vmul.f32 %v3350, %v3374
        %v3382 = vsel %vm2412, %v3375, 0
        %v3385 = vsel %vm2412, %v3376, 0
        %v3388 = vsel %vm2412, %v3377, 0
        %3390 = vmatpush.msra.mxu0 0.0
        %3391 = vmatpush.msra.mxu0 0.0
        %3392 = vmatpush.msra.mxu0 0.0
        %3393 = vmatpush.msra.mxu0 0.0
        %3394 = vmatpush.msra.mxu0 0.0
        %3395 = vmatpush.msra.mxu0 0.0
        %3396 = vmatpush.msra.mxu0 0.0
        %3397 = vmatpush.msra.mxu0 0.0
        %3398 = vmatpush.msra.mxu0 0.0
        %3399 = vmatpush.msra.mxu0 0.0
        %3400 = vmatpush.msra.mxu0 0.0
        %3401 = vmatpush.msra.mxu0 0.0
        %3402 = vmatpush.msra.mxu0 0.0
        %3403 = vmatpush.msra.mxu0 %v3187
        %3404 = vmatpush.msra.mxu0 %v3184
        %3405 = vmatpush.msra.mxu0 %v3181
        %3406 = vmatmul.f32.gmra.mxu0 %v3382
        %v3407 = vpop.f32.mrf.mxu0
        %v3408 = vadd.f32 0.0, %v3407
        %3409 = vmatmul.f32.gmra.mxu0 %v3385
        %v3410 = vpop.f32.mrf.mxu0
        %v3411 = vadd.f32 0.0, %v3410
        %3412 = vmatmul.f32.gmra.mxu0 %v3388
        %v3413 = vpop.f32.mrf.mxu0
        %v3414 = vadd.f32 0.0, %v3413
        %3415 = vdwg.mxu0
        %v3417 = vsel %vm2412, %v3378, 0
        %v3420 = vsel %vm2412, %v3379, 0
        %v3423 = vsel %vm2412, %v3380, 0
        %3425 = vmatpush.msra.mxu0 0.0
        %3426 = vmatpush.msra.mxu0 0.0
        %3427 = vmatpush.msra.mxu0 0.0
        %3428 = vmatpush.msra.mxu0 0.0
        %3429 = vmatpush.msra.mxu0 0.0
        %3430 = vmatpush.msra.mxu0 0.0
        %3431 = vmatpush.msra.mxu0 0.0
        %3432 = vmatpush.msra.mxu0 0.0
        %3433 = vmatpush.msra.mxu0 0.0
        %3434 = vmatpush.msra.mxu0 0.0
        %3435 = vmatpush.msra.mxu0 0.0
        %3436 = vmatpush.msra.mxu0 0.0
        %3437 = vmatpush.msra.mxu0 0.0
        %3438 = vmatpush.msra.mxu0 %v3213
        %3439 = vmatpush.msra.mxu0 %v3210
        %3440 = vmatpush.msra.mxu0 %v3207
        %3441 = vmatmul.f32.gmra.mxu0 %v3417
        %v3442 = vpop.f32.mrf.mxu0
        %v3443 = vadd.f32 0.0, %v3442
        %3444 = vmatmul.f32.gmra.mxu0 %v3420
        %v3445 = vpop.f32.mrf.mxu0
        %v3446 = vadd.f32 0.0, %v3445
        %3447 = vmatmul.f32.gmra.mxu0 %v3423
        %v3448 = vpop.f32.mrf.mxu0
        %v3449 = vadd.f32 0.0, %v3448
        %3450 = vdwg.mxu0
        %v3451 = vld [vmem:[%s65] sm:$0xff]
        %v3452 = vld [vmem:[%s65 + $0x8] sm:$0xff]
        %v3453 = vld [vmem:[%s65 + $0x10] sm:$0xff]
        %v3454 = vld [vmem:[%s65 + $0x18] sm:$0xff]
        %v3456 = vsel %vm2308, %v3408, 0
        %v3459 = vsel %vm2308, %v3411, 0
        %v3462 = vsel %vm2308, %v3414, 0
        %3464 = vmatpush.msra.mxu0 0.0
        %3465 = vmatpush.msra.mxu0 0.0
        %3466 = vmatpush.msra.mxu0 0.0
        %3467 = vmatpush.msra.mxu0 0.0
        %3468 = vmatpush.msra.mxu0 0.0
        %3469 = vmatpush.msra.mxu0 0.0
        %3470 = vmatpush.msra.mxu0 0.0
        %3471 = vmatpush.msra.mxu0 0.0
        %3472 = vmatpush.msra.mxu0 0.0
        %3473 = vmatpush.msra.mxu0 0.0
        %3474 = vmatpush.msra.mxu0 0.0
        %3475 = vmatpush.msra.mxu0 0.0
        %3476 = vmatpush.msra.mxu0 0.0
        %3477 = vmatpush.msra.mxu0 0.0
        %3478 = vmatpush.msra.mxu0 %v3452
        %3479 = vmatpush.msra.mxu0 %v3451
        %3480 = vmatmul.f32.gmra.mxu0 %v3456
        %v3481 = vpop.f32.mrf.mxu0
        %v3482 = vadd.f32 0.0, %v3481
        %3483 = vmatmul.f32.gmra.mxu0 %v3459
        %v3484 = vpop.f32.mrf.mxu0
        %v3485 = vadd.f32 0.0, %v3484
        %3486 = vmatmul.f32.gmra.mxu0 %v3462
        %v3487 = vpop.f32.mrf.mxu0
        %v3488 = vadd.f32 0.0, %v3487
        %3489 = vdwg.mxu0
        %v3491 = vsel %vm2308, %v3443, 0
        %v3494 = vsel %vm2308, %v3446, 0
        %v3497 = vsel %vm2308, %v3449, 0
        %3499 = vmatpush.msra.mxu0 0.0
        %3500 = vmatpush.msra.mxu0 0.0
        %3501 = vmatpush.msra.mxu0 0.0
        %3502 = vmatpush.msra.mxu0 0.0
        %3503 = vmatpush.msra.mxu0 0.0
        %3504 = vmatpush.msra.mxu0 0.0
        %3505 = vmatpush.msra.mxu0 0.0
        %3506 = vmatpush.msra.mxu0 0.0
        %3507 = vmatpush.msra.mxu0 0.0
        %3508 = vmatpush.msra.mxu0 0.0
        %3509 = vmatpush.msra.mxu0 0.0
        %3510 = vmatpush.msra.mxu0 0.0
        %3511 = vmatpush.msra.mxu0 0.0
        %3512 = vmatpush.msra.mxu0 0.0
        %3513 = vmatpush.msra.mxu0 %v3454
        %3514 = vmatpush.msra.mxu0 %v3453
        %3515 = vmatmul.f32.gmra.mxu0 %v3491
        %v3516 = vpop.f32.mrf.mxu0
        %v3517 = vadd.f32 0.0, %v3516
        %3518 = vmatmul.f32.gmra.mxu0 %v3494
        %v3519 = vpop.f32.mrf.mxu0
        %v3520 = vadd.f32 0.0, %v3519
        %3521 = vmatmul.f32.gmra.mxu0 %v3497
        %v3522 = vpop.f32.mrf.mxu0
        %v3523 = vadd.f32 0.0, %v3522
        %3524 = vdwg.mxu0
        %v3525 = vsel %vm2033, %v3482, 0.0
        %v3526 = vsel %vm2033, %v3517, 0.0
        %v3527 = vadd.f32 %v3525, %v3526
        %v3528 = vsel %vm2033, %v3485, 0.0
        %v3529 = vsel %vm2033, %v3520, 0.0
        %v3530 = vadd.f32 %v3528, %v3529
        %v3531 = vsel %vm2033, %v3488, 0.0
        %v3532 = vsel %vm2033, %v3523, 0.0
        %v3533 = vadd.f32 %v3531, %v3532
        %v3534 = vadd.f32 %v2943, %v3527
        %v3535 = vadd.f32 %v2944, %v3530
        %v3536 = vadd.f32 %v2945, %v3533
        %v3537 = vld [vmem:[%s49] sm:$0x1]
        %v3539 = vperm.slane %v3537, 0
        %v3541 = vadd.f32 %v3534, %v3539
        %v3542 = vadd.f32 %v3535, %v3539
        %v3543 = vadd.f32 %v3536, %v3539
        %v3544 = vld [vmem:[%s57] sm:$0x1]
        %v3545 = vld [vmem:[%s55] sm:$0x1]
        %v3546 = vsel %vm2033, %v3541, 0.0
        %3547 = vadd.xlane.f32.xlu0 %v3546
        %v3548 = vpop.xlane.xlu0 %3547
        %v3549 = vsel %vm2033, %v3542, 0.0
        %3550 = vadd.xlane.f32.xlu0 %v3549
        %v3551 = vpop.xlane.xlu0 %3550
        %v3552 = vsel %vm2033, %v3543, 0.0
        %3553 = vadd.xlane.f32.xlu0 %v3552
        %v3554 = vpop.xlane.xlu0 %3553
        %v3555 = vmul.f32 %v3548, %v2049
        %v3556 = vmul.f32 %v3551, %v2049
        %v3557 = vmul.f32 %v3554, %v2049
        %v3558 = vsub.f32 %v3541, %v3555
        %v3559 = vsub.f32 %v3542, %v3556
        %v3560 = vsub.f32 %v3543, %v3557
        %v3561 = vmul.f32 %v3558, %v3558
        %v3562 = vmul.f32 %v3559, %v3559
        %v3563 = vmul.f32 %v3560, %v3560
        %v3564 = vsel %vm2033, %v3561, 0.0
        %3565 = vadd.xlane.f32.xlu0 %v3564
        %v3566 = vpop.xlane.xlu0 %3565
        %v3567 = vsel %vm2033, %v3562, 0.0
        %3568 = vadd.xlane.f32.xlu0 %v3567
        %v3569 = vpop.xlane.xlu0 %3568
        %v3570 = vsel %vm2033, %v3563, 0.0
        %3571 = vadd.xlane.f32.xlu0 %v3570
        %v3572 = vpop.xlane.xlu0 %3571
        %v3573 = vmul.f32 %v3566, %v2049
        %v3574 = vmul.f32 %v3569, %v2049
        %v3575 = vmul.f32 %v3572, %v2049
        %v3576 = vadd.f32 %v3573, 1e-05
        %v3577 = vadd.f32 %v3574, 1e-05
        %v3578 = vadd.f32 %v3575, 1e-05
        %v3579 = vrsqrt.pop %v3576
        %v3580 = vmul.f32 %v3579, %v3576
        %v3581 = vmul.f32 %v3580, %v3579
        %v3582 = vmul.f32 0.5, %v3581
        %v3583 = vsub.f32 1.5, %v3582
        %v3584 = vmul.f32 %v3579, %v3583
        %vm3585 = vweird.f32 %v3576
        %vm3586 = vweird.f32 %v3579
        %vm3587 = vmor %vm3585, %vm3586
        %v3588 = vsel %vm3587, %v3579, %v3584
        %v3589 = vrsqrt.pop %v3577
        %v3590 = vmul.f32 %v3589, %v3577
        %v3591 = vmul.f32 %v3590, %v3589
        %v3592 = vmul.f32 0.5, %v3591
        %v3593 = vsub.f32 1.5, %v3592
        %v3594 = vmul.f32 %v3589, %v3593
        %vm3595 = vweird.f32 %v3577
        %vm3596 = vweird.f32 %v3589
        %vm3597 = vmor %vm3595, %vm3596
        %v3598 = vsel %vm3597, %v3589, %v3594
        %v3599 = vrsqrt.pop %v3578
        %v3600 = vmul.f32 %v3599, %v3578
        %v3601 = vmul.f32 %v3600, %v3599
        %v3602 = vmul.f32 0.5, %v3601
        %v3603 = vsub.f32 1.5, %v3602
        %v3604 = vmul.f32 %v3599, %v3603
        %vm3605 = vweird.f32 %v3578
        %vm3606 = vweird.f32 %v3599
        %vm3607 = vmor %vm3605, %vm3606
        %v3608 = vsel %vm3607, %v3599, %v3604
        %v3609 = vmul.f32 %v3558, %v3588
        %v3610 = vmul.f32 %v3559, %v3598
        %v3611 = vmul.f32 %v3560, %v3608
        %v3613 = vperm.slane %v3544, 0
        %v3615 = vmul.f32 %v3609, %v3613
        %v3616 = vmul.f32 %v3610, %v3613
        %v3617 = vmul.f32 %v3611, %v3613
        %v3619 = vperm.slane %v3545, 0
        %v3621 = vadd.f32 %v3615, %v3619
        %v3622 = vadd.f32 %v3616, %v3619
        %v3623 = vadd.f32 %v3617, %v3619
        %v3624 = vld [vmem:[%s59] sm:$0xff]
        %v3625 = vld [vmem:[%s59 + $0x8] sm:$0xff]
        %v3626 = vld [vmem:[%s59 + $0x10] sm:$0xff]
        %v3627 = vld [vmem:[%s59 + $0x18] sm:$0xff]
        %v3628 = vld [vmem:[%s45] sm:$0x1]
        %v3630 = vperm.slane %v3628, 0
        %v3633 = vsel %vm2033, %v3621, 0
        %v3636 = vsel %vm2033, %v3622, 0
        %v3639 = vsel %vm2033, %v3623, 0
        %3641 = vmatpush.msra.mxu0 0.0
        %3642 = vmatpush.msra.mxu0 0.0
        %3643 = vmatpush.msra.mxu0 0.0
        %3644 = vmatpush.msra.mxu0 0.0
        %3645 = vmatpush.msra.mxu0 0.0
        %3646 = vmatpush.msra.mxu0 0.0
        %3647 = vmatpush.msra.mxu0 0.0
        %3648 = vmatpush.msra.mxu0 0.0
        %3649 = vmatpush.msra.mxu0 0.0
        %3650 = vmatpush.msra.mxu0 0.0
        %3651 = vmatpush.msra.mxu0 0.0
        %3652 = vmatpush.msra.mxu0 0.0
        %3653 = vmatpush.msra.mxu0 %v3627
        %3654 = vmatpush.msra.mxu0 %v3626
        %3655 = vmatpush.msra.mxu0 %v3625
        %3656 = vmatpush.msra.mxu0 %v3624
        %3657 = vmatmul.f32.gmra.mxu0 %v3633
        %v3658 = vpop.f32.mrf.mxu0
        %v3659 = vadd.f32 %v3630, %v3658
        %3660 = vmatmul.f32.gmra.mxu0 %v3636
        %v3661 = vpop.f32.mrf.mxu0
        %v3662 = vadd.f32 %v3630, %v3661
        %3663 = vmatmul.f32.gmra.mxu0 %v3639
        %v3664 = vpop.f32.mrf.mxu0
        %v3665 = vadd.f32 %v3630, %v3664
        %3666 = vdwg.mxu0
        %v3667 = vmul.f32 %v3659, 0.5
        %v3668 = vmul.f32 %v3662, 0.5
        %v3669 = vmul.f32 %v3665, 0.5
        %v3670 = vmul.f32 %v3659, 0.70710677
        %v3671 = vmul.f32 %v3662, 0.70710677
        %v3672 = vmul.f32 %v3665, 0.70710677
        %v3673 = vmul.f32 %v3670, %v3670
        %v3674 = vmin.f32 16.0, %v3673
        %v3675 = vmul.f32 %v3674, 2.1237322e-06
        %v3676 = vadd.f32 %v3675, 0.00028619796
        %v3677 = vmul.f32 %v3674, %v3676
        %v3678 = vadd.f32 %v3677, 0.0036580483
        %v3679 = vmul.f32 %v3674, %v3678
        %v3680 = vadd.f32 %v3679, 0.05243302
        %v3681 = vmul.f32 %v3674, %v3680
        %v3682 = vadd.f32 %v3681, 0.18741608
        %v3683 = vmul.f32 %v3674, %v3682
        %v3684 = vadd.f32 %v3683, 1.1283791
        %v3685 = vmul.f32 %v3670, %v3684
        %v3686 = vmul.f32 %v3674, 3.8918573e-05
        %v3687 = vadd.f32 %v3686, 0.001143296
        %v3688 = vmul.f32 %v3674, %v3687
        %v3689 = vadd.f32 %v3688, 0.014752088
        %v3690 = vmul.f32 %v3674, %v3689
        %v3691 = vadd.f32 %v3690, 0.112945676
        %v3692 = vmul.f32 %v3674, %v3691
        %v3693 = vadd.f32 %v3692, 0.4994258
        %v3694 = vmul.f32 %v3674, %v3693
        %v3695 = vadd.f32 %v3694, 1.0
        %v3696 = vrcp.pop %v3695
        %v3697 = vmul.f32 %v3695, %v3696
        %v3698 = vsub.f32 1.0, %v3697
        %v3699 = vmul.f32 %v3696, %v3698
        %v3700 = vadd.f32 %v3696, %v3699
        %vm3701 = vweird.f32 %v3695
        %vm3702 = vweird.f32 %v3696
        %vm3703 = vmor %vm3701, %vm3702
        %v3704 = vsel %vm3703, %v3696, %v3700
        %v3705 = vand.u32 2147483647, %v3695
        %vm3706 = vcmp.eq.f32.partialorder %v3705, 8.507059e+37
        %v3707 = vand.u32 %v3695, 2147483648
        %v3708 = vor.u32 1.1754944e-38, %v3707
        %v3709 = vsel %vm3706, %v3708, %v3704
        %v3710 = vmul.f32 %v3685, %v3709
        %v3711 = vmin.f32 %v3710, 1.0
        %v3712 = vmax.f32 %v3711, -1.0
        %v3713 = vmul.f32 %v3671, %v3671
        %v3714 = vmin.f32 16.0, %v3713
        %v3715 = vmul.f32 %v3714, 2.1237322e-06
        %v3716 = vadd.f32 %v3715, 0.00028619796
        %v3717 = vmul.f32 %v3714, %v3716
        %v3718 = vadd.f32 %v3717, 0.0036580483
        %v3719 = vmul.f32 %v3714, %v3718
        %v3720 = vadd.f32 %v3719, 0.05243302
        %v3721 = vmul.f32 %v3714, %v3720
        %v3722 = vadd.f32 %v3721, 0.18741608
        %v3723 = vmul.f32 %v3714, %v3722
        %v3724 = vadd.f32 %v3723, 1.1283791
        %v3725 = vmul.f32 %v3671, %v3724
        %v3726 = vmul.f32 %v3714, 3.8918573e-05
        %v3727 = vadd.f32 %v3726, 0.001143296
        %v3728 = vmul.f32 %v3714, %v3727
        %v3729 = vadd.f32 %v3728, 0.014752088
        %v3730 = vmul.f32 %v3714, %v3729
        %v3731 = vadd.f32 %v3730, 0.112945676
        %v3732 = vmul.f32 %v3714, %v3731
        %v3733 = vadd.f32 %v3732, 0.4994258
        %v3734 = vmul.f32 %v3714, %v3733
        %v3735 = vadd.f32 %v3734, 1.0
        %v3736 = vrcp.pop %v3735
        %v3737 = vmul.f32 %v3735, %v3736
        %v3738 = vsub.f32 1.0, %v3737
        %v3739 = vmul.f32 %v3736, %v3738
        %v3740 = vadd.f32 %v3736, %v3739
        %vm3741 = vweird.f32 %v3735
        %vm3742 = vweird.f32 %v3736
        %vm3743 = vmor %vm3741, %vm3742
        %v3744 = vsel %vm3743, %v3736, %v3740
        %v3745 = vand.u32 2147483647, %v3735
        %vm3746 = vcmp.eq.f32.partialorder %v3745, 8.507059e+37
        %v3747 = vand.u32 %v3735, 2147483648
        %v3748 = vor.u32 1.1754944e-38, %v3747
        %v3749 = vsel %vm3746, %v3748, %v3744
        %v3750 = vmul.f32 %v3725, %v3749
        %v3751 = vmin.f32 %v3750, 1.0
        %v3752 = vmax.f32 %v3751, -1.0
        %v3753 = vmul.f32 %v3672, %v3672
        %v3754 = vmin.f32 16.0, %v3753
        %v3755 = vmul.f32 %v3754, 2.1237322e-06
        %v3756 = vadd.f32 %v3755, 0.00028619796
        %v3757 = vmul.f32 %v3754, %v3756
        %v3758 = vadd.f32 %v3757, 0.0036580483
        %v3759 = vmul.f32 %v3754, %v3758
        %v3760 = vadd.f32 %v3759, 0.05243302
        %v3761 = vmul.f32 %v3754, %v3760
        %v3762 = vadd.f32 %v3761, 0.18741608
        %v3763 = vmul.f32 %v3754, %v3762
        %v3764 = vadd.f32 %v3763, 1.1283791
        %v3765 = vmul.f32 %v3672, %v3764
        %v3766 = vmul.f32 %v3754, 3.8918573e-05
        %v3767 = vadd.f32 %v3766, 0.001143296
        %v3768 = vmul.f32 %v3754, %v3767
        %v3769 = vadd.f32 %v3768, 0.014752088
        %v3770 = vmul.f32 %v3754, %v3769
        %v3771 = vadd.f32 %v3770, 0.112945676
        %v3772 = vmul.f32 %v3754, %v3771
        %v3773 = vadd.f32 %v3772, 0.4994258
        %v3774 = vmul.f32 %v3754, %v3773
        %v3775 = vadd.f32 %v3774, 1.0
        %v3776 = vrcp.pop %v3775
        %v3777 = vmul.f32 %v3775, %v3776
        %v3778 = vsub.f32 1.0, %v3777
        %v3779 = vmul.f32 %v3776, %v3778
        %v3780 = vadd.f32 %v3776, %v3779
        %vm3781 = vweird.f32 %v3775
        %vm3782 = vweird.f32 %v3776
        %vm3783 = vmor %vm3781, %vm3782
        %v3784 = vsel %vm3783, %v3776, %v3780
        %v3785 = vand.u32 2147483647, %v3775
        %vm3786 = vcmp.eq.f32.partialorder %v3785, 8.507059e+37
        %v3787 = vand.u32 %v3775, 2147483648
        %v3788 = vor.u32 1.1754944e-38, %v3787
        %v3789 = vsel %vm3786, %v3788, %v3784
        %v3790 = vmul.f32 %v3765, %v3789
        %v3791 = vmin.f32 %v3790, 1.0
        %v3792 = vmax.f32 %v3791, -1.0
        %v3793 = vadd.f32 %v3712, 1.0
        %v3794 = vadd.f32 %v3752, 1.0
        %v3795 = vadd.f32 %v3792, 1.0
        %v3796 = vmul.f32 %v3667, %v3793
        %v3797 = vmul.f32 %v3668, %v3794
        %v3798 = vmul.f32 %v3669, %v3795
        %v3799 = vld [vmem:[%s61] sm:$0xff]
        %v3800 = vld [vmem:[%s61 + $0x8] sm:$0xff]
        %v3801 = vld [vmem:[%s61 + $0x10] sm:$0xff]
        %v3802 = vld [vmem:[%s61 + $0x18] sm:$0xff]
        %v3803 = vld [vmem:[%s61 + $0x20] sm:$0xff]
        %v3804 = vld [vmem:[%s61 + $0x28] sm:$0xff]
        %v3805 = vld [vmem:[%s61 + $0x30] sm:$0xff]
        %v3806 = vld [vmem:[%s61 + $0x38] sm:$0xff]
        %v3807 = vld [vmem:[%s61 + $0x40] sm:$0xff]
        %v3808 = vld [vmem:[%s61 + $0x48] sm:$0xff]
        %v3809 = vld [vmem:[%s61 + $0x50] sm:$0xff]
        %v3810 = vld [vmem:[%s61 + $0x58] sm:$0xff]
        %v3811 = vld [vmem:[%s61 + $0x60] sm:$0xff]
        %v3812 = vld [vmem:[%s61 + $0x68] sm:$0xff]
        %v3813 = vld [vmem:[%s61 + $0x70] sm:$0xff]
        %v3814 = vld [vmem:[%s61 + $0x78] sm:$0xff]
        %v3815 = vld [vmem:[%s47] sm:$0x1]
        %v3817 = vperm.slane %v3815, 0
        %3819 = vmatpush.msra.mxu0 %v3814
        %3820 = vmatpush.msra.mxu0 %v3813
        %3821 = vmatpush.msra.mxu0 %v3812
        %3822 = vmatpush.msra.mxu0 %v3811
        %3823 = vmatpush.msra.mxu0 %v3810
        %3824 = vmatpush.msra.mxu0 %v3809
        %3825 = vmatpush.msra.mxu0 %v3808
        %3826 = vmatpush.msra.mxu0 %v3807
        %3827 = vmatpush.msra.mxu0 %v3806
        %3828 = vmatpush.msra.mxu0 %v3805
        %3829 = vmatpush.msra.mxu0 %v3804
        %3830 = vmatpush.msra.mxu0 %v3803
        %3831 = vmatpush.msra.mxu0 %v3802
        %3832 = vmatpush.msra.mxu0 %v3801
        %3833 = vmatpush.msra.mxu0 %v3800
        %3834 = vmatpush.msra.mxu0 %v3799
        %3835 = vmatmul.f32.gmra.mxu0 %v3796
        %v3836 = vpop.f32.mrf.mxu0
        %v3837 = vadd.f32 %v3817, %v3836
        %3838 = vmatmul.f32.gmra.mxu0 %v3797
        %v3839 = vpop.f32.mrf.mxu0
        %3840 = vmatmul.f32.gmra.mxu0 %v3798
        %v3841 = vpop.f32.mrf.mxu0
        %3842 = vdwg.mxu0
        %v3843 = vadd.f32 %v3541, %v3837
        %v3844 = vld [vmem:[%s73] sm:$0x1]
        %v3845 = vld [vmem:[%s71] sm:$0x1]
        %v3846 = vsel %vm2033, %v3843, 0.0
        %3847 = vadd.xlane.f32.xlu0 %v3846
        %v3848 = vpop.xlane.xlu0 %3847
        %v3849 = vmul.f32 %v3848, %v2049
        %v3850 = vsub.f32 %v3843, %v3849
        %v3851 = vmul.f32 %v3850, %v3850
        %v3852 = vsel %vm2033, %v3851, 0.0
        %3853 = vadd.xlane.f32.xlu0 %v3852
        %v3854 = vpop.xlane.xlu0 %3853
        %v3855 = vmul.f32 %v3854, %v2049
        %v3856 = vadd.f32 %v3855, 1e-05
        %v3857 = vrsqrt.pop %v3856
        %v3858 = vmul.f32 %v3857, %v3856
        %v3859 = vmul.f32 %v3858, %v3857
        %v3860 = vmul.f32 0.5, %v3859
        %v3861 = vsub.f32 1.5, %v3860
        %v3862 = vmul.f32 %v3857, %v3861
        %vm3863 = vweird.f32 %v3856
        %vm3864 = vweird.f32 %v3857
        %vm3865 = vmor %vm3863, %vm3864
        %v3866 = vsel %vm3865, %v3857, %v3862
        %v3867 = vmul.f32 %v3850, %v3866
        %v3869 = vperm.slane %v3844, 0
        %v3871 = vmul.f32 %v3867, %v3869
        %v3873 = vperm.slane %v3845, 0
        %v3875 = vadd.f32 %v3871, %v3873
        %v3876 = vld [vmem:[#allocation7] sm:$0x1]
        %v3878 = vrot.slane %v3875, 7
        %vm3880 = vcmask 1040384
        %v3881 = vsel %vm3880, %v3876, %v3878
        %vm3882 = vcmask 1041408
        %v3883 = vsel %vm3882, %v3881, 0.0
        %v3884 = vld [vmem:[%s15] sm:$0x1]
        %v3885 = vld [vmem:[%s83] sm:$0x1]
        %v3886 = vld [vmem:[%s81] sm:$0x1]
        %v3887 = vsel %vm2033, %v3883, 0.0
        %3888 = vadd.xlane.f32.xlu0 %v3887
        %v3889 = vpop.xlane.xlu0 %3888
        %v3890 = vmul.f32 %v3889, %v2049
        %v3891 = vsub.f32 %v3883, %v3890
        %v3892 = vmul.f32 %v3891, %v3891
        %v3893 = vsel %vm2033, %v3892, 0.0
        %3894 = vadd.xlane.f32.xlu0 %v3893
        %v3895 = vpop.xlane.xlu0 %3894
        %v3896 = vmul.f32 %v3895, %v2049
        %v3897 = vadd.f32 %v3896, 1e-05
        %v3898 = vrsqrt.pop %v3897
        %v3899 = vmul.f32 %v3898, %v3897
        %v3900 = vmul.f32 %v3899, %v3898
        %v3901 = vmul.f32 0.5, %v3900
        %v3902 = vsub.f32 1.5, %v3901
        %v3903 = vmul.f32 %v3898, %v3902
        %vm3904 = vweird.f32 %v3897
        %vm3905 = vweird.f32 %v3898
        %vm3906 = vmor %vm3904, %vm3905
        %v3907 = vsel %vm3906, %v3898, %v3903
        %v3908 = vmul.f32 %v3891, %v3907
        %v3910 = vperm.slane %v3885, 0
        %v3912 = vmul.f32 %v3908, %v3910
        %v3914 = vperm.slane %v3886, 0
        %v3916 = vadd.f32 %v3912, %v3914
        %v3917 = vld [vmem:[%s97] sm:$0xff]
        %v3918 = vld [vmem:[%s97 + $0x8] sm:$0xff]
        %v3919 = vld [vmem:[%s97 + $0x10] sm:$0xff]
        %v3920 = vld [vmem:[%s97 + $0x18] sm:$0xff]
        %v3921 = vld [vmem:[%s97 + $0x20] sm:$0xff]
        %v3922 = vld [vmem:[%s97 + $0x28] sm:$0xff]
        %v3923 = vld [vmem:[%s97 + $0x30] sm:$0xff]
        %v3924 = vld [vmem:[%s97 + $0x38] sm:$0xff]
        %v3926 = vsel %vm2033, %v3916, 0
        %3928 = vmatpush.msra.mxu0 0.0
        %3929 = vmatpush.msra.mxu0 0.0
        %3930 = vmatpush.msra.mxu0 0.0
        %3931 = vmatpush.msra.mxu0 0.0
        %3932 = vmatpush.msra.mxu0 0.0
        %3933 = vmatpush.msra.mxu0 0.0
        %3934 = vmatpush.msra.mxu0 0.0
        %3935 = vmatpush.msra.mxu0 0.0
        %3936 = vmatpush.msra.mxu0 0.0
        %3937 = vmatpush.msra.mxu0 0.0
        %3938 = vmatpush.msra.mxu0 0.0
        %3939 = vmatpush.msra.mxu0 0.0
        %3940 = vmatpush.msra.mxu0 %v3920
        %3941 = vmatpush.msra.mxu0 %v3919
        %3942 = vmatpush.msra.mxu0 %v3918
        %3943 = vmatpush.msra.mxu0 %v3917
        %3944 = vmatmul.f32.gmra.mxu0 %v3926
        %v3945 = vpop.f32.mrf.mxu0
        %v3946 = vadd.f32 0.0, %v3945
        %3947 = vdwg.mxu0
        %3948 = vmatpush.msra.mxu0 0.0
        %3949 = vmatpush.msra.mxu0 0.0
        %3950 = vmatpush.msra.mxu0 0.0
        %3951 = vmatpush.msra.mxu0 0.0
        %3952 = vmatpush.msra.mxu0 0.0
        %3953 = vmatpush.msra.mxu0 0.0
        %3954 = vmatpush.msra.mxu0 0.0
        %3955 = vmatpush.msra.mxu0 0.0
        %3956 = vmatpush.msra.mxu0 0.0
        %3957 = vmatpush.msra.mxu0 0.0
        %3958 = vmatpush.msra.mxu0 0.0
        %3959 = vmatpush.msra.mxu0 0.0
        %3960 = vmatpush.msra.mxu0 %v3924
        %3961 = vmatpush.msra.mxu0 %v3923
        %3962 = vmatpush.msra.mxu0 %v3922
        %3963 = vmatpush.msra.mxu0 %v3921
        %3964 = vmatmul.f32.gmra.mxu0 %v3926
        %v3965 = vpop.f32.mrf.mxu0
        %v3966 = vadd.f32 0.0, %v3965
        %3967 = vdwg.mxu0
        %v3968 = vld [vmem:[%s93] sm:$0xff]
        %v3969 = vld [vmem:[%s93 + $0x8] sm:$0xff]
        %v3970 = vld [vmem:[%s93 + $0x10] sm:$0xff]
        %v3971 = vld [vmem:[%s93 + $0x18] sm:$0xff]
        %v3972 = vld [vmem:[%s93 + $0x20] sm:$0xff]
        %v3973 = vld [vmem:[%s93 + $0x28] sm:$0xff]
        %v3974 = vld [vmem:[%s93 + $0x30] sm:$0xff]
        %v3975 = vld [vmem:[%s93 + $0x38] sm:$0xff]
        %3976 = vmatpush.msra.mxu0 0.0
        %3977 = vmatpush.msra.mxu0 0.0
        %3978 = vmatpush.msra.mxu0 0.0
        %3979 = vmatpush.msra.mxu0 0.0
        %3980 = vmatpush.msra.mxu0 0.0
        %3981 = vmatpush.msra.mxu0 0.0
        %3982 = vmatpush.msra.mxu0 0.0
        %3983 = vmatpush.msra.mxu0 0.0
        %3984 = vmatpush.msra.mxu0 0.0
        %3985 = vmatpush.msra.mxu0 0.0
        %3986 = vmatpush.msra.mxu0 0.0
        %3987 = vmatpush.msra.mxu0 0.0
        %3988 = vmatpush.msra.mxu0 %v3971
        %3989 = vmatpush.msra.mxu0 %v3970
        %3990 = vmatpush.msra.mxu0 %v3969
        %3991 = vmatpush.msra.mxu0 %v3968
        %3992 = vmatmul.f32.gmra.mxu0 %v3926
        %v3993 = vpop.f32.mrf.mxu0
        %v3994 = vadd.f32 0.0, %v3993
        %3995 = vdwg.mxu0
        %3996 = vmatpush.msra.mxu0 0.0
        %3997 = vmatpush.msra.mxu0 0.0
        %3998 = vmatpush.msra.mxu0 0.0
        %3999 = vmatpush.msra.mxu0 0.0
        %4000 = vmatpush.msra.mxu0 0.0
        %4001 = vmatpush.msra.mxu0 0.0
        %4002 = vmatpush.msra.mxu0 0.0
        %4003 = vmatpush.msra.mxu0 0.0
        %4004 = vmatpush.msra.mxu0 0.0
        %4005 = vmatpush.msra.mxu0 0.0
        %4006 = vmatpush.msra.mxu0 0.0
        %4007 = vmatpush.msra.mxu0 0.0
        %4008 = vmatpush.msra.mxu0 %v3975
        %4009 = vmatpush.msra.mxu0 %v3974
        %4010 = vmatpush.msra.mxu0 %v3973
        %4011 = vmatpush.msra.mxu0 %v3972
        %4012 = vmatmul.f32.gmra.mxu0 %v3926
        %v4013 = vpop.f32.mrf.mxu0
        %v4014 = vadd.f32 0.0, %v4013
        %4015 = vdwg.mxu0
        %v4016 = vld [vmem:[%s99] sm:$0xff]
        %v4017 = vld [vmem:[%s99 + $0x8] sm:$0xff]
        %v4018 = vld [vmem:[%s99 + $0x10] sm:$0xff]
        %v4019 = vld [vmem:[%s99 + $0x18] sm:$0xff]
        %v4020 = vld [vmem:[%s99 + $0x20] sm:$0xff]
        %v4021 = vld [vmem:[%s99 + $0x28] sm:$0xff]
        %v4022 = vld [vmem:[%s99 + $0x30] sm:$0xff]
        %v4023 = vld [vmem:[%s99 + $0x38] sm:$0xff]
        %4024 = vmatpush.msra.mxu0 0.0
        %4025 = vmatpush.msra.mxu0 0.0
        %4026 = vmatpush.msra.mxu0 0.0
        %4027 = vmatpush.msra.mxu0 0.0
        %4028 = vmatpush.msra.mxu0 0.0
        %4029 = vmatpush.msra.mxu0 0.0
        %4030 = vmatpush.msra.mxu0 0.0
        %4031 = vmatpush.msra.mxu0 0.0
        %4032 = vmatpush.msra.mxu0 0.0
        %4033 = vmatpush.msra.mxu0 0.0
        %4034 = vmatpush.msra.mxu0 0.0
        %4035 = vmatpush.msra.mxu0 0.0
        %4036 = vmatpush.msra.mxu0 %v4019
        %4037 = vmatpush.msra.mxu0 %v4018
        %4038 = vmatpush.msra.mxu0 %v4017
        %4039 = vmatpush.msra.mxu0 %v4016
        %4040 = vmatmul.f32.gmra.mxu0 %v3926
        %v4041 = vpop.f32.mrf.mxu0
        %v4042 = vadd.f32 0.0, %v4041
        %4043 = vdwg.mxu0
        %4044 = vmatpush.msra.mxu0 0.0
        %4045 = vmatpush.msra.mxu0 0.0
        %4046 = vmatpush.msra.mxu0 0.0
        %4047 = vmatpush.msra.mxu0 0.0
        %4048 = vmatpush.msra.mxu0 0.0
        %4049 = vmatpush.msra.mxu0 0.0
        %4050 = vmatpush.msra.mxu0 0.0
        %4051 = vmatpush.msra.mxu0 0.0
        %4052 = vmatpush.msra.mxu0 0.0
        %4053 = vmatpush.msra.mxu0 0.0
        %4054 = vmatpush.msra.mxu0 0.0
        %4055 = vmatpush.msra.mxu0 0.0
        %4056 = vmatpush.msra.mxu0 %v4023
        %4057 = vmatpush.msra.mxu0 %v4022
        %4058 = vmatpush.msra.mxu0 %v4021
        %4059 = vmatpush.msra.mxu0 %v4020
        %4060 = vmatmul.f32.gmra.mxu0 %v3926
        %v4061 = vpop.f32.mrf.mxu0
        %v4062 = vadd.f32 0.0, %v4061
        %4063 = vdwg.mxu0
        %v4065 = vsel %vm2308, %v3946, 0
        %v4068 = vsel %vm2308, %v3994, 0
        %4070 = vmatpush.xpose.msra.mxu0 0.0
        %4071 = vmatpush.xpose.msra.mxu0 0.0
        %4072 = vmatpush.xpose.msra.mxu0 0.0
        %4073 = vmatpush.xpose.msra.mxu0 0.0
        %4074 = vmatpush.xpose.msra.mxu0 0.0
        %4075 = vmatpush.xpose.msra.mxu0 0.0
        %4076 = vmatpush.xpose.msra.mxu0 0.0
        %4077 = vmatpush.xpose.msra.mxu0 0.0
        %4078 = vmatpush.xpose.msra.mxu0 0.0
        %4079 = vmatpush.xpose.msra.mxu0 0.0
        %4080 = vmatpush.xpose.msra.mxu0 0.0
        %4081 = vmatpush.xpose.msra.mxu0 0.0
        %4082 = vmatpush.xpose.msra.mxu0 0.0
        %4083 = vmatpush.xpose.msra.mxu0 0.0
        %4084 = vmatpush.xpose.msra.mxu0 0.0
        %4085 = vmatpush.xpose.msra.mxu0 %v4068
        %4086 = vmatmul.f32.gmra.mxu0 %v4065
        %v4087 = vpop.f32.mrf.mxu0
        %v4088 = vadd.f32 0.0, %v4087
        %4089 = vdwg.mxu0
        %v4091 = vsel %vm2308, %v3966, 0
        %v4094 = vsel %vm2308, %v4014, 0
        %4096 = vmatpush.xpose.msra.mxu0 0.0
        %4097 = vmatpush.xpose.msra.mxu0 0.0
        %4098 = vmatpush.xpose.msra.mxu0 0.0
        %4099 = vmatpush.xpose.msra.mxu0 0.0
        %4100 = vmatpush.xpose.msra.mxu0 0.0
        %4101 = vmatpush.xpose.msra.mxu0 0.0
        %4102 = vmatpush.xpose.msra.mxu0 0.0
        %4103 = vmatpush.xpose.msra.mxu0 0.0
        %4104 = vmatpush.xpose.msra.mxu0 0.0
        %4105 = vmatpush.xpose.msra.mxu0 0.0
        %4106 = vmatpush.xpose.msra.mxu0 0.0
        %4107 = vmatpush.xpose.msra.mxu0 0.0
        %4108 = vmatpush.xpose.msra.mxu0 0.0
        %4109 = vmatpush.xpose.msra.mxu0 0.0
        %4110 = vmatpush.xpose.msra.mxu0 0.0
        %4111 = vmatpush.xpose.msra.mxu0 %v4094
        %4112 = vmatmul.f32.gmra.mxu0 %v4091
        %v4113 = vpop.f32.mrf.mxu0
        %v4114 = vadd.f32 0.0, %v4113
        %4115 = vdwg.mxu0
        %v4116 = vmul.f32 %v4088, 0.25
        %v4117 = vmul.f32 %v4114, 0.25
        %v4119 = vperm.slane %v3884, 0
        %v4121 = vadd.f32 %v4116, %v4119
        %v4122 = vadd.f32 %v4117, %v4119
        %vm4123 = vcmask 64512
        %v4124 = vsel %vm4123, %v4121, -inf
        %4125 = vmax.xlane.f32.xlu0 %v4124
        %v4126 = vpop.xlane.xlu0 %4125
        %v4127 = vsel %vm4123, %v4122, -inf
        %4128 = vmax.xlane.f32.xlu0 %v4127
        %v4129 = vpop.xlane.xlu0 %4128
        %v4130 = vsub.f32 %v4121, %v4126
        %v4131 = vsub.f32 %v4122, %v4129
        %v4132 = vmul.f32 %v4130, 1.442695
        %v4133 = vpow.pop %v4132
        %v4134 = vmul.f32 %v4131, 1.442695
        %v4135 = vpow.pop %v4134
        %v4136 = vsel %vm4123, %v4133, 0.0
        %4137 = vadd.xlane.f32.xlu0 %v4136
        %v4138 = vpop.xlane.xlu0 %4137
        %v4139 = vsel %vm4123, %v4135, 0.0
        %4140 = vadd.xlane.f32.xlu0 %v4139
        %v4141 = vpop.xlane.xlu0 %4140
        %v4142 = vrcp.pop %v4138
        %v4143 = vrcp.pop %v4141
        %v4144 = vmul.f32 %v4133, %v4142
        %v4145 = vmul.f32 %v4135, %v4143
        %v4147 = vsel %vm4123, %v4144, 0
        %4149 = vmatpush.msra.mxu0 0.0
        %4150 = vmatpush.msra.mxu0 0.0
        %4151 = vmatpush.msra.mxu0 0.0
        %4152 = vmatpush.msra.mxu0 0.0
        %4153 = vmatpush.msra.mxu0 0.0
        %4154 = vmatpush.msra.mxu0 0.0
        %4155 = vmatpush.msra.mxu0 0.0
        %4156 = vmatpush.msra.mxu0 0.0
        %4157 = vmatpush.msra.mxu0 0.0
        %4158 = vmatpush.msra.mxu0 0.0
        %4159 = vmatpush.msra.mxu0 0.0
        %4160 = vmatpush.msra.mxu0 0.0
        %4161 = vmatpush.msra.mxu0 0.0
        %4162 = vmatpush.msra.mxu0 0.0
        %4163 = vmatpush.msra.mxu0 0.0
        %4164 = vmatpush.msra.mxu0 %v4042
        %4165 = vmatmul.f32.gmra.mxu0 %v4147
        %v4166 = vpop.f32.mrf.mxu0
        %v4167 = vadd.f32 0.0, %v4166
        %4168 = vdwg.mxu0
        %v4170 = vsel %vm4123, %v4145, 0
        %4172 = vmatpush.msra.mxu0 0.0
        %4173 = vmatpush.msra.mxu0 0.0
        %4174 = vmatpush.msra.mxu0 0.0
        %4175 = vmatpush.msra.mxu0 0.0
        %4176 = vmatpush.msra.mxu0 0.0
        %4177 = vmatpush.msra.mxu0 0.0
        %4178 = vmatpush.msra.mxu0 0.0
        %4179 = vmatpush.msra.mxu0 0.0
        %4180 = vmatpush.msra.mxu0 0.0
        %4181 = vmatpush.msra.mxu0 0.0
        %4182 = vmatpush.msra.mxu0 0.0
        %4183 = vmatpush.msra.mxu0 0.0
        %4184 = vmatpush.msra.mxu0 0.0
        %4185 = vmatpush.msra.mxu0 0.0
        %4186 = vmatpush.msra.mxu0 0.0
        %4187 = vmatpush.msra.mxu0 %v4062
        %4188 = vmatmul.f32.gmra.mxu0 %v4170
        %v4189 = vpop.f32.mrf.mxu0
        %v4190 = vadd.f32 0.0, %v4189
        %4191 = vdwg.mxu0
        %v4192 = vld [vmem:[%s95] sm:$0xff]
        %v4193 = vld [vmem:[%s95 + $0x8] sm:$0xff]
        %v4194 = vld [vmem:[%s95 + $0x10] sm:$0xff]
        %v4195 = vld [vmem:[%s95 + $0x18] sm:$0xff]
        %v4197 = vsel %vm2308, %v4167, 0
        %4199 = vmatpush.msra.mxu0 0.0
        %4200 = vmatpush.msra.mxu0 0.0
        %4201 = vmatpush.msra.mxu0 0.0
        %4202 = vmatpush.msra.mxu0 0.0
        %4203 = vmatpush.msra.mxu0 0.0
        %4204 = vmatpush.msra.mxu0 0.0
        %4205 = vmatpush.msra.mxu0 0.0
        %4206 = vmatpush.msra.mxu0 0.0
        %4207 = vmatpush.msra.mxu0 0.0
        %4208 = vmatpush.msra.mxu0 0.0
        %4209 = vmatpush.msra.mxu0 0.0
        %4210 = vmatpush.msra.mxu0 0.0
        %4211 = vmatpush.msra.mxu0 0.0
        %4212 = vmatpush.msra.mxu0 0.0
        %4213 = vmatpush.msra.mxu0 %v4193
        %4214 = vmatpush.msra.mxu0 %v4192
        %4215 = vmatmul.f32.gmra.mxu0 %v4197
        %v4216 = vpop.f32.mrf.mxu0
        %v4217 = vadd.f32 0.0, %v4216
        %4218 = vdwg.mxu0
        %v4220 = vsel %vm2308, %v4190, 0
        %4222 = vmatpush.msra.mxu0 0.0
        %4223 = vmatpush.msra.mxu0 0.0
        %4224 = vmatpush.msra.mxu0 0.0
        %4225 = vmatpush.msra.mxu0 0.0
        %4226 = vmatpush.msra.mxu0 0.0
        %4227 = vmatpush.msra.mxu0 0.0
        %4228 = vmatpush.msra.mxu0 0.0
        %4229 = vmatpush.msra.mxu0 0.0
        %4230 = vmatpush.msra.mxu0 0.0
        %4231 = vmatpush.msra.mxu0 0.0
        %4232 = vmatpush.msra.mxu0 0.0
        %4233 = vmatpush.msra.mxu0 0.0
        %4234 = vmatpush.msra.mxu0 0.0
        %4235 = vmatpush.msra.mxu0 0.0
        %4236 = vmatpush.msra.mxu0 %v4195
        %4237 = vmatpush.msra.mxu0 %v4194
        %4238 = vmatmul.f32.gmra.mxu0 %v4220
        %v4239 = vpop.f32.mrf.mxu0
        %v4240 = vadd.f32 0.0, %v4239
        %4241 = vdwg.mxu0
        %v4242 = vsel %vm2033, %v4217, 0.0
        %v4243 = vsel %vm2033, %v4240, 0.0
        %v4244 = vadd.f32 %v4242, %v4243
        %v4245 = vadd.f32 %v3883, %v4244
        %v4246 = vld [vmem:[%s79] sm:$0x1]
        %v4248 = vperm.slane %v4246, 0
        %v4250 = vadd.f32 %v4245, %v4248
        %v4251 = vld [vmem:[%s87] sm:$0x1]
        %v4252 = vld [vmem:[%s85] sm:$0x1]
        %v4253 = vsel %vm2033, %v4250, 0.0
        %4254 = vadd.xlane.f32.xlu0 %v4253
        %v4255 = vpop.xlane.xlu0 %4254
        %v4256 = vmul.f32 %v4255, %v2049
        %v4257 = vsub.f32 %v4250, %v4256
        %v4258 = vmul.f32 %v4257, %v4257
        %v4259 = vsel %vm2033, %v4258, 0.0
        %4260 = vadd.xlane.f32.xlu0 %v4259
        %v4261 = vpop.xlane.xlu0 %4260
        %v4262 = vmul.f32 %v4261, %v2049
        %v4263 = vadd.f32 %v4262, 1e-05
        %v4264 = vrsqrt.pop %v4263
        %v4265 = vmul.f32 %v4264, %v4263
        %v4266 = vmul.f32 %v4265, %v4264
        %v4267 = vmul.f32 0.5, %v4266
        %v4268 = vsub.f32 1.5, %v4267
        %v4269 = vmul.f32 %v4264, %v4268
        %vm4270 = vweird.f32 %v4263
        %vm4271 = vweird.f32 %v4264
        %vm4272 = vmor %vm4270, %vm4271
        %v4273 = vsel %vm4272, %v4264, %v4269
        %v4274 = vmul.f32 %v4257, %v4273
        %v4276 = vperm.slane %v4251, 0
        %v4278 = vmul.f32 %v4274, %v4276
        %v4280 = vperm.slane %v4252, 0
        %v4282 = vadd.f32 %v4278, %v4280
        %v4283 = vld [vmem:[%s89] sm:$0xff]
        %v4284 = vld [vmem:[%s89 + $0x8] sm:$0xff]
        %v4285 = vld [vmem:[%s89 + $0x10] sm:$0xff]
        %v4286 = vld [vmem:[%s89 + $0x18] sm:$0xff]
        %v4287 = vld [vmem:[%s75] sm:$0x1]
        %v4289 = vperm.slane %v4287, 0
        %v4292 = vsel %vm2033, %v4282, 0
        %4294 = vmatpush.msra.mxu0 0.0
        %4295 = vmatpush.msra.mxu0 0.0
        %4296 = vmatpush.msra.mxu0 0.0
        %4297 = vmatpush.msra.mxu0 0.0
        %4298 = vmatpush.msra.mxu0 0.0
        %4299 = vmatpush.msra.mxu0 0.0
        %4300 = vmatpush.msra.mxu0 0.0
        %4301 = vmatpush.msra.mxu0 0.0
        %4302 = vmatpush.msra.mxu0 0.0
        %4303 = vmatpush.msra.mxu0 0.0
        %4304 = vmatpush.msra.mxu0 0.0
        %4305 = vmatpush.msra.mxu0 0.0
        %4306 = vmatpush.msra.mxu0 %v4286
        %4307 = vmatpush.msra.mxu0 %v4285
        %4308 = vmatpush.msra.mxu0 %v4284
        %4309 = vmatpush.msra.mxu0 %v4283
        %4310 = vmatmul.f32.gmra.mxu0 %v4292
        %v4311 = vpop.f32.mrf.mxu0
        %v4312 = vadd.f32 %v4289, %v4311
        %4313 = vdwg.mxu0
        %v4314 = vmul.f32 %v4312, 0.5
        %v4315 = vmul.f32 %v4312, 0.70710677
        %v4316 = vmul.f32 %v4315, %v4315
        %v4317 = vmin.f32 16.0, %v4316
        %v4318 = vmul.f32 %v4317, 2.1237322e-06
        %v4319 = vadd.f32 %v4318, 0.00028619796
        %v4320 = vmul.f32 %v4317, %v4319
        %v4321 = vadd.f32 %v4320, 0.0036580483
        %v4322 = vmul.f32 %v4317, %v4321
        %v4323 = vadd.f32 %v4322, 0.05243302
        %v4324 = vmul.f32 %v4317, %v4323
        %v4325 = vadd.f32 %v4324, 0.18741608
        %v4326 = vmul.f32 %v4317, %v4325
        %v4327 = vadd.f32 %v4326, 1.1283791
        %v4328 = vmul.f32 %v4315, %v4327
        %v4329 = vmul.f32 %v4317, 3.8918573e-05
        %v4330 = vadd.f32 %v4329, 0.001143296
        %v4331 = vmul.f32 %v4317, %v4330
        %v4332 = vadd.f32 %v4331, 0.014752088
        %v4333 = vmul.f32 %v4317, %v4332
        %v4334 = vadd.f32 %v4333, 0.112945676
        %v4335 = vmul.f32 %v4317, %v4334
        %v4336 = vadd.f32 %v4335, 0.4994258
        %v4337 = vmul.f32 %v4317, %v4336
        %v4338 = vadd.f32 %v4337, 1.0
        %v4339 = vrcp.pop %v4338
        %v4340 = vmul.f32 %v4338, %v4339
        %v4341 = vsub.f32 1.0, %v4340
        %v4342 = vmul.f32 %v4339, %v4341
        %v4343 = vadd.f32 %v4339, %v4342
        %vm4344 = vweird.f32 %v4338
        %vm4345 = vweird.f32 %v4339
        %vm4346 = vmor %vm4344, %vm4345
        %v4347 = vsel %vm4346, %v4339, %v4343
        %v4348 = vand.u32 2147483647, %v4338
        %vm4349 = vcmp.eq.f32.partialorder %v4348, 8.507059e+37
        %v4350 = vand.u32 %v4338, 2147483648
        %v4351 = vor.u32 1.1754944e-38, %v4350
        %v4352 = vsel %vm4349, %v4351, %v4347
        %v4353 = vmul.f32 %v4328, %v4352
        %v4354 = vmin.f32 %v4353, 1.0
        %v4355 = vmax.f32 %v4354, -1.0
        %v4356 = vadd.f32 %v4355, 1.0
        %v4357 = vmul.f32 %v4314, %v4356
        %v4358 = vld [vmem:[%s91] sm:$0xff]
        %v4359 = vld [vmem:[%s91 + $0x8] sm:$0xff]
        %v4360 = vld [vmem:[%s91 + $0x10] sm:$0xff]
        %v4361 = vld [vmem:[%s91 + $0x18] sm:$0xff]
        %v4362 = vld [vmem:[%s91 + $0x20] sm:$0xff]
        %v4363 = vld [vmem:[%s91 + $0x28] sm:$0xff]
        %v4364 = vld [vmem:[%s91 + $0x30] sm:$0xff]
        %v4365 = vld [vmem:[%s91 + $0x38] sm:$0xff]
        %v4366 = vld [vmem:[%s91 + $0x40] sm:$0xff]
        %v4367 = vld [vmem:[%s91 + $0x48] sm:$0xff]
        %v4368 = vld [vmem:[%s91 + $0x50] sm:$0xff]
        %v4369 = vld [vmem:[%s91 + $0x58] sm:$0xff]
        %v4370 = vld [vmem:[%s91 + $0x60] sm:$0xff]
        %v4371 = vld [vmem:[%s91 + $0x68] sm:$0xff]
        %v4372 = vld [vmem:[%s91 + $0x70] sm:$0xff]
        %v4373 = vld [vmem:[%s91 + $0x78] sm:$0xff]
        %v4374 = vld [vmem:[%s77] sm:$0x1]
        %v4376 = vperm.slane %v4374, 0
        %4378 = vmatpush.msra.mxu0 %v4373
        %4379 = vmatpush.msra.mxu0 %v4372
        %4380 = vmatpush.msra.mxu0 %v4371
        %4381 = vmatpush.msra.mxu0 %v4370
        %4382 = vmatpush.msra.mxu0 %v4369
        %4383 = vmatpush.msra.mxu0 %v4368
        %4384 = vmatpush.msra.mxu0 %v4367
        %4385 = vmatpush.msra.mxu0 %v4366
        %4386 = vmatpush.msra.mxu0 %v4365
        %4387 = vmatpush.msra.mxu0 %v4364
        %4388 = vmatpush.msra.mxu0 %v4363
        %4389 = vmatpush.msra.mxu0 %v4362
        %4390 = vmatpush.msra.mxu0 %v4361
        %4391 = vmatpush.msra.mxu0 %v4360
        %4392 = vmatpush.msra.mxu0 %v4359
        %4393 = vmatpush.msra.mxu0 %v4358
        %4394 = vmatmul.f32.gmra.mxu0 %v4357
        %v4395 = vpop.f32.mrf.mxu0
        %v4396 = vadd.f32 %v4376, %v4395
        %4397 = vdwg.mxu0
        %v4398 = vadd.f32 %v4250, %v4396
        %v4399 = vld [vmem:[%s109] sm:$0x1]
        %v4400 = vld [vmem:[%s107] sm:$0x1]
        %v4401 = vsel %vm2033, %v4398, 0.0
        %4402 = vadd.xlane.f32.xlu0 %v4401
        %v4403 = vpop.xlane.xlu0 %4402
        %v4404 = vmul.f32 %v4403, %v2049
        %v4405 = vsub.f32 %v4398, %v4404
        %v4406 = vmul.f32 %v4405, %v4405
        %v4407 = vsel %vm2033, %v4406, 0.0
        %4408 = vadd.xlane.f32.xlu0 %v4407
        %v4409 = vpop.xlane.xlu0 %4408
        %v4410 = vmul.f32 %v4409, %v2049
        %v4411 = vadd.f32 %v4410, 1e-05
        %v4412 = vrsqrt.pop %v4411
        %v4413 = vmul.f32 %v4412, %v4411
        %v4414 = vmul.f32 %v4413, %v4412
        %v4415 = vmul.f32 0.5, %v4414
        %v4416 = vsub.f32 1.5, %v4415
        %v4417 = vmul.f32 %v4412, %v4416
        %vm4418 = vweird.f32 %v4411
        %vm4419 = vweird.f32 %v4412
        %vm4420 = vmor %vm4418, %vm4419
        %v4421 = vsel %vm4420, %v4412, %v4417
        %v4422 = vmul.f32 %v4405, %v4421
        %v4424 = vperm.slane %v4399, 0
        %v4426 = vmul.f32 %v4422, %v4424
        %v4428 = vperm.slane %v4400, 0
        %v4430 = vadd.f32 %v4426, %v4428
        %v4431 = vld [vmem:[%s123] sm:$0xff]
        %v4432 = vld [vmem:[%s123 + $0x8] sm:$0xff]
        %v4433 = vld [vmem:[%s123 + $0x10] sm:$0xff]
        %v4434 = vld [vmem:[%s123 + $0x18] sm:$0xff]
        %v4435 = vld [vmem:[%s123 + $0x20] sm:$0xff]
        %v4436 = vld [vmem:[%s123 + $0x28] sm:$0xff]
        %v4437 = vld [vmem:[%s123 + $0x30] sm:$0xff]
        %v4438 = vld [vmem:[%s123 + $0x38] sm:$0xff]
        %v4440 = vsel %vm2033, %v4430, 0
        %4442 = vmatpush.msra.mxu0 0.0
        %4443 = vmatpush.msra.mxu0 0.0
        %4444 = vmatpush.msra.mxu0 0.0
        %4445 = vmatpush.msra.mxu0 0.0
        %4446 = vmatpush.msra.mxu0 0.0
        %4447 = vmatpush.msra.mxu0 0.0
        %4448 = vmatpush.msra.mxu0 0.0
        %4449 = vmatpush.msra.mxu0 0.0
        %4450 = vmatpush.msra.mxu0 0.0
        %4451 = vmatpush.msra.mxu0 0.0
        %4452 = vmatpush.msra.mxu0 0.0
        %4453 = vmatpush.msra.mxu0 0.0
        %4454 = vmatpush.msra.mxu0 %v4434
        %4455 = vmatpush.msra.mxu0 %v4433
        %4456 = vmatpush.msra.mxu0 %v4432
        %4457 = vmatpush.msra.mxu0 %v4431
        %4458 = vmatmul.f32.gmra.mxu0 %v4440
        %v4459 = vpop.f32.mrf.mxu0
        %v4460 = vadd.f32 0.0, %v4459
        %4461 = vdwg.mxu0
        %4462 = vmatpush.msra.mxu0 0.0
        %4463 = vmatpush.msra.mxu0 0.0
        %4464 = vmatpush.msra.mxu0 0.0
        %4465 = vmatpush.msra.mxu0 0.0
        %4466 = vmatpush.msra.mxu0 0.0
        %4467 = vmatpush.msra.mxu0 0.0
        %4468 = vmatpush.msra.mxu0 0.0
        %4469 = vmatpush.msra.mxu0 0.0
        %4470 = vmatpush.msra.mxu0 0.0
        %4471 = vmatpush.msra.mxu0 0.0
        %4472 = vmatpush.msra.mxu0 0.0
        %4473 = vmatpush.msra.mxu0 0.0
        %4474 = vmatpush.msra.mxu0 %v4438
        %4475 = vmatpush.msra.mxu0 %v4437
        %4476 = vmatpush.msra.mxu0 %v4436
        %4477 = vmatpush.msra.mxu0 %v4435
        %4478 = vmatmul.f32.gmra.mxu0 %v4440
        %v4479 = vpop.f32.mrf.mxu0
        %v4480 = vadd.f32 0.0, %v4479
        %4481 = vdwg.mxu0
        %v4482 = vld [vmem:[%s119] sm:$0xff]
        %v4483 = vld [vmem:[%s119 + $0x8] sm:$0xff]
        %v4484 = vld [vmem:[%s119 + $0x10] sm:$0xff]
        %v4485 = vld [vmem:[%s119 + $0x18] sm:$0xff]
        %v4486 = vld [vmem:[%s119 + $0x20] sm:$0xff]
        %v4487 = vld [vmem:[%s119 + $0x28] sm:$0xff]
        %v4488 = vld [vmem:[%s119 + $0x30] sm:$0xff]
        %v4489 = vld [vmem:[%s119 + $0x38] sm:$0xff]
        %4490 = vmatpush.msra.mxu0 0.0
        %4491 = vmatpush.msra.mxu0 0.0
        %4492 = vmatpush.msra.mxu0 0.0
        %4493 = vmatpush.msra.mxu0 0.0
        %4494 = vmatpush.msra.mxu0 0.0
        %4495 = vmatpush.msra.mxu0 0.0
        %4496 = vmatpush.msra.mxu0 0.0
        %4497 = vmatpush.msra.mxu0 0.0
        %4498 = vmatpush.msra.mxu0 0.0
        %4499 = vmatpush.msra.mxu0 0.0
        %4500 = vmatpush.msra.mxu0 0.0
        %4501 = vmatpush.msra.mxu0 0.0
        %4502 = vmatpush.msra.mxu0 %v4485
        %4503 = vmatpush.msra.mxu0 %v4484
        %4504 = vmatpush.msra.mxu0 %v4483
        %4505 = vmatpush.msra.mxu0 %v4482
        %4506 = vmatmul.f32.gmra.mxu0 %v4440
        %v4507 = vpop.f32.mrf.mxu0
        %v4508 = vadd.f32 0.0, %v4507
        %4509 = vdwg.mxu0
        %4510 = vmatpush.msra.mxu0 0.0
        %4511 = vmatpush.msra.mxu0 0.0
        %4512 = vmatpush.msra.mxu0 0.0
        %4513 = vmatpush.msra.mxu0 0.0
        %4514 = vmatpush.msra.mxu0 0.0
        %4515 = vmatpush.msra.mxu0 0.0
        %4516 = vmatpush.msra.mxu0 0.0
        %4517 = vmatpush.msra.mxu0 0.0
        %4518 = vmatpush.msra.mxu0 0.0
        %4519 = vmatpush.msra.mxu0 0.0
        %4520 = vmatpush.msra.mxu0 0.0
        %4521 = vmatpush.msra.mxu0 0.0
        %4522 = vmatpush.msra.mxu0 %v4489
        %4523 = vmatpush.msra.mxu0 %v4488
        %4524 = vmatpush.msra.mxu0 %v4487
        %4525 = vmatpush.msra.mxu0 %v4486
        %4526 = vmatmul.f32.gmra.mxu0 %v4440
        %v4527 = vpop.f32.mrf.mxu0
        %v4528 = vadd.f32 0.0, %v4527
        %4529 = vdwg.mxu0
        %v4530 = vld [vmem:[%s125] sm:$0xff]
        %v4531 = vld [vmem:[%s125 + $0x8] sm:$0xff]
        %v4532 = vld [vmem:[%s125 + $0x10] sm:$0xff]
        %v4533 = vld [vmem:[%s125 + $0x18] sm:$0xff]
        %v4534 = vld [vmem:[%s125 + $0x20] sm:$0xff]
        %v4535 = vld [vmem:[%s125 + $0x28] sm:$0xff]
        %v4536 = vld [vmem:[%s125 + $0x30] sm:$0xff]
        %v4537 = vld [vmem:[%s125 + $0x38] sm:$0xff]
        %4538 = vmatpush.msra.mxu0 0.0
        %4539 = vmatpush.msra.mxu0 0.0
        %4540 = vmatpush.msra.mxu0 0.0
        %4541 = vmatpush.msra.mxu0 0.0
        %4542 = vmatpush.msra.mxu0 0.0
        %4543 = vmatpush.msra.mxu0 0.0
        %4544 = vmatpush.msra.mxu0 0.0
        %4545 = vmatpush.msra.mxu0 0.0
        %4546 = vmatpush.msra.mxu0 0.0
        %4547 = vmatpush.msra.mxu0 0.0
        %4548 = vmatpush.msra.mxu0 0.0
        %4549 = vmatpush.msra.mxu0 0.0
        %4550 = vmatpush.msra.mxu0 %v4533
        %4551 = vmatpush.msra.mxu0 %v4532
        %4552 = vmatpush.msra.mxu0 %v4531
        %4553 = vmatpush.msra.mxu0 %v4530
        %4554 = vmatmul.f32.gmra.mxu0 %v4440
        %v4555 = vpop.f32.mrf.mxu0
        %v4556 = vadd.f32 0.0, %v4555
        %4557 = vdwg.mxu0
        %4558 = vmatpush.msra.mxu0 0.0
        %4559 = vmatpush.msra.mxu0 0.0
        %4560 = vmatpush.msra.mxu0 0.0
        %4561 = vmatpush.msra.mxu0 0.0
        %4562 = vmatpush.msra.mxu0 0.0
        %4563 = vmatpush.msra.mxu0 0.0
        %4564 = vmatpush.msra.mxu0 0.0
        %4565 = vmatpush.msra.mxu0 0.0
        %4566 = vmatpush.msra.mxu0 0.0
        %4567 = vmatpush.msra.mxu0 0.0
        %4568 = vmatpush.msra.mxu0 0.0
        %4569 = vmatpush.msra.mxu0 0.0
        %4570 = vmatpush.msra.mxu0 %v4537
        %4571 = vmatpush.msra.mxu0 %v4536
        %4572 = vmatpush.msra.mxu0 %v4535
        %4573 = vmatpush.msra.mxu0 %v4534
        %4574 = vmatmul.f32.gmra.mxu0 %v4440
        %v4575 = vpop.f32.mrf.mxu0
        %v4576 = vadd.f32 0.0, %v4575
        %4577 = vdwg.mxu0
        %v4579 = vsel %vm2308, %v4460, 0
        %v4582 = vsel %vm2308, %v4508, 0
        %4584 = vmatpush.xpose.msra.mxu0 0.0
        %4585 = vmatpush.xpose.msra.mxu0 0.0
        %4586 = vmatpush.xpose.msra.mxu0 0.0
        %4587 = vmatpush.xpose.msra.mxu0 0.0
        %4588 = vmatpush.xpose.msra.mxu0 0.0
        %4589 = vmatpush.xpose.msra.mxu0 0.0
        %4590 = vmatpush.xpose.msra.mxu0 0.0
        %4591 = vmatpush.xpose.msra.mxu0 0.0
        %4592 = vmatpush.xpose.msra.mxu0 0.0
        %4593 = vmatpush.xpose.msra.mxu0 0.0
        %4594 = vmatpush.xpose.msra.mxu0 0.0
        %4595 = vmatpush.xpose.msra.mxu0 0.0
        %4596 = vmatpush.xpose.msra.mxu0 0.0
        %4597 = vmatpush.xpose.msra.mxu0 0.0
        %4598 = vmatpush.xpose.msra.mxu0 0.0
        %4599 = vmatpush.xpose.msra.mxu0 %v4582
        %4600 = vmatmul.f32.gmra.mxu0 %v4579
        %v4601 = vpop.f32.mrf.mxu0
        %v4602 = vadd.f32 0.0, %v4601
        %4603 = vdwg.mxu0
        %v4605 = vsel %vm2308, %v4480, 0
        %v4608 = vsel %vm2308, %v4528, 0
        %4610 = vmatpush.xpose.msra.mxu0 0.0
        %4611 = vmatpush.xpose.msra.mxu0 0.0
        %4612 = vmatpush.xpose.msra.mxu0 0.0
        %4613 = vmatpush.xpose.msra.mxu0 0.0
        %4614 = vmatpush.xpose.msra.mxu0 0.0
        %4615 = vmatpush.xpose.msra.mxu0 0.0
        %4616 = vmatpush.xpose.msra.mxu0 0.0
        %4617 = vmatpush.xpose.msra.mxu0 0.0
        %4618 = vmatpush.xpose.msra.mxu0 0.0
        %4619 = vmatpush.xpose.msra.mxu0 0.0
        %4620 = vmatpush.xpose.msra.mxu0 0.0
        %4621 = vmatpush.xpose.msra.mxu0 0.0
        %4622 = vmatpush.xpose.msra.mxu0 0.0
        %4623 = vmatpush.xpose.msra.mxu0 0.0
        %4624 = vmatpush.xpose.msra.mxu0 0.0
        %4625 = vmatpush.xpose.msra.mxu0 %v4608
        %4626 = vmatmul.f32.gmra.mxu0 %v4605
        %v4627 = vpop.f32.mrf.mxu0
        %v4628 = vadd.f32 0.0, %v4627
        %4629 = vdwg.mxu0
        %v4630 = vmul.f32 %v4602, 0.25
        %v4631 = vmul.f32 %v4628, 0.25
        %v4632 = vadd.f32 %v4630, %v4119
        %v4633 = vadd.f32 %v4631, %v4119
        %v4634 = vsel %vm4123, %v4632, -inf
        %4635 = vmax.xlane.f32.xlu0 %v4634
        %v4636 = vpop.xlane.xlu0 %4635
        %v4637 = vsel %vm4123, %v4633, -inf
        %4638 = vmax.xlane.f32.xlu0 %v4637
        %v4639 = vpop.xlane.xlu0 %4638
        %v4640 = vsub.f32 %v4632, %v4636
        %v4641 = vsub.f32 %v4633, %v4639
        %v4642 = vmul.f32 %v4640, 1.442695
        %v4643 = vpow.pop %v4642
        %v4644 = vmul.f32 %v4641, 1.442695
        %v4645 = vpow.pop %v4644
        %v4646 = vsel %vm4123, %v4643, 0.0
        %4647 = vadd.xlane.f32.xlu0 %v4646
        %v4648 = vpop.xlane.xlu0 %4647
        %v4649 = vsel %vm4123, %v4645, 0.0
        %4650 = vadd.xlane.f32.xlu0 %v4649
        %v4651 = vpop.xlane.xlu0 %4650
        %v4652 = vrcp.pop %v4648
        %v4653 = vrcp.pop %v4651
        %v4654 = vmul.f32 %v4643, %v4652
        %v4655 = vmul.f32 %v4645, %v4653
        %v4657 = vsel %vm4123, %v4654, 0
        %4659 = vmatpush.msra.mxu0 0.0
        %4660 = vmatpush.msra.mxu0 0.0
        %4661 = vmatpush.msra.mxu0 0.0
        %4662 = vmatpush.msra.mxu0 0.0
        %4663 = vmatpush.msra.mxu0 0.0
        %4664 = vmatpush.msra.mxu0 0.0
        %4665 = vmatpush.msra.mxu0 0.0
        %4666 = vmatpush.msra.mxu0 0.0
        %4667 = vmatpush.msra.mxu0 0.0
        %4668 = vmatpush.msra.mxu0 0.0
        %4669 = vmatpush.msra.mxu0 0.0
        %4670 = vmatpush.msra.mxu0 0.0
        %4671 = vmatpush.msra.mxu0 0.0
        %4672 = vmatpush.msra.mxu0 0.0
        %4673 = vmatpush.msra.mxu0 0.0
        %4674 = vmatpush.msra.mxu0 %v4556
        %4675 = vmatmul.f32.gmra.mxu0 %v4657
        %v4676 = vpop.f32.mrf.mxu0
        %v4677 = vadd.f32 0.0, %v4676
        %4678 = vdwg.mxu0
        %v4680 = vsel %vm4123, %v4655, 0
        %4682 = vmatpush.msra.mxu0 0.0
        %4683 = vmatpush.msra.mxu0 0.0
        %4684 = vmatpush.msra.mxu0 0.0
        %4685 = vmatpush.msra.mxu0 0.0
        %4686 = vmatpush.msra.mxu0 0.0
        %4687 = vmatpush.msra.mxu0 0.0
        %4688 = vmatpush.msra.mxu0 0.0
        %4689 = vmatpush.msra.mxu0 0.0
        %4690 = vmatpush.msra.mxu0 0.0
        %4691 = vmatpush.msra.mxu0 0.0
        %4692 = vmatpush.msra.mxu0 0.0
        %4693 = vmatpush.msra.mxu0 0.0
        %4694 = vmatpush.msra.mxu0 0.0
        %4695 = vmatpush.msra.mxu0 0.0
        %4696 = vmatpush.msra.mxu0 0.0
        %4697 = vmatpush.msra.mxu0 %v4576
        %4698 = vmatmul.f32.gmra.mxu0 %v4680
        %v4699 = vpop.f32.mrf.mxu0
        %v4700 = vadd.f32 0.0, %v4699
        %4701 = vdwg.mxu0
        %v4702 = vld [vmem:[%s121] sm:$0xff]
        %v4703 = vld [vmem:[%s121 + $0x8] sm:$0xff]
        %v4704 = vld [vmem:[%s121 + $0x10] sm:$0xff]
        %v4705 = vld [vmem:[%s121 + $0x18] sm:$0xff]
        %v4707 = vsel %vm2308, %v4677, 0
        %4709 = vmatpush.msra.mxu0 0.0
        %4710 = vmatpush.msra.mxu0 0.0
        %4711 = vmatpush.msra.mxu0 0.0
        %4712 = vmatpush.msra.mxu0 0.0
        %4713 = vmatpush.msra.mxu0 0.0
        %4714 = vmatpush.msra.mxu0 0.0
        %4715 = vmatpush.msra.mxu0 0.0
        %4716 = vmatpush.msra.mxu0 0.0
        %4717 = vmatpush.msra.mxu0 0.0
        %4718 = vmatpush.msra.mxu0 0.0
        %4719 = vmatpush.msra.mxu0 0.0
        %4720 = vmatpush.msra.mxu0 0.0
        %4721 = vmatpush.msra.mxu0 0.0
        %4722 = vmatpush.msra.mxu0 0.0
        %4723 = vmatpush.msra.mxu0 %v4703
        %4724 = vmatpush.msra.mxu0 %v4702
        %4725 = vmatmul.f32.gmra.mxu0 %v4707
        %v4726 = vpop.f32.mrf.mxu0
        %v4727 = vadd.f32 0.0, %v4726
        %4728 = vdwg.mxu0
        %v4730 = vsel %vm2308, %v4700, 0
        %4732 = vmatpush.msra.mxu0 0.0
        %4733 = vmatpush.msra.mxu0 0.0
        %4734 = vmatpush.msra.mxu0 0.0
        %4735 = vmatpush.msra.mxu0 0.0
        %4736 = vmatpush.msra.mxu0 0.0
        %4737 = vmatpush.msra.mxu0 0.0
        %4738 = vmatpush.msra.mxu0 0.0
        %4739 = vmatpush.msra.mxu0 0.0
        %4740 = vmatpush.msra.mxu0 0.0
        %4741 = vmatpush.msra.mxu0 0.0
        %4742 = vmatpush.msra.mxu0 0.0
        %4743 = vmatpush.msra.mxu0 0.0
        %4744 = vmatpush.msra.mxu0 0.0
        %4745 = vmatpush.msra.mxu0 0.0
        %4746 = vmatpush.msra.mxu0 %v4705
        %4747 = vmatpush.msra.mxu0 %v4704
        %4748 = vmatmul.f32.gmra.mxu0 %v4730
        %v4749 = vpop.f32.mrf.mxu0
        %v4750 = vadd.f32 0.0, %v4749
        %4751 = vdwg.mxu0
        %v4752 = vsel %vm2033, %v4727, 0.0
        %v4753 = vsel %vm2033, %v4750, 0.0
        %v4754 = vadd.f32 %v4752, %v4753
        %v4755 = vadd.f32 %v4398, %v4754
        %v4756 = vld [vmem:[%s105] sm:$0x1]
        %v4758 = vperm.slane %v4756, 0
        %v4760 = vadd.f32 %v4755, %v4758
        %v4761 = vld [vmem:[%s113] sm:$0x1]
        %v4762 = vld [vmem:[%s111] sm:$0x1]
        %v4763 = vsel %vm2033, %v4760, 0.0
        %4764 = vadd.xlane.f32.xlu0 %v4763
        %v4765 = vpop.xlane.xlu0 %4764
        %v4766 = vmul.f32 %v4765, %v2049
        %v4767 = vsub.f32 %v4760, %v4766
        %v4768 = vmul.f32 %v4767, %v4767
        %v4769 = vsel %vm2033, %v4768, 0.0
        %4770 = vadd.xlane.f32.xlu0 %v4769
        %v4771 = vpop.xlane.xlu0 %4770
        %v4772 = vmul.f32 %v4771, %v2049
        %v4773 = vadd.f32 %v4772, 1e-05
        %v4774 = vrsqrt.pop %v4773
        %v4775 = vmul.f32 %v4774, %v4773
        %v4776 = vmul.f32 %v4775, %v4774
        %v4777 = vmul.f32 0.5, %v4776
        %v4778 = vsub.f32 1.5, %v4777
        %v4779 = vmul.f32 %v4774, %v4778
        %vm4780 = vweird.f32 %v4773
        %vm4781 = vweird.f32 %v4774
        %vm4782 = vmor %vm4780, %vm4781
        %v4783 = vsel %vm4782, %v4774, %v4779
        %v4784 = vmul.f32 %v4767, %v4783
        %v4786 = vperm.slane %v4761, 0
        %v4788 = vmul.f32 %v4784, %v4786
        %v4790 = vperm.slane %v4762, 0
        %v4792 = vadd.f32 %v4788, %v4790
        %v4793 = vld [vmem:[%s115] sm:$0xff]
        %v4794 = vld [vmem:[%s115 + $0x8] sm:$0xff]
        %v4795 = vld [vmem:[%s115 + $0x10] sm:$0xff]
        %v4796 = vld [vmem:[%s115 + $0x18] sm:$0xff]
        %v4797 = vld [vmem:[%s101] sm:$0x1]
        %v4799 = vperm.slane %v4797, 0
        %v4802 = vsel %vm2033, %v4792, 0
        %4804 = vmatpush.msra.mxu0 0.0
        %4805 = vmatpush.msra.mxu0 0.0
        %4806 = vmatpush.msra.mxu0 0.0
        %4807 = vmatpush.msra.mxu0 0.0
        %4808 = vmatpush.msra.mxu0 0.0
        %4809 = vmatpush.msra.mxu0 0.0
        %4810 = vmatpush.msra.mxu0 0.0
        %4811 = vmatpush.msra.mxu0 0.0
        %4812 = vmatpush.msra.mxu0 0.0
        %4813 = vmatpush.msra.mxu0 0.0
        %4814 = vmatpush.msra.mxu0 0.0
        %4815 = vmatpush.msra.mxu0 0.0
        %4816 = vmatpush.msra.mxu0 %v4796
        %4817 = vmatpush.msra.mxu0 %v4795
        %4818 = vmatpush.msra.mxu0 %v4794
        %4819 = vmatpush.msra.mxu0 %v4793
        %4820 = vmatmul.f32.gmra.mxu0 %v4802
        %v4821 = vpop.f32.mrf.mxu0
        %v4822 = vadd.f32 %v4799, %v4821
        %4823 = vdwg.mxu0
        %v4824 = vmul.f32 %v4822, 0.5
        %v4825 = vmul.f32 %v4822, 0.70710677
        %v4826 = vmul.f32 %v4825, %v4825
        %v4827 = vmin.f32 16.0, %v4826
        %v4828 = vmul.f32 %v4827, 2.1237322e-06
        %v4829 = vadd.f32 %v4828, 0.00028619796
        %v4830 = vmul.f32 %v4827, %v4829
        %v4831 = vadd.f32 %v4830, 0.0036580483
        %v4832 = vmul.f32 %v4827, %v4831
        %v4833 = vadd.f32 %v4832, 0.05243302
        %v4834 = vmul.f32 %v4827, %v4833
        %v4835 = vadd.f32 %v4834, 0.18741608
        %v4836 = vmul.f32 %v4827, %v4835
        %v4837 = vadd.f32 %v4836, 1.1283791
        %v4838 = vmul.f32 %v4825, %v4837
        %v4839 = vmul.f32 %v4827, 3.8918573e-05
        %v4840 = vadd.f32 %v4839, 0.001143296
        %v4841 = vmul.f32 %v4827, %v4840
        %v4842 = vadd.f32 %v4841, 0.014752088
        %v4843 = vmul.f32 %v4827, %v4842
        %v4844 = vadd.f32 %v4843, 0.112945676
        %v4845 = vmul.f32 %v4827, %v4844
        %v4846 = vadd.f32 %v4845, 0.4994258
        %v4847 = vmul.f32 %v4827, %v4846
        %v4848 = vadd.f32 %v4847, 1.0
        %v4849 = vrcp.pop %v4848
        %v4850 = vmul.f32 %v4848, %v4849
        %v4851 = vsub.f32 1.0, %v4850
        %v4852 = vmul.f32 %v4849, %v4851
        %v4853 = vadd.f32 %v4849, %v4852
        %vm4854 = vweird.f32 %v4848
        %vm4855 = vweird.f32 %v4849
        %vm4856 = vmor %vm4854, %vm4855
        %v4857 = vsel %vm4856, %v4849, %v4853
        %v4858 = vand.u32 2147483647, %v4848
        %vm4859 = vcmp.eq.f32.partialorder %v4858, 8.507059e+37
        %v4860 = vand.u32 %v4848, 2147483648
        %v4861 = vor.u32 1.1754944e-38, %v4860
        %v4862 = vsel %vm4859, %v4861, %v4857
        %v4863 = vmul.f32 %v4838, %v4862
        %v4864 = vmin.f32 %v4863, 1.0
        %v4865 = vmax.f32 %v4864, -1.0
        %v4866 = vadd.f32 %v4865, 1.0
        %v4867 = vmul.f32 %v4824, %v4866
        %v4868 = vld [vmem:[%s117] sm:$0xff]
        %v4869 = vld [vmem:[%s117 + $0x8] sm:$0xff]
        %v4870 = vld [vmem:[%s117 + $0x10] sm:$0xff]
        %v4871 = vld [vmem:[%s117 + $0x18] sm:$0xff]
        %v4872 = vld [vmem:[%s117 + $0x20] sm:$0xff]
        %v4873 = vld [vmem:[%s117 + $0x28] sm:$0xff]
        %v4874 = vld [vmem:[%s117 + $0x30] sm:$0xff]
        %v4875 = vld [vmem:[%s117 + $0x38] sm:$0xff]
        %v4876 = vld [vmem:[%s117 + $0x40] sm:$0xff]
        %v4877 = vld [vmem:[%s117 + $0x48] sm:$0xff]
        %v4878 = vld [vmem:[%s117 + $0x50] sm:$0xff]
        %v4879 = vld [vmem:[%s117 + $0x58] sm:$0xff]
        %v4880 = vld [vmem:[%s117 + $0x60] sm:$0xff]
        %v4881 = vld [vmem:[%s117 + $0x68] sm:$0xff]
        %v4882 = vld [vmem:[%s117 + $0x70] sm:$0xff]
        %v4883 = vld [vmem:[%s117 + $0x78] sm:$0xff]
        %v4884 = vld [vmem:[%s103] sm:$0x1]
        %v4886 = vperm.slane %v4884, 0
        %4888 = vmatpush.msra.mxu0 %v4883
        %4889 = vmatpush.msra.mxu0 %v4882
        %4890 = vmatpush.msra.mxu0 %v4881
        %4891 = vmatpush.msra.mxu0 %v4880
        %4892 = vmatpush.msra.mxu0 %v4879
        %4893 = vmatpush.msra.mxu0 %v4878
        %4894 = vmatpush.msra.mxu0 %v4877
        %4895 = vmatpush.msra.mxu0 %v4876
        %4896 = vmatpush.msra.mxu0 %v4875
        %4897 = vmatpush.msra.mxu0 %v4874
        %4898 = vmatpush.msra.mxu0 %v4873
        %4899 = vmatpush.msra.mxu0 %v4872
        %4900 = vmatpush.msra.mxu0 %v4871
        %4901 = vmatpush.msra.mxu0 %v4870
        %4902 = vmatpush.msra.mxu0 %v4869
        %4903 = vmatpush.msra.mxu0 %v4868
        %4904 = vmatmul.f32.gmra.mxu0 %v4867
        %v4905 = vpop.f32.mrf.mxu0
        %v4906 = vadd.f32 %v4886, %v4905
        %4907 = vdwg.mxu0
        %v4908 = vadd.f32 %v4760, %v4906
        %v4909 = vld [vmem:[#allocation5] sm:$0x1]
        %v4910 = vld [vmem:[#allocation2] sm:$0x1]
        %v4911 = vsel %vm2033, %v4908, 0.0
        %4912 = vadd.xlane.f32.xlu0 %v4911
        %v4913 = vpop.xlane.xlu0 %4912
        %v4914 = vmul.f32 %v4913, %v2049
        %v4915 = vsub.f32 %v4908, %v4914
        %v4916 = vmul.f32 %v4915, %v4915
        %v4917 = vsel %vm2033, %v4916, 0.0
        %4918 = vadd.xlane.f32.xlu0 %v4917
        %v4919 = vpop.xlane.xlu0 %4918
        %v4920 = vmul.f32 %v4919, %v2049
        %v4921 = vadd.f32 %v4920, 1e-05
        %v4922 = vrsqrt.pop %v4921
        %v4923 = vmul.f32 %v4922, %v4921
        %v4924 = vmul.f32 %v4923, %v4922
        %v4925 = vmul.f32 0.5, %v4924
        %v4926 = vsub.f32 1.5, %v4925
        %v4927 = vmul.f32 %v4922, %v4926
        %vm4928 = vweird.f32 %v4921
        %vm4929 = vweird.f32 %v4922
        %vm4930 = vmor %vm4928, %vm4929
        %v4931 = vsel %vm4930, %v4922, %v4927
        %v4932 = vmul.f32 %v4915, %v4931
        %v4934 = vperm.slane %v4909, 0
        %v4936 = vmul.f32 %v4932, %v4934
        %v4938 = vperm.slane %v4910, 0
        %v4940 = vadd.f32 %v4936, %v4938
        %v4941 = vld [vmem:[%s9] sm:$0x1]
        %v4942 = vld [vmem:[%s7] sm:$0x1]
        %vm4943 = vcmask 253952
        %v4944 = vsel %vm4943, %v4940, 0.0
        %4945 = vadd.xlane.f32.xlu0 %v4944
        %v4946 = vpop.xlane.xlu0 %4945
        %v4947 = vmul.f32 %v4946, %v2049
        %v4948 = vsub.f32 %v4940, %v4947
        %v4949 = vmul.f32 %v4948, %v4948
        %v4950 = vsel %vm4943, %v4949, 0.0
        %4951 = vadd.xlane.f32.xlu0 %v4950
        %v4952 = vpop.xlane.xlu0 %4951
        %v4953 = vmul.f32 %v4952, %v2049
        %v4954 = vadd.f32 %v4953, 1e-05
        %v4955 = vrsqrt.pop %v4954
        %v4956 = vmul.f32 %v4955, %v4954
        %v4957 = vmul.f32 %v4956, %v4955
        %v4958 = vmul.f32 0.5, %v4957
        %v4959 = vsub.f32 1.5, %v4958
        %v4960 = vmul.f32 %v4955, %v4959
        %vm4961 = vweird.f32 %v4954
        %vm4962 = vweird.f32 %v4955
        %vm4963 = vmor %vm4961, %vm4962
        %v4964 = vsel %vm4963, %v4955, %v4960
        %v4965 = vmul.f32 %v4948, %v4964
        %v4966 = vmul.f32 %v4965, %v4941
        %v4967 = vadd.f32 %v4966, %v4942
        %v4968 = vld [vmem:[%s11] sm:$0xff]
        %v4969 = vld [vmem:[%s11 + $0x8] sm:$0xff]
        %v4970 = vld [vmem:[%s11 + $0x10] sm:$0xff]
        %v4971 = vld [vmem:[%s11 + $0x18] sm:$0xff]
        %v4972 = vld [vmem:[%s5] sm:$0x1]
        %v4974 = vsel %vm2033, %v4967, 0
        %4976 = vmatpush.msra.mxu0 0.0
        %4977 = vmatpush.msra.mxu0 0.0
        %4978 = vmatpush.msra.mxu0 0.0
        %4979 = vmatpush.msra.mxu0 0.0
        %4980 = vmatpush.msra.mxu0 0.0
        %4981 = vmatpush.msra.mxu0 0.0
        %4982 = vmatpush.msra.mxu0 0.0
        %4983 = vmatpush.msra.mxu0 0.0
        %4984 = vmatpush.msra.mxu0 0.0
        %4985 = vmatpush.msra.mxu0 0.0
        %4986 = vmatpush.msra.mxu0 0.0
        %4987 = vmatpush.msra.mxu0 0.0
        %4988 = vmatpush.msra.mxu0 %v4971
        %4989 = vmatpush.msra.mxu0 %v4970
        %4990 = vmatpush.msra.mxu0 %v4969
        %4991 = vmatpush.msra.mxu0 %v4968
        %4992 = vmatmul.f32.gmra.mxu0 %v4974
        %v4993 = vpop.f32.mrf.mxu0
        %v4994 = vadd.f32 %v4972, %v4993
        %4995 = vdwg.mxu0
        %4996 = vst [vmem:[%s1974] sm:$0x1] %v4994
        %s4997 = sand.u32 %s1548, 1
        %s4998 = scalar_lea.sflag [#allocation4], %s4997
        %s4999 = sand.u32 %s1548, 1
        %s5000 = scalar_lea.vmem [#allocation8], %s4999
        // Predicated region
        $region297: #{vivit_forward_pallas.1} parent=283 // pred_check
          %p5001 = pneg %p1558
        $region298: #{vivit_forward_pallas.1} parent=283 // pred_check_branch
          %5003 = sbr.rel (%p5001) target = $region300
        $region299: #{vivit_forward_pallas.1} parent=283 // pred_region
          %5005 = vsyncadd %s4998, 0
          %s5006 = scalar_lea.hbm %s133, %s149
          %s5008 = sshll.u32 %s5000, 4
          %s5009 = int_to_ptr.vmem [resolvable:$true] %s5008
          %s5010 = sshll.u32 %s5006, 4
          %s5011 = int_to_ptr.hbm [resolvable:$true] %s5010
          %5013 = dma.vmem_to_hbm [thread:$0]  %s5009, 16, %s5011, %s4998
        $region300: #{vivit_forward_pallas.1} parent=283 // pred_fallthru
          _
      $region284: #{vivit_forward_pallas.1} parent=5 // pred_fallthru
        _
      %p5014 = scmp.le.s32.totalorder 2, %s144
      // Predicated region
      $region301: #{vivit_forward_pallas.1} parent=5 // pred_check
        %p5015 = pneg %p5014
      $region302: #{vivit_forward_pallas.1} parent=5 // pred_check_branch
        %5017 = sbr.rel (%p5015) target = $region304
      $region303: #{vivit_forward_pallas.1} parent=5 // pred_region
        %s5018 = ssub.s32 %s144, 2
        // Predicated region
        $region305: #{vivit_forward_pallas.1} parent=303 // pred_check
          %p5019 = pneg %p1564
        $region306: #{vivit_forward_pallas.1} parent=303 // pred_check_branch
          %5021 = sbr.rel (%p5019) target = $region308
        $region307: #{vivit_forward_pallas.1} parent=303 // pred_region
          %s5022 = sand.u32 %s1549, 1
          %s5023 = scalar_lea.sflag [#allocation4], %s5022
          %s5024 = sand.u32 %s1549, 1
          %s5025 = scalar_lea.vmem [#allocation8], %s5024
          %5027 = dma.done %s5023, 16
        $region308: #{vivit_forward_pallas.1} parent=303 // pred_fallthru
          _
      $region304: #{vivit_forward_pallas.1} parent=5 // pred_fallthru
        _
    $region6: #{vivit_forward_pallas.1} parent=1 // loop_footer
      %s148 = sadd.s32 1, %s144
    $region7: #{vivit_forward_pallas.1} parent=1 // loop_footer_branch
      %143 = sbr.rel target = $region3
    $region8: #{vivit_forward_pallas.1} parent=1 // loop_exit
      _
    %5028 = vsyncpa [#allocation3], 1
    %s5029 = scalar_lea.sflag [#allocation3], 1
    %5030 = vsyncpa %s5029, 1
    %5031 = vsyncpa [#allocation6], 1
    %5032 = vsyncpa [#allocation4], 1
    %s5033 = scalar_lea.sflag [#allocation4], 1
    %5034 = vsyncpa %s5033, 1

</llo_original>
